<compile_context>
chip_gen: v7x
topology: tpu7x:2x2x1
jax: 0.10.0
libtpu: 0.0.40
codegen_flags: <defaults>
</compile_context>

<pallas_src>
import functools

import jax
import jax.numpy as jnp
from jax import lax
from jax.experimental import pallas as pl
from jax.experimental.pallas import tpu as pltpu

# ----------------------------- configuration ------------------------------
DIM      = 16    # channels ("dim")
D_STATE  = 16    # == DIM  (required by the A_bar broadcast)
D_CONV   = 4
EXPAND   = 1     # -> d_inner == DIM (required by self.B / self.C / D * x_proj)
D_INNER  = int(EXPAND * DIM)
NPOINTS  = 16    # == DIM  (required by the residual add)
BATCH    = 1     # required by the batched matmul broadcast inside the scan
LN_EPS   = 1e-5

# packed parameter slab: 16-row blocks, every row is DIM == 16 lanes wide
_R_A     = 0 * DIM    # A                     [DIM, D_STATE]   (natural layout)
_R_WIN   = 1 * DIM    # proj_in.weight        [D_INNER, DIM]
_R_WB    = 2 * DIM    # B.weight              [D_STATE, D_INNER]
_R_WC    = 3 * DIM    # C.weight              [D_STATE, D_INNER]
_R_WOUT  = 4 * DIM    # proj_out.weight       [DIM, D_INNER]
_R_WOUTD = 5 * DIM    # proj_out.weight * D   [DIM, D_INNER]   (precomputed)
_R_CONV  = 6 * DIM    # conv.weight[:, 0, :]  [DIM, D_CONV] zero-padded to 16 lanes
_R_COLS  = 7 * DIM    # column-vector params: b_in | b_out | gamma | beta
_R_EYE   = 8 * DIM    # identity matrix (exact MXU transpose of the residual)
_P_ROWS  = 9 * DIM    # 144 rows (multiple of 8)

_C_BIN, _C_BOUT, _C_GAMMA, _C_BETA = 0, 1, 2, 3


def _mm(a, b, dims):
    """2-D dot_general (standard / NT forms only), exact-f32 accumulation.

    HIGHEST is intentional: the exponentially growing hidden state of this
    block amplifies low-precision matmul error far beyond the 1e-3 check.
    """
    return lax.dot_general(a, b, dimension_numbers=(dims, ((), ())),
                           precision=lax.Precision.HIGHEST,
                           preferred_element_type=jnp.float32)


def _tree_sum(vals):
    """Pairwise (depth ~log2 n) f32 add tree: short critical path, exact f32."""
    while len(vals) > 1:
        nxt = [a + b for a, b in zip(vals[0::2], vals[1::2])]
        if len(vals) % 2:
            nxt.append(vals[-1])
        vals = nxt
    return vals[0]


# ------------------------------- the kernel --------------------------------
def ssm_block_kernel(
    x_ref,       # [DIM, NPOINTS]  input, channel-major (== x[0], raw layout)
    params_ref,  # [_P_ROWS, DIM]  packed parameter slab
    out_ref,     # [DIM, NPOINTS]  output, channel-major (PyTorch return layout)
):
    x_cm = x_ref[...]                                     # [DIM, N]

    # ---- parameter unpack: aligned 16-row block loads, in-vreg slices ------
    a_nat   = params_ref[pl.ds(_R_A,     DIM), :]         # A          [d, s]
    w_in    = params_ref[pl.ds(_R_WIN,   D_INNER), :]
    w_b     = params_ref[pl.ds(_R_WB,    D_STATE), :]
    w_c     = params_ref[pl.ds(_R_WC,    D_STATE), :]
    w_out   = params_ref[pl.ds(_R_WOUT,  DIM), :]
    w_out_d = params_ref[pl.ds(_R_WOUTD, DIM), :]         # w_out[d, j] * D[j]
    w_conv  = params_ref[pl.ds(_R_CONV,  DIM), :]         # cols 0..3 valid
    cols    = params_ref[pl.ds(_R_COLS,  DIM), :]
    eye     = params_ref[pl.ds(_R_EYE,   DIM), :]
    b_in_c  = cols[:, _C_BIN:_C_BIN + 1]                  # [16, 1] column params
    b_out_c = cols[:, _C_BOUT:_C_BOUT + 1]
    gamma_c = cols[:, _C_GAMMA:_C_GAMMA + 1]
    beta_c  = cols[:, _C_BETA:_C_BETA + 1]

    # ---- exact residual transpose (identity NT matmul), issued early so its
    #      MXU latency hides under the conv / projection work ----------------
    x_res_t = _mm(eye, x_cm, ((1,), (1,)))                # x_res_t[d, n] = x_cm[n, d]

    # ---- causal depthwise conv1d, channel-major, fully vreg-resident -------
    # conv[c, t] = sum_k w[c, k] * x[c, t + k - (K-1)]   (zero-padded on the left)
    xpad = jnp.concatenate(
        [jnp.zeros((DIM, D_CONV - 1), jnp.float32), x_cm], axis=1)   # [DIM, N+3]
    conv = w_conv[:, 0:1] * xpad[:, 0:NPOINTS]
    for k in range(1, D_CONV):                            # K is tiny, unroll
        conv = conv + w_conv[:, k:k + 1] * xpad[:, k:k + NPOINTS]
    conv = conv * jax.nn.sigmoid(conv)                    # SiLU, [DIM, N]

    # ---- proj_in / B / C / delta, emitted directly in [feature, point] -----
    x_projt = _mm(w_in, conv, ((1,), (0,))) + b_in_c      # x_proj^T   [D_INNER, N]
    delta_t = jax.nn.sigmoid(x_projt[:D_STATE, :])        # delta^T    [D_STATE, N]
    bbar_t  = _mm(w_b, x_projt, ((1,), (0,))) * delta_t   # B_bar^T    [D_STATE, N]
    cmat_t  = _mm(w_c, x_projt, ((1,), (0,)))             # C^T        [D_STATE, N]
    a_neg   = -jnp.exp(a_nat)                             # -exp(A)    [DIM, D_STATE]

    # ---- sequential scan: h kept transposed [D_STATE(r), DIM(j)], updated
    #      with exact-f32 rank-1 VPU FMAs; no MXU on the recurrence path ------
    #   h_t_new[r, j] = sum_c A_bar_i[r, c] * h_t[c, j] + B_bar_i[r]
    #   A_bar_i[r, c] = exp(-exp(A[r, c]) * delta[i, r])   (delta-only -> off path)
    h_t = jnp.broadcast_to(bbar_t[:, 0:1], (D_STATE, DIM))          # step 0: h == 0
    rows = [jnp.sum(cmat_t[:, 0:1] * h_t, axis=0, keepdims=True)]   # y_0 [1, DIM]
    for i in range(1, NPOINTS):                           # static unroll
        a_bar = jnp.exp(a_neg * delta_t[:, i:i + 1])      # [r, c], just-in-time
        terms = [a_bar[:, c:c + 1] * h_t[c:c + 1, :] for c in range(D_STATE)]
        h_t = _tree_sum(terms) + bbar_t[:, i:i + 1]
        rows.append(jnp.sum(cmat_t[:, i:i + 1] * h_t, axis=0, keepdims=True))
    y_ssm = jnp.concatenate(rows, axis=0)                 # [N, D_INNER]

    # ---- proj_out (D*x_proj folded into a pre-scaled weight), residual, LN --
    # x_out^T[d, n] = sum_j w_out[d,j]*y_ssm[n,j] + sum_j w_out[d,j]*D[j]*x_proj[n,j] + b_out[d]
    x_out_t = (_mm(w_out, y_ssm, ((1,), (1,)))
               + _mm(w_out_d, x_projt, ((1,), (0,)))
               + b_out_c)                                 # [DIM, N]
    # PyTorch adds the *untransposed* [B, DIM, N] residual onto the [B, N, DIM]
    # activations; in this channel-major layout that is x_out^T + x_cm^T.
    z = x_out_t + x_res_t
    # LayerNorm over the channel axis (sublanes in this layout).
    mean = jnp.mean(z, axis=0, keepdims=True)
    var = jnp.mean((z - mean) ** 2, axis=0, keepdims=True)
    z_hat = (z - mean) / jnp.sqrt(var + LN_EPS)
    out_ref[...] = z_hat * gamma_c + beta_c               # channel-major output


# ------------------------------ wrapper -------------------------------------
def pack_params(p):
    """Pack all parameters into one [144, 16] f32 slab (call ONCE at init)."""
    f32 = lambda a: jnp.asarray(a, jnp.float32)
    conv_blk = jnp.zeros((DIM, DIM), jnp.float32).at[:, :D_CONV].set(f32(p["conv_w"]))
    cols = jnp.zeros((DIM, DIM), jnp.float32)
    cols = cols.at[:, _C_BIN].set(f32(p["b_in"]))
    cols = cols.at[:, _C_BOUT].set(f32(p["b_out"]))
    cols = cols.at[:, _C_GAMMA].set(f32(p["gamma"]))
    cols = cols.at[:, _C_BETA].set(f32(p["beta"]))
    w_out = f32(p["w_out"])
    blocks = [
        f32(p["A"]), f32(p["w_in"]), f32(p["w_b"]), f32(p["w_c"]), w_out,
        w_out * f32(p["D"])[None, :],            # proj_out.weight pre-scaled by D
        conv_blk, cols, jnp.eye(DIM, dtype=jnp.float32),
    ]
    slab = jnp.concatenate(blocks, axis=0)
    assert slab.shape == (_P_ROWS, DIM)
    return slab


@jax.jit
def ssm_block_forward(x, slab):
    """x: [1, DIM, NPOINTS] f32, slab: pre-packed [144, 16] f32 parameter slab.

    Returns [1, DIM, NPOINTS] f32 (PyTorch layout).  The only wrapper-side ops
    are the free x[0] / y[None] reshapes; all compute is inside the kernel.
    """
    assert x.shape == (BATCH, DIM, NPOINTS) and BATCH == 1
    vmem = lambda: pl.BlockSpec(memory_space=pltpu.MemorySpace.VMEM)
    y = pl.pallas_call(
        ssm_block_kernel,
        out_shape=jax.ShapeDtypeStruct((DIM, NPOINTS), jnp.float32),
        in_specs=[vmem(), vmem()],
        out_specs=vmem(),
        cost_estimate=pl.CostEstimate(
            flops=200_000, transcendentals=5_000, bytes_accessed=11_500),
    )(x[0], slab)
    return y[None]                                        # -> [1, DIM, N]


# ----------------------- deterministic parameter init -----------------------
def init_params(key):
    ks = jax.random.split(key, 8)
    rn = lambda k, shape, s: (s * jax.random.normal(k, shape)).astype(jnp.float32)
    return dict(
        conv_w=rn(ks[0], (DIM, D_CONV), 1.0 / (D_CONV ** 0.5)),  # conv.weight[:,0,:]
        A=rn(ks[1], (DIM, D_STATE), 1.0),                        # torch.randn
        D=rn(ks[2], (DIM,), 1.0),                                # torch.randn
        w_b=rn(ks[3], (D_STATE, DIM), 1.0 / (DIM ** 0.5)),
        w_c=rn(ks[4], (D_STATE, DIM), 1.0 / (DIM ** 0.5)),
        w_in=rn(ks[5], (D_INNER, DIM), 1.0 / (DIM ** 0.5)),
        b_in=jnp.zeros((D_INNER,), jnp.float32),
        w_out=rn(ks[6], (DIM, D_INNER), 1.0 / (D_INNER ** 0.5)),
        b_out=rn(ks[7], (DIM,), 0.05),
        gamma=jnp.ones((DIM,), jnp.float32),                     # LayerNorm default
        beta=jnp.zeros((DIM,), jnp.float32),
    )


# --------------- literal JAX transcription of the torch forward -------------
def torch_style_reference(x, p):
    mm = functools.partial(jnp.matmul, precision=lax.Precision.HIGHEST)
    residual = x                                       # [1, DIM, N]
    xt = jnp.swapaxes(x, 1, 2)                         # [1, N, DIM]
    k_size, n = D_CONV, xt.shape[1]
    xpad = jnp.pad(x, ((0, 0), (0, 0), (k_size - 1, k_size - 1)))
    out_len = n + k_size - 1
    conv = jnp.zeros((x.shape[0], DIM, out_len), jnp.float32)
    for k in range(k_size):                            # depthwise conv1d
        conv = conv + p["conv_w"][None, :, k:k + 1] * xpad[:, :, k:k + out_len]
    conv = conv[..., :n]
    xconv = jax.nn.silu(jnp.swapaxes(conv, 1, 2))      # [1, N, DIM]
    x_proj = mm(xconv, p["w_in"].T) + p["b_in"]        # [1, N, D_INNER]
    A = -jnp.exp(p["A"])
    Bm = mm(x_proj, p["w_b"].T)
    Cm = mm(x_proj, p["w_c"].T)
    D = p["D"]
    delta = jax.nn.sigmoid(x_proj[..., :D_STATE])
    A_bar = jnp.exp(A[None, None] * delta[..., None])  # [1, N, DIM, D_STATE]
    B_bar = Bm[..., None] * delta[..., None]           # [1, N, D_STATE, 1]
    h = jnp.zeros((x.shape[0], DIM, D_STATE), jnp.float32)
    outs = []
    for i in range(n):
        h = (jnp.squeeze(mm(A_bar[:, i], h[..., None]), -1)
             + jnp.squeeze(B_bar[:, i], -1))
        y_i = jnp.squeeze(mm(h, Cm[:, i][..., None]), -1) + D * x_proj[:, i]
        outs.append(y_i)
    x_ssm = jnp.stack(outs, axis=1)                    # [1, N, DIM]
    x_out = mm(x_ssm, p["w_out"].T) + p["b_out"]
    z = x_out + residual                               # residual added untransposed
    mean = jnp.mean(z, axis=-1, keepdims=True)
    var = jnp.mean((z - mean) ** 2, axis=-1, keepdims=True)
    zn = (z - mean) / jnp.sqrt(var + LN_EPS) * p["gamma"] + p["beta"]
    return jnp.swapaxes(zn, 1, 2)                      # [1, DIM, N]


# --------------------------------- main --------------------------------------
if __name__ == "__main__":
    key = jax.random.PRNGKey(0)
    pkey, xkey = jax.random.split(key)
    params = init_params(pkey)
    slab = jax.block_until_ready(pack_params(params))   # packed ONCE, outside the forward
    x = jax.random.normal(xkey, (BATCH, DIM, NPOINTS), dtype=jnp.float32)

    out = jax.block_until_ready(ssm_block_forward(x, slab))
    ref = jax.block_until_ready(torch_style_reference(x, params))

    assert out.shape == (BATCH, DIM, NPOINTS), out.shape
    if not bool(jnp.allclose(out, ref, atol=1e-3, rtol=1e-3)):
        max_err = float(jnp.max(jnp.abs(out - ref)))
        raise AssertionError(f"Pallas kernel mismatch vs reference, max abs err={max_err}")
    print("KERNEL_OK")
</pallas_src>

<mosaic_0001>
module attributes {stable_mosaic.version = 11 : i64} {
  func.func @ssm_block_kernel(%arg0: memref<16x16xf32, #tpu.memory_space<vmem>>, %arg1: memref<144x16xf32, #tpu.memory_space<vmem>>, %arg2: memref<16x16xf32, #tpu.memory_space<vmem>>) attributes {dimension_semantics = [], scalar_prefetch = 0 : i64, scratch_operands = 0 : i64, tpu.core_type = #tpu.core_type<tc>} {
    %c0 = arith.constant 0 : index
    %c0_0 = arith.constant 0 : index
    %0 = vector.load %arg0[%c0, %c0_0] : memref<16x16xf32, #tpu.memory_space<vmem>>, vector<16x16xf32>
    %c0_1 = arith.constant 0 : index
    %c0_2 = arith.constant 0 : index
    %1 = vector.load %arg1[%c0_1, %c0_2] : memref<144x16xf32, #tpu.memory_space<vmem>>, vector<16x16xf32>
    %c16 = arith.constant 16 : index
    %c0_3 = arith.constant 0 : index
    %2 = vector.load %arg1[%c16, %c0_3] : memref<144x16xf32, #tpu.memory_space<vmem>>, vector<16x16xf32>
    %c32 = arith.constant 32 : index
    %c0_4 = arith.constant 0 : index
    %3 = vector.load %arg1[%c32, %c0_4] : memref<144x16xf32, #tpu.memory_space<vmem>>, vector<16x16xf32>
    %c48 = arith.constant 48 : index
    %c0_5 = arith.constant 0 : index
    %4 = vector.load %arg1[%c48, %c0_5] : memref<144x16xf32, #tpu.memory_space<vmem>>, vector<16x16xf32>
    %c64 = arith.constant 64 : index
    %c0_6 = arith.constant 0 : index
    %5 = vector.load %arg1[%c64, %c0_6] : memref<144x16xf32, #tpu.memory_space<vmem>>, vector<16x16xf32>
    %c80 = arith.constant 80 : index
    %c0_7 = arith.constant 0 : index
    %6 = vector.load %arg1[%c80, %c0_7] : memref<144x16xf32, #tpu.memory_space<vmem>>, vector<16x16xf32>
    %c96 = arith.constant 96 : index
    %c0_8 = arith.constant 0 : index
    %7 = vector.load %arg1[%c96, %c0_8] : memref<144x16xf32, #tpu.memory_space<vmem>>, vector<16x16xf32>
    %c112 = arith.constant 112 : index
    %c0_9 = arith.constant 0 : index
    %8 = vector.load %arg1[%c112, %c0_9] : memref<144x16xf32, #tpu.memory_space<vmem>>, vector<16x16xf32>
    %c128 = arith.constant 128 : index
    %c0_10 = arith.constant 0 : index
    %9 = vector.load %arg1[%c128, %c0_10] : memref<144x16xf32, #tpu.memory_space<vmem>>, vector<16x16xf32>
    %10 = vector.extract_strided_slice %8 {offsets = [0, 0], sizes = [16, 1], strides = [1, 1]} : vector<16x16xf32> to vector<16x1xf32>
    %11 = vector.extract_strided_slice %8 {offsets = [0, 1], sizes = [16, 1], strides = [1, 1]} : vector<16x16xf32> to vector<16x1xf32>
    %12 = vector.extract_strided_slice %8 {offsets = [0, 2], sizes = [16, 1], strides = [1, 1]} : vector<16x16xf32> to vector<16x1xf32>
    %13 = vector.extract_strided_slice %8 {offsets = [0, 3], sizes = [16, 1], strides = [1, 1]} : vector<16x16xf32> to vector<16x1xf32>
    %cst = arith.constant dense<0.000000e+00> : vector<16x16xf32>
    %14 = tpu.matmul %9, %0, %cst {dimension_numbers = #tpu.dot_dimension_numbers<[1], [1], [0], [0], [0, 0, 1, 0], [], []>, precision = #tpu.contract_precision<fp32>} : vector<16x16xf32>, vector<16x16xf32>, vector<16x16xf32> -> vector<16x16xf32>
    %cst_11 = arith.constant 0.000000e+00 : f32
    %15 = vector.broadcast %cst_11 : f32 to vector<16x3xf32>
    %16 = tpu.concatenate %15, %0 in 1 : vector<16x3xf32>, vector<16x16xf32> -> vector<16x19xf32>
    %17 = vector.extract_strided_slice %7 {offsets = [0, 0], sizes = [16, 1], strides = [1, 1]} : vector<16x16xf32> to vector<16x1xf32>
    %18 = vector.extract_strided_slice %16 {offsets = [0, 0], sizes = [16, 16], strides = [1, 1]} : vector<16x19xf32> to vector<16x16xf32>
    %19 = vector.broadcast %17 : vector<16x1xf32> to vector<16x16xf32>
    %20 = arith.mulf %19, %18 : vector<16x16xf32>
    %21 = vector.extract_strided_slice %7 {offsets = [0, 1], sizes = [16, 1], strides = [1, 1]} : vector<16x16xf32> to vector<16x1xf32>
    %22 = vector.extract_strided_slice %16 {offsets = [0, 1], sizes = [16, 16], strides = [1, 1]} : vector<16x19xf32> to vector<16x16xf32>
    %23 = vector.broadcast %21 : vector<16x1xf32> to vector<16x16xf32>
    %24 = arith.mulf %23, %22 : vector<16x16xf32>
    %25 = arith.addf %20, %24 : vector<16x16xf32>
    %26 = vector.extract_strided_slice %7 {offsets = [0, 2], sizes = [16, 1], strides = [1, 1]} : vector<16x16xf32> to vector<16x1xf32>
    %27 = vector.extract_strided_slice %16 {offsets = [0, 2], sizes = [16, 16], strides = [1, 1]} : vector<16x19xf32> to vector<16x16xf32>
    %28 = vector.broadcast %26 : vector<16x1xf32> to vector<16x16xf32>
    %29 = arith.mulf %28, %27 : vector<16x16xf32>
    %30 = arith.addf %25, %29 : vector<16x16xf32>
    %31 = vector.extract_strided_slice %7 {offsets = [0, 3], sizes = [16, 1], strides = [1, 1]} : vector<16x16xf32> to vector<16x1xf32>
    %32 = vector.extract_strided_slice %16 {offsets = [0, 3], sizes = [16, 16], strides = [1, 1]} : vector<16x19xf32> to vector<16x16xf32>
    %33 = vector.broadcast %31 : vector<16x1xf32> to vector<16x16xf32>
    %34 = arith.mulf %33, %32 : vector<16x16xf32>
    %35 = arith.addf %30, %34 : vector<16x16xf32>
    %36 = arith.negf %35 : vector<16x16xf32>
    %37 = math.exp %36 : vector<16x16xf32>
    %cst_12 = arith.constant 1.000000e+00 : f32
    %38 = vector.broadcast %cst_12 : f32 to vector<16x16xf32>
    %39 = arith.addf %38, %37 : vector<16x16xf32>
    %40 = arith.divf %38, %39 : vector<16x16xf32>
    %41 = arith.mulf %35, %40 : vector<16x16xf32>
    %cst_13 = arith.constant dense<0.000000e+00> : vector<16x16xf32>
    %42 = tpu.matmul %2, %41, %cst_13 {dimension_numbers = #tpu.dot_dimension_numbers<[1], [0], [0], [1], [0, 0, 1, 1], [], []>, precision = #tpu.contract_precision<fp32>} : vector<16x16xf32>, vector<16x16xf32>, vector<16x16xf32> -> vector<16x16xf32>
    %43 = vector.broadcast %10 : vector<16x1xf32> to vector<16x16xf32>
    %44 = arith.addf %42, %43 : vector<16x16xf32>
    %45 = arith.negf %44 : vector<16x16xf32>
    %46 = math.exp %45 : vector<16x16xf32>
    %cst_14 = arith.constant 1.000000e+00 : f32
    %47 = vector.broadcast %cst_14 : f32 to vector<16x16xf32>
    %48 = arith.addf %47, %46 : vector<16x16xf32>
    %49 = arith.divf %47, %48 : vector<16x16xf32>
    %cst_15 = arith.constant dense<0.000000e+00> : vector<16x16xf32>
    %50 = tpu.matmul %3, %44, %cst_15 {dimension_numbers = #tpu.dot_dimension_numbers<[1], [0], [0], [1], [0, 0, 1, 1], [], []>, precision = #tpu.contract_precision<fp32>} : vector<16x16xf32>, vector<16x16xf32>, vector<16x16xf32> -> vector<16x16xf32>
    %51 = arith.mulf %50, %49 : vector<16x16xf32>
    %cst_16 = arith.constant dense<0.000000e+00> : vector<16x16xf32>
    %52 = tpu.matmul %4, %44, %cst_16 {dimension_numbers = #tpu.dot_dimension_numbers<[1], [0], [0], [1], [0, 0, 1, 1], [], []>, precision = #tpu.contract_precision<fp32>} : vector<16x16xf32>, vector<16x16xf32>, vector<16x16xf32> -> vector<16x16xf32>
    %53 = math.exp %1 : vector<16x16xf32>
    %cst_17 = arith.constant 0.000000e+00 : f32
    %54 = vector.broadcast %cst_17 : f32 to vector<16x16xf32>
    %55 = arith.subf %54, %53 : vector<16x16xf32>
    %56 = vector.extract_strided_slice %51 {offsets = [0, 0], sizes = [16, 1], strides = [1, 1]} : vector<16x16xf32> to vector<16x1xf32>
    %57 = vector.shape_cast %56 : vector<16x1xf32> to vector<16x1xf32>
    %58 = vector.broadcast %57 : vector<16x1xf32> to vector<16x16xf32>
    %59 = vector.extract_strided_slice %52 {offsets = [0, 0], sizes = [16, 1], strides = [1, 1]} : vector<16x16xf32> to vector<16x1xf32>
    %60 = vector.broadcast %59 : vector<16x1xf32> to vector<16x16xf32>
    %61 = arith.mulf %60, %58 : vector<16x16xf32>
    %cst_18 = arith.constant dense<0.000000e+00> : vector<16xf32>
    %62 = vector.multi_reduction <add>, %61, %cst_18 [0] : vector<16x16xf32> to vector<16xf32>
    %63 = vector.shape_cast %62 : vector<16xf32> to vector<1x16xf32>
    %64 = vector.extract_strided_slice %49 {offsets = [0, 1], sizes = [16, 1], strides = [1, 1]} : vector<16x16xf32> to vector<16x1xf32>
    %65 = vector.broadcast %64 : vector<16x1xf32> to vector<16x16xf32>
    %66 = arith.mulf %55, %65 : vector<16x16xf32>
    %67 = math.exp %66 : vector<16x16xf32>
    %68 = vector.extract_strided_slice %67 {offsets = [0, 0], sizes = [16, 1], strides = [1, 1]} : vector<16x16xf32> to vector<16x1xf32>
    %69 = vector.extract_strided_slice %58 {offsets = [0, 0], sizes = [1, 16], strides = [1, 1]} : vector<16x16xf32> to vector<1x16xf32>
    %70 = vector.broadcast %68 : vector<16x1xf32> to vector<16x16xf32>
    %71 = vector.broadcast %69 : vector<1x16xf32> to vector<16x16xf32>
    %72 = arith.mulf %70, %71 : vector<16x16xf32>
    %73 = vector.extract_strided_slice %67 {offsets = [0, 1], sizes = [16, 1], strides = [1, 1]} : vector<16x16xf32> to vector<16x1xf32>
    %74 = vector.extract_strided_slice %58 {offsets = [1, 0], sizes = [1, 16], strides = [1, 1]} : vector<16x16xf32> to vector<1x16xf32>
    %75 = vector.broadcast %73 : vector<16x1xf32> to vector<16x16xf32>
    %76 = vector.broadcast %74 : vector<1x16xf32> to vector<16x16xf32>
    %77 = arith.mulf %75, %76 : vector<16x16xf32>
    %78 = vector.extract_strided_slice %67 {offsets = [0, 2], sizes = [16, 1], strides = [1, 1]} : vector<16x16xf32> to vector<16x1xf32>
    %79 = vector.extract_strided_slice %58 {offsets = [2, 0], sizes = [1, 16], strides = [1, 1]} : vector<16x16xf32> to vector<1x16xf32>
    %80 = vector.broadcast %78 : vector<16x1xf32> to vector<16x16xf32>
    %81 = vector.broadcast %79 : vector<1x16xf32> to vector<16x16xf32>
    %82 = arith.mulf %80, %81 : vector<16x16xf32>
    %83 = vector.extract_strided_slice %67 {offsets = [0, 3], sizes = [16, 1], strides = [1, 1]} : vector<16x16xf32> to vector<16x1xf32>
    %84 = vector.extract_strided_slice %58 {offsets = [3, 0], sizes = [1, 16], strides = [1, 1]} : vector<16x16xf32> to vector<1x16xf32>
    %85 = vector.broadcast %83 : vector<16x1xf32> to vector<16x16xf32>
    %86 = vector.broadcast %84 : vector<1x16xf32> to vector<16x16xf32>
    %87 = arith.mulf %85, %86 : vector<16x16xf32>
    %88 = vector.extract_strided_slice %67 {offsets = [0, 4], sizes = [16, 1], strides = [1, 1]} : vector<16x16xf32> to vector<16x1xf32>
    %89 = vector.extract_strided_slice %58 {offsets = [4, 0], sizes = [1, 16], strides = [1, 1]} : vector<16x16xf32> to vector<1x16xf32>
    %90 = vector.broadcast %88 : vector<16x1xf32> to vector<16x16xf32>
    %91 = vector.broadcast %89 : vector<1x16xf32> to vector<16x16xf32>
    %92 = arith.mulf %90, %91 : vector<16x16xf32>
    %93 = vector.extract_strided_slice %67 {offsets = [0, 5], sizes = [16, 1], strides = [1, 1]} : vector<16x16xf32> to vector<16x1xf32>
    %94 = vector.extract_strided_slice %58 {offsets = [5, 0], sizes = [1, 16], strides = [1, 1]} : vector<16x16xf32> to vector<1x16xf32>
    %95 = vector.broadcast %93 : vector<16x1xf32> to vector<16x16xf32>
    %96 = vector.broadcast %94 : vector<1x16xf32> to vector<16x16xf32>
    %97 = arith.mulf %95, %96 : vector<16x16xf32>
    %98 = vector.extract_strided_slice %67 {offsets = [0, 6], sizes = [16, 1], strides = [1, 1]} : vector<16x16xf32> to vector<16x1xf32>
    %99 = vector.extract_strided_slice %58 {offsets = [6, 0], sizes = [1, 16], strides = [1, 1]} : vector<16x16xf32> to vector<1x16xf32>
    %100 = vector.broadcast %98 : vector<16x1xf32> to vector<16x16xf32>
    %101 = vector.broadcast %99 : vector<1x16xf32> to vector<16x16xf32>
    %102 = arith.mulf %100, %101 : vector<16x16xf32>
    %103 = vector.extract_strided_slice %67 {offsets = [0, 7], sizes = [16, 1], strides = [1, 1]} : vector<16x16xf32> to vector<16x1xf32>
    %104 = vector.extract_strided_slice %58 {offsets = [7, 0], sizes = [1, 16], strides = [1, 1]} : vector<16x16xf32> to vector<1x16xf32>
    %105 = vector.broadcast %103 : vector<16x1xf32> to vector<16x16xf32>
    %106 = vector.broadcast %104 : vector<1x16xf32> to vector<16x16xf32>
    %107 = arith.mulf %105, %106 : vector<16x16xf32>
    %108 = vector.extract_strided_slice %67 {offsets = [0, 8], sizes = [16, 1], strides = [1, 1]} : vector<16x16xf32> to vector<16x1xf32>
    %109 = vector.extract_strided_slice %58 {offsets = [8, 0], sizes = [1, 16], strides = [1, 1]} : vector<16x16xf32> to vector<1x16xf32>
    %110 = vector.broadcast %108 : vector<16x1xf32> to vector<16x16xf32>
    %111 = vector.broadcast %109 : vector<1x16xf32> to vector<16x16xf32>
    %112 = arith.mulf %110, %111 : vector<16x16xf32>
    %113 = vector.extract_strided_slice %67 {offsets = [0, 9], sizes = [16, 1], strides = [1, 1]} : vector<16x16xf32> to vector<16x1xf32>
    %114 = vector.extract_strided_slice %58 {offsets = [9, 0], sizes = [1, 16], strides = [1, 1]} : vector<16x16xf32> to vector<1x16xf32>
    %115 = vector.broadcast %113 : vector<16x1xf32> to vector<16x16xf32>
    %116 = vector.broadcast %114 : vector<1x16xf32> to vector<16x16xf32>
    %117 = arith.mulf %115, %116 : vector<16x16xf32>
    %118 = vector.extract_strided_slice %67 {offsets = [0, 10], sizes = [16, 1], strides = [1, 1]} : vector<16x16xf32> to vector<16x1xf32>
    %119 = vector.extract_strided_slice %58 {offsets = [10, 0], sizes = [1, 16], strides = [1, 1]} : vector<16x16xf32> to vector<1x16xf32>
    %120 = vector.broadcast %118 : vector<16x1xf32> to vector<16x16xf32>
    %121 = vector.broadcast %119 : vector<1x16xf32> to vector<16x16xf32>
    %122 = arith.mulf %120, %121 : vector<16x16xf32>
    %123 = vector.extract_strided_slice %67 {offsets = [0, 11], sizes = [16, 1], strides = [1, 1]} : vector<16x16xf32> to vector<16x1xf32>
    %124 = vector.extract_strided_slice %58 {offsets = [11, 0], sizes = [1, 16], strides = [1, 1]} : vector<16x16xf32> to vector<1x16xf32>
    %125 = vector.broadcast %123 : vector<16x1xf32> to vector<16x16xf32>
    %126 = vector.broadcast %124 : vector<1x16xf32> to vector<16x16xf32>
    %127 = arith.mulf %125, %126 : vector<16x16xf32>
    %128 = vector.extract_strided_slice %67 {offsets = [0, 12], sizes = [16, 1], strides = [1, 1]} : vector<16x16xf32> to vector<16x1xf32>
    %129 = vector.extract_strided_slice %58 {offsets = [12, 0], sizes = [1, 16], strides = [1, 1]} : vector<16x16xf32> to vector<1x16xf32>
    %130 = vector.broadcast %128 : vector<16x1xf32> to vector<16x16xf32>
    %131 = vector.broadcast %129 : vector<1x16xf32> to vector<16x16xf32>
    %132 = arith.mulf %130, %131 : vector<16x16xf32>
    %133 = vector.extract_strided_slice %67 {offsets = [0, 13], sizes = [16, 1], strides = [1, 1]} : vector<16x16xf32> to vector<16x1xf32>
    %134 = vector.extract_strided_slice %58 {offsets = [13, 0], sizes = [1, 16], strides = [1, 1]} : vector<16x16xf32> to vector<1x16xf32>
    %135 = vector.broadcast %133 : vector<16x1xf32> to vector<16x16xf32>
    %136 = vector.broadcast %134 : vector<1x16xf32> to vector<16x16xf32>
    %137 = arith.mulf %135, %136 : vector<16x16xf32>
    %138 = vector.extract_strided_slice %67 {offsets = [0, 14], sizes = [16, 1], strides = [1, 1]} : vector<16x16xf32> to vector<16x1xf32>
    %139 = vector.extract_strided_slice %58 {offsets = [14, 0], sizes = [1, 16], strides = [1, 1]} : vector<16x16xf32> to vector<1x16xf32>
    %140 = vector.broadcast %138 : vector<16x1xf32> to vector<16x16xf32>
    %141 = vector.broadcast %139 : vector<1x16xf32> to vector<16x16xf32>
    %142 = arith.mulf %140, %141 : vector<16x16xf32>
    %143 = vector.extract_strided_slice %67 {offsets = [0, 15], sizes = [16, 1], strides = [1, 1]} : vector<16x16xf32> to vector<16x1xf32>
    %144 = vector.extract_strided_slice %58 {offsets = [15, 0], sizes = [1, 16], strides = [1, 1]} : vector<16x16xf32> to vector<1x16xf32>
    %145 = vector.broadcast %143 : vector<16x1xf32> to vector<16x16xf32>
    %146 = vector.broadcast %144 : vector<1x16xf32> to vector<16x16xf32>
    %147 = arith.mulf %145, %146 : vector<16x16xf32>
    %148 = arith.addf %72, %77 : vector<16x16xf32>
    %149 = arith.addf %82, %87 : vector<16x16xf32>
    %150 = arith.addf %92, %97 : vector<16x16xf32>
    %151 = arith.addf %102, %107 : vector<16x16xf32>
    %152 = arith.addf %112, %117 : vector<16x16xf32>
    %153 = arith.addf %122, %127 : vector<16x16xf32>
    %154 = arith.addf %132, %137 : vector<16x16xf32>
    %155 = arith.addf %142, %147 : vector<16x16xf32>
    %156 = arith.addf %148, %149 : vector<16x16xf32>
    %157 = arith.addf %150, %151 : vector<16x16xf32>
    %158 = arith.addf %152, %153 : vector<16x16xf32>
    %159 = arith.addf %154, %155 : vector<16x16xf32>
    %160 = arith.addf %156, %157 : vector<16x16xf32>
    %161 = arith.addf %158, %159 : vector<16x16xf32>
    %162 = arith.addf %160, %161 : vector<16x16xf32>
    %163 = vector.extract_strided_slice %51 {offsets = [0, 1], sizes = [16, 1], strides = [1, 1]} : vector<16x16xf32> to vector<16x1xf32>
    %164 = vector.broadcast %163 : vector<16x1xf32> to vector<16x16xf32>
    %165 = arith.addf %162, %164 : vector<16x16xf32>
    %166 = vector.extract_strided_slice %52 {offsets = [0, 1], sizes = [16, 1], strides = [1, 1]} : vector<16x16xf32> to vector<16x1xf32>
    %167 = vector.broadcast %166 : vector<16x1xf32> to vector<16x16xf32>
    %168 = arith.mulf %167, %165 : vector<16x16xf32>
    %cst_19 = arith.constant dense<0.000000e+00> : vector<16xf32>
    %169 = vector.multi_reduction <add>, %168, %cst_19 [0] : vector<16x16xf32> to vector<16xf32>
    %170 = vector.shape_cast %169 : vector<16xf32> to vector<1x16xf32>
    %171 = vector.extract_strided_slice %49 {offsets = [0, 2], sizes = [16, 1], strides = [1, 1]} : vector<16x16xf32> to vector<16x1xf32>
    %172 = vector.broadcast %171 : vector<16x1xf32> to vector<16x16xf32>
    %173 = arith.mulf %55, %172 : vector<16x16xf32>
    %174 = math.exp %173 : vector<16x16xf32>
    %175 = vector.extract_strided_slice %174 {offsets = [0, 0], sizes = [16, 1], strides = [1, 1]} : vector<16x16xf32> to vector<16x1xf32>
    %176 = vector.extract_strided_slice %165 {offsets = [0, 0], sizes = [1, 16], strides = [1, 1]} : vector<16x16xf32> to vector<1x16xf32>
    %177 = vector.broadcast %175 : vector<16x1xf32> to vector<16x16xf32>
    %178 = vector.broadcast %176 : vector<1x16xf32> to vector<16x16xf32>
    %179 = arith.mulf %177, %178 : vector<16x16xf32>
    %180 = vector.extract_strided_slice %174 {offsets = [0, 1], sizes = [16, 1], strides = [1, 1]} : vector<16x16xf32> to vector<16x1xf32>
    %181 = vector.extract_strided_slice %165 {offsets = [1, 0], sizes = [1, 16], strides = [1, 1]} : vector<16x16xf32> to vector<1x16xf32>
    %182 = vector.broadcast %180 : vector<16x1xf32> to vector<16x16xf32>
    %183 = vector.broadcast %181 : vector<1x16xf32> to vector<16x16xf32>
    %184 = arith.mulf %182, %183 : vector<16x16xf32>
    %185 = vector.extract_strided_slice %174 {offsets = [0, 2], sizes = [16, 1], strides = [1, 1]} : vector<16x16xf32> to vector<16x1xf32>
    %186 = vector.extract_strided_slice %165 {offsets = [2, 0], sizes = [1, 16], strides = [1, 1]} : vector<16x16xf32> to vector<1x16xf32>
    %187 = vector.broadcast %185 : vector<16x1xf32> to vector<16x16xf32>
    %188 = vector.broadcast %186 : vector<1x16xf32> to vector<16x16xf32>
    %189 = arith.mulf %187, %188 : vector<16x16xf32>
    %190 = vector.extract_strided_slice %174 {offsets = [0, 3], sizes = [16, 1], strides = [1, 1]} : vector<16x16xf32> to vector<16x1xf32>
    %191 = vector.extract_strided_slice %165 {offsets = [3, 0], sizes = [1, 16], strides = [1, 1]} : vector<16x16xf32> to vector<1x16xf32>
    %192 = vector.broadcast %190 : vector<16x1xf32> to vector<16x16xf32>
    %193 = vector.broadcast %191 : vector<1x16xf32> to vector<16x16xf32>
    %194 = arith.mulf %192, %193 : vector<16x16xf32>
    %195 = vector.extract_strided_slice %174 {offsets = [0, 4], sizes = [16, 1], strides = [1, 1]} : vector<16x16xf32> to vector<16x1xf32>
    %196 = vector.extract_strided_slice %165 {offsets = [4, 0], sizes = [1, 16], strides = [1, 1]} : vector<16x16xf32> to vector<1x16xf32>
    %197 = vector.broadcast %195 : vector<16x1xf32> to vector<16x16xf32>
    %198 = vector.broadcast %196 : vector<1x16xf32> to vector<16x16xf32>
    %199 = arith.mulf %197, %198 : vector<16x16xf32>
    %200 = vector.extract_strided_slice %174 {offsets = [0, 5], sizes = [16, 1], strides = [1, 1]} : vector<16x16xf32> to vector<16x1xf32>
    %201 = vector.extract_strided_slice %165 {offsets = [5, 0], sizes = [1, 16], strides = [1, 1]} : vector<16x16xf32> to vector<1x16xf32>
    %202 = vector.broadcast %200 : vector<16x1xf32> to vector<16x16xf32>
    %203 = vector.broadcast %201 : vector<1x16xf32> to vector<16x16xf32>
    %204 = arith.mulf %202, %203 : vector<16x16xf32>
    %205 = vector.extract_strided_slice %174 {offsets = [0, 6], sizes = [16, 1], strides = [1, 1]} : vector<16x16xf32> to vector<16x1xf32>
    %206 = vector.extract_strided_slice %165 {offsets = [6, 0], sizes = [1, 16], strides = [1, 1]} : vector<16x16xf32> to vector<1x16xf32>
    %207 = vector.broadcast %205 : vector<16x1xf32> to vector<16x16xf32>
    %208 = vector.broadcast %206 : vector<1x16xf32> to vector<16x16xf32>
    %209 = arith.mulf %207, %208 : vector<16x16xf32>
    %210 = vector.extract_strided_slice %174 {offsets = [0, 7], sizes = [16, 1], strides = [1, 1]} : vector<16x16xf32> to vector<16x1xf32>
    %211 = vector.extract_strided_slice %165 {offsets = [7, 0], sizes = [1, 16], strides = [1, 1]} : vector<16x16xf32> to vector<1x16xf32>
    %212 = vector.broadcast %210 : vector<16x1xf32> to vector<16x16xf32>
    %213 = vector.broadcast %211 : vector<1x16xf32> to vector<16x16xf32>
    %214 = arith.mulf %212, %213 : vector<16x16xf32>
    %215 = vector.extract_strided_slice %174 {offsets = [0, 8], sizes = [16, 1], strides = [1, 1]} : vector<16x16xf32> to vector<16x1xf32>
    %216 = vector.extract_strided_slice %165 {offsets = [8, 0], sizes = [1, 16], strides = [1, 1]} : vector<16x16xf32> to vector<1x16xf32>
    %217 = vector.broadcast %215 : vector<16x1xf32> to vector<16x16xf32>
    %218 = vector.broadcast %216 : vector<1x16xf32> to vector<16x16xf32>
    %219 = arith.mulf %217, %218 : vector<16x16xf32>
    %220 = vector.extract_strided_slice %174 {offsets = [0, 9], sizes = [16, 1], strides = [1, 1]} : vector<16x16xf32> to vector<16x1xf32>
    %221 = vector.extract_strided_slice %165 {offsets = [9, 0], sizes = [1, 16], strides = [1, 1]} : vector<16x16xf32> to vector<1x16xf32>
    %222 = vector.broadcast %220 : vector<16x1xf32> to vector<16x16xf32>
    %223 = vector.broadcast %221 : vector<1x16xf32> to vector<16x16xf32>
    %224 = arith.mulf %222, %223 : vector<16x16xf32>
    %225 = vector.extract_strided_slice %174 {offsets = [0, 10], sizes = [16, 1], strides = [1, 1]} : vector<16x16xf32> to vector<16x1xf32>
    %226 = vector.extract_strided_slice %165 {offsets = [10, 0], sizes = [1, 16], strides = [1, 1]} : vector<16x16xf32> to vector<1x16xf32>
    %227 = vector.broadcast %225 : vector<16x1xf32> to vector<16x16xf32>
    %228 = vector.broadcast %226 : vector<1x16xf32> to vector<16x16xf32>
    %229 = arith.mulf %227, %228 : vector<16x16xf32>
    %230 = vector.extract_strided_slice %174 {offsets = [0, 11], sizes = [16, 1], strides = [1, 1]} : vector<16x16xf32> to vector<16x1xf32>
    %231 = vector.extract_strided_slice %165 {offsets = [11, 0], sizes = [1, 16], strides = [1, 1]} : vector<16x16xf32> to vector<1x16xf32>
    %232 = vector.broadcast %230 : vector<16x1xf32> to vector<16x16xf32>
    %233 = vector.broadcast %231 : vector<1x16xf32> to vector<16x16xf32>
    %234 = arith.mulf %232, %233 : vector<16x16xf32>
    %235 = vector.extract_strided_slice %174 {offsets = [0, 12], sizes = [16, 1], strides = [1, 1]} : vector<16x16xf32> to vector<16x1xf32>
    %236 = vector.extract_strided_slice %165 {offsets = [12, 0], sizes = [1, 16], strides = [1, 1]} : vector<16x16xf32> to vector<1x16xf32>
    %237 = vector.broadcast %235 : vector<16x1xf32> to vector<16x16xf32>
    %238 = vector.broadcast %236 : vector<1x16xf32> to vector<16x16xf32>
    %239 = arith.mulf %237, %238 : vector<16x16xf32>
    %240 = vector.extract_strided_slice %174 {offsets = [0, 13], sizes = [16, 1], strides = [1, 1]} : vector<16x16xf32> to vector<16x1xf32>
    %241 = vector.extract_strided_slice %165 {offsets = [13, 0], sizes = [1, 16], strides = [1, 1]} : vector<16x16xf32> to vector<1x16xf32>
    %242 = vector.broadcast %240 : vector<16x1xf32> to vector<16x16xf32>
    %243 = vector.broadcast %241 : vector<1x16xf32> to vector<16x16xf32>
    %244 = arith.mulf %242, %243 : vector<16x16xf32>
    %245 = vector.extract_strided_slice %174 {offsets = [0, 14], sizes = [16, 1], strides = [1, 1]} : vector<16x16xf32> to vector<16x1xf32>
    %246 = vector.extract_strided_slice %165 {offsets = [14, 0], sizes = [1, 16], strides = [1, 1]} : vector<16x16xf32> to vector<1x16xf32>
    %247 = vector.broadcast %245 : vector<16x1xf32> to vector<16x16xf32>
    %248 = vector.broadcast %246 : vector<1x16xf32> to vector<16x16xf32>
    %249 = arith.mulf %247, %248 : vector<16x16xf32>
    %250 = vector.extract_strided_slice %174 {offsets = [0, 15], sizes = [16, 1], strides = [1, 1]} : vector<16x16xf32> to vector<16x1xf32>
    %251 = vector.extract_strided_slice %165 {offsets = [15, 0], sizes = [1, 16], strides = [1, 1]} : vector<16x16xf32> to vector<1x16xf32>
    %252 = vector.broadcast %250 : vector<16x1xf32> to vector<16x16xf32>
    %253 = vector.broadcast %251 : vector<1x16xf32> to vector<16x16xf32>
    %254 = arith.mulf %252, %253 : vector<16x16xf32>
    %255 = arith.addf %179, %184 : vector<16x16xf32>
    %256 = arith.addf %189, %194 : vector<16x16xf32>
    %257 = arith.addf %199, %204 : vector<16x16xf32>
    %258 = arith.addf %209, %214 : vector<16x16xf32>
    %259 = arith.addf %219, %224 : vector<16x16xf32>
    %260 = arith.addf %229, %234 : vector<16x16xf32>
    %261 = arith.addf %239, %244 : vector<16x16xf32>
    %262 = arith.addf %249, %254 : vector<16x16xf32>
    %263 = arith.addf %255, %256 : vector<16x16xf32>
    %264 = arith.addf %257, %258 : vector<16x16xf32>
    %265 = arith.addf %259, %260 : vector<16x16xf32>
    %266 = arith.addf %261, %262 : vector<16x16xf32>
    %267 = arith.addf %263, %264 : vector<16x16xf32>
    %268 = arith.addf %265, %266 : vector<16x16xf32>
    %269 = arith.addf %267, %268 : vector<16x16xf32>
    %270 = vector.extract_strided_slice %51 {offsets = [0, 2], sizes = [16, 1], strides = [1, 1]} : vector<16x16xf32> to vector<16x1xf32>
    %271 = vector.broadcast %270 : vector<16x1xf32> to vector<16x16xf32>
    %272 = arith.addf %269, %271 : vector<16x16xf32>
    %273 = vector.extract_strided_slice %52 {offsets = [0, 2], sizes = [16, 1], strides = [1, 1]} : vector<16x16xf32> to vector<16x1xf32>
    %274 = vector.broadcast %273 : vector<16x1xf32> to vector<16x16xf32>
    %275 = arith.mulf %274, %272 : vector<16x16xf32>
    %cst_20 = arith.constant dense<0.000000e+00> : vector<16xf32>
    %276 = vector.multi_reduction <add>, %275, %cst_20 [0] : vector<16x16xf32> to vector<16xf32>
    %277 = vector.shape_cast %276 : vector<16xf32> to vector<1x16xf32>
    %278 = vector.extract_strided_slice %49 {offsets = [0, 3], sizes = [16, 1], strides = [1, 1]} : vector<16x16xf32> to vector<16x1xf32>
    %279 = vector.broadcast %278 : vector<16x1xf32> to vector<16x16xf32>
    %280 = arith.mulf %55, %279 : vector<16x16xf32>
    %281 = math.exp %280 : vector<16x16xf32>
    %282 = vector.extract_strided_slice %281 {offsets = [0, 0], sizes = [16, 1], strides = [1, 1]} : vector<16x16xf32> to vector<16x1xf32>
    %283 = vector.extract_strided_slice %272 {offsets = [0, 0], sizes = [1, 16], strides = [1, 1]} : vector<16x16xf32> to vector<1x16xf32>
    %284 = vector.broadcast %282 : vector<16x1xf32> to vector<16x16xf32>
    %285 = vector.broadcast %283 : vector<1x16xf32> to vector<16x16xf32>
    %286 = arith.mulf %284, %285 : vector<16x16xf32>
    %287 = vector.extract_strided_slice %281 {offsets = [0, 1], sizes = [16, 1], strides = [1, 1]} : vector<16x16xf32> to vector<16x1xf32>
    %288 = vector.extract_strided_slice %272 {offsets = [1, 0], sizes = [1, 16], strides = [1, 1]} : vector<16x16xf32> to vector<1x16xf32>
    %289 = vector.broadcast %287 : vector<16x1xf32> to vector<16x16xf32>
    %290 = vector.broadcast %288 : vector<1x16xf32> to vector<16x16xf32>
    %291 = arith.mulf %289, %290 : vector<16x16xf32>
    %292 = vector.extract_strided_slice %281 {offsets = [0, 2], sizes = [16, 1], strides = [1, 1]} : vector<16x16xf32> to vector<16x1xf32>
    %293 = vector.extract_strided_slice %272 {offsets = [2, 0], sizes = [1, 16], strides = [1, 1]} : vector<16x16xf32> to vector<1x16xf32>
    %294 = vector.broadcast %292 : vector<16x1xf32> to vector<16x16xf32>
    %295 = vector.broadcast %293 : vector<1x16xf32> to vector<16x16xf32>
    %296 = arith.mulf %294, %295 : vector<16x16xf32>
    %297 = vector.extract_strided_slice %281 {offsets = [0, 3], sizes = [16, 1], strides = [1, 1]} : vector<16x16xf32> to vector<16x1xf32>
    %298 = vector.extract_strided_slice %272 {offsets = [3, 0], sizes = [1, 16], strides = [1, 1]} : vector<16x16xf32> to vector<1x16xf32>
    %299 = vector.broadcast %297 : vector<16x1xf32> to vector<16x16xf32>
    %300 = vector.broadcast %298 : vector<1x16xf32> to vector<16x16xf32>
    %301 = arith.mulf %299, %300 : vector<16x16xf32>
    %302 = vector.extract_strided_slice %281 {offsets = [0, 4], sizes = [16, 1], strides = [1, 1]} : vector<16x16xf32> to vector<16x1xf32>
    %303 = vector.extract_strided_slice %272 {offsets = [4, 0], sizes = [1, 16], strides = [1, 1]} : vector<16x16xf32> to vector<1x16xf32>
    %304 = vector.broadcast %302 : vector<16x1xf32> to vector<16x16xf32>
    %305 = vector.broadcast %303 : vector<1x16xf32> to vector<16x16xf32>
    %306 = arith.mulf %304, %305 : vector<16x16xf32>
    %307 = vector.extract_strided_slice %281 {offsets = [0, 5], sizes = [16, 1], strides = [1, 1]} : vector<16x16xf32> to vector<16x1xf32>
    %308 = vector.extract_strided_slice %272 {offsets = [5, 0], sizes = [1, 16], strides = [1, 1]} : vector<16x16xf32> to vector<1x16xf32>
    %309 = vector.broadcast %307 : vector<16x1xf32> to vector<16x16xf32>
    %310 = vector.broadcast %308 : vector<1x16xf32> to vector<16x16xf32>
    %311 = arith.mulf %309, %310 : vector<16x16xf32>
    %312 = vector.extract_strided_slice %281 {offsets = [0, 6], sizes = [16, 1], strides = [1, 1]} : vector<16x16xf32> to vector<16x1xf32>
    %313 = vector.extract_strided_slice %272 {offsets = [6, 0], sizes = [1, 16], strides = [1, 1]} : vector<16x16xf32> to vector<1x16xf32>
    %314 = vector.broadcast %312 : vector<16x1xf32> to vector<16x16xf32>
    %315 = vector.broadcast %313 : vector<1x16xf32> to vector<16x16xf32>
    %316 = arith.mulf %314, %315 : vector<16x16xf32>
    %317 = vector.extract_strided_slice %281 {offsets = [0, 7], sizes = [16, 1], strides = [1, 1]} : vector<16x16xf32> to vector<16x1xf32>
    %318 = vector.extract_strided_slice %272 {offsets = [7, 0], sizes = [1, 16], strides = [1, 1]} : vector<16x16xf32> to vector<1x16xf32>
    %319 = vector.broadcast %317 : vector<16x1xf32> to vector<16x16xf32>
    %320 = vector.broadcast %318 : vector<1x16xf32> to vector<16x16xf32>
    %321 = arith.mulf %319, %320 : vector<16x16xf32>
    %322 = vector.extract_strided_slice %281 {offsets = [0, 8], sizes = [16, 1], strides = [1, 1]} : vector<16x16xf32> to vector<16x1xf32>
    %323 = vector.extract_strided_slice %272 {offsets = [8, 0], sizes = [1, 16], strides = [1, 1]} : vector<16x16xf32> to vector<1x16xf32>
    %324 = vector.broadcast %322 : vector<16x1xf32> to vector<16x16xf32>
    %325 = vector.broadcast %323 : vector<1x16xf32> to vector<16x16xf32>
    %326 = arith.mulf %324, %325 : vector<16x16xf32>
    %327 = vector.extract_strided_slice %281 {offsets = [0, 9], sizes = [16, 1], strides = [1, 1]} : vector<16x16xf32> to vector<16x1xf32>
    %328 = vector.extract_strided_slice %272 {offsets = [9, 0], sizes = [1, 16], strides = [1, 1]} : vector<16x16xf32> to vector<1x16xf32>
    %329 = vector.broadcast %327 : vector<16x1xf32> to vector<16x16xf32>
    %330 = vector.broadcast %328 : vector<1x16xf32> to vector<16x16xf32>
    %331 = arith.mulf %329, %330 : vector<16x16xf32>
    %332 = vector.extract_strided_slice %281 {offsets = [0, 10], sizes = [16, 1], strides = [1, 1]} : vector<16x16xf32> to vector<16x1xf32>
    %333 = vector.extract_strided_slice %272 {offsets = [10, 0], sizes = [1, 16], strides = [1, 1]} : vector<16x16xf32> to vector<1x16xf32>
    %334 = vector.broadcast %332 : vector<16x1xf32> to vector<16x16xf32>
    %335 = vector.broadcast %333 : vector<1x16xf32> to vector<16x16xf32>
    %336 = arith.mulf %334, %335 : vector<16x16xf32>
    %337 = vector.extract_strided_slice %281 {offsets = [0, 11], sizes = [16, 1], strides = [1, 1]} : vector<16x16xf32> to vector<16x1xf32>
    %338 = vector.extract_strided_slice %272 {offsets = [11, 0], sizes = [1, 16], strides = [1, 1]} : vector<16x16xf32> to vector<1x16xf32>
    %339 = vector.broadcast %337 : vector<16x1xf32> to vector<16x16xf32>
    %340 = vector.broadcast %338 : vector<1x16xf32> to vector<16x16xf32>
    %341 = arith.mulf %339, %340 : vector<16x16xf32>
    %342 = vector.extract_strided_slice %281 {offsets = [0, 12], sizes = [16, 1], strides = [1, 1]} : vector<16x16xf32> to vector<16x1xf32>
    %343 = vector.extract_strided_slice %272 {offsets = [12, 0], sizes = [1, 16], strides = [1, 1]} : vector<16x16xf32> to vector<1x16xf32>
    %344 = vector.broadcast %342 : vector<16x1xf32> to vector<16x16xf32>
    %345 = vector.broadcast %343 : vector<1x16xf32> to vector<16x16xf32>
    %346 = arith.mulf %344, %345 : vector<16x16xf32>
    %347 = vector.extract_strided_slice %281 {offsets = [0, 13], sizes = [16, 1], strides = [1, 1]} : vector<16x16xf32> to vector<16x1xf32>
    %348 = vector.extract_strided_slice %272 {offsets = [13, 0], sizes = [1, 16], strides = [1, 1]} : vector<16x16xf32> to vector<1x16xf32>
    %349 = vector.broadcast %347 : vector<16x1xf32> to vector<16x16xf32>
    %350 = vector.broadcast %348 : vector<1x16xf32> to vector<16x16xf32>
    %351 = arith.mulf %349, %350 : vector<16x16xf32>
    %352 = vector.extract_strided_slice %281 {offsets = [0, 14], sizes = [16, 1], strides = [1, 1]} : vector<16x16xf32> to vector<16x1xf32>
    %353 = vector.extract_strided_slice %272 {offsets = [14, 0], sizes = [1, 16], strides = [1, 1]} : vector<16x16xf32> to vector<1x16xf32>
    %354 = vector.broadcast %352 : vector<16x1xf32> to vector<16x16xf32>
    %355 = vector.broadcast %353 : vector<1x16xf32> to vector<16x16xf32>
    %356 = arith.mulf %354, %355 : vector<16x16xf32>
    %357 = vector.extract_strided_slice %281 {offsets = [0, 15], sizes = [16, 1], strides = [1, 1]} : vector<16x16xf32> to vector<16x1xf32>
    %358 = vector.extract_strided_slice %272 {offsets = [15, 0], sizes = [1, 16], strides = [1, 1]} : vector<16x16xf32> to vector<1x16xf32>
    %359 = vector.broadcast %357 : vector<16x1xf32> to vector<16x16xf32>
    %360 = vector.broadcast %358 : vector<1x16xf32> to vector<16x16xf32>
    %361 = arith.mulf %359, %360 : vector<16x16xf32>
    %362 = arith.addf %286, %291 : vector<16x16xf32>
    %363 = arith.addf %296, %301 : vector<16x16xf32>
    %364 = arith.addf %306, %311 : vector<16x16xf32>
    %365 = arith.addf %316, %321 : vector<16x16xf32>
    %366 = arith.addf %326, %331 : vector<16x16xf32>
    %367 = arith.addf %336, %341 : vector<16x16xf32>
    %368 = arith.addf %346, %351 : vector<16x16xf32>
    %369 = arith.addf %356, %361 : vector<16x16xf32>
    %370 = arith.addf %362, %363 : vector<16x16xf32>
    %371 = arith.addf %364, %365 : vector<16x16xf32>
    %372 = arith.addf %366, %367 : vector<16x16xf32>
    %373 = arith.addf %368, %369 : vector<16x16xf32>
    %374 = arith.addf %370, %371 : vector<16x16xf32>
    %375 = arith.addf %372, %373 : vector<16x16xf32>
    %376 = arith.addf %374, %375 : vector<16x16xf32>
    %377 = vector.extract_strided_slice %51 {offsets = [0, 3], sizes = [16, 1], strides = [1, 1]} : vector<16x16xf32> to vector<16x1xf32>
    %378 = vector.broadcast %377 : vector<16x1xf32> to vector<16x16xf32>
    %379 = arith.addf %376, %378 : vector<16x16xf32>
    %380 = vector.extract_strided_slice %52 {offsets = [0, 3], sizes = [16, 1], strides = [1, 1]} : vector<16x16xf32> to vector<16x1xf32>
    %381 = vector.broadcast %380 : vector<16x1xf32> to vector<16x16xf32>
    %382 = arith.mulf %381, %379 : vector<16x16xf32>
    %cst_21 = arith.constant dense<0.000000e+00> : vector<16xf32>
    %383 = vector.multi_reduction <add>, %382, %cst_21 [0] : vector<16x16xf32> to vector<16xf32>
    %384 = vector.shape_cast %383 : vector<16xf32> to vector<1x16xf32>
    %385 = vector.extract_strided_slice %49 {offsets = [0, 4], sizes = [16, 1], strides = [1, 1]} : vector<16x16xf32> to vector<16x1xf32>
    %386 = vector.broadcast %385 : vector<16x1xf32> to vector<16x16xf32>
    %387 = arith.mulf %55, %386 : vector<16x16xf32>
    %388 = math.exp %387 : vector<16x16xf32>
    %389 = vector.extract_strided_slice %388 {offsets = [0, 0], sizes = [16, 1], strides = [1, 1]} : vector<16x16xf32> to vector<16x1xf32>
    %390 = vector.extract_strided_slice %379 {offsets = [0, 0], sizes = [1, 16], strides = [1, 1]} : vector<16x16xf32> to vector<1x16xf32>
    %391 = vector.broadcast %389 : vector<16x1xf32> to vector<16x16xf32>
    %392 = vector.broadcast %390 : vector<1x16xf32> to vector<16x16xf32>
    %393 = arith.mulf %391, %392 : vector<16x16xf32>
    %394 = vector.extract_strided_slice %388 {offsets = [0, 1], sizes = [16, 1], strides = [1, 1]} : vector<16x16xf32> to vector<16x1xf32>
    %395 = vector.extract_strided_slice %379 {offsets = [1, 0], sizes = [1, 16], strides = [1, 1]} : vector<16x16xf32> to vector<1x16xf32>
    %396 = vector.broadcast %394 : vector<16x1xf32> to vector<16x16xf32>
    %397 = vector.broadcast %395 : vector<1x16xf32> to vector<16x16xf32>
    %398 = arith.mulf %396, %397 : vector<16x16xf32>
    %399 = vector.extract_strided_slice %388 {offsets = [0, 2], sizes = [16, 1], strides = [1, 1]} : vector<16x16xf32> to vector<16x1xf32>
    %400 = vector.extract_strided_slice %379 {offsets = [2, 0], sizes = [1, 16], strides = [1, 1]} : vector<16x16xf32> to vector<1x16xf32>
    %401 = vector.broadcast %399 : vector<16x1xf32> to vector<16x16xf32>
    %402 = vector.broadcast %400 : vector<1x16xf32> to vector<16x16xf32>
    %403 = arith.mulf %401, %402 : vector<16x16xf32>
    %404 = vector.extract_strided_slice %388 {offsets = [0, 3], sizes = [16, 1], strides = [1, 1]} : vector<16x16xf32> to vector<16x1xf32>
    %405 = vector.extract_strided_slice %379 {offsets = [3, 0], sizes = [1, 16], strides = [1, 1]} : vector<16x16xf32> to vector<1x16xf32>
    %406 = vector.broadcast %404 : vector<16x1xf32> to vector<16x16xf32>
    %407 = vector.broadcast %405 : vector<1x16xf32> to vector<16x16xf32>
    %408 = arith.mulf %406, %407 : vector<16x16xf32>
    %409 = vector.extract_strided_slice %388 {offsets = [0, 4], sizes = [16, 1], strides = [1, 1]} : vector<16x16xf32> to vector<16x1xf32>
    %410 = vector.extract_strided_slice %379 {offsets = [4, 0], sizes = [1, 16], strides = [1, 1]} : vector<16x16xf32> to vector<1x16xf32>
    %411 = vector.broadcast %409 : vector<16x1xf32> to vector<16x16xf32>
    %412 = vector.broadcast %410 : vector<1x16xf32> to vector<16x16xf32>
    %413 = arith.mulf %411, %412 : vector<16x16xf32>
    %414 = vector.extract_strided_slice %388 {offsets = [0, 5], sizes = [16, 1], strides = [1, 1]} : vector<16x16xf32> to vector<16x1xf32>
    %415 = vector.extract_strided_slice %379 {offsets = [5, 0], sizes = [1, 16], strides = [1, 1]} : vector<16x16xf32> to vector<1x16xf32>
    %416 = vector.broadcast %414 : vector<16x1xf32> to vector<16x16xf32>
    %417 = vector.broadcast %415 : vector<1x16xf32> to vector<16x16xf32>
    %418 = arith.mulf %416, %417 : vector<16x16xf32>
    %419 = vector.extract_strided_slice %388 {offsets = [0, 6], sizes = [16, 1], strides = [1, 1]} : vector<16x16xf32> to vector<16x1xf32>
    %420 = vector.extract_strided_slice %379 {offsets = [6, 0], sizes = [1, 16], strides = [1, 1]} : vector<16x16xf32> to vector<1x16xf32>
    %421 = vector.broadcast %419 : vector<16x1xf32> to vector<16x16xf32>
    %422 = vector.broadcast %420 : vector<1x16xf32> to vector<16x16xf32>
    %423 = arith.mulf %421, %422 : vector<16x16xf32>
    %424 = vector.extract_strided_slice %388 {offsets = [0, 7], sizes = [16, 1], strides = [1, 1]} : vector<16x16xf32> to vector<16x1xf32>
    %425 = vector.extract_strided_slice %379 {offsets = [7, 0], sizes = [1, 16], strides = [1, 1]} : vector<16x16xf32> to vector<1x16xf32>
    %426 = vector.broadcast %424 : vector<16x1xf32> to vector<16x16xf32>
    %427 = vector.broadcast %425 : vector<1x16xf32> to vector<16x16xf32>
    %428 = arith.mulf %426, %427 : vector<16x16xf32>
    %429 = vector.extract_strided_slice %388 {offsets = [0, 8], sizes = [16, 1], strides = [1, 1]} : vector<16x16xf32> to vector<16x1xf32>
    %430 = vector.extract_strided_slice %379 {offsets = [8, 0], sizes = [1, 16], strides = [1, 1]} : vector<16x16xf32> to vector<1x16xf32>
    %431 = vector.broadcast %429 : vector<16x1xf32> to vector<16x16xf32>
    %432 = vector.broadcast %430 : vector<1x16xf32> to vector<16x16xf32>
    %433 = arith.mulf %431, %432 : vector<16x16xf32>
    %434 = vector.extract_strided_slice %388 {offsets = [0, 9], sizes = [16, 1], strides = [1, 1]} : vector<16x16xf32> to vector<16x1xf32>
    %435 = vector.extract_strided_slice %379 {offsets = [9, 0], sizes = [1, 16], strides = [1, 1]} : vector<16x16xf32> to vector<1x16xf32>
    %436 = vector.broadcast %434 : vector<16x1xf32> to vector<16x16xf32>
    %437 = vector.broadcast %435 : vector<1x16xf32> to vector<16x16xf32>
    %438 = arith.mulf %436, %437 : vector<16x16xf32>
    %439 = vector.extract_strided_slice %388 {offsets = [0, 10], sizes = [16, 1], strides = [1, 1]} : vector<16x16xf32> to vector<16x1xf32>
    %440 = vector.extract_strided_slice %379 {offsets = [10, 0], sizes = [1, 16], strides = [1, 1]} : vector<16x16xf32> to vector<1x16xf32>
    %441 = vector.broadcast %439 : vector<16x1xf32> to vector<16x16xf32>
    %442 = vector.broadcast %440 : vector<1x16xf32> to vector<16x16xf32>
    %443 = arith.mulf %441, %442 : vector<16x16xf32>
    %444 = vector.extract_strided_slice %388 {offsets = [0, 11], sizes = [16, 1], strides = [1, 1]} : vector<16x16xf32> to vector<16x1xf32>
    %445 = vector.extract_strided_slice %379 {offsets = [11, 0], sizes = [1, 16], strides = [1, 1]} : vector<16x16xf32> to vector<1x16xf32>
    %446 = vector.broadcast %444 : vector<16x1xf32> to vector<16x16xf32>
    %447 = vector.broadcast %445 : vector<1x16xf32> to vector<16x16xf32>
    %448 = arith.mulf %446, %447 : vector<16x16xf32>
    %449 = vector.extract_strided_slice %388 {offsets = [0, 12], sizes = [16, 1], strides = [1, 1]} : vector<16x16xf32> to vector<16x1xf32>
    %450 = vector.extract_strided_slice %379 {offsets = [12, 0], sizes = [1, 16], strides = [1, 1]} : vector<16x16xf32> to vector<1x16xf32>
    %451 = vector.broadcast %449 : vector<16x1xf32> to vector<16x16xf32>
    %452 = vector.broadcast %450 : vector<1x16xf32> to vector<16x16xf32>
    %453 = arith.mulf %451, %452 : vector<16x16xf32>
    %454 = vector.extract_strided_slice %388 {offsets = [0, 13], sizes = [16, 1], strides = [1, 1]} : vector<16x16xf32> to vector<16x1xf32>
    %455 = vector.extract_strided_slice %379 {offsets = [13, 0], sizes = [1, 16], strides = [1, 1]} : vector<16x16xf32> to vector<1x16xf32>
    %456 = vector.broadcast %454 : vector<16x1xf32> to vector<16x16xf32>
    %457 = vector.broadcast %455 : vector<1x16xf32> to vector<16x16xf32>
    %458 = arith.mulf %456, %457 : vector<16x16xf32>
    %459 = vector.extract_strided_slice %388 {offsets = [0, 14], sizes = [16, 1], strides = [1, 1]} : vector<16x16xf32> to vector<16x1xf32>
    %460 = vector.extract_strided_slice %379 {offsets = [14, 0], sizes = [1, 16], strides = [1, 1]} : vector<16x16xf32> to vector<1x16xf32>
    %461 = vector.broadcast %459 : vector<16x1xf32> to vector<16x16xf32>
    %462 = vector.broadcast %460 : vector<1x16xf32> to vector<16x16xf32>
    %463 = arith.mulf %461, %462 : vector<16x16xf32>
    %464 = vector.extract_strided_slice %388 {offsets = [0, 15], sizes = [16, 1], strides = [1, 1]} : vector<16x16xf32> to vector<16x1xf32>
    %465 = vector.extract_strided_slice %379 {offsets = [15, 0], sizes = [1, 16], strides = [1, 1]} : vector<16x16xf32> to vector<1x16xf32>
    %466 = vector.broadcast %464 : vector<16x1xf32> to vector<16x16xf32>
    %467 = vector.broadcast %465 : vector<1x16xf32> to vector<16x16xf32>
    %468 = arith.mulf %466, %467 : vector<16x16xf32>
    %469 = arith.addf %393, %398 : vector<16x16xf32>
    %470 = arith.addf %403, %408 : vector<16x16xf32>
    %471 = arith.addf %413, %418 : vector<16x16xf32>
    %472 = arith.addf %423, %428 : vector<16x16xf32>
    %473 = arith.addf %433, %438 : vector<16x16xf32>
    %474 = arith.addf %443, %448 : vector<16x16xf32>
    %475 = arith.addf %453, %458 : vector<16x16xf32>
    %476 = arith.addf %463, %468 : vector<16x16xf32>
    %477 = arith.addf %469, %470 : vector<16x16xf32>
    %478 = arith.addf %471, %472 : vector<16x16xf32>
    %479 = arith.addf %473, %474 : vector<16x16xf32>
    %480 = arith.addf %475, %476 : vector<16x16xf32>
    %481 = arith.addf %477, %478 : vector<16x16xf32>
    %482 = arith.addf %479, %480 : vector<16x16xf32>
    %483 = arith.addf %481, %482 : vector<16x16xf32>
    %484 = vector.extract_strided_slice %51 {offsets = [0, 4], sizes = [16, 1], strides = [1, 1]} : vector<16x16xf32> to vector<16x1xf32>
    %485 = vector.broadcast %484 : vector<16x1xf32> to vector<16x16xf32>
    %486 = arith.addf %483, %485 : vector<16x16xf32>
    %487 = vector.extract_strided_slice %52 {offsets = [0, 4], sizes = [16, 1], strides = [1, 1]} : vector<16x16xf32> to vector<16x1xf32>
    %488 = vector.broadcast %487 : vector<16x1xf32> to vector<16x16xf32>
    %489 = arith.mulf %488, %486 : vector<16x16xf32>
    %cst_22 = arith.constant dense<0.000000e+00> : vector<16xf32>
    %490 = vector.multi_reduction <add>, %489, %cst_22 [0] : vector<16x16xf32> to vector<16xf32>
    %491 = vector.shape_cast %490 : vector<16xf32> to vector<1x16xf32>
    %492 = vector.extract_strided_slice %49 {offsets = [0, 5], sizes = [16, 1], strides = [1, 1]} : vector<16x16xf32> to vector<16x1xf32>
    %493 = vector.broadcast %492 : vector<16x1xf32> to vector<16x16xf32>
    %494 = arith.mulf %55, %493 : vector<16x16xf32>
    %495 = math.exp %494 : vector<16x16xf32>
    %496 = vector.extract_strided_slice %495 {offsets = [0, 0], sizes = [16, 1], strides = [1, 1]} : vector<16x16xf32> to vector<16x1xf32>
    %497 = vector.extract_strided_slice %486 {offsets = [0, 0], sizes = [1, 16], strides = [1, 1]} : vector<16x16xf32> to vector<1x16xf32>
    %498 = vector.broadcast %496 : vector<16x1xf32> to vector<16x16xf32>
    %499 = vector.broadcast %497 : vector<1x16xf32> to vector<16x16xf32>
    %500 = arith.mulf %498, %499 : vector<16x16xf32>
    %501 = vector.extract_strided_slice %495 {offsets = [0, 1], sizes = [16, 1], strides = [1, 1]} : vector<16x16xf32> to vector<16x1xf32>
    %502 = vector.extract_strided_slice %486 {offsets = [1, 0], sizes = [1, 16], strides = [1, 1]} : vector<16x16xf32> to vector<1x16xf32>
    %503 = vector.broadcast %501 : vector<16x1xf32> to vector<16x16xf32>
    %504 = vector.broadcast %502 : vector<1x16xf32> to vector<16x16xf32>
    %505 = arith.mulf %503, %504 : vector<16x16xf32>
    %506 = vector.extract_strided_slice %495 {offsets = [0, 2], sizes = [16, 1], strides = [1, 1]} : vector<16x16xf32> to vector<16x1xf32>
    %507 = vector.extract_strided_slice %486 {offsets = [2, 0], sizes = [1, 16], strides = [1, 1]} : vector<16x16xf32> to vector<1x16xf32>
    %508 = vector.broadcast %506 : vector<16x1xf32> to vector<16x16xf32>
    %509 = vector.broadcast %507 : vector<1x16xf32> to vector<16x16xf32>
    %510 = arith.mulf %508, %509 : vector<16x16xf32>
    %511 = vector.extract_strided_slice %495 {offsets = [0, 3], sizes = [16, 1], strides = [1, 1]} : vector<16x16xf32> to vector<16x1xf32>
    %512 = vector.extract_strided_slice %486 {offsets = [3, 0], sizes = [1, 16], strides = [1, 1]} : vector<16x16xf32> to vector<1x16xf32>
    %513 = vector.broadcast %511 : vector<16x1xf32> to vector<16x16xf32>
    %514 = vector.broadcast %512 : vector<1x16xf32> to vector<16x16xf32>
    %515 = arith.mulf %513, %514 : vector<16x16xf32>
    %516 = vector.extract_strided_slice %495 {offsets = [0, 4], sizes = [16, 1], strides = [1, 1]} : vector<16x16xf32> to vector<16x1xf32>
    %517 = vector.extract_strided_slice %486 {offsets = [4, 0], sizes = [1, 16], strides = [1, 1]} : vector<16x16xf32> to vector<1x16xf32>
    %518 = vector.broadcast %516 : vector<16x1xf32> to vector<16x16xf32>
    %519 = vector.broadcast %517 : vector<1x16xf32> to vector<16x16xf32>
    %520 = arith.mulf %518, %519 : vector<16x16xf32>
    %521 = vector.extract_strided_slice %495 {offsets = [0, 5], sizes = [16, 1], strides = [1, 1]} : vector<16x16xf32> to vector<16x1xf32>
    %522 = vector.extract_strided_slice %486 {offsets = [5, 0], sizes = [1, 16], strides = [1, 1]} : vector<16x16xf32> to vector<1x16xf32>
    %523 = vector.broadcast %521 : vector<16x1xf32> to vector<16x16xf32>
    %524 = vector.broadcast %522 : vector<1x16xf32> to vector<16x16xf32>
    %525 = arith.mulf %523, %524 : vector<16x16xf32>
    %526 = vector.extract_strided_slice %495 {offsets = [0, 6], sizes = [16, 1], strides = [1, 1]} : vector<16x16xf32> to vector<16x1xf32>
    %527 = vector.extract_strided_slice %486 {offsets = [6, 0], sizes = [1, 16], strides = [1, 1]} : vector<16x16xf32> to vector<1x16xf32>
    %528 = vector.broadcast %526 : vector<16x1xf32> to vector<16x16xf32>
    %529 = vector.broadcast %527 : vector<1x16xf32> to vector<16x16xf32>
    %530 = arith.mulf %528, %529 : vector<16x16xf32>
    %531 = vector.extract_strided_slice %495 {offsets = [0, 7], sizes = [16, 1], strides = [1, 1]} : vector<16x16xf32> to vector<16x1xf32>
    %532 = vector.extract_strided_slice %486 {offsets = [7, 0], sizes = [1, 16], strides = [1, 1]} : vector<16x16xf32> to vector<1x16xf32>
    %533 = vector.broadcast %531 : vector<16x1xf32> to vector<16x16xf32>
    %534 = vector.broadcast %532 : vector<1x16xf32> to vector<16x16xf32>
    %535 = arith.mulf %533, %534 : vector<16x16xf32>
    %536 = vector.extract_strided_slice %495 {offsets = [0, 8], sizes = [16, 1], strides = [1, 1]} : vector<16x16xf32> to vector<16x1xf32>
    %537 = vector.extract_strided_slice %486 {offsets = [8, 0], sizes = [1, 16], strides = [1, 1]} : vector<16x16xf32> to vector<1x16xf32>
    %538 = vector.broadcast %536 : vector<16x1xf32> to vector<16x16xf32>
    %539 = vector.broadcast %537 : vector<1x16xf32> to vector<16x16xf32>
    %540 = arith.mulf %538, %539 : vector<16x16xf32>
    %541 = vector.extract_strided_slice %495 {offsets = [0, 9], sizes = [16, 1], strides = [1, 1]} : vector<16x16xf32> to vector<16x1xf32>
    %542 = vector.extract_strided_slice %486 {offsets = [9, 0], sizes = [1, 16], strides = [1, 1]} : vector<16x16xf32> to vector<1x16xf32>
    %543 = vector.broadcast %541 : vector<16x1xf32> to vector<16x16xf32>
    %544 = vector.broadcast %542 : vector<1x16xf32> to vector<16x16xf32>
    %545 = arith.mulf %543, %544 : vector<16x16xf32>
    %546 = vector.extract_strided_slice %495 {offsets = [0, 10], sizes = [16, 1], strides = [1, 1]} : vector<16x16xf32> to vector<16x1xf32>
    %547 = vector.extract_strided_slice %486 {offsets = [10, 0], sizes = [1, 16], strides = [1, 1]} : vector<16x16xf32> to vector<1x16xf32>
    %548 = vector.broadcast %546 : vector<16x1xf32> to vector<16x16xf32>
    %549 = vector.broadcast %547 : vector<1x16xf32> to vector<16x16xf32>
    %550 = arith.mulf %548, %549 : vector<16x16xf32>
    %551 = vector.extract_strided_slice %495 {offsets = [0, 11], sizes = [16, 1], strides = [1, 1]} : vector<16x16xf32> to vector<16x1xf32>
    %552 = vector.extract_strided_slice %486 {offsets = [11, 0], sizes = [1, 16], strides = [1, 1]} : vector<16x16xf32> to vector<1x16xf32>
    %553 = vector.broadcast %551 : vector<16x1xf32> to vector<16x16xf32>
    %554 = vector.broadcast %552 : vector<1x16xf32> to vector<16x16xf32>
    %555 = arith.mulf %553, %554 : vector<16x16xf32>
    %556 = vector.extract_strided_slice %495 {offsets = [0, 12], sizes = [16, 1], strides = [1, 1]} : vector<16x16xf32> to vector<16x1xf32>
    %557 = vector.extract_strided_slice %486 {offsets = [12, 0], sizes = [1, 16], strides = [1, 1]} : vector<16x16xf32> to vector<1x16xf32>
    %558 = vector.broadcast %556 : vector<16x1xf32> to vector<16x16xf32>
    %559 = vector.broadcast %557 : vector<1x16xf32> to vector<16x16xf32>
    %560 = arith.mulf %558, %559 : vector<16x16xf32>
    %561 = vector.extract_strided_slice %495 {offsets = [0, 13], sizes = [16, 1], strides = [1, 1]} : vector<16x16xf32> to vector<16x1xf32>
    %562 = vector.extract_strided_slice %486 {offsets = [13, 0], sizes = [1, 16], strides = [1, 1]} : vector<16x16xf32> to vector<1x16xf32>
    %563 = vector.broadcast %561 : vector<16x1xf32> to vector<16x16xf32>
    %564 = vector.broadcast %562 : vector<1x16xf32> to vector<16x16xf32>
    %565 = arith.mulf %563, %564 : vector<16x16xf32>
    %566 = vector.extract_strided_slice %495 {offsets = [0, 14], sizes = [16, 1], strides = [1, 1]} : vector<16x16xf32> to vector<16x1xf32>
    %567 = vector.extract_strided_slice %486 {offsets = [14, 0], sizes = [1, 16], strides = [1, 1]} : vector<16x16xf32> to vector<1x16xf32>
    %568 = vector.broadcast %566 : vector<16x1xf32> to vector<16x16xf32>
    %569 = vector.broadcast %567 : vector<1x16xf32> to vector<16x16xf32>
    %570 = arith.mulf %568, %569 : vector<16x16xf32>
    %571 = vector.extract_strided_slice %495 {offsets = [0, 15], sizes = [16, 1], strides = [1, 1]} : vector<16x16xf32> to vector<16x1xf32>
    %572 = vector.extract_strided_slice %486 {offsets = [15, 0], sizes = [1, 16], strides = [1, 1]} : vector<16x16xf32> to vector<1x16xf32>
    %573 = vector.broadcast %571 : vector<16x1xf32> to vector<16x16xf32>
    %574 = vector.broadcast %572 : vector<1x16xf32> to vector<16x16xf32>
    %575 = arith.mulf %573, %574 : vector<16x16xf32>
    %576 = arith.addf %500, %505 : vector<16x16xf32>
    %577 = arith.addf %510, %515 : vector<16x16xf32>
    %578 = arith.addf %520, %525 : vector<16x16xf32>
    %579 = arith.addf %530, %535 : vector<16x16xf32>
    %580 = arith.addf %540, %545 : vector<16x16xf32>
    %581 = arith.addf %550, %555 : vector<16x16xf32>
    %582 = arith.addf %560, %565 : vector<16x16xf32>
    %583 = arith.addf %570, %575 : vector<16x16xf32>
    %584 = arith.addf %576, %577 : vector<16x16xf32>
    %585 = arith.addf %578, %579 : vector<16x16xf32>
    %586 = arith.addf %580, %581 : vector<16x16xf32>
    %587 = arith.addf %582, %583 : vector<16x16xf32>
    %588 = arith.addf %584, %585 : vector<16x16xf32>
    %589 = arith.addf %586, %587 : vector<16x16xf32>
    %590 = arith.addf %588, %589 : vector<16x16xf32>
    %591 = vector.extract_strided_slice %51 {offsets = [0, 5], sizes = [16, 1], strides = [1, 1]} : vector<16x16xf32> to vector<16x1xf32>
    %592 = vector.broadcast %591 : vector<16x1xf32> to vector<16x16xf32>
    %593 = arith.addf %590, %592 : vector<16x16xf32>
    %594 = vector.extract_strided_slice %52 {offsets = [0, 5], sizes = [16, 1], strides = [1, 1]} : vector<16x16xf32> to vector<16x1xf32>
    %595 = vector.broadcast %594 : vector<16x1xf32> to vector<16x16xf32>
    %596 = arith.mulf %595, %593 : vector<16x16xf32>
    %cst_23 = arith.constant dense<0.000000e+00> : vector<16xf32>
    %597 = vector.multi_reduction <add>, %596, %cst_23 [0] : vector<16x16xf32> to vector<16xf32>
    %598 = vector.shape_cast %597 : vector<16xf32> to vector<1x16xf32>
    %599 = vector.extract_strided_slice %49 {offsets = [0, 6], sizes = [16, 1], strides = [1, 1]} : vector<16x16xf32> to vector<16x1xf32>
    %600 = vector.broadcast %599 : vector<16x1xf32> to vector<16x16xf32>
    %601 = arith.mulf %55, %600 : vector<16x16xf32>
    %602 = math.exp %601 : vector<16x16xf32>
    %603 = vector.extract_strided_slice %602 {offsets = [0, 0], sizes = [16, 1], strides = [1, 1]} : vector<16x16xf32> to vector<16x1xf32>
    %604 = vector.extract_strided_slice %593 {offsets = [0, 0], sizes = [1, 16], strides = [1, 1]} : vector<16x16xf32> to vector<1x16xf32>
    %605 = vector.broadcast %603 : vector<16x1xf32> to vector<16x16xf32>
    %606 = vector.broadcast %604 : vector<1x16xf32> to vector<16x16xf32>
    %607 = arith.mulf %605, %606 : vector<16x16xf32>
    %608 = vector.extract_strided_slice %602 {offsets = [0, 1], sizes = [16, 1], strides = [1, 1]} : vector<16x16xf32> to vector<16x1xf32>
    %609 = vector.extract_strided_slice %593 {offsets = [1, 0], sizes = [1, 16], strides = [1, 1]} : vector<16x16xf32> to vector<1x16xf32>
    %610 = vector.broadcast %608 : vector<16x1xf32> to vector<16x16xf32>
    %611 = vector.broadcast %609 : vector<1x16xf32> to vector<16x16xf32>
    %612 = arith.mulf %610, %611 : vector<16x16xf32>
    %613 = vector.extract_strided_slice %602 {offsets = [0, 2], sizes = [16, 1], strides = [1, 1]} : vector<16x16xf32> to vector<16x1xf32>
    %614 = vector.extract_strided_slice %593 {offsets = [2, 0], sizes = [1, 16], strides = [1, 1]} : vector<16x16xf32> to vector<1x16xf32>
    %615 = vector.broadcast %613 : vector<16x1xf32> to vector<16x16xf32>
    %616 = vector.broadcast %614 : vector<1x16xf32> to vector<16x16xf32>
    %617 = arith.mulf %615, %616 : vector<16x16xf32>
    %618 = vector.extract_strided_slice %602 {offsets = [0, 3], sizes = [16, 1], strides = [1, 1]} : vector<16x16xf32> to vector<16x1xf32>
    %619 = vector.extract_strided_slice %593 {offsets = [3, 0], sizes = [1, 16], strides = [1, 1]} : vector<16x16xf32> to vector<1x16xf32>
    %620 = vector.broadcast %618 : vector<16x1xf32> to vector<16x16xf32>
    %621 = vector.broadcast %619 : vector<1x16xf32> to vector<16x16xf32>
    %622 = arith.mulf %620, %621 : vector<16x16xf32>
    %623 = vector.extract_strided_slice %602 {offsets = [0, 4], sizes = [16, 1], strides = [1, 1]} : vector<16x16xf32> to vector<16x1xf32>
    %624 = vector.extract_strided_slice %593 {offsets = [4, 0], sizes = [1, 16], strides = [1, 1]} : vector<16x16xf32> to vector<1x16xf32>
    %625 = vector.broadcast %623 : vector<16x1xf32> to vector<16x16xf32>
    %626 = vector.broadcast %624 : vector<1x16xf32> to vector<16x16xf32>
    %627 = arith.mulf %625, %626 : vector<16x16xf32>
    %628 = vector.extract_strided_slice %602 {offsets = [0, 5], sizes = [16, 1], strides = [1, 1]} : vector<16x16xf32> to vector<16x1xf32>
    %629 = vector.extract_strided_slice %593 {offsets = [5, 0], sizes = [1, 16], strides = [1, 1]} : vector<16x16xf32> to vector<1x16xf32>
    %630 = vector.broadcast %628 : vector<16x1xf32> to vector<16x16xf32>
    %631 = vector.broadcast %629 : vector<1x16xf32> to vector<16x16xf32>
    %632 = arith.mulf %630, %631 : vector<16x16xf32>
    %633 = vector.extract_strided_slice %602 {offsets = [0, 6], sizes = [16, 1], strides = [1, 1]} : vector<16x16xf32> to vector<16x1xf32>
    %634 = vector.extract_strided_slice %593 {offsets = [6, 0], sizes = [1, 16], strides = [1, 1]} : vector<16x16xf32> to vector<1x16xf32>
    %635 = vector.broadcast %633 : vector<16x1xf32> to vector<16x16xf32>
    %636 = vector.broadcast %634 : vector<1x16xf32> to vector<16x16xf32>
    %637 = arith.mulf %635, %636 : vector<16x16xf32>
    %638 = vector.extract_strided_slice %602 {offsets = [0, 7], sizes = [16, 1], strides = [1, 1]} : vector<16x16xf32> to vector<16x1xf32>
    %639 = vector.extract_strided_slice %593 {offsets = [7, 0], sizes = [1, 16], strides = [1, 1]} : vector<16x16xf32> to vector<1x16xf32>
    %640 = vector.broadcast %638 : vector<16x1xf32> to vector<16x16xf32>
    %641 = vector.broadcast %639 : vector<1x16xf32> to vector<16x16xf32>
    %642 = arith.mulf %640, %641 : vector<16x16xf32>
    %643 = vector.extract_strided_slice %602 {offsets = [0, 8], sizes = [16, 1], strides = [1, 1]} : vector<16x16xf32> to vector<16x1xf32>
    %644 = vector.extract_strided_slice %593 {offsets = [8, 0], sizes = [1, 16], strides = [1, 1]} : vector<16x16xf32> to vector<1x16xf32>
    %645 = vector.broadcast %643 : vector<16x1xf32> to vector<16x16xf32>
    %646 = vector.broadcast %644 : vector<1x16xf32> to vector<16x16xf32>
    %647 = arith.mulf %645, %646 : vector<16x16xf32>
    %648 = vector.extract_strided_slice %602 {offsets = [0, 9], sizes = [16, 1], strides = [1, 1]} : vector<16x16xf32> to vector<16x1xf32>
    %649 = vector.extract_strided_slice %593 {offsets = [9, 0], sizes = [1, 16], strides = [1, 1]} : vector<16x16xf32> to vector<1x16xf32>
    %650 = vector.broadcast %648 : vector<16x1xf32> to vector<16x16xf32>
    %651 = vector.broadcast %649 : vector<1x16xf32> to vector<16x16xf32>
    %652 = arith.mulf %650, %651 : vector<16x16xf32>
    %653 = vector.extract_strided_slice %602 {offsets = [0, 10], sizes = [16, 1], strides = [1, 1]} : vector<16x16xf32> to vector<16x1xf32>
    %654 = vector.extract_strided_slice %593 {offsets = [10, 0], sizes = [1, 16], strides = [1, 1]} : vector<16x16xf32> to vector<1x16xf32>
    %655 = vector.broadcast %653 : vector<16x1xf32> to vector<16x16xf32>
    %656 = vector.broadcast %654 : vector<1x16xf32> to vector<16x16xf32>
    %657 = arith.mulf %655, %656 : vector<16x16xf32>
    %658 = vector.extract_strided_slice %602 {offsets = [0, 11], sizes = [16, 1], strides = [1, 1]} : vector<16x16xf32> to vector<16x1xf32>
    %659 = vector.extract_strided_slice %593 {offsets = [11, 0], sizes = [1, 16], strides = [1, 1]} : vector<16x16xf32> to vector<1x16xf32>
    %660 = vector.broadcast %658 : vector<16x1xf32> to vector<16x16xf32>
    %661 = vector.broadcast %659 : vector<1x16xf32> to vector<16x16xf32>
    %662 = arith.mulf %660, %661 : vector<16x16xf32>
    %663 = vector.extract_strided_slice %602 {offsets = [0, 12], sizes = [16, 1], strides = [1, 1]} : vector<16x16xf32> to vector<16x1xf32>
    %664 = vector.extract_strided_slice %593 {offsets = [12, 0], sizes = [1, 16], strides = [1, 1]} : vector<16x16xf32> to vector<1x16xf32>
    %665 = vector.broadcast %663 : vector<16x1xf32> to vector<16x16xf32>
    %666 = vector.broadcast %664 : vector<1x16xf32> to vector<16x16xf32>
    %667 = arith.mulf %665, %666 : vector<16x16xf32>
    %668 = vector.extract_strided_slice %602 {offsets = [0, 13], sizes = [16, 1], strides = [1, 1]} : vector<16x16xf32> to vector<16x1xf32>
    %669 = vector.extract_strided_slice %593 {offsets = [13, 0], sizes = [1, 16], strides = [1, 1]} : vector<16x16xf32> to vector<1x16xf32>
    %670 = vector.broadcast %668 : vector<16x1xf32> to vector<16x16xf32>
    %671 = vector.broadcast %669 : vector<1x16xf32> to vector<16x16xf32>
    %672 = arith.mulf %670, %671 : vector<16x16xf32>
    %673 = vector.extract_strided_slice %602 {offsets = [0, 14], sizes = [16, 1], strides = [1, 1]} : vector<16x16xf32> to vector<16x1xf32>
    %674 = vector.extract_strided_slice %593 {offsets = [14, 0], sizes = [1, 16], strides = [1, 1]} : vector<16x16xf32> to vector<1x16xf32>
    %675 = vector.broadcast %673 : vector<16x1xf32> to vector<16x16xf32>
    %676 = vector.broadcast %674 : vector<1x16xf32> to vector<16x16xf32>
    %677 = arith.mulf %675, %676 : vector<16x16xf32>
    %678 = vector.extract_strided_slice %602 {offsets = [0, 15], sizes = [16, 1], strides = [1, 1]} : vector<16x16xf32> to vector<16x1xf32>
    %679 = vector.extract_strided_slice %593 {offsets = [15, 0], sizes = [1, 16], strides = [1, 1]} : vector<16x16xf32> to vector<1x16xf32>
    %680 = vector.broadcast %678 : vector<16x1xf32> to vector<16x16xf32>
    %681 = vector.broadcast %679 : vector<1x16xf32> to vector<16x16xf32>
    %682 = arith.mulf %680, %681 : vector<16x16xf32>
    %683 = arith.addf %607, %612 : vector<16x16xf32>
    %684 = arith.addf %617, %622 : vector<16x16xf32>
    %685 = arith.addf %627, %632 : vector<16x16xf32>
    %686 = arith.addf %637, %642 : vector<16x16xf32>
    %687 = arith.addf %647, %652 : vector<16x16xf32>
    %688 = arith.addf %657, %662 : vector<16x16xf32>
    %689 = arith.addf %667, %672 : vector<16x16xf32>
    %690 = arith.addf %677, %682 : vector<16x16xf32>
    %691 = arith.addf %683, %684 : vector<16x16xf32>
    %692 = arith.addf %685, %686 : vector<16x16xf32>
    %693 = arith.addf %687, %688 : vector<16x16xf32>
    %694 = arith.addf %689, %690 : vector<16x16xf32>
    %695 = arith.addf %691, %692 : vector<16x16xf32>
    %696 = arith.addf %693, %694 : vector<16x16xf32>
    %697 = arith.addf %695, %696 : vector<16x16xf32>
    %698 = vector.extract_strided_slice %51 {offsets = [0, 6], sizes = [16, 1], strides = [1, 1]} : vector<16x16xf32> to vector<16x1xf32>
    %699 = vector.broadcast %698 : vector<16x1xf32> to vector<16x16xf32>
    %700 = arith.addf %697, %699 : vector<16x16xf32>
    %701 = vector.extract_strided_slice %52 {offsets = [0, 6], sizes = [16, 1], strides = [1, 1]} : vector<16x16xf32> to vector<16x1xf32>
    %702 = vector.broadcast %701 : vector<16x1xf32> to vector<16x16xf32>
    %703 = arith.mulf %702, %700 : vector<16x16xf32>
    %cst_24 = arith.constant dense<0.000000e+00> : vector<16xf32>
    %704 = vector.multi_reduction <add>, %703, %cst_24 [0] : vector<16x16xf32> to vector<16xf32>
    %705 = vector.shape_cast %704 : vector<16xf32> to vector<1x16xf32>
    %706 = vector.extract_strided_slice %49 {offsets = [0, 7], sizes = [16, 1], strides = [1, 1]} : vector<16x16xf32> to vector<16x1xf32>
    %707 = vector.broadcast %706 : vector<16x1xf32> to vector<16x16xf32>
    %708 = arith.mulf %55, %707 : vector<16x16xf32>
    %709 = math.exp %708 : vector<16x16xf32>
    %710 = vector.extract_strided_slice %709 {offsets = [0, 0], sizes = [16, 1], strides = [1, 1]} : vector<16x16xf32> to vector<16x1xf32>
    %711 = vector.extract_strided_slice %700 {offsets = [0, 0], sizes = [1, 16], strides = [1, 1]} : vector<16x16xf32> to vector<1x16xf32>
    %712 = vector.broadcast %710 : vector<16x1xf32> to vector<16x16xf32>
    %713 = vector.broadcast %711 : vector<1x16xf32> to vector<16x16xf32>
    %714 = arith.mulf %712, %713 : vector<16x16xf32>
    %715 = vector.extract_strided_slice %709 {offsets = [0, 1], sizes = [16, 1], strides = [1, 1]} : vector<16x16xf32> to vector<16x1xf32>
    %716 = vector.extract_strided_slice %700 {offsets = [1, 0], sizes = [1, 16], strides = [1, 1]} : vector<16x16xf32> to vector<1x16xf32>
    %717 = vector.broadcast %715 : vector<16x1xf32> to vector<16x16xf32>
    %718 = vector.broadcast %716 : vector<1x16xf32> to vector<16x16xf32>
    %719 = arith.mulf %717, %718 : vector<16x16xf32>
    %720 = vector.extract_strided_slice %709 {offsets = [0, 2], sizes = [16, 1], strides = [1, 1]} : vector<16x16xf32> to vector<16x1xf32>
    %721 = vector.extract_strided_slice %700 {offsets = [2, 0], sizes = [1, 16], strides = [1, 1]} : vector<16x16xf32> to vector<1x16xf32>
    %722 = vector.broadcast %720 : vector<16x1xf32> to vector<16x16xf32>
    %723 = vector.broadcast %721 : vector<1x16xf32> to vector<16x16xf32>
    %724 = arith.mulf %722, %723 : vector<16x16xf32>
    %725 = vector.extract_strided_slice %709 {offsets = [0, 3], sizes = [16, 1], strides = [1, 1]} : vector<16x16xf32> to vector<16x1xf32>
    %726 = vector.extract_strided_slice %700 {offsets = [3, 0], sizes = [1, 16], strides = [1, 1]} : vector<16x16xf32> to vector<1x16xf32>
    %727 = vector.broadcast %725 : vector<16x1xf32> to vector<16x16xf32>
    %728 = vector.broadcast %726 : vector<1x16xf32> to vector<16x16xf32>
    %729 = arith.mulf %727, %728 : vector<16x16xf32>
    %730 = vector.extract_strided_slice %709 {offsets = [0, 4], sizes = [16, 1], strides = [1, 1]} : vector<16x16xf32> to vector<16x1xf32>
    %731 = vector.extract_strided_slice %700 {offsets = [4, 0], sizes = [1, 16], strides = [1, 1]} : vector<16x16xf32> to vector<1x16xf32>
    %732 = vector.broadcast %730 : vector<16x1xf32> to vector<16x16xf32>
    %733 = vector.broadcast %731 : vector<1x16xf32> to vector<16x16xf32>
    %734 = arith.mulf %732, %733 : vector<16x16xf32>
    %735 = vector.extract_strided_slice %709 {offsets = [0, 5], sizes = [16, 1], strides = [1, 1]} : vector<16x16xf32> to vector<16x1xf32>
    %736 = vector.extract_strided_slice %700 {offsets = [5, 0], sizes = [1, 16], strides = [1, 1]} : vector<16x16xf32> to vector<1x16xf32>
    %737 = vector.broadcast %735 : vector<16x1xf32> to vector<16x16xf32>
    %738 = vector.broadcast %736 : vector<1x16xf32> to vector<16x16xf32>
    %739 = arith.mulf %737, %738 : vector<16x16xf32>
    %740 = vector.extract_strided_slice %709 {offsets = [0, 6], sizes = [16, 1], strides = [1, 1]} : vector<16x16xf32> to vector<16x1xf32>
    %741 = vector.extract_strided_slice %700 {offsets = [6, 0], sizes = [1, 16], strides = [1, 1]} : vector<16x16xf32> to vector<1x16xf32>
    %742 = vector.broadcast %740 : vector<16x1xf32> to vector<16x16xf32>
    %743 = vector.broadcast %741 : vector<1x16xf32> to vector<16x16xf32>
    %744 = arith.mulf %742, %743 : vector<16x16xf32>
    %745 = vector.extract_strided_slice %709 {offsets = [0, 7], sizes = [16, 1], strides = [1, 1]} : vector<16x16xf32> to vector<16x1xf32>
    %746 = vector.extract_strided_slice %700 {offsets = [7, 0], sizes = [1, 16], strides = [1, 1]} : vector<16x16xf32> to vector<1x16xf32>
    %747 = vector.broadcast %745 : vector<16x1xf32> to vector<16x16xf32>
    %748 = vector.broadcast %746 : vector<1x16xf32> to vector<16x16xf32>
    %749 = arith.mulf %747, %748 : vector<16x16xf32>
    %750 = vector.extract_strided_slice %709 {offsets = [0, 8], sizes = [16, 1], strides = [1, 1]} : vector<16x16xf32> to vector<16x1xf32>
    %751 = vector.extract_strided_slice %700 {offsets = [8, 0], sizes = [1, 16], strides = [1, 1]} : vector<16x16xf32> to vector<1x16xf32>
    %752 = vector.broadcast %750 : vector<16x1xf32> to vector<16x16xf32>
    %753 = vector.broadcast %751 : vector<1x16xf32> to vector<16x16xf32>
    %754 = arith.mulf %752, %753 : vector<16x16xf32>
    %755 = vector.extract_strided_slice %709 {offsets = [0, 9], sizes = [16, 1], strides = [1, 1]} : vector<16x16xf32> to vector<16x1xf32>
    %756 = vector.extract_strided_slice %700 {offsets = [9, 0], sizes = [1, 16], strides = [1, 1]} : vector<16x16xf32> to vector<1x16xf32>
    %757 = vector.broadcast %755 : vector<16x1xf32> to vector<16x16xf32>
    %758 = vector.broadcast %756 : vector<1x16xf32> to vector<16x16xf32>
    %759 = arith.mulf %757, %758 : vector<16x16xf32>
    %760 = vector.extract_strided_slice %709 {offsets = [0, 10], sizes = [16, 1], strides = [1, 1]} : vector<16x16xf32> to vector<16x1xf32>
    %761 = vector.extract_strided_slice %700 {offsets = [10, 0], sizes = [1, 16], strides = [1, 1]} : vector<16x16xf32> to vector<1x16xf32>
    %762 = vector.broadcast %760 : vector<16x1xf32> to vector<16x16xf32>
    %763 = vector.broadcast %761 : vector<1x16xf32> to vector<16x16xf32>
    %764 = arith.mulf %762, %763 : vector<16x16xf32>
    %765 = vector.extract_strided_slice %709 {offsets = [0, 11], sizes = [16, 1], strides = [1, 1]} : vector<16x16xf32> to vector<16x1xf32>
    %766 = vector.extract_strided_slice %700 {offsets = [11, 0], sizes = [1, 16], strides = [1, 1]} : vector<16x16xf32> to vector<1x16xf32>
    %767 = vector.broadcast %765 : vector<16x1xf32> to vector<16x16xf32>
    %768 = vector.broadcast %766 : vector<1x16xf32> to vector<16x16xf32>
    %769 = arith.mulf %767, %768 : vector<16x16xf32>
    %770 = vector.extract_strided_slice %709 {offsets = [0, 12], sizes = [16, 1], strides = [1, 1]} : vector<16x16xf32> to vector<16x1xf32>
    %771 = vector.extract_strided_slice %700 {offsets = [12, 0], sizes = [1, 16], strides = [1, 1]} : vector<16x16xf32> to vector<1x16xf32>
    %772 = vector.broadcast %770 : vector<16x1xf32> to vector<16x16xf32>
    %773 = vector.broadcast %771 : vector<1x16xf32> to vector<16x16xf32>
    %774 = arith.mulf %772, %773 : vector<16x16xf32>
    %775 = vector.extract_strided_slice %709 {offsets = [0, 13], sizes = [16, 1], strides = [1, 1]} : vector<16x16xf32> to vector<16x1xf32>
    %776 = vector.extract_strided_slice %700 {offsets = [13, 0], sizes = [1, 16], strides = [1, 1]} : vector<16x16xf32> to vector<1x16xf32>
    %777 = vector.broadcast %775 : vector<16x1xf32> to vector<16x16xf32>
    %778 = vector.broadcast %776 : vector<1x16xf32> to vector<16x16xf32>
    %779 = arith.mulf %777, %778 : vector<16x16xf32>
    %780 = vector.extract_strided_slice %709 {offsets = [0, 14], sizes = [16, 1], strides = [1, 1]} : vector<16x16xf32> to vector<16x1xf32>
    %781 = vector.extract_strided_slice %700 {offsets = [14, 0], sizes = [1, 16], strides = [1, 1]} : vector<16x16xf32> to vector<1x16xf32>
    %782 = vector.broadcast %780 : vector<16x1xf32> to vector<16x16xf32>
    %783 = vector.broadcast %781 : vector<1x16xf32> to vector<16x16xf32>
    %784 = arith.mulf %782, %783 : vector<16x16xf32>
    %785 = vector.extract_strided_slice %709 {offsets = [0, 15], sizes = [16, 1], strides = [1, 1]} : vector<16x16xf32> to vector<16x1xf32>
    %786 = vector.extract_strided_slice %700 {offsets = [15, 0], sizes = [1, 16], strides = [1, 1]} : vector<16x16xf32> to vector<1x16xf32>
    %787 = vector.broadcast %785 : vector<16x1xf32> to vector<16x16xf32>
    %788 = vector.broadcast %786 : vector<1x16xf32> to vector<16x16xf32>
    %789 = arith.mulf %787, %788 : vector<16x16xf32>
    %790 = arith.addf %714, %719 : vector<16x16xf32>
    %791 = arith.addf %724, %729 : vector<16x16xf32>
    %792 = arith.addf %734, %739 : vector<16x16xf32>
    %793 = arith.addf %744, %749 : vector<16x16xf32>
    %794 = arith.addf %754, %759 : vector<16x16xf32>
    %795 = arith.addf %764, %769 : vector<16x16xf32>
    %796 = arith.addf %774, %779 : vector<16x16xf32>
    %797 = arith.addf %784, %789 : vector<16x16xf32>
    %798 = arith.addf %790, %791 : vector<16x16xf32>
    %799 = arith.addf %792, %793 : vector<16x16xf32>
    %800 = arith.addf %794, %795 : vector<16x16xf32>
    %801 = arith.addf %796, %797 : vector<16x16xf32>
    %802 = arith.addf %798, %799 : vector<16x16xf32>
    %803 = arith.addf %800, %801 : vector<16x16xf32>
    %804 = arith.addf %802, %803 : vector<16x16xf32>
    %805 = vector.extract_strided_slice %51 {offsets = [0, 7], sizes = [16, 1], strides = [1, 1]} : vector<16x16xf32> to vector<16x1xf32>
    %806 = vector.broadcast %805 : vector<16x1xf32> to vector<16x16xf32>
    %807 = arith.addf %804, %806 : vector<16x16xf32>
    %808 = vector.extract_strided_slice %52 {offsets = [0, 7], sizes = [16, 1], strides = [1, 1]} : vector<16x16xf32> to vector<16x1xf32>
    %809 = vector.broadcast %808 : vector<16x1xf32> to vector<16x16xf32>
    %810 = arith.mulf %809, %807 : vector<16x16xf32>
    %cst_25 = arith.constant dense<0.000000e+00> : vector<16xf32>
    %811 = vector.multi_reduction <add>, %810, %cst_25 [0] : vector<16x16xf32> to vector<16xf32>
    %812 = vector.shape_cast %811 : vector<16xf32> to vector<1x16xf32>
    %813 = vector.extract_strided_slice %49 {offsets = [0, 8], sizes = [16, 1], strides = [1, 1]} : vector<16x16xf32> to vector<16x1xf32>
    %814 = vector.broadcast %813 : vector<16x1xf32> to vector<16x16xf32>
    %815 = arith.mulf %55, %814 : vector<16x16xf32>
    %816 = math.exp %815 : vector<16x16xf32>
    %817 = vector.extract_strided_slice %816 {offsets = [0, 0], sizes = [16, 1], strides = [1, 1]} : vector<16x16xf32> to vector<16x1xf32>
    %818 = vector.extract_strided_slice %807 {offsets = [0, 0], sizes = [1, 16], strides = [1, 1]} : vector<16x16xf32> to vector<1x16xf32>
    %819 = vector.broadcast %817 : vector<16x1xf32> to vector<16x16xf32>
    %820 = vector.broadcast %818 : vector<1x16xf32> to vector<16x16xf32>
    %821 = arith.mulf %819, %820 : vector<16x16xf32>
    %822 = vector.extract_strided_slice %816 {offsets = [0, 1], sizes = [16, 1], strides = [1, 1]} : vector<16x16xf32> to vector<16x1xf32>
    %823 = vector.extract_strided_slice %807 {offsets = [1, 0], sizes = [1, 16], strides = [1, 1]} : vector<16x16xf32> to vector<1x16xf32>
    %824 = vector.broadcast %822 : vector<16x1xf32> to vector<16x16xf32>
    %825 = vector.broadcast %823 : vector<1x16xf32> to vector<16x16xf32>
    %826 = arith.mulf %824, %825 : vector<16x16xf32>
    %827 = vector.extract_strided_slice %816 {offsets = [0, 2], sizes = [16, 1], strides = [1, 1]} : vector<16x16xf32> to vector<16x1xf32>
    %828 = vector.extract_strided_slice %807 {offsets = [2, 0], sizes = [1, 16], strides = [1, 1]} : vector<16x16xf32> to vector<1x16xf32>
    %829 = vector.broadcast %827 : vector<16x1xf32> to vector<16x16xf32>
    %830 = vector.broadcast %828 : vector<1x16xf32> to vector<16x16xf32>
    %831 = arith.mulf %829, %830 : vector<16x16xf32>
    %832 = vector.extract_strided_slice %816 {offsets = [0, 3], sizes = [16, 1], strides = [1, 1]} : vector<16x16xf32> to vector<16x1xf32>
    %833 = vector.extract_strided_slice %807 {offsets = [3, 0], sizes = [1, 16], strides = [1, 1]} : vector<16x16xf32> to vector<1x16xf32>
    %834 = vector.broadcast %832 : vector<16x1xf32> to vector<16x16xf32>
    %835 = vector.broadcast %833 : vector<1x16xf32> to vector<16x16xf32>
    %836 = arith.mulf %834, %835 : vector<16x16xf32>
    %837 = vector.extract_strided_slice %816 {offsets = [0, 4], sizes = [16, 1], strides = [1, 1]} : vector<16x16xf32> to vector<16x1xf32>
    %838 = vector.extract_strided_slice %807 {offsets = [4, 0], sizes = [1, 16], strides = [1, 1]} : vector<16x16xf32> to vector<1x16xf32>
    %839 = vector.broadcast %837 : vector<16x1xf32> to vector<16x16xf32>
    %840 = vector.broadcast %838 : vector<1x16xf32> to vector<16x16xf32>
    %841 = arith.mulf %839, %840 : vector<16x16xf32>
    %842 = vector.extract_strided_slice %816 {offsets = [0, 5], sizes = [16, 1], strides = [1, 1]} : vector<16x16xf32> to vector<16x1xf32>
    %843 = vector.extract_strided_slice %807 {offsets = [5, 0], sizes = [1, 16], strides = [1, 1]} : vector<16x16xf32> to vector<1x16xf32>
    %844 = vector.broadcast %842 : vector<16x1xf32> to vector<16x16xf32>
    %845 = vector.broadcast %843 : vector<1x16xf32> to vector<16x16xf32>
    %846 = arith.mulf %844, %845 : vector<16x16xf32>
    %847 = vector.extract_strided_slice %816 {offsets = [0, 6], sizes = [16, 1], strides = [1, 1]} : vector<16x16xf32> to vector<16x1xf32>
    %848 = vector.extract_strided_slice %807 {offsets = [6, 0], sizes = [1, 16], strides = [1, 1]} : vector<16x16xf32> to vector<1x16xf32>
    %849 = vector.broadcast %847 : vector<16x1xf32> to vector<16x16xf32>
    %850 = vector.broadcast %848 : vector<1x16xf32> to vector<16x16xf32>
    %851 = arith.mulf %849, %850 : vector<16x16xf32>
    %852 = vector.extract_strided_slice %816 {offsets = [0, 7], sizes = [16, 1], strides = [1, 1]} : vector<16x16xf32> to vector<16x1xf32>
    %853 = vector.extract_strided_slice %807 {offsets = [7, 0], sizes = [1, 16], strides = [1, 1]} : vector<16x16xf32> to vector<1x16xf32>
    %854 = vector.broadcast %852 : vector<16x1xf32> to vector<16x16xf32>
    %855 = vector.broadcast %853 : vector<1x16xf32> to vector<16x16xf32>
    %856 = arith.mulf %854, %855 : vector<16x16xf32>
    %857 = vector.extract_strided_slice %816 {offsets = [0, 8], sizes = [16, 1], strides = [1, 1]} : vector<16x16xf32> to vector<16x1xf32>
    %858 = vector.extract_strided_slice %807 {offsets = [8, 0], sizes = [1, 16], strides = [1, 1]} : vector<16x16xf32> to vector<1x16xf32>
    %859 = vector.broadcast %857 : vector<16x1xf32> to vector<16x16xf32>
    %860 = vector.broadcast %858 : vector<1x16xf32> to vector<16x16xf32>
    %861 = arith.mulf %859, %860 : vector<16x16xf32>
    %862 = vector.extract_strided_slice %816 {offsets = [0, 9], sizes = [16, 1], strides = [1, 1]} : vector<16x16xf32> to vector<16x1xf32>
    %863 = vector.extract_strided_slice %807 {offsets = [9, 0], sizes = [1, 16], strides = [1, 1]} : vector<16x16xf32> to vector<1x16xf32>
    %864 = vector.broadcast %862 : vector<16x1xf32> to vector<16x16xf32>
    %865 = vector.broadcast %863 : vector<1x16xf32> to vector<16x16xf32>
    %866 = arith.mulf %864, %865 : vector<16x16xf32>
    %867 = vector.extract_strided_slice %816 {offsets = [0, 10], sizes = [16, 1], strides = [1, 1]} : vector<16x16xf32> to vector<16x1xf32>
    %868 = vector.extract_strided_slice %807 {offsets = [10, 0], sizes = [1, 16], strides = [1, 1]} : vector<16x16xf32> to vector<1x16xf32>
    %869 = vector.broadcast %867 : vector<16x1xf32> to vector<16x16xf32>
    %870 = vector.broadcast %868 : vector<1x16xf32> to vector<16x16xf32>
    %871 = arith.mulf %869, %870 : vector<16x16xf32>
    %872 = vector.extract_strided_slice %816 {offsets = [0, 11], sizes = [16, 1], strides = [1, 1]} : vector<16x16xf32> to vector<16x1xf32>
    %873 = vector.extract_strided_slice %807 {offsets = [11, 0], sizes = [1, 16], strides = [1, 1]} : vector<16x16xf32> to vector<1x16xf32>
    %874 = vector.broadcast %872 : vector<16x1xf32> to vector<16x16xf32>
    %875 = vector.broadcast %873 : vector<1x16xf32> to vector<16x16xf32>
    %876 = arith.mulf %874, %875 : vector<16x16xf32>
    %877 = vector.extract_strided_slice %816 {offsets = [0, 12], sizes = [16, 1], strides = [1, 1]} : vector<16x16xf32> to vector<16x1xf32>
    %878 = vector.extract_strided_slice %807 {offsets = [12, 0], sizes = [1, 16], strides = [1, 1]} : vector<16x16xf32> to vector<1x16xf32>
    %879 = vector.broadcast %877 : vector<16x1xf32> to vector<16x16xf32>
    %880 = vector.broadcast %878 : vector<1x16xf32> to vector<16x16xf32>
    %881 = arith.mulf %879, %880 : vector<16x16xf32>
    %882 = vector.extract_strided_slice %816 {offsets = [0, 13], sizes = [16, 1], strides = [1, 1]} : vector<16x16xf32> to vector<16x1xf32>
    %883 = vector.extract_strided_slice %807 {offsets = [13, 0], sizes = [1, 16], strides = [1, 1]} : vector<16x16xf32> to vector<1x16xf32>
    %884 = vector.broadcast %882 : vector<16x1xf32> to vector<16x16xf32>
    %885 = vector.broadcast %883 : vector<1x16xf32> to vector<16x16xf32>
    %886 = arith.mulf %884, %885 : vector<16x16xf32>
    %887 = vector.extract_strided_slice %816 {offsets = [0, 14], sizes = [16, 1], strides = [1, 1]} : vector<16x16xf32> to vector<16x1xf32>
    %888 = vector.extract_strided_slice %807 {offsets = [14, 0], sizes = [1, 16], strides = [1, 1]} : vector<16x16xf32> to vector<1x16xf32>
    %889 = vector.broadcast %887 : vector<16x1xf32> to vector<16x16xf32>
    %890 = vector.broadcast %888 : vector<1x16xf32> to vector<16x16xf32>
    %891 = arith.mulf %889, %890 : vector<16x16xf32>
    %892 = vector.extract_strided_slice %816 {offsets = [0, 15], sizes = [16, 1], strides = [1, 1]} : vector<16x16xf32> to vector<16x1xf32>
    %893 = vector.extract_strided_slice %807 {offsets = [15, 0], sizes = [1, 16], strides = [1, 1]} : vector<16x16xf32> to vector<1x16xf32>
    %894 = vector.broadcast %892 : vector<16x1xf32> to vector<16x16xf32>
    %895 = vector.broadcast %893 : vector<1x16xf32> to vector<16x16xf32>
    %896 = arith.mulf %894, %895 : vector<16x16xf32>
    %897 = arith.addf %821, %826 : vector<16x16xf32>
    %898 = arith.addf %831, %836 : vector<16x16xf32>
    %899 = arith.addf %841, %846 : vector<16x16xf32>
    %900 = arith.addf %851, %856 : vector<16x16xf32>
    %901 = arith.addf %861, %866 : vector<16x16xf32>
    %902 = arith.addf %871, %876 : vector<16x16xf32>
    %903 = arith.addf %881, %886 : vector<16x16xf32>
    %904 = arith.addf %891, %896 : vector<16x16xf32>
    %905 = arith.addf %897, %898 : vector<16x16xf32>
    %906 = arith.addf %899, %900 : vector<16x16xf32>
    %907 = arith.addf %901, %902 : vector<16x16xf32>
    %908 = arith.addf %903, %904 : vector<16x16xf32>
    %909 = arith.addf %905, %906 : vector<16x16xf32>
    %910 = arith.addf %907, %908 : vector<16x16xf32>
    %911 = arith.addf %909, %910 : vector<16x16xf32>
    %912 = vector.extract_strided_slice %51 {offsets = [0, 8], sizes = [16, 1], strides = [1, 1]} : vector<16x16xf32> to vector<16x1xf32>
    %913 = vector.broadcast %912 : vector<16x1xf32> to vector<16x16xf32>
    %914 = arith.addf %911, %913 : vector<16x16xf32>
    %915 = vector.extract_strided_slice %52 {offsets = [0, 8], sizes = [16, 1], strides = [1, 1]} : vector<16x16xf32> to vector<16x1xf32>
    %916 = vector.broadcast %915 : vector<16x1xf32> to vector<16x16xf32>
    %917 = arith.mulf %916, %914 : vector<16x16xf32>
    %cst_26 = arith.constant dense<0.000000e+00> : vector<16xf32>
    %918 = vector.multi_reduction <add>, %917, %cst_26 [0] : vector<16x16xf32> to vector<16xf32>
    %919 = vector.shape_cast %918 : vector<16xf32> to vector<1x16xf32>
    %920 = vector.extract_strided_slice %49 {offsets = [0, 9], sizes = [16, 1], strides = [1, 1]} : vector<16x16xf32> to vector<16x1xf32>
    %921 = vector.broadcast %920 : vector<16x1xf32> to vector<16x16xf32>
    %922 = arith.mulf %55, %921 : vector<16x16xf32>
    %923 = math.exp %922 : vector<16x16xf32>
    %924 = vector.extract_strided_slice %923 {offsets = [0, 0], sizes = [16, 1], strides = [1, 1]} : vector<16x16xf32> to vector<16x1xf32>
    %925 = vector.extract_strided_slice %914 {offsets = [0, 0], sizes = [1, 16], strides = [1, 1]} : vector<16x16xf32> to vector<1x16xf32>
    %926 = vector.broadcast %924 : vector<16x1xf32> to vector<16x16xf32>
    %927 = vector.broadcast %925 : vector<1x16xf32> to vector<16x16xf32>
    %928 = arith.mulf %926, %927 : vector<16x16xf32>
    %929 = vector.extract_strided_slice %923 {offsets = [0, 1], sizes = [16, 1], strides = [1, 1]} : vector<16x16xf32> to vector<16x1xf32>
    %930 = vector.extract_strided_slice %914 {offsets = [1, 0], sizes = [1, 16], strides = [1, 1]} : vector<16x16xf32> to vector<1x16xf32>
    %931 = vector.broadcast %929 : vector<16x1xf32> to vector<16x16xf32>
    %932 = vector.broadcast %930 : vector<1x16xf32> to vector<16x16xf32>
    %933 = arith.mulf %931, %932 : vector<16x16xf32>
    %934 = vector.extract_strided_slice %923 {offsets = [0, 2], sizes = [16, 1], strides = [1, 1]} : vector<16x16xf32> to vector<16x1xf32>
    %935 = vector.extract_strided_slice %914 {offsets = [2, 0], sizes = [1, 16], strides = [1, 1]} : vector<16x16xf32> to vector<1x16xf32>
    %936 = vector.broadcast %934 : vector<16x1xf32> to vector<16x16xf32>
    %937 = vector.broadcast %935 : vector<1x16xf32> to vector<16x16xf32>
    %938 = arith.mulf %936, %937 : vector<16x16xf32>
    %939 = vector.extract_strided_slice %923 {offsets = [0, 3], sizes = [16, 1], strides = [1, 1]} : vector<16x16xf32> to vector<16x1xf32>
    %940 = vector.extract_strided_slice %914 {offsets = [3, 0], sizes = [1, 16], strides = [1, 1]} : vector<16x16xf32> to vector<1x16xf32>
    %941 = vector.broadcast %939 : vector<16x1xf32> to vector<16x16xf32>
    %942 = vector.broadcast %940 : vector<1x16xf32> to vector<16x16xf32>
    %943 = arith.mulf %941, %942 : vector<16x16xf32>
    %944 = vector.extract_strided_slice %923 {offsets = [0, 4], sizes = [16, 1], strides = [1, 1]} : vector<16x16xf32> to vector<16x1xf32>
    %945 = vector.extract_strided_slice %914 {offsets = [4, 0], sizes = [1, 16], strides = [1, 1]} : vector<16x16xf32> to vector<1x16xf32>
    %946 = vector.broadcast %944 : vector<16x1xf32> to vector<16x16xf32>
    %947 = vector.broadcast %945 : vector<1x16xf32> to vector<16x16xf32>
    %948 = arith.mulf %946, %947 : vector<16x16xf32>
    %949 = vector.extract_strided_slice %923 {offsets = [0, 5], sizes = [16, 1], strides = [1, 1]} : vector<16x16xf32> to vector<16x1xf32>
    %950 = vector.extract_strided_slice %914 {offsets = [5, 0], sizes = [1, 16], strides = [1, 1]} : vector<16x16xf32> to vector<1x16xf32>
    %951 = vector.broadcast %949 : vector<16x1xf32> to vector<16x16xf32>
    %952 = vector.broadcast %950 : vector<1x16xf32> to vector<16x16xf32>
    %953 = arith.mulf %951, %952 : vector<16x16xf32>
    %954 = vector.extract_strided_slice %923 {offsets = [0, 6], sizes = [16, 1], strides = [1, 1]} : vector<16x16xf32> to vector<16x1xf32>
    %955 = vector.extract_strided_slice %914 {offsets = [6, 0], sizes = [1, 16], strides = [1, 1]} : vector<16x16xf32> to vector<1x16xf32>
    %956 = vector.broadcast %954 : vector<16x1xf32> to vector<16x16xf32>
    %957 = vector.broadcast %955 : vector<1x16xf32> to vector<16x16xf32>
    %958 = arith.mulf %956, %957 : vector<16x16xf32>
    %959 = vector.extract_strided_slice %923 {offsets = [0, 7], sizes = [16, 1], strides = [1, 1]} : vector<16x16xf32> to vector<16x1xf32>
    %960 = vector.extract_strided_slice %914 {offsets = [7, 0], sizes = [1, 16], strides = [1, 1]} : vector<16x16xf32> to vector<1x16xf32>
    %961 = vector.broadcast %959 : vector<16x1xf32> to vector<16x16xf32>
    %962 = vector.broadcast %960 : vector<1x16xf32> to vector<16x16xf32>
    %963 = arith.mulf %961, %962 : vector<16x16xf32>
    %964 = vector.extract_strided_slice %923 {offsets = [0, 8], sizes = [16, 1], strides = [1, 1]} : vector<16x16xf32> to vector<16x1xf32>
    %965 = vector.extract_strided_slice %914 {offsets = [8, 0], sizes = [1, 16], strides = [1, 1]} : vector<16x16xf32> to vector<1x16xf32>
    %966 = vector.broadcast %964 : vector<16x1xf32> to vector<16x16xf32>
    %967 = vector.broadcast %965 : vector<1x16xf32> to vector<16x16xf32>
    %968 = arith.mulf %966, %967 : vector<16x16xf32>
    %969 = vector.extract_strided_slice %923 {offsets = [0, 9], sizes = [16, 1], strides = [1, 1]} : vector<16x16xf32> to vector<16x1xf32>
    %970 = vector.extract_strided_slice %914 {offsets = [9, 0], sizes = [1, 16], strides = [1, 1]} : vector<16x16xf32> to vector<1x16xf32>
    %971 = vector.broadcast %969 : vector<16x1xf32> to vector<16x16xf32>
    %972 = vector.broadcast %970 : vector<1x16xf32> to vector<16x16xf32>
    %973 = arith.mulf %971, %972 : vector<16x16xf32>
    %974 = vector.extract_strided_slice %923 {offsets = [0, 10], sizes = [16, 1], strides = [1, 1]} : vector<16x16xf32> to vector<16x1xf32>
    %975 = vector.extract_strided_slice %914 {offsets = [10, 0], sizes = [1, 16], strides = [1, 1]} : vector<16x16xf32> to vector<1x16xf32>
    %976 = vector.broadcast %974 : vector<16x1xf32> to vector<16x16xf32>
    %977 = vector.broadcast %975 : vector<1x16xf32> to vector<16x16xf32>
    %978 = arith.mulf %976, %977 : vector<16x16xf32>
    %979 = vector.extract_strided_slice %923 {offsets = [0, 11], sizes = [16, 1], strides = [1, 1]} : vector<16x16xf32> to vector<16x1xf32>
    %980 = vector.extract_strided_slice %914 {offsets = [11, 0], sizes = [1, 16], strides = [1, 1]} : vector<16x16xf32> to vector<1x16xf32>
    %981 = vector.broadcast %979 : vector<16x1xf32> to vector<16x16xf32>
    %982 = vector.broadcast %980 : vector<1x16xf32> to vector<16x16xf32>
    %983 = arith.mulf %981, %982 : vector<16x16xf32>
    %984 = vector.extract_strided_slice %923 {offsets = [0, 12], sizes = [16, 1], strides = [1, 1]} : vector<16x16xf32> to vector<16x1xf32>
    %985 = vector.extract_strided_slice %914 {offsets = [12, 0], sizes = [1, 16], strides = [1, 1]} : vector<16x16xf32> to vector<1x16xf32>
    %986 = vector.broadcast %984 : vector<16x1xf32> to vector<16x16xf32>
    %987 = vector.broadcast %985 : vector<1x16xf32> to vector<16x16xf32>
    %988 = arith.mulf %986, %987 : vector<16x16xf32>
    %989 = vector.extract_strided_slice %923 {offsets = [0, 13], sizes = [16, 1], strides = [1, 1]} : vector<16x16xf32> to vector<16x1xf32>
    %990 = vector.extract_strided_slice %914 {offsets = [13, 0], sizes = [1, 16], strides = [1, 1]} : vector<16x16xf32> to vector<1x16xf32>
    %991 = vector.broadcast %989 : vector<16x1xf32> to vector<16x16xf32>
    %992 = vector.broadcast %990 : vector<1x16xf32> to vector<16x16xf32>
    %993 = arith.mulf %991, %992 : vector<16x16xf32>
    %994 = vector.extract_strided_slice %923 {offsets = [0, 14], sizes = [16, 1], strides = [1, 1]} : vector<16x16xf32> to vector<16x1xf32>
    %995 = vector.extract_strided_slice %914 {offsets = [14, 0], sizes = [1, 16], strides = [1, 1]} : vector<16x16xf32> to vector<1x16xf32>
    %996 = vector.broadcast %994 : vector<16x1xf32> to vector<16x16xf32>
    %997 = vector.broadcast %995 : vector<1x16xf32> to vector<16x16xf32>
    %998 = arith.mulf %996, %997 : vector<16x16xf32>
    %999 = vector.extract_strided_slice %923 {offsets = [0, 15], sizes = [16, 1], strides = [1, 1]} : vector<16x16xf32> to vector<16x1xf32>
    %1000 = vector.extract_strided_slice %914 {offsets = [15, 0], sizes = [1, 16], strides = [1, 1]} : vector<16x16xf32> to vector<1x16xf32>
    %1001 = vector.broadcast %999 : vector<16x1xf32> to vector<16x16xf32>
    %1002 = vector.broadcast %1000 : vector<1x16xf32> to vector<16x16xf32>
    %1003 = arith.mulf %1001, %1002 : vector<16x16xf32>
    %1004 = arith.addf %928, %933 : vector<16x16xf32>
    %1005 = arith.addf %938, %943 : vector<16x16xf32>
    %1006 = arith.addf %948, %953 : vector<16x16xf32>
    %1007 = arith.addf %958, %963 : vector<16x16xf32>
    %1008 = arith.addf %968, %973 : vector<16x16xf32>
    %1009 = arith.addf %978, %983 : vector<16x16xf32>
    %1010 = arith.addf %988, %993 : vector<16x16xf32>
    %1011 = arith.addf %998, %1003 : vector<16x16xf32>
    %1012 = arith.addf %1004, %1005 : vector<16x16xf32>
    %1013 = arith.addf %1006, %1007 : vector<16x16xf32>
    %1014 = arith.addf %1008, %1009 : vector<16x16xf32>
    %1015 = arith.addf %1010, %1011 : vector<16x16xf32>
    %1016 = arith.addf %1012, %1013 : vector<16x16xf32>
    %1017 = arith.addf %1014, %1015 : vector<16x16xf32>
    %1018 = arith.addf %1016, %1017 : vector<16x16xf32>
    %1019 = vector.extract_strided_slice %51 {offsets = [0, 9], sizes = [16, 1], strides = [1, 1]} : vector<16x16xf32> to vector<16x1xf32>
    %1020 = vector.broadcast %1019 : vector<16x1xf32> to vector<16x16xf32>
    %1021 = arith.addf %1018, %1020 : vector<16x16xf32>
    %1022 = vector.extract_strided_slice %52 {offsets = [0, 9], sizes = [16, 1], strides = [1, 1]} : vector<16x16xf32> to vector<16x1xf32>
    %1023 = vector.broadcast %1022 : vector<16x1xf32> to vector<16x16xf32>
    %1024 = arith.mulf %1023, %1021 : vector<16x16xf32>
    %cst_27 = arith.constant dense<0.000000e+00> : vector<16xf32>
    %1025 = vector.multi_reduction <add>, %1024, %cst_27 [0] : vector<16x16xf32> to vector<16xf32>
    %1026 = vector.shape_cast %1025 : vector<16xf32> to vector<1x16xf32>
    %1027 = vector.extract_strided_slice %49 {offsets = [0, 10], sizes = [16, 1], strides = [1, 1]} : vector<16x16xf32> to vector<16x1xf32>
    %1028 = vector.broadcast %1027 : vector<16x1xf32> to vector<16x16xf32>
    %1029 = arith.mulf %55, %1028 : vector<16x16xf32>
    %1030 = math.exp %1029 : vector<16x16xf32>
    %1031 = vector.extract_strided_slice %1030 {offsets = [0, 0], sizes = [16, 1], strides = [1, 1]} : vector<16x16xf32> to vector<16x1xf32>
    %1032 = vector.extract_strided_slice %1021 {offsets = [0, 0], sizes = [1, 16], strides = [1, 1]} : vector<16x16xf32> to vector<1x16xf32>
    %1033 = vector.broadcast %1031 : vector<16x1xf32> to vector<16x16xf32>
    %1034 = vector.broadcast %1032 : vector<1x16xf32> to vector<16x16xf32>
    %1035 = arith.mulf %1033, %1034 : vector<16x16xf32>
    %1036 = vector.extract_strided_slice %1030 {offsets = [0, 1], sizes = [16, 1], strides = [1, 1]} : vector<16x16xf32> to vector<16x1xf32>
    %1037 = vector.extract_strided_slice %1021 {offsets = [1, 0], sizes = [1, 16], strides = [1, 1]} : vector<16x16xf32> to vector<1x16xf32>
    %1038 = vector.broadcast %1036 : vector<16x1xf32> to vector<16x16xf32>
    %1039 = vector.broadcast %1037 : vector<1x16xf32> to vector<16x16xf32>
    %1040 = arith.mulf %1038, %1039 : vector<16x16xf32>
    %1041 = vector.extract_strided_slice %1030 {offsets = [0, 2], sizes = [16, 1], strides = [1, 1]} : vector<16x16xf32> to vector<16x1xf32>
    %1042 = vector.extract_strided_slice %1021 {offsets = [2, 0], sizes = [1, 16], strides = [1, 1]} : vector<16x16xf32> to vector<1x16xf32>
    %1043 = vector.broadcast %1041 : vector<16x1xf32> to vector<16x16xf32>
    %1044 = vector.broadcast %1042 : vector<1x16xf32> to vector<16x16xf32>
    %1045 = arith.mulf %1043, %1044 : vector<16x16xf32>
    %1046 = vector.extract_strided_slice %1030 {offsets = [0, 3], sizes = [16, 1], strides = [1, 1]} : vector<16x16xf32> to vector<16x1xf32>
    %1047 = vector.extract_strided_slice %1021 {offsets = [3, 0], sizes = [1, 16], strides = [1, 1]} : vector<16x16xf32> to vector<1x16xf32>
    %1048 = vector.broadcast %1046 : vector<16x1xf32> to vector<16x16xf32>
    %1049 = vector.broadcast %1047 : vector<1x16xf32> to vector<16x16xf32>
    %1050 = arith.mulf %1048, %1049 : vector<16x16xf32>
    %1051 = vector.extract_strided_slice %1030 {offsets = [0, 4], sizes = [16, 1], strides = [1, 1]} : vector<16x16xf32> to vector<16x1xf32>
    %1052 = vector.extract_strided_slice %1021 {offsets = [4, 0], sizes = [1, 16], strides = [1, 1]} : vector<16x16xf32> to vector<1x16xf32>
    %1053 = vector.broadcast %1051 : vector<16x1xf32> to vector<16x16xf32>
    %1054 = vector.broadcast %1052 : vector<1x16xf32> to vector<16x16xf32>
    %1055 = arith.mulf %1053, %1054 : vector<16x16xf32>
    %1056 = vector.extract_strided_slice %1030 {offsets = [0, 5], sizes = [16, 1], strides = [1, 1]} : vector<16x16xf32> to vector<16x1xf32>
    %1057 = vector.extract_strided_slice %1021 {offsets = [5, 0], sizes = [1, 16], strides = [1, 1]} : vector<16x16xf32> to vector<1x16xf32>
    %1058 = vector.broadcast %1056 : vector<16x1xf32> to vector<16x16xf32>
    %1059 = vector.broadcast %1057 : vector<1x16xf32> to vector<16x16xf32>
    %1060 = arith.mulf %1058, %1059 : vector<16x16xf32>
    %1061 = vector.extract_strided_slice %1030 {offsets = [0, 6], sizes = [16, 1], strides = [1, 1]} : vector<16x16xf32> to vector<16x1xf32>
    %1062 = vector.extract_strided_slice %1021 {offsets = [6, 0], sizes = [1, 16], strides = [1, 1]} : vector<16x16xf32> to vector<1x16xf32>
    %1063 = vector.broadcast %1061 : vector<16x1xf32> to vector<16x16xf32>
    %1064 = vector.broadcast %1062 : vector<1x16xf32> to vector<16x16xf32>
    %1065 = arith.mulf %1063, %1064 : vector<16x16xf32>
    %1066 = vector.extract_strided_slice %1030 {offsets = [0, 7], sizes = [16, 1], strides = [1, 1]} : vector<16x16xf32> to vector<16x1xf32>
    %1067 = vector.extract_strided_slice %1021 {offsets = [7, 0], sizes = [1, 16], strides = [1, 1]} : vector<16x16xf32> to vector<1x16xf32>
    %1068 = vector.broadcast %1066 : vector<16x1xf32> to vector<16x16xf32>
    %1069 = vector.broadcast %1067 : vector<1x16xf32> to vector<16x16xf32>
    %1070 = arith.mulf %1068, %1069 : vector<16x16xf32>
    %1071 = vector.extract_strided_slice %1030 {offsets = [0, 8], sizes = [16, 1], strides = [1, 1]} : vector<16x16xf32> to vector<16x1xf32>
    %1072 = vector.extract_strided_slice %1021 {offsets = [8, 0], sizes = [1, 16], strides = [1, 1]} : vector<16x16xf32> to vector<1x16xf32>
    %1073 = vector.broadcast %1071 : vector<16x1xf32> to vector<16x16xf32>
    %1074 = vector.broadcast %1072 : vector<1x16xf32> to vector<16x16xf32>
    %1075 = arith.mulf %1073, %1074 : vector<16x16xf32>
    %1076 = vector.extract_strided_slice %1030 {offsets = [0, 9], sizes = [16, 1], strides = [1, 1]} : vector<16x16xf32> to vector<16x1xf32>
    %1077 = vector.extract_strided_slice %1021 {offsets = [9, 0], sizes = [1, 16], strides = [1, 1]} : vector<16x16xf32> to vector<1x16xf32>
    %1078 = vector.broadcast %1076 : vector<16x1xf32> to vector<16x16xf32>
    %1079 = vector.broadcast %1077 : vector<1x16xf32> to vector<16x16xf32>
    %1080 = arith.mulf %1078, %1079 : vector<16x16xf32>
    %1081 = vector.extract_strided_slice %1030 {offsets = [0, 10], sizes = [16, 1], strides = [1, 1]} : vector<16x16xf32> to vector<16x1xf32>
    %1082 = vector.extract_strided_slice %1021 {offsets = [10, 0], sizes = [1, 16], strides = [1, 1]} : vector<16x16xf32> to vector<1x16xf32>
    %1083 = vector.broadcast %1081 : vector<16x1xf32> to vector<16x16xf32>
    %1084 = vector.broadcast %1082 : vector<1x16xf32> to vector<16x16xf32>
    %1085 = arith.mulf %1083, %1084 : vector<16x16xf32>
    %1086 = vector.extract_strided_slice %1030 {offsets = [0, 11], sizes = [16, 1], strides = [1, 1]} : vector<16x16xf32> to vector<16x1xf32>
    %1087 = vector.extract_strided_slice %1021 {offsets = [11, 0], sizes = [1, 16], strides = [1, 1]} : vector<16x16xf32> to vector<1x16xf32>
    %1088 = vector.broadcast %1086 : vector<16x1xf32> to vector<16x16xf32>
    %1089 = vector.broadcast %1087 : vector<1x16xf32> to vector<16x16xf32>
    %1090 = arith.mulf %1088, %1089 : vector<16x16xf32>
    %1091 = vector.extract_strided_slice %1030 {offsets = [0, 12], sizes = [16, 1], strides = [1, 1]} : vector<16x16xf32> to vector<16x1xf32>
    %1092 = vector.extract_strided_slice %1021 {offsets = [12, 0], sizes = [1, 16], strides = [1, 1]} : vector<16x16xf32> to vector<1x16xf32>
    %1093 = vector.broadcast %1091 : vector<16x1xf32> to vector<16x16xf32>
    %1094 = vector.broadcast %1092 : vector<1x16xf32> to vector<16x16xf32>
    %1095 = arith.mulf %1093, %1094 : vector<16x16xf32>
    %1096 = vector.extract_strided_slice %1030 {offsets = [0, 13], sizes = [16, 1], strides = [1, 1]} : vector<16x16xf32> to vector<16x1xf32>
    %1097 = vector.extract_strided_slice %1021 {offsets = [13, 0], sizes = [1, 16], strides = [1, 1]} : vector<16x16xf32> to vector<1x16xf32>
    %1098 = vector.broadcast %1096 : vector<16x1xf32> to vector<16x16xf32>
    %1099 = vector.broadcast %1097 : vector<1x16xf32> to vector<16x16xf32>
    %1100 = arith.mulf %1098, %1099 : vector<16x16xf32>
    %1101 = vector.extract_strided_slice %1030 {offsets = [0, 14], sizes = [16, 1], strides = [1, 1]} : vector<16x16xf32> to vector<16x1xf32>
    %1102 = vector.extract_strided_slice %1021 {offsets = [14, 0], sizes = [1, 16], strides = [1, 1]} : vector<16x16xf32> to vector<1x16xf32>
    %1103 = vector.broadcast %1101 : vector<16x1xf32> to vector<16x16xf32>
    %1104 = vector.broadcast %1102 : vector<1x16xf32> to vector<16x16xf32>
    %1105 = arith.mulf %1103, %1104 : vector<16x16xf32>
    %1106 = vector.extract_strided_slice %1030 {offsets = [0, 15], sizes = [16, 1], strides = [1, 1]} : vector<16x16xf32> to vector<16x1xf32>
    %1107 = vector.extract_strided_slice %1021 {offsets = [15, 0], sizes = [1, 16], strides = [1, 1]} : vector<16x16xf32> to vector<1x16xf32>
    %1108 = vector.broadcast %1106 : vector<16x1xf32> to vector<16x16xf32>
    %1109 = vector.broadcast %1107 : vector<1x16xf32> to vector<16x16xf32>
    %1110 = arith.mulf %1108, %1109 : vector<16x16xf32>
    %1111 = arith.addf %1035, %1040 : vector<16x16xf32>
    %1112 = arith.addf %1045, %1050 : vector<16x16xf32>
    %1113 = arith.addf %1055, %1060 : vector<16x16xf32>
    %1114 = arith.addf %1065, %1070 : vector<16x16xf32>
    %1115 = arith.addf %1075, %1080 : vector<16x16xf32>
    %1116 = arith.addf %1085, %1090 : vector<16x16xf32>
    %1117 = arith.addf %1095, %1100 : vector<16x16xf32>
    %1118 = arith.addf %1105, %1110 : vector<16x16xf32>
    %1119 = arith.addf %1111, %1112 : vector<16x16xf32>
    %1120 = arith.addf %1113, %1114 : vector<16x16xf32>
    %1121 = arith.addf %1115, %1116 : vector<16x16xf32>
    %1122 = arith.addf %1117, %1118 : vector<16x16xf32>
    %1123 = arith.addf %1119, %1120 : vector<16x16xf32>
    %1124 = arith.addf %1121, %1122 : vector<16x16xf32>
    %1125 = arith.addf %1123, %1124 : vector<16x16xf32>
    %1126 = vector.extract_strided_slice %51 {offsets = [0, 10], sizes = [16, 1], strides = [1, 1]} : vector<16x16xf32> to vector<16x1xf32>
    %1127 = vector.broadcast %1126 : vector<16x1xf32> to vector<16x16xf32>
    %1128 = arith.addf %1125, %1127 : vector<16x16xf32>
    %1129 = vector.extract_strided_slice %52 {offsets = [0, 10], sizes = [16, 1], strides = [1, 1]} : vector<16x16xf32> to vector<16x1xf32>
    %1130 = vector.broadcast %1129 : vector<16x1xf32> to vector<16x16xf32>
    %1131 = arith.mulf %1130, %1128 : vector<16x16xf32>
    %cst_28 = arith.constant dense<0.000000e+00> : vector<16xf32>
    %1132 = vector.multi_reduction <add>, %1131, %cst_28 [0] : vector<16x16xf32> to vector<16xf32>
    %1133 = vector.shape_cast %1132 : vector<16xf32> to vector<1x16xf32>
    %1134 = vector.extract_strided_slice %49 {offsets = [0, 11], sizes = [16, 1], strides = [1, 1]} : vector<16x16xf32> to vector<16x1xf32>
    %1135 = vector.broadcast %1134 : vector<16x1xf32> to vector<16x16xf32>
    %1136 = arith.mulf %55, %1135 : vector<16x16xf32>
    %1137 = math.exp %1136 : vector<16x16xf32>
    %1138 = vector.extract_strided_slice %1137 {offsets = [0, 0], sizes = [16, 1], strides = [1, 1]} : vector<16x16xf32> to vector<16x1xf32>
    %1139 = vector.extract_strided_slice %1128 {offsets = [0, 0], sizes = [1, 16], strides = [1, 1]} : vector<16x16xf32> to vector<1x16xf32>
    %1140 = vector.broadcast %1138 : vector<16x1xf32> to vector<16x16xf32>
    %1141 = vector.broadcast %1139 : vector<1x16xf32> to vector<16x16xf32>
    %1142 = arith.mulf %1140, %1141 : vector<16x16xf32>
    %1143 = vector.extract_strided_slice %1137 {offsets = [0, 1], sizes = [16, 1], strides = [1, 1]} : vector<16x16xf32> to vector<16x1xf32>
    %1144 = vector.extract_strided_slice %1128 {offsets = [1, 0], sizes = [1, 16], strides = [1, 1]} : vector<16x16xf32> to vector<1x16xf32>
    %1145 = vector.broadcast %1143 : vector<16x1xf32> to vector<16x16xf32>
    %1146 = vector.broadcast %1144 : vector<1x16xf32> to vector<16x16xf32>
    %1147 = arith.mulf %1145, %1146 : vector<16x16xf32>
    %1148 = vector.extract_strided_slice %1137 {offsets = [0, 2], sizes = [16, 1], strides = [1, 1]} : vector<16x16xf32> to vector<16x1xf32>
    %1149 = vector.extract_strided_slice %1128 {offsets = [2, 0], sizes = [1, 16], strides = [1, 1]} : vector<16x16xf32> to vector<1x16xf32>
    %1150 = vector.broadcast %1148 : vector<16x1xf32> to vector<16x16xf32>
    %1151 = vector.broadcast %1149 : vector<1x16xf32> to vector<16x16xf32>
    %1152 = arith.mulf %1150, %1151 : vector<16x16xf32>
    %1153 = vector.extract_strided_slice %1137 {offsets = [0, 3], sizes = [16, 1], strides = [1, 1]} : vector<16x16xf32> to vector<16x1xf32>
    %1154 = vector.extract_strided_slice %1128 {offsets = [3, 0], sizes = [1, 16], strides = [1, 1]} : vector<16x16xf32> to vector<1x16xf32>
    %1155 = vector.broadcast %1153 : vector<16x1xf32> to vector<16x16xf32>
    %1156 = vector.broadcast %1154 : vector<1x16xf32> to vector<16x16xf32>
    %1157 = arith.mulf %1155, %1156 : vector<16x16xf32>
    %1158 = vector.extract_strided_slice %1137 {offsets = [0, 4], sizes = [16, 1], strides = [1, 1]} : vector<16x16xf32> to vector<16x1xf32>
    %1159 = vector.extract_strided_slice %1128 {offsets = [4, 0], sizes = [1, 16], strides = [1, 1]} : vector<16x16xf32> to vector<1x16xf32>
    %1160 = vector.broadcast %1158 : vector<16x1xf32> to vector<16x16xf32>
    %1161 = vector.broadcast %1159 : vector<1x16xf32> to vector<16x16xf32>
    %1162 = arith.mulf %1160, %1161 : vector<16x16xf32>
    %1163 = vector.extract_strided_slice %1137 {offsets = [0, 5], sizes = [16, 1], strides = [1, 1]} : vector<16x16xf32> to vector<16x1xf32>
    %1164 = vector.extract_strided_slice %1128 {offsets = [5, 0], sizes = [1, 16], strides = [1, 1]} : vector<16x16xf32> to vector<1x16xf32>
    %1165 = vector.broadcast %1163 : vector<16x1xf32> to vector<16x16xf32>
    %1166 = vector.broadcast %1164 : vector<1x16xf32> to vector<16x16xf32>
    %1167 = arith.mulf %1165, %1166 : vector<16x16xf32>
    %1168 = vector.extract_strided_slice %1137 {offsets = [0, 6], sizes = [16, 1], strides = [1, 1]} : vector<16x16xf32> to vector<16x1xf32>
    %1169 = vector.extract_strided_slice %1128 {offsets = [6, 0], sizes = [1, 16], strides = [1, 1]} : vector<16x16xf32> to vector<1x16xf32>
    %1170 = vector.broadcast %1168 : vector<16x1xf32> to vector<16x16xf32>
    %1171 = vector.broadcast %1169 : vector<1x16xf32> to vector<16x16xf32>
    %1172 = arith.mulf %1170, %1171 : vector<16x16xf32>
    %1173 = vector.extract_strided_slice %1137 {offsets = [0, 7], sizes = [16, 1], strides = [1, 1]} : vector<16x16xf32> to vector<16x1xf32>
    %1174 = vector.extract_strided_slice %1128 {offsets = [7, 0], sizes = [1, 16], strides = [1, 1]} : vector<16x16xf32> to vector<1x16xf32>
    %1175 = vector.broadcast %1173 : vector<16x1xf32> to vector<16x16xf32>
    %1176 = vector.broadcast %1174 : vector<1x16xf32> to vector<16x16xf32>
    %1177 = arith.mulf %1175, %1176 : vector<16x16xf32>
    %1178 = vector.extract_strided_slice %1137 {offsets = [0, 8], sizes = [16, 1], strides = [1, 1]} : vector<16x16xf32> to vector<16x1xf32>
    %1179 = vector.extract_strided_slice %1128 {offsets = [8, 0], sizes = [1, 16], strides = [1, 1]} : vector<16x16xf32> to vector<1x16xf32>
    %1180 = vector.broadcast %1178 : vector<16x1xf32> to vector<16x16xf32>
    %1181 = vector.broadcast %1179 : vector<1x16xf32> to vector<16x16xf32>
    %1182 = arith.mulf %1180, %1181 : vector<16x16xf32>
    %1183 = vector.extract_strided_slice %1137 {offsets = [0, 9], sizes = [16, 1], strides = [1, 1]} : vector<16x16xf32> to vector<16x1xf32>
    %1184 = vector.extract_strided_slice %1128 {offsets = [9, 0], sizes = [1, 16], strides = [1, 1]} : vector<16x16xf32> to vector<1x16xf32>
    %1185 = vector.broadcast %1183 : vector<16x1xf32> to vector<16x16xf32>
    %1186 = vector.broadcast %1184 : vector<1x16xf32> to vector<16x16xf32>
    %1187 = arith.mulf %1185, %1186 : vector<16x16xf32>
    %1188 = vector.extract_strided_slice %1137 {offsets = [0, 10], sizes = [16, 1], strides = [1, 1]} : vector<16x16xf32> to vector<16x1xf32>
    %1189 = vector.extract_strided_slice %1128 {offsets = [10, 0], sizes = [1, 16], strides = [1, 1]} : vector<16x16xf32> to vector<1x16xf32>
    %1190 = vector.broadcast %1188 : vector<16x1xf32> to vector<16x16xf32>
    %1191 = vector.broadcast %1189 : vector<1x16xf32> to vector<16x16xf32>
    %1192 = arith.mulf %1190, %1191 : vector<16x16xf32>
    %1193 = vector.extract_strided_slice %1137 {offsets = [0, 11], sizes = [16, 1], strides = [1, 1]} : vector<16x16xf32> to vector<16x1xf32>
    %1194 = vector.extract_strided_slice %1128 {offsets = [11, 0], sizes = [1, 16], strides = [1, 1]} : vector<16x16xf32> to vector<1x16xf32>
    %1195 = vector.broadcast %1193 : vector<16x1xf32> to vector<16x16xf32>
    %1196 = vector.broadcast %1194 : vector<1x16xf32> to vector<16x16xf32>
    %1197 = arith.mulf %1195, %1196 : vector<16x16xf32>
    %1198 = vector.extract_strided_slice %1137 {offsets = [0, 12], sizes = [16, 1], strides = [1, 1]} : vector<16x16xf32> to vector<16x1xf32>
    %1199 = vector.extract_strided_slice %1128 {offsets = [12, 0], sizes = [1, 16], strides = [1, 1]} : vector<16x16xf32> to vector<1x16xf32>
    %1200 = vector.broadcast %1198 : vector<16x1xf32> to vector<16x16xf32>
    %1201 = vector.broadcast %1199 : vector<1x16xf32> to vector<16x16xf32>
    %1202 = arith.mulf %1200, %1201 : vector<16x16xf32>
    %1203 = vector.extract_strided_slice %1137 {offsets = [0, 13], sizes = [16, 1], strides = [1, 1]} : vector<16x16xf32> to vector<16x1xf32>
    %1204 = vector.extract_strided_slice %1128 {offsets = [13, 0], sizes = [1, 16], strides = [1, 1]} : vector<16x16xf32> to vector<1x16xf32>
    %1205 = vector.broadcast %1203 : vector<16x1xf32> to vector<16x16xf32>
    %1206 = vector.broadcast %1204 : vector<1x16xf32> to vector<16x16xf32>
    %1207 = arith.mulf %1205, %1206 : vector<16x16xf32>
    %1208 = vector.extract_strided_slice %1137 {offsets = [0, 14], sizes = [16, 1], strides = [1, 1]} : vector<16x16xf32> to vector<16x1xf32>
    %1209 = vector.extract_strided_slice %1128 {offsets = [14, 0], sizes = [1, 16], strides = [1, 1]} : vector<16x16xf32> to vector<1x16xf32>
    %1210 = vector.broadcast %1208 : vector<16x1xf32> to vector<16x16xf32>
    %1211 = vector.broadcast %1209 : vector<1x16xf32> to vector<16x16xf32>
    %1212 = arith.mulf %1210, %1211 : vector<16x16xf32>
    %1213 = vector.extract_strided_slice %1137 {offsets = [0, 15], sizes = [16, 1], strides = [1, 1]} : vector<16x16xf32> to vector<16x1xf32>
    %1214 = vector.extract_strided_slice %1128 {offsets = [15, 0], sizes = [1, 16], strides = [1, 1]} : vector<16x16xf32> to vector<1x16xf32>
    %1215 = vector.broadcast %1213 : vector<16x1xf32> to vector<16x16xf32>
    %1216 = vector.broadcast %1214 : vector<1x16xf32> to vector<16x16xf32>
    %1217 = arith.mulf %1215, %1216 : vector<16x16xf32>
    %1218 = arith.addf %1142, %1147 : vector<16x16xf32>
    %1219 = arith.addf %1152, %1157 : vector<16x16xf32>
    %1220 = arith.addf %1162, %1167 : vector<16x16xf32>
    %1221 = arith.addf %1172, %1177 : vector<16x16xf32>
    %1222 = arith.addf %1182, %1187 : vector<16x16xf32>
    %1223 = arith.addf %1192, %1197 : vector<16x16xf32>
    %1224 = arith.addf %1202, %1207 : vector<16x16xf32>
    %1225 = arith.addf %1212, %1217 : vector<16x16xf32>
    %1226 = arith.addf %1218, %1219 : vector<16x16xf32>
    %1227 = arith.addf %1220, %1221 : vector<16x16xf32>
    %1228 = arith.addf %1222, %1223 : vector<16x16xf32>
    %1229 = arith.addf %1224, %1225 : vector<16x16xf32>
    %1230 = arith.addf %1226, %1227 : vector<16x16xf32>
    %1231 = arith.addf %1228, %1229 : vector<16x16xf32>
    %1232 = arith.addf %1230, %1231 : vector<16x16xf32>
    %1233 = vector.extract_strided_slice %51 {offsets = [0, 11], sizes = [16, 1], strides = [1, 1]} : vector<16x16xf32> to vector<16x1xf32>
    %1234 = vector.broadcast %1233 : vector<16x1xf32> to vector<16x16xf32>
    %1235 = arith.addf %1232, %1234 : vector<16x16xf32>
    %1236 = vector.extract_strided_slice %52 {offsets = [0, 11], sizes = [16, 1], strides = [1, 1]} : vector<16x16xf32> to vector<16x1xf32>
    %1237 = vector.broadcast %1236 : vector<16x1xf32> to vector<16x16xf32>
    %1238 = arith.mulf %1237, %1235 : vector<16x16xf32>
    %cst_29 = arith.constant dense<0.000000e+00> : vector<16xf32>
    %1239 = vector.multi_reduction <add>, %1238, %cst_29 [0] : vector<16x16xf32> to vector<16xf32>
    %1240 = vector.shape_cast %1239 : vector<16xf32> to vector<1x16xf32>
    %1241 = vector.extract_strided_slice %49 {offsets = [0, 12], sizes = [16, 1], strides = [1, 1]} : vector<16x16xf32> to vector<16x1xf32>
    %1242 = vector.broadcast %1241 : vector<16x1xf32> to vector<16x16xf32>
    %1243 = arith.mulf %55, %1242 : vector<16x16xf32>
    %1244 = math.exp %1243 : vector<16x16xf32>
    %1245 = vector.extract_strided_slice %1244 {offsets = [0, 0], sizes = [16, 1], strides = [1, 1]} : vector<16x16xf32> to vector<16x1xf32>
    %1246 = vector.extract_strided_slice %1235 {offsets = [0, 0], sizes = [1, 16], strides = [1, 1]} : vector<16x16xf32> to vector<1x16xf32>
    %1247 = vector.broadcast %1245 : vector<16x1xf32> to vector<16x16xf32>
    %1248 = vector.broadcast %1246 : vector<1x16xf32> to vector<16x16xf32>
    %1249 = arith.mulf %1247, %1248 : vector<16x16xf32>
    %1250 = vector.extract_strided_slice %1244 {offsets = [0, 1], sizes = [16, 1], strides = [1, 1]} : vector<16x16xf32> to vector<16x1xf32>
    %1251 = vector.extract_strided_slice %1235 {offsets = [1, 0], sizes = [1, 16], strides = [1, 1]} : vector<16x16xf32> to vector<1x16xf32>
    %1252 = vector.broadcast %1250 : vector<16x1xf32> to vector<16x16xf32>
    %1253 = vector.broadcast %1251 : vector<1x16xf32> to vector<16x16xf32>
    %1254 = arith.mulf %1252, %1253 : vector<16x16xf32>
    %1255 = vector.extract_strided_slice %1244 {offsets = [0, 2], sizes = [16, 1], strides = [1, 1]} : vector<16x16xf32> to vector<16x1xf32>
    %1256 = vector.extract_strided_slice %1235 {offsets = [2, 0], sizes = [1, 16], strides = [1, 1]} : vector<16x16xf32> to vector<1x16xf32>
    %1257 = vector.broadcast %1255 : vector<16x1xf32> to vector<16x16xf32>
    %1258 = vector.broadcast %1256 : vector<1x16xf32> to vector<16x16xf32>
    %1259 = arith.mulf %1257, %1258 : vector<16x16xf32>
    %1260 = vector.extract_strided_slice %1244 {offsets = [0, 3], sizes = [16, 1], strides = [1, 1]} : vector<16x16xf32> to vector<16x1xf32>
    %1261 = vector.extract_strided_slice %1235 {offsets = [3, 0], sizes = [1, 16], strides = [1, 1]} : vector<16x16xf32> to vector<1x16xf32>
    %1262 = vector.broadcast %1260 : vector<16x1xf32> to vector<16x16xf32>
    %1263 = vector.broadcast %1261 : vector<1x16xf32> to vector<16x16xf32>
    %1264 = arith.mulf %1262, %1263 : vector<16x16xf32>
    %1265 = vector.extract_strided_slice %1244 {offsets = [0, 4], sizes = [16, 1], strides = [1, 1]} : vector<16x16xf32> to vector<16x1xf32>
    %1266 = vector.extract_strided_slice %1235 {offsets = [4, 0], sizes = [1, 16], strides = [1, 1]} : vector<16x16xf32> to vector<1x16xf32>
    %1267 = vector.broadcast %1265 : vector<16x1xf32> to vector<16x16xf32>
    %1268 = vector.broadcast %1266 : vector<1x16xf32> to vector<16x16xf32>
    %1269 = arith.mulf %1267, %1268 : vector<16x16xf32>
    %1270 = vector.extract_strided_slice %1244 {offsets = [0, 5], sizes = [16, 1], strides = [1, 1]} : vector<16x16xf32> to vector<16x1xf32>
    %1271 = vector.extract_strided_slice %1235 {offsets = [5, 0], sizes = [1, 16], strides = [1, 1]} : vector<16x16xf32> to vector<1x16xf32>
    %1272 = vector.broadcast %1270 : vector<16x1xf32> to vector<16x16xf32>
    %1273 = vector.broadcast %1271 : vector<1x16xf32> to vector<16x16xf32>
    %1274 = arith.mulf %1272, %1273 : vector<16x16xf32>
    %1275 = vector.extract_strided_slice %1244 {offsets = [0, 6], sizes = [16, 1], strides = [1, 1]} : vector<16x16xf32> to vector<16x1xf32>
    %1276 = vector.extract_strided_slice %1235 {offsets = [6, 0], sizes = [1, 16], strides = [1, 1]} : vector<16x16xf32> to vector<1x16xf32>
    %1277 = vector.broadcast %1275 : vector<16x1xf32> to vector<16x16xf32>
    %1278 = vector.broadcast %1276 : vector<1x16xf32> to vector<16x16xf32>
    %1279 = arith.mulf %1277, %1278 : vector<16x16xf32>
    %1280 = vector.extract_strided_slice %1244 {offsets = [0, 7], sizes = [16, 1], strides = [1, 1]} : vector<16x16xf32> to vector<16x1xf32>
    %1281 = vector.extract_strided_slice %1235 {offsets = [7, 0], sizes = [1, 16], strides = [1, 1]} : vector<16x16xf32> to vector<1x16xf32>
    %1282 = vector.broadcast %1280 : vector<16x1xf32> to vector<16x16xf32>
    %1283 = vector.broadcast %1281 : vector<1x16xf32> to vector<16x16xf32>
    %1284 = arith.mulf %1282, %1283 : vector<16x16xf32>
    %1285 = vector.extract_strided_slice %1244 {offsets = [0, 8], sizes = [16, 1], strides = [1, 1]} : vector<16x16xf32> to vector<16x1xf32>
    %1286 = vector.extract_strided_slice %1235 {offsets = [8, 0], sizes = [1, 16], strides = [1, 1]} : vector<16x16xf32> to vector<1x16xf32>
    %1287 = vector.broadcast %1285 : vector<16x1xf32> to vector<16x16xf32>
    %1288 = vector.broadcast %1286 : vector<1x16xf32> to vector<16x16xf32>
    %1289 = arith.mulf %1287, %1288 : vector<16x16xf32>
    %1290 = vector.extract_strided_slice %1244 {offsets = [0, 9], sizes = [16, 1], strides = [1, 1]} : vector<16x16xf32> to vector<16x1xf32>
    %1291 = vector.extract_strided_slice %1235 {offsets = [9, 0], sizes = [1, 16], strides = [1, 1]} : vector<16x16xf32> to vector<1x16xf32>
    %1292 = vector.broadcast %1290 : vector<16x1xf32> to vector<16x16xf32>
    %1293 = vector.broadcast %1291 : vector<1x16xf32> to vector<16x16xf32>
    %1294 = arith.mulf %1292, %1293 : vector<16x16xf32>
    %1295 = vector.extract_strided_slice %1244 {offsets = [0, 10], sizes = [16, 1], strides = [1, 1]} : vector<16x16xf32> to vector<16x1xf32>
    %1296 = vector.extract_strided_slice %1235 {offsets = [10, 0], sizes = [1, 16], strides = [1, 1]} : vector<16x16xf32> to vector<1x16xf32>
    %1297 = vector.broadcast %1295 : vector<16x1xf32> to vector<16x16xf32>
    %1298 = vector.broadcast %1296 : vector<1x16xf32> to vector<16x16xf32>
    %1299 = arith.mulf %1297, %1298 : vector<16x16xf32>
    %1300 = vector.extract_strided_slice %1244 {offsets = [0, 11], sizes = [16, 1], strides = [1, 1]} : vector<16x16xf32> to vector<16x1xf32>
    %1301 = vector.extract_strided_slice %1235 {offsets = [11, 0], sizes = [1, 16], strides = [1, 1]} : vector<16x16xf32> to vector<1x16xf32>
    %1302 = vector.broadcast %1300 : vector<16x1xf32> to vector<16x16xf32>
    %1303 = vector.broadcast %1301 : vector<1x16xf32> to vector<16x16xf32>
    %1304 = arith.mulf %1302, %1303 : vector<16x16xf32>
    %1305 = vector.extract_strided_slice %1244 {offsets = [0, 12], sizes = [16, 1], strides = [1, 1]} : vector<16x16xf32> to vector<16x1xf32>
    %1306 = vector.extract_strided_slice %1235 {offsets = [12, 0], sizes = [1, 16], strides = [1, 1]} : vector<16x16xf32> to vector<1x16xf32>
    %1307 = vector.broadcast %1305 : vector<16x1xf32> to vector<16x16xf32>
    %1308 = vector.broadcast %1306 : vector<1x16xf32> to vector<16x16xf32>
    %1309 = arith.mulf %1307, %1308 : vector<16x16xf32>
    %1310 = vector.extract_strided_slice %1244 {offsets = [0, 13], sizes = [16, 1], strides = [1, 1]} : vector<16x16xf32> to vector<16x1xf32>
    %1311 = vector.extract_strided_slice %1235 {offsets = [13, 0], sizes = [1, 16], strides = [1, 1]} : vector<16x16xf32> to vector<1x16xf32>
    %1312 = vector.broadcast %1310 : vector<16x1xf32> to vector<16x16xf32>
    %1313 = vector.broadcast %1311 : vector<1x16xf32> to vector<16x16xf32>
    %1314 = arith.mulf %1312, %1313 : vector<16x16xf32>
    %1315 = vector.extract_strided_slice %1244 {offsets = [0, 14], sizes = [16, 1], strides = [1, 1]} : vector<16x16xf32> to vector<16x1xf32>
    %1316 = vector.extract_strided_slice %1235 {offsets = [14, 0], sizes = [1, 16], strides = [1, 1]} : vector<16x16xf32> to vector<1x16xf32>
    %1317 = vector.broadcast %1315 : vector<16x1xf32> to vector<16x16xf32>
    %1318 = vector.broadcast %1316 : vector<1x16xf32> to vector<16x16xf32>
    %1319 = arith.mulf %1317, %1318 : vector<16x16xf32>
    %1320 = vector.extract_strided_slice %1244 {offsets = [0, 15], sizes = [16, 1], strides = [1, 1]} : vector<16x16xf32> to vector<16x1xf32>
    %1321 = vector.extract_strided_slice %1235 {offsets = [15, 0], sizes = [1, 16], strides = [1, 1]} : vector<16x16xf32> to vector<1x16xf32>
    %1322 = vector.broadcast %1320 : vector<16x1xf32> to vector<16x16xf32>
    %1323 = vector.broadcast %1321 : vector<1x16xf32> to vector<16x16xf32>
    %1324 = arith.mulf %1322, %1323 : vector<16x16xf32>
    %1325 = arith.addf %1249, %1254 : vector<16x16xf32>
    %1326 = arith.addf %1259, %1264 : vector<16x16xf32>
    %1327 = arith.addf %1269, %1274 : vector<16x16xf32>
    %1328 = arith.addf %1279, %1284 : vector<16x16xf32>
    %1329 = arith.addf %1289, %1294 : vector<16x16xf32>
    %1330 = arith.addf %1299, %1304 : vector<16x16xf32>
    %1331 = arith.addf %1309, %1314 : vector<16x16xf32>
    %1332 = arith.addf %1319, %1324 : vector<16x16xf32>
    %1333 = arith.addf %1325, %1326 : vector<16x16xf32>
    %1334 = arith.addf %1327, %1328 : vector<16x16xf32>
    %1335 = arith.addf %1329, %1330 : vector<16x16xf32>
    %1336 = arith.addf %1331, %1332 : vector<16x16xf32>
    %1337 = arith.addf %1333, %1334 : vector<16x16xf32>
    %1338 = arith.addf %1335, %1336 : vector<16x16xf32>
    %1339 = arith.addf %1337, %1338 : vector<16x16xf32>
    %1340 = vector.extract_strided_slice %51 {offsets = [0, 12], sizes = [16, 1], strides = [1, 1]} : vector<16x16xf32> to vector<16x1xf32>
    %1341 = vector.broadcast %1340 : vector<16x1xf32> to vector<16x16xf32>
    %1342 = arith.addf %1339, %1341 : vector<16x16xf32>
    %1343 = vector.extract_strided_slice %52 {offsets = [0, 12], sizes = [16, 1], strides = [1, 1]} : vector<16x16xf32> to vector<16x1xf32>
    %1344 = vector.broadcast %1343 : vector<16x1xf32> to vector<16x16xf32>
    %1345 = arith.mulf %1344, %1342 : vector<16x16xf32>
    %cst_30 = arith.constant dense<0.000000e+00> : vector<16xf32>
    %1346 = vector.multi_reduction <add>, %1345, %cst_30 [0] : vector<16x16xf32> to vector<16xf32>
    %1347 = vector.shape_cast %1346 : vector<16xf32> to vector<1x16xf32>
    %1348 = vector.extract_strided_slice %49 {offsets = [0, 13], sizes = [16, 1], strides = [1, 1]} : vector<16x16xf32> to vector<16x1xf32>
    %1349 = vector.broadcast %1348 : vector<16x1xf32> to vector<16x16xf32>
    %1350 = arith.mulf %55, %1349 : vector<16x16xf32>
    %1351 = math.exp %1350 : vector<16x16xf32>
    %1352 = vector.extract_strided_slice %1351 {offsets = [0, 0], sizes = [16, 1], strides = [1, 1]} : vector<16x16xf32> to vector<16x1xf32>
    %1353 = vector.extract_strided_slice %1342 {offsets = [0, 0], sizes = [1, 16], strides = [1, 1]} : vector<16x16xf32> to vector<1x16xf32>
    %1354 = vector.broadcast %1352 : vector<16x1xf32> to vector<16x16xf32>
    %1355 = vector.broadcast %1353 : vector<1x16xf32> to vector<16x16xf32>
    %1356 = arith.mulf %1354, %1355 : vector<16x16xf32>
    %1357 = vector.extract_strided_slice %1351 {offsets = [0, 1], sizes = [16, 1], strides = [1, 1]} : vector<16x16xf32> to vector<16x1xf32>
    %1358 = vector.extract_strided_slice %1342 {offsets = [1, 0], sizes = [1, 16], strides = [1, 1]} : vector<16x16xf32> to vector<1x16xf32>
    %1359 = vector.broadcast %1357 : vector<16x1xf32> to vector<16x16xf32>
    %1360 = vector.broadcast %1358 : vector<1x16xf32> to vector<16x16xf32>
    %1361 = arith.mulf %1359, %1360 : vector<16x16xf32>
    %1362 = vector.extract_strided_slice %1351 {offsets = [0, 2], sizes = [16, 1], strides = [1, 1]} : vector<16x16xf32> to vector<16x1xf32>
    %1363 = vector.extract_strided_slice %1342 {offsets = [2, 0], sizes = [1, 16], strides = [1, 1]} : vector<16x16xf32> to vector<1x16xf32>
    %1364 = vector.broadcast %1362 : vector<16x1xf32> to vector<16x16xf32>
    %1365 = vector.broadcast %1363 : vector<1x16xf32> to vector<16x16xf32>
    %1366 = arith.mulf %1364, %1365 : vector<16x16xf32>
    %1367 = vector.extract_strided_slice %1351 {offsets = [0, 3], sizes = [16, 1], strides = [1, 1]} : vector<16x16xf32> to vector<16x1xf32>
    %1368 = vector.extract_strided_slice %1342 {offsets = [3, 0], sizes = [1, 16], strides = [1, 1]} : vector<16x16xf32> to vector<1x16xf32>
    %1369 = vector.broadcast %1367 : vector<16x1xf32> to vector<16x16xf32>
    %1370 = vector.broadcast %1368 : vector<1x16xf32> to vector<16x16xf32>
    %1371 = arith.mulf %1369, %1370 : vector<16x16xf32>
    %1372 = vector.extract_strided_slice %1351 {offsets = [0, 4], sizes = [16, 1], strides = [1, 1]} : vector<16x16xf32> to vector<16x1xf32>
    %1373 = vector.extract_strided_slice %1342 {offsets = [4, 0], sizes = [1, 16], strides = [1, 1]} : vector<16x16xf32> to vector<1x16xf32>
    %1374 = vector.broadcast %1372 : vector<16x1xf32> to vector<16x16xf32>
    %1375 = vector.broadcast %1373 : vector<1x16xf32> to vector<16x16xf32>
    %1376 = arith.mulf %1374, %1375 : vector<16x16xf32>
    %1377 = vector.extract_strided_slice %1351 {offsets = [0, 5], sizes = [16, 1], strides = [1, 1]} : vector<16x16xf32> to vector<16x1xf32>
    %1378 = vector.extract_strided_slice %1342 {offsets = [5, 0], sizes = [1, 16], strides = [1, 1]} : vector<16x16xf32> to vector<1x16xf32>
    %1379 = vector.broadcast %1377 : vector<16x1xf32> to vector<16x16xf32>
    %1380 = vector.broadcast %1378 : vector<1x16xf32> to vector<16x16xf32>
    %1381 = arith.mulf %1379, %1380 : vector<16x16xf32>
    %1382 = vector.extract_strided_slice %1351 {offsets = [0, 6], sizes = [16, 1], strides = [1, 1]} : vector<16x16xf32> to vector<16x1xf32>
    %1383 = vector.extract_strided_slice %1342 {offsets = [6, 0], sizes = [1, 16], strides = [1, 1]} : vector<16x16xf32> to vector<1x16xf32>
    %1384 = vector.broadcast %1382 : vector<16x1xf32> to vector<16x16xf32>
    %1385 = vector.broadcast %1383 : vector<1x16xf32> to vector<16x16xf32>
    %1386 = arith.mulf %1384, %1385 : vector<16x16xf32>
    %1387 = vector.extract_strided_slice %1351 {offsets = [0, 7], sizes = [16, 1], strides = [1, 1]} : vector<16x16xf32> to vector<16x1xf32>
    %1388 = vector.extract_strided_slice %1342 {offsets = [7, 0], sizes = [1, 16], strides = [1, 1]} : vector<16x16xf32> to vector<1x16xf32>
    %1389 = vector.broadcast %1387 : vector<16x1xf32> to vector<16x16xf32>
    %1390 = vector.broadcast %1388 : vector<1x16xf32> to vector<16x16xf32>
    %1391 = arith.mulf %1389, %1390 : vector<16x16xf32>
    %1392 = vector.extract_strided_slice %1351 {offsets = [0, 8], sizes = [16, 1], strides = [1, 1]} : vector<16x16xf32> to vector<16x1xf32>
    %1393 = vector.extract_strided_slice %1342 {offsets = [8, 0], sizes = [1, 16], strides = [1, 1]} : vector<16x16xf32> to vector<1x16xf32>
    %1394 = vector.broadcast %1392 : vector<16x1xf32> to vector<16x16xf32>
    %1395 = vector.broadcast %1393 : vector<1x16xf32> to vector<16x16xf32>
    %1396 = arith.mulf %1394, %1395 : vector<16x16xf32>
    %1397 = vector.extract_strided_slice %1351 {offsets = [0, 9], sizes = [16, 1], strides = [1, 1]} : vector<16x16xf32> to vector<16x1xf32>
    %1398 = vector.extract_strided_slice %1342 {offsets = [9, 0], sizes = [1, 16], strides = [1, 1]} : vector<16x16xf32> to vector<1x16xf32>
    %1399 = vector.broadcast %1397 : vector<16x1xf32> to vector<16x16xf32>
    %1400 = vector.broadcast %1398 : vector<1x16xf32> to vector<16x16xf32>
    %1401 = arith.mulf %1399, %1400 : vector<16x16xf32>
    %1402 = vector.extract_strided_slice %1351 {offsets = [0, 10], sizes = [16, 1], strides = [1, 1]} : vector<16x16xf32> to vector<16x1xf32>
    %1403 = vector.extract_strided_slice %1342 {offsets = [10, 0], sizes = [1, 16], strides = [1, 1]} : vector<16x16xf32> to vector<1x16xf32>
    %1404 = vector.broadcast %1402 : vector<16x1xf32> to vector<16x16xf32>
    %1405 = vector.broadcast %1403 : vector<1x16xf32> to vector<16x16xf32>
    %1406 = arith.mulf %1404, %1405 : vector<16x16xf32>
    %1407 = vector.extract_strided_slice %1351 {offsets = [0, 11], sizes = [16, 1], strides = [1, 1]} : vector<16x16xf32> to vector<16x1xf32>
    %1408 = vector.extract_strided_slice %1342 {offsets = [11, 0], sizes = [1, 16], strides = [1, 1]} : vector<16x16xf32> to vector<1x16xf32>
    %1409 = vector.broadcast %1407 : vector<16x1xf32> to vector<16x16xf32>
    %1410 = vector.broadcast %1408 : vector<1x16xf32> to vector<16x16xf32>
    %1411 = arith.mulf %1409, %1410 : vector<16x16xf32>
    %1412 = vector.extract_strided_slice %1351 {offsets = [0, 12], sizes = [16, 1], strides = [1, 1]} : vector<16x16xf32> to vector<16x1xf32>
    %1413 = vector.extract_strided_slice %1342 {offsets = [12, 0], sizes = [1, 16], strides = [1, 1]} : vector<16x16xf32> to vector<1x16xf32>
    %1414 = vector.broadcast %1412 : vector<16x1xf32> to vector<16x16xf32>
    %1415 = vector.broadcast %1413 : vector<1x16xf32> to vector<16x16xf32>
    %1416 = arith.mulf %1414, %1415 : vector<16x16xf32>
    %1417 = vector.extract_strided_slice %1351 {offsets = [0, 13], sizes = [16, 1], strides = [1, 1]} : vector<16x16xf32> to vector<16x1xf32>
    %1418 = vector.extract_strided_slice %1342 {offsets = [13, 0], sizes = [1, 16], strides = [1, 1]} : vector<16x16xf32> to vector<1x16xf32>
    %1419 = vector.broadcast %1417 : vector<16x1xf32> to vector<16x16xf32>
    %1420 = vector.broadcast %1418 : vector<1x16xf32> to vector<16x16xf32>
    %1421 = arith.mulf %1419, %1420 : vector<16x16xf32>
    %1422 = vector.extract_strided_slice %1351 {offsets = [0, 14], sizes = [16, 1], strides = [1, 1]} : vector<16x16xf32> to vector<16x1xf32>
    %1423 = vector.extract_strided_slice %1342 {offsets = [14, 0], sizes = [1, 16], strides = [1, 1]} : vector<16x16xf32> to vector<1x16xf32>
    %1424 = vector.broadcast %1422 : vector<16x1xf32> to vector<16x16xf32>
    %1425 = vector.broadcast %1423 : vector<1x16xf32> to vector<16x16xf32>
    %1426 = arith.mulf %1424, %1425 : vector<16x16xf32>
    %1427 = vector.extract_strided_slice %1351 {offsets = [0, 15], sizes = [16, 1], strides = [1, 1]} : vector<16x16xf32> to vector<16x1xf32>
    %1428 = vector.extract_strided_slice %1342 {offsets = [15, 0], sizes = [1, 16], strides = [1, 1]} : vector<16x16xf32> to vector<1x16xf32>
    %1429 = vector.broadcast %1427 : vector<16x1xf32> to vector<16x16xf32>
    %1430 = vector.broadcast %1428 : vector<1x16xf32> to vector<16x16xf32>
    %1431 = arith.mulf %1429, %1430 : vector<16x16xf32>
    %1432 = arith.addf %1356, %1361 : vector<16x16xf32>
    %1433 = arith.addf %1366, %1371 : vector<16x16xf32>
    %1434 = arith.addf %1376, %1381 : vector<16x16xf32>
    %1435 = arith.addf %1386, %1391 : vector<16x16xf32>
    %1436 = arith.addf %1396, %1401 : vector<16x16xf32>
    %1437 = arith.addf %1406, %1411 : vector<16x16xf32>
    %1438 = arith.addf %1416, %1421 : vector<16x16xf32>
    %1439 = arith.addf %1426, %1431 : vector<16x16xf32>
    %1440 = arith.addf %1432, %1433 : vector<16x16xf32>
    %1441 = arith.addf %1434, %1435 : vector<16x16xf32>
    %1442 = arith.addf %1436, %1437 : vector<16x16xf32>
    %1443 = arith.addf %1438, %1439 : vector<16x16xf32>
    %1444 = arith.addf %1440, %1441 : vector<16x16xf32>
    %1445 = arith.addf %1442, %1443 : vector<16x16xf32>
    %1446 = arith.addf %1444, %1445 : vector<16x16xf32>
    %1447 = vector.extract_strided_slice %51 {offsets = [0, 13], sizes = [16, 1], strides = [1, 1]} : vector<16x16xf32> to vector<16x1xf32>
    %1448 = vector.broadcast %1447 : vector<16x1xf32> to vector<16x16xf32>
    %1449 = arith.addf %1446, %1448 : vector<16x16xf32>
    %1450 = vector.extract_strided_slice %52 {offsets = [0, 13], sizes = [16, 1], strides = [1, 1]} : vector<16x16xf32> to vector<16x1xf32>
    %1451 = vector.broadcast %1450 : vector<16x1xf32> to vector<16x16xf32>
    %1452 = arith.mulf %1451, %1449 : vector<16x16xf32>
    %cst_31 = arith.constant dense<0.000000e+00> : vector<16xf32>
    %1453 = vector.multi_reduction <add>, %1452, %cst_31 [0] : vector<16x16xf32> to vector<16xf32>
    %1454 = vector.shape_cast %1453 : vector<16xf32> to vector<1x16xf32>
    %1455 = vector.extract_strided_slice %49 {offsets = [0, 14], sizes = [16, 1], strides = [1, 1]} : vector<16x16xf32> to vector<16x1xf32>
    %1456 = vector.broadcast %1455 : vector<16x1xf32> to vector<16x16xf32>
    %1457 = arith.mulf %55, %1456 : vector<16x16xf32>
    %1458 = math.exp %1457 : vector<16x16xf32>
    %1459 = vector.extract_strided_slice %1458 {offsets = [0, 0], sizes = [16, 1], strides = [1, 1]} : vector<16x16xf32> to vector<16x1xf32>
    %1460 = vector.extract_strided_slice %1449 {offsets = [0, 0], sizes = [1, 16], strides = [1, 1]} : vector<16x16xf32> to vector<1x16xf32>
    %1461 = vector.broadcast %1459 : vector<16x1xf32> to vector<16x16xf32>
    %1462 = vector.broadcast %1460 : vector<1x16xf32> to vector<16x16xf32>
    %1463 = arith.mulf %1461, %1462 : vector<16x16xf32>
    %1464 = vector.extract_strided_slice %1458 {offsets = [0, 1], sizes = [16, 1], strides = [1, 1]} : vector<16x16xf32> to vector<16x1xf32>
    %1465 = vector.extract_strided_slice %1449 {offsets = [1, 0], sizes = [1, 16], strides = [1, 1]} : vector<16x16xf32> to vector<1x16xf32>
    %1466 = vector.broadcast %1464 : vector<16x1xf32> to vector<16x16xf32>
    %1467 = vector.broadcast %1465 : vector<1x16xf32> to vector<16x16xf32>
    %1468 = arith.mulf %1466, %1467 : vector<16x16xf32>
    %1469 = vector.extract_strided_slice %1458 {offsets = [0, 2], sizes = [16, 1], strides = [1, 1]} : vector<16x16xf32> to vector<16x1xf32>
    %1470 = vector.extract_strided_slice %1449 {offsets = [2, 0], sizes = [1, 16], strides = [1, 1]} : vector<16x16xf32> to vector<1x16xf32>
    %1471 = vector.broadcast %1469 : vector<16x1xf32> to vector<16x16xf32>
    %1472 = vector.broadcast %1470 : vector<1x16xf32> to vector<16x16xf32>
    %1473 = arith.mulf %1471, %1472 : vector<16x16xf32>
    %1474 = vector.extract_strided_slice %1458 {offsets = [0, 3], sizes = [16, 1], strides = [1, 1]} : vector<16x16xf32> to vector<16x1xf32>
    %1475 = vector.extract_strided_slice %1449 {offsets = [3, 0], sizes = [1, 16], strides = [1, 1]} : vector<16x16xf32> to vector<1x16xf32>
    %1476 = vector.broadcast %1474 : vector<16x1xf32> to vector<16x16xf32>
    %1477 = vector.broadcast %1475 : vector<1x16xf32> to vector<16x16xf32>
    %1478 = arith.mulf %1476, %1477 : vector<16x16xf32>
    %1479 = vector.extract_strided_slice %1458 {offsets = [0, 4], sizes = [16, 1], strides = [1, 1]} : vector<16x16xf32> to vector<16x1xf32>
    %1480 = vector.extract_strided_slice %1449 {offsets = [4, 0], sizes = [1, 16], strides = [1, 1]} : vector<16x16xf32> to vector<1x16xf32>
    %1481 = vector.broadcast %1479 : vector<16x1xf32> to vector<16x16xf32>
    %1482 = vector.broadcast %1480 : vector<1x16xf32> to vector<16x16xf32>
    %1483 = arith.mulf %1481, %1482 : vector<16x16xf32>
    %1484 = vector.extract_strided_slice %1458 {offsets = [0, 5], sizes = [16, 1], strides = [1, 1]} : vector<16x16xf32> to vector<16x1xf32>
    %1485 = vector.extract_strided_slice %1449 {offsets = [5, 0], sizes = [1, 16], strides = [1, 1]} : vector<16x16xf32> to vector<1x16xf32>
    %1486 = vector.broadcast %1484 : vector<16x1xf32> to vector<16x16xf32>
    %1487 = vector.broadcast %1485 : vector<1x16xf32> to vector<16x16xf32>
    %1488 = arith.mulf %1486, %1487 : vector<16x16xf32>
    %1489 = vector.extract_strided_slice %1458 {offsets = [0, 6], sizes = [16, 1], strides = [1, 1]} : vector<16x16xf32> to vector<16x1xf32>
    %1490 = vector.extract_strided_slice %1449 {offsets = [6, 0], sizes = [1, 16], strides = [1, 1]} : vector<16x16xf32> to vector<1x16xf32>
    %1491 = vector.broadcast %1489 : vector<16x1xf32> to vector<16x16xf32>
    %1492 = vector.broadcast %1490 : vector<1x16xf32> to vector<16x16xf32>
    %1493 = arith.mulf %1491, %1492 : vector<16x16xf32>
    %1494 = vector.extract_strided_slice %1458 {offsets = [0, 7], sizes = [16, 1], strides = [1, 1]} : vector<16x16xf32> to vector<16x1xf32>
    %1495 = vector.extract_strided_slice %1449 {offsets = [7, 0], sizes = [1, 16], strides = [1, 1]} : vector<16x16xf32> to vector<1x16xf32>
    %1496 = vector.broadcast %1494 : vector<16x1xf32> to vector<16x16xf32>
    %1497 = vector.broadcast %1495 : vector<1x16xf32> to vector<16x16xf32>
    %1498 = arith.mulf %1496, %1497 : vector<16x16xf32>
    %1499 = vector.extract_strided_slice %1458 {offsets = [0, 8], sizes = [16, 1], strides = [1, 1]} : vector<16x16xf32> to vector<16x1xf32>
    %1500 = vector.extract_strided_slice %1449 {offsets = [8, 0], sizes = [1, 16], strides = [1, 1]} : vector<16x16xf32> to vector<1x16xf32>
    %1501 = vector.broadcast %1499 : vector<16x1xf32> to vector<16x16xf32>
    %1502 = vector.broadcast %1500 : vector<1x16xf32> to vector<16x16xf32>
    %1503 = arith.mulf %1501, %1502 : vector<16x16xf32>
    %1504 = vector.extract_strided_slice %1458 {offsets = [0, 9], sizes = [16, 1], strides = [1, 1]} : vector<16x16xf32> to vector<16x1xf32>
    %1505 = vector.extract_strided_slice %1449 {offsets = [9, 0], sizes = [1, 16], strides = [1, 1]} : vector<16x16xf32> to vector<1x16xf32>
    %1506 = vector.broadcast %1504 : vector<16x1xf32> to vector<16x16xf32>
    %1507 = vector.broadcast %1505 : vector<1x16xf32> to vector<16x16xf32>
    %1508 = arith.mulf %1506, %1507 : vector<16x16xf32>
    %1509 = vector.extract_strided_slice %1458 {offsets = [0, 10], sizes = [16, 1], strides = [1, 1]} : vector<16x16xf32> to vector<16x1xf32>
    %1510 = vector.extract_strided_slice %1449 {offsets = [10, 0], sizes = [1, 16], strides = [1, 1]} : vector<16x16xf32> to vector<1x16xf32>
    %1511 = vector.broadcast %1509 : vector<16x1xf32> to vector<16x16xf32>
    %1512 = vector.broadcast %1510 : vector<1x16xf32> to vector<16x16xf32>
    %1513 = arith.mulf %1511, %1512 : vector<16x16xf32>
    %1514 = vector.extract_strided_slice %1458 {offsets = [0, 11], sizes = [16, 1], strides = [1, 1]} : vector<16x16xf32> to vector<16x1xf32>
    %1515 = vector.extract_strided_slice %1449 {offsets = [11, 0], sizes = [1, 16], strides = [1, 1]} : vector<16x16xf32> to vector<1x16xf32>
    %1516 = vector.broadcast %1514 : vector<16x1xf32> to vector<16x16xf32>
    %1517 = vector.broadcast %1515 : vector<1x16xf32> to vector<16x16xf32>
    %1518 = arith.mulf %1516, %1517 : vector<16x16xf32>
    %1519 = vector.extract_strided_slice %1458 {offsets = [0, 12], sizes = [16, 1], strides = [1, 1]} : vector<16x16xf32> to vector<16x1xf32>
    %1520 = vector.extract_strided_slice %1449 {offsets = [12, 0], sizes = [1, 16], strides = [1, 1]} : vector<16x16xf32> to vector<1x16xf32>
    %1521 = vector.broadcast %1519 : vector<16x1xf32> to vector<16x16xf32>
    %1522 = vector.broadcast %1520 : vector<1x16xf32> to vector<16x16xf32>
    %1523 = arith.mulf %1521, %1522 : vector<16x16xf32>
    %1524 = vector.extract_strided_slice %1458 {offsets = [0, 13], sizes = [16, 1], strides = [1, 1]} : vector<16x16xf32> to vector<16x1xf32>
    %1525 = vector.extract_strided_slice %1449 {offsets = [13, 0], sizes = [1, 16], strides = [1, 1]} : vector<16x16xf32> to vector<1x16xf32>
    %1526 = vector.broadcast %1524 : vector<16x1xf32> to vector<16x16xf32>
    %1527 = vector.broadcast %1525 : vector<1x16xf32> to vector<16x16xf32>
    %1528 = arith.mulf %1526, %1527 : vector<16x16xf32>
    %1529 = vector.extract_strided_slice %1458 {offsets = [0, 14], sizes = [16, 1], strides = [1, 1]} : vector<16x16xf32> to vector<16x1xf32>
    %1530 = vector.extract_strided_slice %1449 {offsets = [14, 0], sizes = [1, 16], strides = [1, 1]} : vector<16x16xf32> to vector<1x16xf32>
    %1531 = vector.broadcast %1529 : vector<16x1xf32> to vector<16x16xf32>
    %1532 = vector.broadcast %1530 : vector<1x16xf32> to vector<16x16xf32>
    %1533 = arith.mulf %1531, %1532 : vector<16x16xf32>
    %1534 = vector.extract_strided_slice %1458 {offsets = [0, 15], sizes = [16, 1], strides = [1, 1]} : vector<16x16xf32> to vector<16x1xf32>
    %1535 = vector.extract_strided_slice %1449 {offsets = [15, 0], sizes = [1, 16], strides = [1, 1]} : vector<16x16xf32> to vector<1x16xf32>
    %1536 = vector.broadcast %1534 : vector<16x1xf32> to vector<16x16xf32>
    %1537 = vector.broadcast %1535 : vector<1x16xf32> to vector<16x16xf32>
    %1538 = arith.mulf %1536, %1537 : vector<16x16xf32>
    %1539 = arith.addf %1463, %1468 : vector<16x16xf32>
    %1540 = arith.addf %1473, %1478 : vector<16x16xf32>
    %1541 = arith.addf %1483, %1488 : vector<16x16xf32>
    %1542 = arith.addf %1493, %1498 : vector<16x16xf32>
    %1543 = arith.addf %1503, %1508 : vector<16x16xf32>
    %1544 = arith.addf %1513, %1518 : vector<16x16xf32>
    %1545 = arith.addf %1523, %1528 : vector<16x16xf32>
    %1546 = arith.addf %1533, %1538 : vector<16x16xf32>
    %1547 = arith.addf %1539, %1540 : vector<16x16xf32>
    %1548 = arith.addf %1541, %1542 : vector<16x16xf32>
    %1549 = arith.addf %1543, %1544 : vector<16x16xf32>
    %1550 = arith.addf %1545, %1546 : vector<16x16xf32>
    %1551 = arith.addf %1547, %1548 : vector<16x16xf32>
    %1552 = arith.addf %1549, %1550 : vector<16x16xf32>
    %1553 = arith.addf %1551, %1552 : vector<16x16xf32>
    %1554 = vector.extract_strided_slice %51 {offsets = [0, 14], sizes = [16, 1], strides = [1, 1]} : vector<16x16xf32> to vector<16x1xf32>
    %1555 = vector.broadcast %1554 : vector<16x1xf32> to vector<16x16xf32>
    %1556 = arith.addf %1553, %1555 : vector<16x16xf32>
    %1557 = vector.extract_strided_slice %52 {offsets = [0, 14], sizes = [16, 1], strides = [1, 1]} : vector<16x16xf32> to vector<16x1xf32>
    %1558 = vector.broadcast %1557 : vector<16x1xf32> to vector<16x16xf32>
    %1559 = arith.mulf %1558, %1556 : vector<16x16xf32>
    %cst_32 = arith.constant dense<0.000000e+00> : vector<16xf32>
    %1560 = vector.multi_reduction <add>, %1559, %cst_32 [0] : vector<16x16xf32> to vector<16xf32>
    %1561 = vector.shape_cast %1560 : vector<16xf32> to vector<1x16xf32>
    %1562 = vector.extract_strided_slice %49 {offsets = [0, 15], sizes = [16, 1], strides = [1, 1]} : vector<16x16xf32> to vector<16x1xf32>
    %1563 = vector.broadcast %1562 : vector<16x1xf32> to vector<16x16xf32>
    %1564 = arith.mulf %55, %1563 : vector<16x16xf32>
    %1565 = math.exp %1564 : vector<16x16xf32>
    %1566 = vector.extract_strided_slice %1565 {offsets = [0, 0], sizes = [16, 1], strides = [1, 1]} : vector<16x16xf32> to vector<16x1xf32>
    %1567 = vector.extract_strided_slice %1556 {offsets = [0, 0], sizes = [1, 16], strides = [1, 1]} : vector<16x16xf32> to vector<1x16xf32>
    %1568 = vector.broadcast %1566 : vector<16x1xf32> to vector<16x16xf32>
    %1569 = vector.broadcast %1567 : vector<1x16xf32> to vector<16x16xf32>
    %1570 = arith.mulf %1568, %1569 : vector<16x16xf32>
    %1571 = vector.extract_strided_slice %1565 {offsets = [0, 1], sizes = [16, 1], strides = [1, 1]} : vector<16x16xf32> to vector<16x1xf32>
    %1572 = vector.extract_strided_slice %1556 {offsets = [1, 0], sizes = [1, 16], strides = [1, 1]} : vector<16x16xf32> to vector<1x16xf32>
    %1573 = vector.broadcast %1571 : vector<16x1xf32> to vector<16x16xf32>
    %1574 = vector.broadcast %1572 : vector<1x16xf32> to vector<16x16xf32>
    %1575 = arith.mulf %1573, %1574 : vector<16x16xf32>
    %1576 = vector.extract_strided_slice %1565 {offsets = [0, 2], sizes = [16, 1], strides = [1, 1]} : vector<16x16xf32> to vector<16x1xf32>
    %1577 = vector.extract_strided_slice %1556 {offsets = [2, 0], sizes = [1, 16], strides = [1, 1]} : vector<16x16xf32> to vector<1x16xf32>
    %1578 = vector.broadcast %1576 : vector<16x1xf32> to vector<16x16xf32>
    %1579 = vector.broadcast %1577 : vector<1x16xf32> to vector<16x16xf32>
    %1580 = arith.mulf %1578, %1579 : vector<16x16xf32>
    %1581 = vector.extract_strided_slice %1565 {offsets = [0, 3], sizes = [16, 1], strides = [1, 1]} : vector<16x16xf32> to vector<16x1xf32>
    %1582 = vector.extract_strided_slice %1556 {offsets = [3, 0], sizes = [1, 16], strides = [1, 1]} : vector<16x16xf32> to vector<1x16xf32>
    %1583 = vector.broadcast %1581 : vector<16x1xf32> to vector<16x16xf32>
    %1584 = vector.broadcast %1582 : vector<1x16xf32> to vector<16x16xf32>
    %1585 = arith.mulf %1583, %1584 : vector<16x16xf32>
    %1586 = vector.extract_strided_slice %1565 {offsets = [0, 4], sizes = [16, 1], strides = [1, 1]} : vector<16x16xf32> to vector<16x1xf32>
    %1587 = vector.extract_strided_slice %1556 {offsets = [4, 0], sizes = [1, 16], strides = [1, 1]} : vector<16x16xf32> to vector<1x16xf32>
    %1588 = vector.broadcast %1586 : vector<16x1xf32> to vector<16x16xf32>
    %1589 = vector.broadcast %1587 : vector<1x16xf32> to vector<16x16xf32>
    %1590 = arith.mulf %1588, %1589 : vector<16x16xf32>
    %1591 = vector.extract_strided_slice %1565 {offsets = [0, 5], sizes = [16, 1], strides = [1, 1]} : vector<16x16xf32> to vector<16x1xf32>
    %1592 = vector.extract_strided_slice %1556 {offsets = [5, 0], sizes = [1, 16], strides = [1, 1]} : vector<16x16xf32> to vector<1x16xf32>
    %1593 = vector.broadcast %1591 : vector<16x1xf32> to vector<16x16xf32>
    %1594 = vector.broadcast %1592 : vector<1x16xf32> to vector<16x16xf32>
    %1595 = arith.mulf %1593, %1594 : vector<16x16xf32>
    %1596 = vector.extract_strided_slice %1565 {offsets = [0, 6], sizes = [16, 1], strides = [1, 1]} : vector<16x16xf32> to vector<16x1xf32>
    %1597 = vector.extract_strided_slice %1556 {offsets = [6, 0], sizes = [1, 16], strides = [1, 1]} : vector<16x16xf32> to vector<1x16xf32>
    %1598 = vector.broadcast %1596 : vector<16x1xf32> to vector<16x16xf32>
    %1599 = vector.broadcast %1597 : vector<1x16xf32> to vector<16x16xf32>
    %1600 = arith.mulf %1598, %1599 : vector<16x16xf32>
    %1601 = vector.extract_strided_slice %1565 {offsets = [0, 7], sizes = [16, 1], strides = [1, 1]} : vector<16x16xf32> to vector<16x1xf32>
    %1602 = vector.extract_strided_slice %1556 {offsets = [7, 0], sizes = [1, 16], strides = [1, 1]} : vector<16x16xf32> to vector<1x16xf32>
    %1603 = vector.broadcast %1601 : vector<16x1xf32> to vector<16x16xf32>
    %1604 = vector.broadcast %1602 : vector<1x16xf32> to vector<16x16xf32>
    %1605 = arith.mulf %1603, %1604 : vector<16x16xf32>
    %1606 = vector.extract_strided_slice %1565 {offsets = [0, 8], sizes = [16, 1], strides = [1, 1]} : vector<16x16xf32> to vector<16x1xf32>
    %1607 = vector.extract_strided_slice %1556 {offsets = [8, 0], sizes = [1, 16], strides = [1, 1]} : vector<16x16xf32> to vector<1x16xf32>
    %1608 = vector.broadcast %1606 : vector<16x1xf32> to vector<16x16xf32>
    %1609 = vector.broadcast %1607 : vector<1x16xf32> to vector<16x16xf32>
    %1610 = arith.mulf %1608, %1609 : vector<16x16xf32>
    %1611 = vector.extract_strided_slice %1565 {offsets = [0, 9], sizes = [16, 1], strides = [1, 1]} : vector<16x16xf32> to vector<16x1xf32>
    %1612 = vector.extract_strided_slice %1556 {offsets = [9, 0], sizes = [1, 16], strides = [1, 1]} : vector<16x16xf32> to vector<1x16xf32>
    %1613 = vector.broadcast %1611 : vector<16x1xf32> to vector<16x16xf32>
    %1614 = vector.broadcast %1612 : vector<1x16xf32> to vector<16x16xf32>
    %1615 = arith.mulf %1613, %1614 : vector<16x16xf32>
    %1616 = vector.extract_strided_slice %1565 {offsets = [0, 10], sizes = [16, 1], strides = [1, 1]} : vector<16x16xf32> to vector<16x1xf32>
    %1617 = vector.extract_strided_slice %1556 {offsets = [10, 0], sizes = [1, 16], strides = [1, 1]} : vector<16x16xf32> to vector<1x16xf32>
    %1618 = vector.broadcast %1616 : vector<16x1xf32> to vector<16x16xf32>
    %1619 = vector.broadcast %1617 : vector<1x16xf32> to vector<16x16xf32>
    %1620 = arith.mulf %1618, %1619 : vector<16x16xf32>
    %1621 = vector.extract_strided_slice %1565 {offsets = [0, 11], sizes = [16, 1], strides = [1, 1]} : vector<16x16xf32> to vector<16x1xf32>
    %1622 = vector.extract_strided_slice %1556 {offsets = [11, 0], sizes = [1, 16], strides = [1, 1]} : vector<16x16xf32> to vector<1x16xf32>
    %1623 = vector.broadcast %1621 : vector<16x1xf32> to vector<16x16xf32>
    %1624 = vector.broadcast %1622 : vector<1x16xf32> to vector<16x16xf32>
    %1625 = arith.mulf %1623, %1624 : vector<16x16xf32>
    %1626 = vector.extract_strided_slice %1565 {offsets = [0, 12], sizes = [16, 1], strides = [1, 1]} : vector<16x16xf32> to vector<16x1xf32>
    %1627 = vector.extract_strided_slice %1556 {offsets = [12, 0], sizes = [1, 16], strides = [1, 1]} : vector<16x16xf32> to vector<1x16xf32>
    %1628 = vector.broadcast %1626 : vector<16x1xf32> to vector<16x16xf32>
    %1629 = vector.broadcast %1627 : vector<1x16xf32> to vector<16x16xf32>
    %1630 = arith.mulf %1628, %1629 : vector<16x16xf32>
    %1631 = vector.extract_strided_slice %1565 {offsets = [0, 13], sizes = [16, 1], strides = [1, 1]} : vector<16x16xf32> to vector<16x1xf32>
    %1632 = vector.extract_strided_slice %1556 {offsets = [13, 0], sizes = [1, 16], strides = [1, 1]} : vector<16x16xf32> to vector<1x16xf32>
    %1633 = vector.broadcast %1631 : vector<16x1xf32> to vector<16x16xf32>
    %1634 = vector.broadcast %1632 : vector<1x16xf32> to vector<16x16xf32>
    %1635 = arith.mulf %1633, %1634 : vector<16x16xf32>
    %1636 = vector.extract_strided_slice %1565 {offsets = [0, 14], sizes = [16, 1], strides = [1, 1]} : vector<16x16xf32> to vector<16x1xf32>
    %1637 = vector.extract_strided_slice %1556 {offsets = [14, 0], sizes = [1, 16], strides = [1, 1]} : vector<16x16xf32> to vector<1x16xf32>
    %1638 = vector.broadcast %1636 : vector<16x1xf32> to vector<16x16xf32>
    %1639 = vector.broadcast %1637 : vector<1x16xf32> to vector<16x16xf32>
    %1640 = arith.mulf %1638, %1639 : vector<16x16xf32>
    %1641 = vector.extract_strided_slice %1565 {offsets = [0, 15], sizes = [16, 1], strides = [1, 1]} : vector<16x16xf32> to vector<16x1xf32>
    %1642 = vector.extract_strided_slice %1556 {offsets = [15, 0], sizes = [1, 16], strides = [1, 1]} : vector<16x16xf32> to vector<1x16xf32>
    %1643 = vector.broadcast %1641 : vector<16x1xf32> to vector<16x16xf32>
    %1644 = vector.broadcast %1642 : vector<1x16xf32> to vector<16x16xf32>
    %1645 = arith.mulf %1643, %1644 : vector<16x16xf32>
    %1646 = arith.addf %1570, %1575 : vector<16x16xf32>
    %1647 = arith.addf %1580, %1585 : vector<16x16xf32>
    %1648 = arith.addf %1590, %1595 : vector<16x16xf32>
    %1649 = arith.addf %1600, %1605 : vector<16x16xf32>
    %1650 = arith.addf %1610, %1615 : vector<16x16xf32>
    %1651 = arith.addf %1620, %1625 : vector<16x16xf32>
    %1652 = arith.addf %1630, %1635 : vector<16x16xf32>
    %1653 = arith.addf %1640, %1645 : vector<16x16xf32>
    %1654 = arith.addf %1646, %1647 : vector<16x16xf32>
    %1655 = arith.addf %1648, %1649 : vector<16x16xf32>
    %1656 = arith.addf %1650, %1651 : vector<16x16xf32>
    %1657 = arith.addf %1652, %1653 : vector<16x16xf32>
    %1658 = arith.addf %1654, %1655 : vector<16x16xf32>
    %1659 = arith.addf %1656, %1657 : vector<16x16xf32>
    %1660 = arith.addf %1658, %1659 : vector<16x16xf32>
    %1661 = vector.extract_strided_slice %51 {offsets = [0, 15], sizes = [16, 1], strides = [1, 1]} : vector<16x16xf32> to vector<16x1xf32>
    %1662 = vector.broadcast %1661 : vector<16x1xf32> to vector<16x16xf32>
    %1663 = arith.addf %1660, %1662 : vector<16x16xf32>
    %1664 = vector.extract_strided_slice %52 {offsets = [0, 15], sizes = [16, 1], strides = [1, 1]} : vector<16x16xf32> to vector<16x1xf32>
    %1665 = vector.broadcast %1664 : vector<16x1xf32> to vector<16x16xf32>
    %1666 = arith.mulf %1665, %1663 : vector<16x16xf32>
    %cst_33 = arith.constant dense<0.000000e+00> : vector<16xf32>
    %1667 = vector.multi_reduction <add>, %1666, %cst_33 [0] : vector<16x16xf32> to vector<16xf32>
    %1668 = vector.shape_cast %1667 : vector<16xf32> to vector<1x16xf32>
    %1669 = tpu.concatenate %63, %170, %277, %384, %491, %598, %705, %812, %919, %1026, %1133, %1240, %1347, %1454, %1561, %1668 in 0 : vector<1x16xf32>, vector<1x16xf32>, vector<1x16xf32>, vector<1x16xf32>, vector<1x16xf32>, vector<1x16xf32>, vector<1x16xf32>, vector<1x16xf32>, vector<1x16xf32>, vector<1x16xf32>, vector<1x16xf32>, vector<1x16xf32>, vector<1x16xf32>, vector<1x16xf32>, vector<1x16xf32>, vector<1x16xf32> -> vector<16x16xf32>
    %cst_34 = arith.constant dense<0.000000e+00> : vector<16x16xf32>
    %1670 = tpu.matmul %5, %1669, %cst_34 {dimension_numbers = #tpu.dot_dimension_numbers<[1], [1], [0], [0], [0, 0, 1, 0], [], []>, precision = #tpu.contract_precision<fp32>} : vector<16x16xf32>, vector<16x16xf32>, vector<16x16xf32> -> vector<16x16xf32>
    %cst_35 = arith.constant dense<0.000000e+00> : vector<16x16xf32>
    %1671 = tpu.matmul %6, %44, %cst_35 {dimension_numbers = #tpu.dot_dimension_numbers<[1], [0], [0], [1], [0, 0, 1, 1], [], []>, precision = #tpu.contract_precision<fp32>} : vector<16x16xf32>, vector<16x16xf32>, vector<16x16xf32> -> vector<16x16xf32>
    %1672 = arith.addf %1670, %1671 : vector<16x16xf32>
    %1673 = vector.broadcast %11 : vector<16x1xf32> to vector<16x16xf32>
    %1674 = arith.addf %1672, %1673 : vector<16x16xf32>
    %1675 = arith.addf %1674, %14 : vector<16x16xf32>
    %cst_36 = arith.constant dense<0.000000e+00> : vector<16xf32>
    %1676 = vector.multi_reduction <add>, %1675, %cst_36 [0] : vector<16x16xf32> to vector<16xf32>
    %1677 = vector.shape_cast %1676 : vector<16xf32> to vector<1x16xf32>
    %cst_37 = arith.constant 1.600000e+01 : f32
    %1678 = vector.broadcast %cst_37 : f32 to vector<1x16xf32>
    %1679 = arith.divf %1677, %1678 : vector<1x16xf32>
    %1680 = vector.broadcast %1679 : vector<1x16xf32> to vector<16x16xf32>
    %1681 = arith.subf %1675, %1680 : vector<16x16xf32>
    %1682 = arith.mulf %1681, %1681 : vector<16x16xf32>
    %cst_38 = arith.constant dense<0.000000e+00> : vector<16xf32>
    %1683 = vector.multi_reduction <add>, %1682, %cst_38 [0] : vector<16x16xf32> to vector<16xf32>
    %1684 = vector.shape_cast %1683 : vector<16xf32> to vector<1x16xf32>
    %cst_39 = arith.constant 1.600000e+01 : f32
    %1685 = vector.broadcast %cst_39 : f32 to vector<1x16xf32>
    %1686 = arith.divf %1684, %1685 : vector<1x16xf32>
    %1687 = vector.broadcast %1679 : vector<1x16xf32> to vector<16x16xf32>
    %1688 = arith.subf %1675, %1687 : vector<16x16xf32>
    %cst_40 = arith.constant 9.99999974E-6 : f32
    %1689 = vector.broadcast %cst_40 : f32 to vector<1x16xf32>
    %1690 = arith.addf %1686, %1689 : vector<1x16xf32>
    %1691 = math.sqrt %1690 : vector<1x16xf32>
    %1692 = vector.broadcast %1691 : vector<1x16xf32> to vector<16x16xf32>
    %1693 = arith.divf %1688, %1692 : vector<16x16xf32>
    %1694 = vector.broadcast %12 : vector<16x1xf32> to vector<16x16xf32>
    %1695 = arith.mulf %1693, %1694 : vector<16x16xf32>
    %1696 = vector.broadcast %13 : vector<16x1xf32> to vector<16x16xf32>
    %1697 = arith.addf %1695, %1696 : vector<16x16xf32>
    %c0_41 = arith.constant 0 : index
    %c0_42 = arith.constant 0 : index
    %1698 = vector.load %arg2[%c0_41, %c0_42] : memref<16x16xf32, #tpu.memory_space<vmem>>, vector<16x16xf32>
    tpu.vector_store %arg2[%c0_41, %c0_42], %1697 {strides = array<i32>} : memref<16x16xf32, #tpu.memory_space<vmem>>, vector<16x16xf32>,
    return
  }
}

</mosaic_0001>

<llo_original>
// kernel: ssm_block_forward.1
$region0: #{ssm_block_forward.1}
  #allocation0 [shape = 'u32[]', space=smem, size = 0x4, offset = 0x4, fixed_abs, tag = 'smem constant byte address 0x4 - core index']
  #allocation1 [shape = 'u32[144,128]{1,0:T(1,128)}', space=vmem, size = 0x12000, scoped, tag = 'internal scratch']
  %s0 = inlined_call_operand.vmem [shape: f32[16,16], index: 0, kind: input, shape index: {}]
  %s1 = inlined_call_operand.vmem [shape: f32[144,16], index: 1, kind: input, shape index: {}]
  %s2 = inlined_call_operand.hbm [shape: f32[16,16], index: 2, kind: output, shape index: {}]
  %s3 = sld [smem:[#allocation0]]
  $region18: #{ssm_block_forward.1} parent=0
    _
  %s5 = ssub.s32 1, %s3
  %s6 = scalar_select 0, %s5, %s3
  $region1: #{ssm_block_forward.1} parent=0
    #allocation2 [shape = 'u8[8192]{0}', space=vmem, size = 0x2000, scoped, tag = 'output window, operand 0, single buffered']
    #allocation3 [shape = 's32[1]{0}', space=sflag, size = 0x4, scoped, tag = 'scoped memory for ssm_block_forward.1']
    %7 = vsyncpa [#allocation3], 0
    // Predicated region
    $region2: #{ssm_block_forward.1} parent=1 // pred_check
      _
    $region3: #{ssm_block_forward.1} parent=1 // pred_check_branch
      %9 = sbr.rel (0) target = $region5
    $region4: #{ssm_block_forward.1} parent=1 // pred_region
      _
    $region5: #{ssm_block_forward.1} parent=1 // pred_fallthru
      _
    // Predicated region
    $region6: #{ssm_block_forward.1} parent=1 // pred_check
      _
    $region7: #{ssm_block_forward.1} parent=1 // pred_check_branch
      %11 = sbr.rel (0) target = $region9
    $region8: #{ssm_block_forward.1} parent=1 // pred_region
      _
    $region9: #{ssm_block_forward.1} parent=1 // pred_fallthru
      _
    %v12 = vld [vmem:[%s0] sm:$0xff]
    %v13 = vld [vmem:[%s0 + $0x8] sm:$0xff]
    %v14 = vld [vmem:[%s1] sm:$0xff]
    %v15 = vld [vmem:[%s1 + $0x8] sm:$0xff]
    %v16 = vld [vmem:[%s1 + $0x10] sm:$0xff]
    %v17 = vld [vmem:[%s1 + $0x18] sm:$0xff]
    %v18 = vld [vmem:[%s1 + $0x20] sm:$0xff]
    %v19 = vld [vmem:[%s1 + $0x28] sm:$0xff]
    %v20 = vld [vmem:[%s1 + $0x30] sm:$0xff]
    %v21 = vld [vmem:[%s1 + $0x38] sm:$0xff]
    %v22 = vld [vmem:[%s1 + $0x40] sm:$0xff]
    %v23 = vld [vmem:[%s1 + $0x48] sm:$0xff]
    %v24 = vld [vmem:[%s1 + $0x50] sm:$0xff]
    %v25 = vld [vmem:[%s1 + $0x58] sm:$0xff]
    %v26 = vld [vmem:[%s1 + $0x60] sm:$0xff]
    %v27 = vld [vmem:[%s1 + $0x68] sm:$0xff]
    %v28 = vld [vmem:[%s1 + $0x70] sm:$0xff]
    %v29 = vld [vmem:[%s1 + $0x78] sm:$0xff]
    %v30 = vld [vmem:[%s1 + $0x80] sm:$0xff]
    %v31 = vld [vmem:[%s1 + $0x88] sm:$0xff]
    %vm32 = vcmask 130048
    %v34 = vsel %vm32, %v30, 0
    %v37 = vsel %vm32, %v31, 0
    %v40 = vsel %vm32, %v12, 0
    %v43 = vsel %vm32, %v13, 0
    %45 = vmatprep.subr.mxu0 0.0
    %v46 = vand.u32 %v40, 4294901760
    %47 = vmatpush1.xpose.msra.mxu0 %v46
    %48 = vmatprep.subr.mxu0 0.0
    %v49 = vand.u32 %v43, 4294901760
    %50 = vmatpush1.xpose.msra.mxu0 %v49
    %51 = vmatprep.subr.mxu0 0.0
    %52 = vmatpush1.xpose.msra.mxu0 0.0
    %53 = vmatprep.subr.mxu0 0.0
    %54 = vmatpush1.xpose.msra.mxu0 0.0
    %55 = vmatprep.subr.mxu0 0.0
    %56 = vmatpush1.xpose.msra.mxu0 0.0
    %57 = vmatprep.subr.mxu0 0.0
    %58 = vmatpush1.xpose.msra.mxu0 0.0
    %59 = vmatprep.subr.mxu0 0.0
    %60 = vmatpush1.xpose.msra.mxu0 0.0
    %61 = vmatprep.subr.mxu0 0.0
    %62 = vmatpush1.xpose.msra.mxu0 0.0
    %63 = vmatprep.subr.mxu0 0.0
    %64 = vmatpush1.xpose.msra.mxu0 0.0
    %65 = vmatprep.subr.mxu0 0.0
    %66 = vmatpush1.xpose.msra.mxu0 0.0
    %67 = vmatprep.subr.mxu0 0.0
    %68 = vmatpush1.xpose.msra.mxu0 0.0
    %69 = vmatprep.subr.mxu0 0.0
    %70 = vmatpush1.xpose.msra.mxu0 0.0
    %71 = vmatprep.subr.mxu0 0.0
    %72 = vmatpush1.xpose.msra.mxu0 0.0
    %73 = vmatprep.subr.mxu0 0.0
    %74 = vmatpush1.xpose.msra.mxu0 0.0
    %75 = vmatprep.subr.mxu0 0.0
    %76 = vmatpush1.xpose.msra.mxu0 0.0
    %77 = vmatprep.subr.mxu0 0.0
    %78 = vmatpush1.xpose.msra.mxu0 0.0
    %79 = vmatprep.subr.mxu0 0.0
    %80 = vmatpush1.xpose.msra.mxu0 0.0
    %81 = vmatprep.subr.mxu0 0.0
    %82 = vmatpush1.xpose.msra.mxu0 0.0
    %83 = vmatprep.subr.mxu0 0.0
    %84 = vmatpush1.xpose.msra.mxu0 0.0
    %85 = vmatprep.subr.mxu0 0.0
    %86 = vmatpush1.xpose.msra.mxu0 0.0
    %87 = vmatprep.subr.mxu0 0.0
    %88 = vmatpush1.xpose.msra.mxu0 0.0
    %89 = vmatprep.subr.mxu0 0.0
    %90 = vmatpush1.xpose.msra.mxu0 0.0
    %91 = vmatprep.subr.mxu0 0.0
    %92 = vmatpush1.xpose.msra.mxu0 0.0
    %93 = vmatprep.subr.mxu0 0.0
    %94 = vmatpush1.xpose.msra.mxu0 0.0
    %95 = vmatprep.subr.mxu0 0.0
    %96 = vmatpush1.xpose.msra.mxu0 0.0
    %97 = vmatprep.subr.mxu0 0.0
    %98 = vmatpush1.xpose.msra.mxu0 0.0
    %99 = vmatprep.subr.mxu0 0.0
    %100 = vmatpush1.xpose.msra.mxu0 0.0
    %101 = vmatprep.subr.mxu0 0.0
    %102 = vmatpush1.xpose.msra.mxu0 0.0
    %103 = vmatprep.subr.mxu0 0.0
    %104 = vmatpush1.xpose.msra.mxu0 0.0
    %105 = vmatprep.subr.mxu0 0.0
    %106 = vmatpush1.xpose.msra.mxu0 0.0
    %107 = vmatprep.subr.mxu0 0.0
    %108 = vmatpush1.xpose.msra.mxu0 0.0
    %109 = vmatprep.subr.mxu0 0.0
    %110 = vmatpush1.xpose.msra.mxu0 0.0
    %111 = vmatprep.mubr.f32.mxu0 0.0
    %v112 = vand.u32 %v34, 4294901760
    %v113 = vsub.f32 %v34, %v112
    %v114 = vand.u32 %v113, 4294901760
    %v115 = vsub.f32 %v113, %v114
    %v116 = vand.u32 %v115, 4294901760
    %117 = vmatmul.mubr.f32.gmra.mrb[0].mxu0 %v116
    %v118 = vpop.f32.mrb[0].mxu0
    %v119 = vadd.f32 0.0, %v118
    %v120 = vpop.f32.mrb[0].mxu0
    %121 = vmatprep.mubr.f32.mxu0 0.0
    %v122 = vand.u32 %v37, 4294901760
    %v123 = vsub.f32 %v37, %v122
    %v124 = vand.u32 %v123, 4294901760
    %v125 = vsub.f32 %v123, %v124
    %v126 = vand.u32 %v125, 4294901760
    %127 = vmatmul.mubr.f32.gmra.mrb[0].mxu0 %v126
    %v128 = vpop.f32.mrb[0].mxu0
    %v129 = vadd.f32 0.0, %v128
    %v130 = vpop.f32.mrb[0].mxu0
    %131 = vdwg.mxu0
    %132 = vmatprep.subr.mxu0 0.0
    %v133 = vand.u32 %v40, 4294901760
    %v134 = vsub.f32 %v40, %v133
    %v135 = vand.u32 %v134, 4294901760
    %v136 = vsub.f32 %v134, %v135
    %v137 = vand.u32 %v136, 4294901760
    %138 = vmatpush1.xpose.msra.mxu0 %v137
    %139 = vmatprep.subr.mxu0 0.0
    %v140 = vand.u32 %v43, 4294901760
    %v141 = vsub.f32 %v43, %v140
    %v142 = vand.u32 %v141, 4294901760
    %v143 = vsub.f32 %v141, %v142
    %v144 = vand.u32 %v143, 4294901760
    %145 = vmatpush1.xpose.msra.mxu0 %v144
    %146 = vmatprep.subr.mxu0 0.0
    %147 = vmatpush1.xpose.msra.mxu0 0.0
    %148 = vmatprep.subr.mxu0 0.0
    %149 = vmatpush1.xpose.msra.mxu0 0.0
    %150 = vmatprep.subr.mxu0 0.0
    %151 = vmatpush1.xpose.msra.mxu0 0.0
    %152 = vmatprep.subr.mxu0 0.0
    %153 = vmatpush1.xpose.msra.mxu0 0.0
    %154 = vmatprep.subr.mxu0 0.0
    %155 = vmatpush1.xpose.msra.mxu0 0.0
    %156 = vmatprep.subr.mxu0 0.0
    %157 = vmatpush1.xpose.msra.mxu0 0.0
    %158 = vmatprep.subr.mxu0 0.0
    %159 = vmatpush1.xpose.msra.mxu0 0.0
    %160 = vmatprep.subr.mxu0 0.0
    %161 = vmatpush1.xpose.msra.mxu0 0.0
    %162 = vmatprep.subr.mxu0 0.0
    %163 = vmatpush1.xpose.msra.mxu0 0.0
    %164 = vmatprep.subr.mxu0 0.0
    %165 = vmatpush1.xpose.msra.mxu0 0.0
    %166 = vmatprep.subr.mxu0 0.0
    %167 = vmatpush1.xpose.msra.mxu0 0.0
    %168 = vmatprep.subr.mxu0 0.0
    %169 = vmatpush1.xpose.msra.mxu0 0.0
    %170 = vmatprep.subr.mxu0 0.0
    %171 = vmatpush1.xpose.msra.mxu0 0.0
    %172 = vmatprep.subr.mxu0 0.0
    %173 = vmatpush1.xpose.msra.mxu0 0.0
    %174 = vmatprep.subr.mxu0 0.0
    %175 = vmatpush1.xpose.msra.mxu0 0.0
    %176 = vmatprep.subr.mxu0 0.0
    %177 = vmatpush1.xpose.msra.mxu0 0.0
    %178 = vmatprep.subr.mxu0 0.0
    %179 = vmatpush1.xpose.msra.mxu0 0.0
    %180 = vmatprep.subr.mxu0 0.0
    %181 = vmatpush1.xpose.msra.mxu0 0.0
    %182 = vmatprep.subr.mxu0 0.0
    %183 = vmatpush1.xpose.msra.mxu0 0.0
    %184 = vmatprep.subr.mxu0 0.0
    %185 = vmatpush1.xpose.msra.mxu0 0.0
    %186 = vmatprep.subr.mxu0 0.0
    %187 = vmatpush1.xpose.msra.mxu0 0.0
    %188 = vmatprep.subr.mxu0 0.0
    %189 = vmatpush1.xpose.msra.mxu0 0.0
    %190 = vmatprep.subr.mxu0 0.0
    %191 = vmatpush1.xpose.msra.mxu0 0.0
    %192 = vmatprep.subr.mxu0 0.0
    %193 = vmatpush1.xpose.msra.mxu0 0.0
    %194 = vmatprep.subr.mxu0 0.0
    %195 = vmatpush1.xpose.msra.mxu0 0.0
    %196 = vmatprep.subr.mxu0 0.0
    %197 = vmatpush1.xpose.msra.mxu0 0.0
    %198 = vmatprep.subr.mxu0 0.0
    %199 = vmatpush1.xpose.msra.mxu0 0.0
    %200 = vmatprep.subr.mxu0 0.0
    %201 = vmatpush1.xpose.msra.mxu0 0.0
    %202 = vmatprep.subr.mxu0 0.0
    %203 = vmatpush1.xpose.msra.mxu0 0.0
    %204 = vmatprep.subr.mxu0 0.0
    %205 = vmatpush1.xpose.msra.mxu0 0.0
    %206 = vmatprep.mubr.f32.mxu0 0.0
    %v207 = vand.u32 %v34, 4294901760
    %208 = vmatmul.mubr.f32.gmra.mrb[0].mxu0 %v207
    %v209 = vpop.f32.mrb[0].mxu0
    %v210 = vadd.f32 %v119, %v209
    %v211 = vpop.f32.mrb[0].mxu0
    %212 = vmatprep.mubr.f32.mxu0 0.0
    %v213 = vand.u32 %v37, 4294901760
    %214 = vmatmul.mubr.f32.gmra.mrb[0].mxu0 %v213
    %v215 = vpop.f32.mrb[0].mxu0
    %v216 = vadd.f32 %v129, %v215
    %v217 = vpop.f32.mrb[0].mxu0
    %218 = vdwg.mxu0
    %219 = vmatprep.subr.mxu0 0.0
    %v220 = vand.u32 %v40, 4294901760
    %v221 = vsub.f32 %v40, %v220
    %222 = vmatpush1.xpose.msra.mxu0 %v221
    %223 = vmatprep.subr.mxu0 0.0
    %v224 = vand.u32 %v43, 4294901760
    %v225 = vsub.f32 %v43, %v224
    %226 = vmatpush1.xpose.msra.mxu0 %v225
    %227 = vmatprep.subr.mxu0 0.0
    %228 = vmatpush1.xpose.msra.mxu0 0.0
    %229 = vmatprep.subr.mxu0 0.0
    %230 = vmatpush1.xpose.msra.mxu0 0.0
    %231 = vmatprep.subr.mxu0 0.0
    %232 = vmatpush1.xpose.msra.mxu0 0.0
    %233 = vmatprep.subr.mxu0 0.0
    %234 = vmatpush1.xpose.msra.mxu0 0.0
    %235 = vmatprep.subr.mxu0 0.0
    %236 = vmatpush1.xpose.msra.mxu0 0.0
    %237 = vmatprep.subr.mxu0 0.0
    %238 = vmatpush1.xpose.msra.mxu0 0.0
    %239 = vmatprep.subr.mxu0 0.0
    %240 = vmatpush1.xpose.msra.mxu0 0.0
    %241 = vmatprep.subr.mxu0 0.0
    %242 = vmatpush1.xpose.msra.mxu0 0.0
    %243 = vmatprep.subr.mxu0 0.0
    %244 = vmatpush1.xpose.msra.mxu0 0.0
    %245 = vmatprep.subr.mxu0 0.0
    %246 = vmatpush1.xpose.msra.mxu0 0.0
    %247 = vmatprep.subr.mxu0 0.0
    %248 = vmatpush1.xpose.msra.mxu0 0.0
    %249 = vmatprep.subr.mxu0 0.0
    %250 = vmatpush1.xpose.msra.mxu0 0.0
    %251 = vmatprep.subr.mxu0 0.0
    %252 = vmatpush1.xpose.msra.mxu0 0.0
    %253 = vmatprep.subr.mxu0 0.0
    %254 = vmatpush1.xpose.msra.mxu0 0.0
    %255 = vmatprep.subr.mxu0 0.0
    %256 = vmatpush1.xpose.msra.mxu0 0.0
    %257 = vmatprep.subr.mxu0 0.0
    %258 = vmatpush1.xpose.msra.mxu0 0.0
    %259 = vmatprep.subr.mxu0 0.0
    %260 = vmatpush1.xpose.msra.mxu0 0.0
    %261 = vmatprep.subr.mxu0 0.0
    %262 = vmatpush1.xpose.msra.mxu0 0.0
    %263 = vmatprep.subr.mxu0 0.0
    %264 = vmatpush1.xpose.msra.mxu0 0.0
    %265 = vmatprep.subr.mxu0 0.0
    %266 = vmatpush1.xpose.msra.mxu0 0.0
    %267 = vmatprep.subr.mxu0 0.0
    %268 = vmatpush1.xpose.msra.mxu0 0.0
    %269 = vmatprep.subr.mxu0 0.0
    %270 = vmatpush1.xpose.msra.mxu0 0.0
    %271 = vmatprep.subr.mxu0 0.0
    %272 = vmatpush1.xpose.msra.mxu0 0.0
    %273 = vmatprep.subr.mxu0 0.0
    %274 = vmatpush1.xpose.msra.mxu0 0.0
    %275 = vmatprep.subr.mxu0 0.0
    %276 = vmatpush1.xpose.msra.mxu0 0.0
    %277 = vmatprep.subr.mxu0 0.0
    %278 = vmatpush1.xpose.msra.mxu0 0.0
    %279 = vmatprep.subr.mxu0 0.0
    %280 = vmatpush1.xpose.msra.mxu0 0.0
    %281 = vmatprep.subr.mxu0 0.0
    %282 = vmatpush1.xpose.msra.mxu0 0.0
    %283 = vmatprep.subr.mxu0 0.0
    %284 = vmatpush1.xpose.msra.mxu0 0.0
    %285 = vmatprep.subr.mxu0 0.0
    %286 = vmatpush1.xpose.msra.mxu0 0.0
    %287 = vmatprep.mubr.f32.mxu0 0.0
    %v288 = vand.u32 %v34, 4294901760
    %v289 = vsub.f32 %v34, %v288
    %290 = vmatmul.mubr.f32.gmra.mrb[0].mxu0 %v289
    %v291 = vpop.f32.mrb[0].mxu0
    %v292 = vadd.f32 %v210, %v291
    %v293 = vpop.f32.mrb[0].mxu0
    %294 = vmatprep.mubr.f32.mxu0 0.0
    %v295 = vand.u32 %v37, 4294901760
    %v296 = vsub.f32 %v37, %v295
    %297 = vmatmul.mubr.f32.gmra.mrb[0].mxu0 %v296
    %v298 = vpop.f32.mrb[0].mxu0
    %v299 = vadd.f32 %v216, %v298
    %v300 = vpop.f32.mrb[0].mxu0
    %301 = vdwg.mxu0
    %302 = vmatprep.subr.mxu0 0.0
    %v303 = vand.u32 %v40, 4294901760
    %304 = vmatpush1.xpose.msra.mxu0 %v303
    %305 = vmatprep.subr.mxu0 0.0
    %v306 = vand.u32 %v43, 4294901760
    %307 = vmatpush1.xpose.msra.mxu0 %v306
    %308 = vmatprep.subr.mxu0 0.0
    %309 = vmatpush1.xpose.msra.mxu0 0.0
    %310 = vmatprep.subr.mxu0 0.0
    %311 = vmatpush1.xpose.msra.mxu0 0.0
    %312 = vmatprep.subr.mxu0 0.0
    %313 = vmatpush1.xpose.msra.mxu0 0.0
    %314 = vmatprep.subr.mxu0 0.0
    %315 = vmatpush1.xpose.msra.mxu0 0.0
    %316 = vmatprep.subr.mxu0 0.0
    %317 = vmatpush1.xpose.msra.mxu0 0.0
    %318 = vmatprep.subr.mxu0 0.0
    %319 = vmatpush1.xpose.msra.mxu0 0.0
    %320 = vmatprep.subr.mxu0 0.0
    %321 = vmatpush1.xpose.msra.mxu0 0.0
    %322 = vmatprep.subr.mxu0 0.0
    %323 = vmatpush1.xpose.msra.mxu0 0.0
    %324 = vmatprep.subr.mxu0 0.0
    %325 = vmatpush1.xpose.msra.mxu0 0.0
    %326 = vmatprep.subr.mxu0 0.0
    %327 = vmatpush1.xpose.msra.mxu0 0.0
    %328 = vmatprep.subr.mxu0 0.0
    %329 = vmatpush1.xpose.msra.mxu0 0.0
    %330 = vmatprep.subr.mxu0 0.0
    %331 = vmatpush1.xpose.msra.mxu0 0.0
    %332 = vmatprep.subr.mxu0 0.0
    %333 = vmatpush1.xpose.msra.mxu0 0.0
    %334 = vmatprep.subr.mxu0 0.0
    %335 = vmatpush1.xpose.msra.mxu0 0.0
    %336 = vmatprep.subr.mxu0 0.0
    %337 = vmatpush1.xpose.msra.mxu0 0.0
    %338 = vmatprep.subr.mxu0 0.0
    %339 = vmatpush1.xpose.msra.mxu0 0.0
    %340 = vmatprep.subr.mxu0 0.0
    %341 = vmatpush1.xpose.msra.mxu0 0.0
    %342 = vmatprep.subr.mxu0 0.0
    %343 = vmatpush1.xpose.msra.mxu0 0.0
    %344 = vmatprep.subr.mxu0 0.0
    %345 = vmatpush1.xpose.msra.mxu0 0.0
    %346 = vmatprep.subr.mxu0 0.0
    %347 = vmatpush1.xpose.msra.mxu0 0.0
    %348 = vmatprep.subr.mxu0 0.0
    %349 = vmatpush1.xpose.msra.mxu0 0.0
    %350 = vmatprep.subr.mxu0 0.0
    %351 = vmatpush1.xpose.msra.mxu0 0.0
    %352 = vmatprep.subr.mxu0 0.0
    %353 = vmatpush1.xpose.msra.mxu0 0.0
    %354 = vmatprep.subr.mxu0 0.0
    %355 = vmatpush1.xpose.msra.mxu0 0.0
    %356 = vmatprep.subr.mxu0 0.0
    %357 = vmatpush1.xpose.msra.mxu0 0.0
    %358 = vmatprep.subr.mxu0 0.0
    %359 = vmatpush1.xpose.msra.mxu0 0.0
    %360 = vmatprep.subr.mxu0 0.0
    %361 = vmatpush1.xpose.msra.mxu0 0.0
    %362 = vmatprep.subr.mxu0 0.0
    %363 = vmatpush1.xpose.msra.mxu0 0.0
    %364 = vmatprep.subr.mxu0 0.0
    %365 = vmatpush1.xpose.msra.mxu0 0.0
    %366 = vmatprep.subr.mxu0 0.0
    %367 = vmatpush1.xpose.msra.mxu0 0.0
    %368 = vmatprep.mubr.f32.mxu0 0.0
    %v369 = vand.u32 %v34, 4294901760
    %v370 = vsub.f32 %v34, %v369
    %v371 = vand.u32 %v370, 4294901760
    %372 = vmatmul.mubr.f32.gmra.mrb[0].mxu0 %v371
    %v373 = vpop.f32.mrb[0].mxu0
    %v374 = vadd.f32 %v292, %v373
    %v375 = vpop.f32.mrb[0].mxu0
    %376 = vmatprep.mubr.f32.mxu0 0.0
    %v377 = vand.u32 %v37, 4294901760
    %v378 = vsub.f32 %v37, %v377
    %v379 = vand.u32 %v378, 4294901760
    %380 = vmatmul.mubr.f32.gmra.mrb[0].mxu0 %v379
    %v381 = vpop.f32.mrb[0].mxu0
    %v382 = vadd.f32 %v299, %v381
    %v383 = vpop.f32.mrb[0].mxu0
    %384 = vdwg.mxu0
    %385 = vmatprep.subr.mxu0 0.0
    %v386 = vand.u32 %v40, 4294901760
    %v387 = vsub.f32 %v40, %v386
    %v388 = vand.u32 %v387, 4294901760
    %389 = vmatpush1.xpose.msra.mxu0 %v388
    %390 = vmatprep.subr.mxu0 0.0
    %v391 = vand.u32 %v43, 4294901760
    %v392 = vsub.f32 %v43, %v391
    %v393 = vand.u32 %v392, 4294901760
    %394 = vmatpush1.xpose.msra.mxu0 %v393
    %395 = vmatprep.subr.mxu0 0.0
    %396 = vmatpush1.xpose.msra.mxu0 0.0
    %397 = vmatprep.subr.mxu0 0.0
    %398 = vmatpush1.xpose.msra.mxu0 0.0
    %399 = vmatprep.subr.mxu0 0.0
    %400 = vmatpush1.xpose.msra.mxu0 0.0
    %401 = vmatprep.subr.mxu0 0.0
    %402 = vmatpush1.xpose.msra.mxu0 0.0
    %403 = vmatprep.subr.mxu0 0.0
    %404 = vmatpush1.xpose.msra.mxu0 0.0
    %405 = vmatprep.subr.mxu0 0.0
    %406 = vmatpush1.xpose.msra.mxu0 0.0
    %407 = vmatprep.subr.mxu0 0.0
    %408 = vmatpush1.xpose.msra.mxu0 0.0
    %409 = vmatprep.subr.mxu0 0.0
    %410 = vmatpush1.xpose.msra.mxu0 0.0
    %411 = vmatprep.subr.mxu0 0.0
    %412 = vmatpush1.xpose.msra.mxu0 0.0
    %413 = vmatprep.subr.mxu0 0.0
    %414 = vmatpush1.xpose.msra.mxu0 0.0
    %415 = vmatprep.subr.mxu0 0.0
    %416 = vmatpush1.xpose.msra.mxu0 0.0
    %417 = vmatprep.subr.mxu0 0.0
    %418 = vmatpush1.xpose.msra.mxu0 0.0
    %419 = vmatprep.subr.mxu0 0.0
    %420 = vmatpush1.xpose.msra.mxu0 0.0
    %421 = vmatprep.subr.mxu0 0.0
    %422 = vmatpush1.xpose.msra.mxu0 0.0
    %423 = vmatprep.subr.mxu0 0.0
    %424 = vmatpush1.xpose.msra.mxu0 0.0
    %425 = vmatprep.subr.mxu0 0.0
    %426 = vmatpush1.xpose.msra.mxu0 0.0
    %427 = vmatprep.subr.mxu0 0.0
    %428 = vmatpush1.xpose.msra.mxu0 0.0
    %429 = vmatprep.subr.mxu0 0.0
    %430 = vmatpush1.xpose.msra.mxu0 0.0
    %431 = vmatprep.subr.mxu0 0.0
    %432 = vmatpush1.xpose.msra.mxu0 0.0
    %433 = vmatprep.subr.mxu0 0.0
    %434 = vmatpush1.xpose.msra.mxu0 0.0
    %435 = vmatprep.subr.mxu0 0.0
    %436 = vmatpush1.xpose.msra.mxu0 0.0
    %437 = vmatprep.subr.mxu0 0.0
    %438 = vmatpush1.xpose.msra.mxu0 0.0
    %439 = vmatprep.subr.mxu0 0.0
    %440 = vmatpush1.xpose.msra.mxu0 0.0
    %441 = vmatprep.subr.mxu0 0.0
    %442 = vmatpush1.xpose.msra.mxu0 0.0
    %443 = vmatprep.subr.mxu0 0.0
    %444 = vmatpush1.xpose.msra.mxu0 0.0
    %445 = vmatprep.subr.mxu0 0.0
    %446 = vmatpush1.xpose.msra.mxu0 0.0
    %447 = vmatprep.subr.mxu0 0.0
    %448 = vmatpush1.xpose.msra.mxu0 0.0
    %449 = vmatprep.subr.mxu0 0.0
    %450 = vmatpush1.xpose.msra.mxu0 0.0
    %451 = vmatprep.subr.mxu0 0.0
    %452 = vmatpush1.xpose.msra.mxu0 0.0
    %453 = vmatprep.subr.mxu0 0.0
    %454 = vmatpush1.xpose.msra.mxu0 0.0
    %455 = vmatprep.mubr.f32.mxu0 0.0
    %v456 = vand.u32 %v34, 4294901760
    %457 = vmatmul.mubr.f32.gmra.mrb[0].mxu0 %v456
    %v458 = vpop.f32.mrb[0].mxu0
    %v459 = vadd.f32 %v374, %v458
    %v460 = vpop.f32.mrb[0].mxu0
    %461 = vmatprep.mubr.f32.mxu0 0.0
    %v462 = vand.u32 %v37, 4294901760
    %463 = vmatmul.mubr.f32.gmra.mrb[0].mxu0 %v462
    %v464 = vpop.f32.mrb[0].mxu0
    %v465 = vadd.f32 %v382, %v464
    %v466 = vpop.f32.mrb[0].mxu0
    %467 = vdwg.mxu0
    %468 = vmatprep.subr.mxu0 0.0
    %v469 = vand.u32 %v40, 4294901760
    %470 = vmatpush1.xpose.msra.mxu0 %v469
    %471 = vmatprep.subr.mxu0 0.0
    %v472 = vand.u32 %v43, 4294901760
    %473 = vmatpush1.xpose.msra.mxu0 %v472
    %474 = vmatprep.subr.mxu0 0.0
    %475 = vmatpush1.xpose.msra.mxu0 0.0
    %476 = vmatprep.subr.mxu0 0.0
    %477 = vmatpush1.xpose.msra.mxu0 0.0
    %478 = vmatprep.subr.mxu0 0.0
    %479 = vmatpush1.xpose.msra.mxu0 0.0
    %480 = vmatprep.subr.mxu0 0.0
    %481 = vmatpush1.xpose.msra.mxu0 0.0
    %482 = vmatprep.subr.mxu0 0.0
    %483 = vmatpush1.xpose.msra.mxu0 0.0
    %484 = vmatprep.subr.mxu0 0.0
    %485 = vmatpush1.xpose.msra.mxu0 0.0
    %486 = vmatprep.subr.mxu0 0.0
    %487 = vmatpush1.xpose.msra.mxu0 0.0
    %488 = vmatprep.subr.mxu0 0.0
    %489 = vmatpush1.xpose.msra.mxu0 0.0
    %490 = vmatprep.subr.mxu0 0.0
    %491 = vmatpush1.xpose.msra.mxu0 0.0
    %492 = vmatprep.subr.mxu0 0.0
    %493 = vmatpush1.xpose.msra.mxu0 0.0
    %494 = vmatprep.subr.mxu0 0.0
    %495 = vmatpush1.xpose.msra.mxu0 0.0
    %496 = vmatprep.subr.mxu0 0.0
    %497 = vmatpush1.xpose.msra.mxu0 0.0
    %498 = vmatprep.subr.mxu0 0.0
    %499 = vmatpush1.xpose.msra.mxu0 0.0
    %500 = vmatprep.subr.mxu0 0.0
    %501 = vmatpush1.xpose.msra.mxu0 0.0
    %502 = vmatprep.subr.mxu0 0.0
    %503 = vmatpush1.xpose.msra.mxu0 0.0
    %504 = vmatprep.subr.mxu0 0.0
    %505 = vmatpush1.xpose.msra.mxu0 0.0
    %506 = vmatprep.subr.mxu0 0.0
    %507 = vmatpush1.xpose.msra.mxu0 0.0
    %508 = vmatprep.subr.mxu0 0.0
    %509 = vmatpush1.xpose.msra.mxu0 0.0
    %510 = vmatprep.subr.mxu0 0.0
    %511 = vmatpush1.xpose.msra.mxu0 0.0
    %512 = vmatprep.subr.mxu0 0.0
    %513 = vmatpush1.xpose.msra.mxu0 0.0
    %514 = vmatprep.subr.mxu0 0.0
    %515 = vmatpush1.xpose.msra.mxu0 0.0
    %516 = vmatprep.subr.mxu0 0.0
    %517 = vmatpush1.xpose.msra.mxu0 0.0
    %518 = vmatprep.subr.mxu0 0.0
    %519 = vmatpush1.xpose.msra.mxu0 0.0
    %520 = vmatprep.subr.mxu0 0.0
    %521 = vmatpush1.xpose.msra.mxu0 0.0
    %522 = vmatprep.subr.mxu0 0.0
    %523 = vmatpush1.xpose.msra.mxu0 0.0
    %524 = vmatprep.subr.mxu0 0.0
    %525 = vmatpush1.xpose.msra.mxu0 0.0
    %526 = vmatprep.subr.mxu0 0.0
    %527 = vmatpush1.xpose.msra.mxu0 0.0
    %528 = vmatprep.subr.mxu0 0.0
    %529 = vmatpush1.xpose.msra.mxu0 0.0
    %530 = vmatprep.subr.mxu0 0.0
    %531 = vmatpush1.xpose.msra.mxu0 0.0
    %532 = vmatprep.subr.mxu0 0.0
    %533 = vmatpush1.xpose.msra.mxu0 0.0
    %534 = vmatprep.mubr.f32.mxu0 0.0
    %v535 = vand.u32 %v34, 4294901760
    %536 = vmatmul.mubr.f32.gmra.mrb[0].mxu0 %v535
    %v537 = vpop.f32.mrb[0].mxu0
    %v538 = vadd.f32 %v459, %v537
    %v539 = vpop.f32.mrb[0].mxu0
    %540 = vmatprep.mubr.f32.mxu0 0.0
    %v541 = vand.u32 %v37, 4294901760
    %542 = vmatmul.mubr.f32.gmra.mrb[0].mxu0 %v541
    %v543 = vpop.f32.mrb[0].mxu0
    %v544 = vadd.f32 %v465, %v543
    %v545 = vpop.f32.mrb[0].mxu0
    %546 = vdwg.mxu0
    %547 = vrot.lane.b32.xlu0 %v12, 3
    %v548 = vpop.permute.xlu0 %547
    %549 = vrot.lane.b32.xlu0 %v13, 3
    %v550 = vpop.permute.xlu0 %549
    %vm553 = vcmask 23552
    %v554 = vsel %vm553, 0.0, %v548
    %v555 = vsel %vm553, 0.0, %v550
    %557 = vset.pattern.permute.xlu0 0
    %558 = vperm.xlu0 %557, %v26
    %v559 = vpop.permute.xlu0 %558
    %562 = vset.pattern.permute.xlu0 0
    %563 = vperm.xlu0 %562, %v27
    %v564 = vpop.permute.xlu0 %563
    %v566 = vmul.f32 %v559, %v554
    %v567 = vmul.f32 %v564, %v555
    %568 = vset.pattern.permute.xlu0 1
    %569 = vperm.xlu0 %568, %v26
    %v570 = vpop.permute.xlu0 %569
    %572 = vset.pattern.permute.xlu0 1
    %573 = vperm.xlu0 %572, %v27
    %v574 = vpop.permute.xlu0 %573
    %v576 = vmul.f32 %v570, %v554
    %v577 = vmul.f32 %v574, %v555
    %580 = vrot.lane.b32.xlu0 %v576, 127
    %v581 = vpop.permute.xlu0 %580
    %582 = vrot.lane.b32.xlu0 %v577, 127
    %v583 = vpop.permute.xlu0 %582
    %v586 = vadd.f32 %v566, %v581
    %v587 = vadd.f32 %v567, %v583
    %588 = vset.pattern.permute.xlu0 2
    %589 = vperm.xlu0 %588, %v26
    %v590 = vpop.permute.xlu0 %589
    %592 = vset.pattern.permute.xlu0 2
    %593 = vperm.xlu0 %592, %v27
    %v594 = vpop.permute.xlu0 %593
    %v596 = vmul.f32 %v590, %v554
    %v597 = vmul.f32 %v594, %v555
    %600 = vrot.lane.b32.xlu0 %v596, 126
    %v601 = vpop.permute.xlu0 %600
    %602 = vrot.lane.b32.xlu0 %v597, 126
    %v603 = vpop.permute.xlu0 %602
    %v606 = vadd.f32 %v586, %v601
    %v607 = vadd.f32 %v587, %v603
    %608 = vset.pattern.permute.xlu0 3
    %609 = vperm.xlu0 %608, %v26
    %v610 = vpop.permute.xlu0 %609
    %612 = vset.pattern.permute.xlu0 3
    %613 = vperm.xlu0 %612, %v27
    %v614 = vpop.permute.xlu0 %613
    %v616 = vmul.f32 %v610, %v554
    %v617 = vmul.f32 %v614, %v555
    %620 = vrot.lane.b32.xlu0 %v616, 125
    %v621 = vpop.permute.xlu0 %620
    %622 = vrot.lane.b32.xlu0 %v617, 125
    %v623 = vpop.permute.xlu0 %622
    %v626 = vadd.f32 %v606, %v621
    %v627 = vadd.f32 %v607, %v623
    %v628 = vxor.u32 %v626, 2147483648
    %v629 = vxor.u32 %v627, 2147483648
    %v630 = vmul.f32 %v628, 1.442695
    %v631 = vpow.pop %v630
    %v632 = vmul.f32 %v629, 1.442695
    %v633 = vpow.pop %v632
    %v634 = vadd.f32 %v631, 1.0
    %v635 = vadd.f32 %v633, 1.0
    %v636 = vrcp.pop %v634
    %v637 = vmul.f32 1.0, %v636
    %v638 = vrcp.pop %v635
    %v639 = vmul.f32 1.0, %v638
    %v640 = vmul.f32 %v626, %v637
    %v641 = vmul.f32 %v627, %v639
    %643 = vset.pattern.permute.xlu0 0
    %644 = vperm.xlu0 %643, %v28
    %v645 = vpop.permute.xlu0 %644
    %648 = vset.pattern.permute.xlu0 0
    %649 = vperm.xlu0 %648, %v29
    %v650 = vpop.permute.xlu0 %649
    %v653 = vsel %vm32, %v16, 0
    %v656 = vsel %vm32, %v17, 0
    %658 = vmatprep.subr.mxu0 0.0
    %v659 = vand.u32 %v640, 4294901760
    %660 = vmatpush1.msra.mxu0 %v659
    %661 = vmatprep.subr.mxu0 0.0
    %v662 = vand.u32 %v641, 4294901760
    %663 = vmatpush1.msra.mxu0 %v662
    %664 = vmatprep.subr.mxu0 0.0
    %665 = vmatpush1.msra.mxu0 0.0
    %666 = vmatprep.subr.mxu0 0.0
    %667 = vmatpush1.msra.mxu0 0.0
    %668 = vmatprep.subr.mxu0 0.0
    %669 = vmatpush1.msra.mxu0 0.0
    %670 = vmatprep.subr.mxu0 0.0
    %671 = vmatpush1.msra.mxu0 0.0
    %672 = vmatprep.subr.mxu0 0.0
    %673 = vmatpush1.msra.mxu0 0.0
    %674 = vmatprep.subr.mxu0 0.0
    %675 = vmatpush1.msra.mxu0 0.0
    %676 = vmatprep.subr.mxu0 0.0
    %677 = vmatpush1.msra.mxu0 0.0
    %678 = vmatprep.subr.mxu0 0.0
    %679 = vmatpush1.msra.mxu0 0.0
    %680 = vmatprep.subr.mxu0 0.0
    %681 = vmatpush1.msra.mxu0 0.0
    %682 = vmatprep.subr.mxu0 0.0
    %683 = vmatpush1.msra.mxu0 0.0
    %684 = vmatprep.subr.mxu0 0.0
    %685 = vmatpush1.msra.mxu0 0.0
    %686 = vmatprep.subr.mxu0 0.0
    %687 = vmatpush1.msra.mxu0 0.0
    %688 = vmatprep.subr.mxu0 0.0
    %689 = vmatpush1.msra.mxu0 0.0
    %690 = vmatprep.subr.mxu0 0.0
    %691 = vmatpush1.msra.mxu0 0.0
    %692 = vmatprep.subr.mxu0 0.0
    %693 = vmatpush1.msra.mxu0 0.0
    %694 = vmatprep.subr.mxu0 0.0
    %695 = vmatpush1.msra.mxu0 0.0
    %696 = vmatprep.subr.mxu0 0.0
    %697 = vmatpush1.msra.mxu0 0.0
    %698 = vmatprep.subr.mxu0 0.0
    %699 = vmatpush1.msra.mxu0 0.0
    %700 = vmatprep.subr.mxu0 0.0
    %701 = vmatpush1.msra.mxu0 0.0
    %702 = vmatprep.subr.mxu0 0.0
    %703 = vmatpush1.msra.mxu0 0.0
    %704 = vmatprep.subr.mxu0 0.0
    %705 = vmatpush1.msra.mxu0 0.0
    %706 = vmatprep.subr.mxu0 0.0
    %707 = vmatpush1.msra.mxu0 0.0
    %708 = vmatprep.subr.mxu0 0.0
    %709 = vmatpush1.msra.mxu0 0.0
    %710 = vmatprep.subr.mxu0 0.0
    %711 = vmatpush1.msra.mxu0 0.0
    %712 = vmatprep.subr.mxu0 0.0
    %713 = vmatpush1.msra.mxu0 0.0
    %714 = vmatprep.subr.mxu0 0.0
    %715 = vmatpush1.msra.mxu0 0.0
    %716 = vmatprep.subr.mxu0 0.0
    %717 = vmatpush1.msra.mxu0 0.0
    %718 = vmatprep.subr.mxu0 0.0
    %719 = vmatpush1.msra.mxu0 0.0
    %720 = vmatprep.subr.mxu0 0.0
    %721 = vmatpush1.msra.mxu0 0.0
    %722 = vmatprep.subr.mxu0 0.0
    %723 = vmatpush1.msra.mxu0 0.0
    %724 = vmatprep.mubr.f32.mxu0 0.0
    %v725 = vand.u32 %v653, 4294901760
    %v726 = vsub.f32 %v653, %v725
    %v727 = vand.u32 %v726, 4294901760
    %v728 = vsub.f32 %v726, %v727
    %v729 = vand.u32 %v728, 4294901760
    %730 = vmatmul.mubr.f32.gmra.mrb[0].mxu0 %v729
    %v731 = vpop.f32.mrb[0].mxu0
    %v732 = vadd.f32 %v645, %v731
    %v733 = vpop.f32.mrb[0].mxu0
    %734 = vmatprep.mubr.f32.mxu0 0.0
    %v735 = vand.u32 %v656, 4294901760
    %v736 = vsub.f32 %v656, %v735
    %v737 = vand.u32 %v736, 4294901760
    %v738 = vsub.f32 %v736, %v737
    %v739 = vand.u32 %v738, 4294901760
    %740 = vmatmul.mubr.f32.gmra.mrb[0].mxu0 %v739
    %v741 = vpop.f32.mrb[0].mxu0
    %v742 = vadd.f32 %v650, %v741
    %v743 = vpop.f32.mrb[0].mxu0
    %744 = vdwg.mxu0
    %745 = vmatprep.subr.mxu0 0.0
    %v746 = vand.u32 %v640, 4294901760
    %v747 = vsub.f32 %v640, %v746
    %v748 = vand.u32 %v747, 4294901760
    %v749 = vsub.f32 %v747, %v748
    %v750 = vand.u32 %v749, 4294901760
    %751 = vmatpush1.msra.mxu0 %v750
    %752 = vmatprep.subr.mxu0 0.0
    %v753 = vand.u32 %v641, 4294901760
    %v754 = vsub.f32 %v641, %v753
    %v755 = vand.u32 %v754, 4294901760
    %v756 = vsub.f32 %v754, %v755
    %v757 = vand.u32 %v756, 4294901760
    %758 = vmatpush1.msra.mxu0 %v757
    %759 = vmatprep.subr.mxu0 0.0
    %760 = vmatpush1.msra.mxu0 0.0
    %761 = vmatprep.subr.mxu0 0.0
    %762 = vmatpush1.msra.mxu0 0.0
    %763 = vmatprep.subr.mxu0 0.0
    %764 = vmatpush1.msra.mxu0 0.0
    %765 = vmatprep.subr.mxu0 0.0
    %766 = vmatpush1.msra.mxu0 0.0
    %767 = vmatprep.subr.mxu0 0.0
    %768 = vmatpush1.msra.mxu0 0.0
    %769 = vmatprep.subr.mxu0 0.0
    %770 = vmatpush1.msra.mxu0 0.0
    %771 = vmatprep.subr.mxu0 0.0
    %772 = vmatpush1.msra.mxu0 0.0
    %773 = vmatprep.subr.mxu0 0.0
    %774 = vmatpush1.msra.mxu0 0.0
    %775 = vmatprep.subr.mxu0 0.0
    %776 = vmatpush1.msra.mxu0 0.0
    %777 = vmatprep.subr.mxu0 0.0
    %778 = vmatpush1.msra.mxu0 0.0
    %779 = vmatprep.subr.mxu0 0.0
    %780 = vmatpush1.msra.mxu0 0.0
    %781 = vmatprep.subr.mxu0 0.0
    %782 = vmatpush1.msra.mxu0 0.0
    %783 = vmatprep.subr.mxu0 0.0
    %784 = vmatpush1.msra.mxu0 0.0
    %785 = vmatprep.subr.mxu0 0.0
    %786 = vmatpush1.msra.mxu0 0.0
    %787 = vmatprep.subr.mxu0 0.0
    %788 = vmatpush1.msra.mxu0 0.0
    %789 = vmatprep.subr.mxu0 0.0
    %790 = vmatpush1.msra.mxu0 0.0
    %791 = vmatprep.subr.mxu0 0.0
    %792 = vmatpush1.msra.mxu0 0.0
    %793 = vmatprep.subr.mxu0 0.0
    %794 = vmatpush1.msra.mxu0 0.0
    %795 = vmatprep.subr.mxu0 0.0
    %796 = vmatpush1.msra.mxu0 0.0
    %797 = vmatprep.subr.mxu0 0.0
    %798 = vmatpush1.msra.mxu0 0.0
    %799 = vmatprep.subr.mxu0 0.0
    %800 = vmatpush1.msra.mxu0 0.0
    %801 = vmatprep.subr.mxu0 0.0
    %802 = vmatpush1.msra.mxu0 0.0
    %803 = vmatprep.subr.mxu0 0.0
    %804 = vmatpush1.msra.mxu0 0.0
    %805 = vmatprep.subr.mxu0 0.0
    %806 = vmatpush1.msra.mxu0 0.0
    %807 = vmatprep.subr.mxu0 0.0
    %808 = vmatpush1.msra.mxu0 0.0
    %809 = vmatprep.subr.mxu0 0.0
    %810 = vmatpush1.msra.mxu0 0.0
    %811 = vmatprep.subr.mxu0 0.0
    %812 = vmatpush1.msra.mxu0 0.0
    %813 = vmatprep.subr.mxu0 0.0
    %814 = vmatpush1.msra.mxu0 0.0
    %815 = vmatprep.subr.mxu0 0.0
    %816 = vmatpush1.msra.mxu0 0.0
    %817 = vmatprep.subr.mxu0 0.0
    %818 = vmatpush1.msra.mxu0 0.0
    %819 = vmatprep.mubr.f32.mxu0 0.0
    %v820 = vand.u32 %v653, 4294901760
    %821 = vmatmul.mubr.f32.gmra.mrb[0].mxu0 %v820
    %v822 = vpop.f32.mrb[0].mxu0
    %v823 = vadd.f32 %v732, %v822
    %v824 = vpop.f32.mrb[0].mxu0
    %825 = vmatprep.mubr.f32.mxu0 0.0
    %v826 = vand.u32 %v656, 4294901760
    %827 = vmatmul.mubr.f32.gmra.mrb[0].mxu0 %v826
    %v828 = vpop.f32.mrb[0].mxu0
    %v829 = vadd.f32 %v742, %v828
    %v830 = vpop.f32.mrb[0].mxu0
    %831 = vdwg.mxu0
    %832 = vmatprep.subr.mxu0 0.0
    %v833 = vand.u32 %v640, 4294901760
    %v834 = vsub.f32 %v640, %v833
    %835 = vmatpush1.msra.mxu0 %v834
    %836 = vmatprep.subr.mxu0 0.0
    %v837 = vand.u32 %v641, 4294901760
    %v838 = vsub.f32 %v641, %v837
    %839 = vmatpush1.msra.mxu0 %v838
    %840 = vmatprep.subr.mxu0 0.0
    %841 = vmatpush1.msra.mxu0 0.0
    %842 = vmatprep.subr.mxu0 0.0
    %843 = vmatpush1.msra.mxu0 0.0
    %844 = vmatprep.subr.mxu0 0.0
    %845 = vmatpush1.msra.mxu0 0.0
    %846 = vmatprep.subr.mxu0 0.0
    %847 = vmatpush1.msra.mxu0 0.0
    %848 = vmatprep.subr.mxu0 0.0
    %849 = vmatpush1.msra.mxu0 0.0
    %850 = vmatprep.subr.mxu0 0.0
    %851 = vmatpush1.msra.mxu0 0.0
    %852 = vmatprep.subr.mxu0 0.0
    %853 = vmatpush1.msra.mxu0 0.0
    %854 = vmatprep.subr.mxu0 0.0
    %855 = vmatpush1.msra.mxu0 0.0
    %856 = vmatprep.subr.mxu0 0.0
    %857 = vmatpush1.msra.mxu0 0.0
    %858 = vmatprep.subr.mxu0 0.0
    %859 = vmatpush1.msra.mxu0 0.0
    %860 = vmatprep.subr.mxu0 0.0
    %861 = vmatpush1.msra.mxu0 0.0
    %862 = vmatprep.subr.mxu0 0.0
    %863 = vmatpush1.msra.mxu0 0.0
    %864 = vmatprep.subr.mxu0 0.0
    %865 = vmatpush1.msra.mxu0 0.0
    %866 = vmatprep.subr.mxu0 0.0
    %867 = vmatpush1.msra.mxu0 0.0
    %868 = vmatprep.subr.mxu0 0.0
    %869 = vmatpush1.msra.mxu0 0.0
    %870 = vmatprep.subr.mxu0 0.0
    %871 = vmatpush1.msra.mxu0 0.0
    %872 = vmatprep.subr.mxu0 0.0
    %873 = vmatpush1.msra.mxu0 0.0
    %874 = vmatprep.subr.mxu0 0.0
    %875 = vmatpush1.msra.mxu0 0.0
    %876 = vmatprep.subr.mxu0 0.0
    %877 = vmatpush1.msra.mxu0 0.0
    %878 = vmatprep.subr.mxu0 0.0
    %879 = vmatpush1.msra.mxu0 0.0
    %880 = vmatprep.subr.mxu0 0.0
    %881 = vmatpush1.msra.mxu0 0.0
    %882 = vmatprep.subr.mxu0 0.0
    %883 = vmatpush1.msra.mxu0 0.0
    %884 = vmatprep.subr.mxu0 0.0
    %885 = vmatpush1.msra.mxu0 0.0
    %886 = vmatprep.subr.mxu0 0.0
    %887 = vmatpush1.msra.mxu0 0.0
    %888 = vmatprep.subr.mxu0 0.0
    %889 = vmatpush1.msra.mxu0 0.0
    %890 = vmatprep.subr.mxu0 0.0
    %891 = vmatpush1.msra.mxu0 0.0
    %892 = vmatprep.subr.mxu0 0.0
    %893 = vmatpush1.msra.mxu0 0.0
    %894 = vmatprep.subr.mxu0 0.0
    %895 = vmatpush1.msra.mxu0 0.0
    %896 = vmatprep.subr.mxu0 0.0
    %897 = vmatpush1.msra.mxu0 0.0
    %898 = vmatprep.subr.mxu0 0.0
    %899 = vmatpush1.msra.mxu0 0.0
    %900 = vmatprep.mubr.f32.mxu0 0.0
    %v901 = vand.u32 %v653, 4294901760
    %v902 = vsub.f32 %v653, %v901
    %903 = vmatmul.mubr.f32.gmra.mrb[0].mxu0 %v902
    %v904 = vpop.f32.mrb[0].mxu0
    %v905 = vadd.f32 %v823, %v904
    %v906 = vpop.f32.mrb[0].mxu0
    %907 = vmatprep.mubr.f32.mxu0 0.0
    %v908 = vand.u32 %v656, 4294901760
    %v909 = vsub.f32 %v656, %v908
    %910 = vmatmul.mubr.f32.gmra.mrb[0].mxu0 %v909
    %v911 = vpop.f32.mrb[0].mxu0
    %v912 = vadd.f32 %v829, %v911
    %v913 = vpop.f32.mrb[0].mxu0
    %914 = vdwg.mxu0
    %915 = vmatprep.subr.mxu0 0.0
    %v916 = vand.u32 %v640, 4294901760
    %917 = vmatpush1.msra.mxu0 %v916
    %918 = vmatprep.subr.mxu0 0.0
    %v919 = vand.u32 %v641, 4294901760
    %920 = vmatpush1.msra.mxu0 %v919
    %921 = vmatprep.subr.mxu0 0.0
    %922 = vmatpush1.msra.mxu0 0.0
    %923 = vmatprep.subr.mxu0 0.0
    %924 = vmatpush1.msra.mxu0 0.0
    %925 = vmatprep.subr.mxu0 0.0
    %926 = vmatpush1.msra.mxu0 0.0
    %927 = vmatprep.subr.mxu0 0.0
    %928 = vmatpush1.msra.mxu0 0.0
    %929 = vmatprep.subr.mxu0 0.0
    %930 = vmatpush1.msra.mxu0 0.0
    %931 = vmatprep.subr.mxu0 0.0
    %932 = vmatpush1.msra.mxu0 0.0
    %933 = vmatprep.subr.mxu0 0.0
    %934 = vmatpush1.msra.mxu0 0.0
    %935 = vmatprep.subr.mxu0 0.0
    %936 = vmatpush1.msra.mxu0 0.0
    %937 = vmatprep.subr.mxu0 0.0
    %938 = vmatpush1.msra.mxu0 0.0
    %939 = vmatprep.subr.mxu0 0.0
    %940 = vmatpush1.msra.mxu0 0.0
    %941 = vmatprep.subr.mxu0 0.0
    %942 = vmatpush1.msra.mxu0 0.0
    %943 = vmatprep.subr.mxu0 0.0
    %944 = vmatpush1.msra.mxu0 0.0
    %945 = vmatprep.subr.mxu0 0.0
    %946 = vmatpush1.msra.mxu0 0.0
    %947 = vmatprep.subr.mxu0 0.0
    %948 = vmatpush1.msra.mxu0 0.0
    %949 = vmatprep.subr.mxu0 0.0
    %950 = vmatpush1.msra.mxu0 0.0
    %951 = vmatprep.subr.mxu0 0.0
    %952 = vmatpush1.msra.mxu0 0.0
    %953 = vmatprep.subr.mxu0 0.0
    %954 = vmatpush1.msra.mxu0 0.0
    %955 = vmatprep.subr.mxu0 0.0
    %956 = vmatpush1.msra.mxu0 0.0
    %957 = vmatprep.subr.mxu0 0.0
    %958 = vmatpush1.msra.mxu0 0.0
    %959 = vmatprep.subr.mxu0 0.0
    %960 = vmatpush1.msra.mxu0 0.0
    %961 = vmatprep.subr.mxu0 0.0
    %962 = vmatpush1.msra.mxu0 0.0
    %963 = vmatprep.subr.mxu0 0.0
    %964 = vmatpush1.msra.mxu0 0.0
    %965 = vmatprep.subr.mxu0 0.0
    %966 = vmatpush1.msra.mxu0 0.0
    %967 = vmatprep.subr.mxu0 0.0
    %968 = vmatpush1.msra.mxu0 0.0
    %969 = vmatprep.subr.mxu0 0.0
    %970 = vmatpush1.msra.mxu0 0.0
    %971 = vmatprep.subr.mxu0 0.0
    %972 = vmatpush1.msra.mxu0 0.0
    %973 = vmatprep.subr.mxu0 0.0
    %974 = vmatpush1.msra.mxu0 0.0
    %975 = vmatprep.subr.mxu0 0.0
    %976 = vmatpush1.msra.mxu0 0.0
    %977 = vmatprep.subr.mxu0 0.0
    %978 = vmatpush1.msra.mxu0 0.0
    %979 = vmatprep.subr.mxu0 0.0
    %980 = vmatpush1.msra.mxu0 0.0
    %981 = vmatprep.mubr.f32.mxu0 0.0
    %v982 = vand.u32 %v653, 4294901760
    %v983 = vsub.f32 %v653, %v982
    %v984 = vand.u32 %v983, 4294901760
    %985 = vmatmul.mubr.f32.gmra.mrb[0].mxu0 %v984
    %v986 = vpop.f32.mrb[0].mxu0
    %v987 = vadd.f32 %v905, %v986
    %v988 = vpop.f32.mrb[0].mxu0
    %989 = vmatprep.mubr.f32.mxu0 0.0
    %v990 = vand.u32 %v656, 4294901760
    %v991 = vsub.f32 %v656, %v990
    %v992 = vand.u32 %v991, 4294901760
    %993 = vmatmul.mubr.f32.gmra.mrb[0].mxu0 %v992
    %v994 = vpop.f32.mrb[0].mxu0
    %v995 = vadd.f32 %v912, %v994
    %v996 = vpop.f32.mrb[0].mxu0
    %997 = vdwg.mxu0
    %998 = vmatprep.subr.mxu0 0.0
    %v999 = vand.u32 %v640, 4294901760
    %v1000 = vsub.f32 %v640, %v999
    %v1001 = vand.u32 %v1000, 4294901760
    %1002 = vmatpush1.msra.mxu0 %v1001
    %1003 = vmatprep.subr.mxu0 0.0
    %v1004 = vand.u32 %v641, 4294901760
    %v1005 = vsub.f32 %v641, %v1004
    %v1006 = vand.u32 %v1005, 4294901760
    %1007 = vmatpush1.msra.mxu0 %v1006
    %1008 = vmatprep.subr.mxu0 0.0
    %1009 = vmatpush1.msra.mxu0 0.0
    %1010 = vmatprep.subr.mxu0 0.0
    %1011 = vmatpush1.msra.mxu0 0.0
    %1012 = vmatprep.subr.mxu0 0.0
    %1013 = vmatpush1.msra.mxu0 0.0
    %1014 = vmatprep.subr.mxu0 0.0
    %1015 = vmatpush1.msra.mxu0 0.0
    %1016 = vmatprep.subr.mxu0 0.0
    %1017 = vmatpush1.msra.mxu0 0.0
    %1018 = vmatprep.subr.mxu0 0.0
    %1019 = vmatpush1.msra.mxu0 0.0
    %1020 = vmatprep.subr.mxu0 0.0
    %1021 = vmatpush1.msra.mxu0 0.0
    %1022 = vmatprep.subr.mxu0 0.0
    %1023 = vmatpush1.msra.mxu0 0.0
    %1024 = vmatprep.subr.mxu0 0.0
    %1025 = vmatpush1.msra.mxu0 0.0
    %1026 = vmatprep.subr.mxu0 0.0
    %1027 = vmatpush1.msra.mxu0 0.0
    %1028 = vmatprep.subr.mxu0 0.0
    %1029 = vmatpush1.msra.mxu0 0.0
    %1030 = vmatprep.subr.mxu0 0.0
    %1031 = vmatpush1.msra.mxu0 0.0
    %1032 = vmatprep.subr.mxu0 0.0
    %1033 = vmatpush1.msra.mxu0 0.0
    %1034 = vmatprep.subr.mxu0 0.0
    %1035 = vmatpush1.msra.mxu0 0.0
    %1036 = vmatprep.subr.mxu0 0.0
    %1037 = vmatpush1.msra.mxu0 0.0
    %1038 = vmatprep.subr.mxu0 0.0
    %1039 = vmatpush1.msra.mxu0 0.0
    %1040 = vmatprep.subr.mxu0 0.0
    %1041 = vmatpush1.msra.mxu0 0.0
    %1042 = vmatprep.subr.mxu0 0.0
    %1043 = vmatpush1.msra.mxu0 0.0
    %1044 = vmatprep.subr.mxu0 0.0
    %1045 = vmatpush1.msra.mxu0 0.0
    %1046 = vmatprep.subr.mxu0 0.0
    %1047 = vmatpush1.msra.mxu0 0.0
    %1048 = vmatprep.subr.mxu0 0.0
    %1049 = vmatpush1.msra.mxu0 0.0
    %1050 = vmatprep.subr.mxu0 0.0
    %1051 = vmatpush1.msra.mxu0 0.0
    %1052 = vmatprep.subr.mxu0 0.0
    %1053 = vmatpush1.msra.mxu0 0.0
    %1054 = vmatprep.subr.mxu0 0.0
    %1055 = vmatpush1.msra.mxu0 0.0
    %1056 = vmatprep.subr.mxu0 0.0
    %1057 = vmatpush1.msra.mxu0 0.0
    %1058 = vmatprep.subr.mxu0 0.0
    %1059 = vmatpush1.msra.mxu0 0.0
    %1060 = vmatprep.subr.mxu0 0.0
    %1061 = vmatpush1.msra.mxu0 0.0
    %1062 = vmatprep.subr.mxu0 0.0
    %1063 = vmatpush1.msra.mxu0 0.0
    %1064 = vmatprep.subr.mxu0 0.0
    %1065 = vmatpush1.msra.mxu0 0.0
    %1066 = vmatprep.subr.mxu0 0.0
    %1067 = vmatpush1.msra.mxu0 0.0
    %1068 = vmatprep.mubr.f32.mxu0 0.0
    %v1069 = vand.u32 %v653, 4294901760
    %1070 = vmatmul.mubr.f32.gmra.mrb[0].mxu0 %v1069
    %v1071 = vpop.f32.mrb[0].mxu0
    %v1072 = vadd.f32 %v987, %v1071
    %v1073 = vpop.f32.mrb[0].mxu0
    %1074 = vmatprep.mubr.f32.mxu0 0.0
    %v1075 = vand.u32 %v656, 4294901760
    %1076 = vmatmul.mubr.f32.gmra.mrb[0].mxu0 %v1075
    %v1077 = vpop.f32.mrb[0].mxu0
    %v1078 = vadd.f32 %v995, %v1077
    %v1079 = vpop.f32.mrb[0].mxu0
    %1080 = vdwg.mxu0
    %1081 = vmatprep.subr.mxu0 0.0
    %v1082 = vand.u32 %v640, 4294901760
    %1083 = vmatpush1.msra.mxu0 %v1082
    %1084 = vmatprep.subr.mxu0 0.0
    %v1085 = vand.u32 %v641, 4294901760
    %1086 = vmatpush1.msra.mxu0 %v1085
    %1087 = vmatprep.subr.mxu0 0.0
    %1088 = vmatpush1.msra.mxu0 0.0
    %1089 = vmatprep.subr.mxu0 0.0
    %1090 = vmatpush1.msra.mxu0 0.0
    %1091 = vmatprep.subr.mxu0 0.0
    %1092 = vmatpush1.msra.mxu0 0.0
    %1093 = vmatprep.subr.mxu0 0.0
    %1094 = vmatpush1.msra.mxu0 0.0
    %1095 = vmatprep.subr.mxu0 0.0
    %1096 = vmatpush1.msra.mxu0 0.0
    %1097 = vmatprep.subr.mxu0 0.0
    %1098 = vmatpush1.msra.mxu0 0.0
    %1099 = vmatprep.subr.mxu0 0.0
    %1100 = vmatpush1.msra.mxu0 0.0
    %1101 = vmatprep.subr.mxu0 0.0
    %1102 = vmatpush1.msra.mxu0 0.0
    %1103 = vmatprep.subr.mxu0 0.0
    %1104 = vmatpush1.msra.mxu0 0.0
    %1105 = vmatprep.subr.mxu0 0.0
    %1106 = vmatpush1.msra.mxu0 0.0
    %1107 = vmatprep.subr.mxu0 0.0
    %1108 = vmatpush1.msra.mxu0 0.0
    %1109 = vmatprep.subr.mxu0 0.0
    %1110 = vmatpush1.msra.mxu0 0.0
    %1111 = vmatprep.subr.mxu0 0.0
    %1112 = vmatpush1.msra.mxu0 0.0
    %1113 = vmatprep.subr.mxu0 0.0
    %1114 = vmatpush1.msra.mxu0 0.0
    %1115 = vmatprep.subr.mxu0 0.0
    %1116 = vmatpush1.msra.mxu0 0.0
    %1117 = vmatprep.subr.mxu0 0.0
    %1118 = vmatpush1.msra.mxu0 0.0
    %1119 = vmatprep.subr.mxu0 0.0
    %1120 = vmatpush1.msra.mxu0 0.0
    %1121 = vmatprep.subr.mxu0 0.0
    %1122 = vmatpush1.msra.mxu0 0.0
    %1123 = vmatprep.subr.mxu0 0.0
    %1124 = vmatpush1.msra.mxu0 0.0
    %1125 = vmatprep.subr.mxu0 0.0
    %1126 = vmatpush1.msra.mxu0 0.0
    %1127 = vmatprep.subr.mxu0 0.0
    %1128 = vmatpush1.msra.mxu0 0.0
    %1129 = vmatprep.subr.mxu0 0.0
    %1130 = vmatpush1.msra.mxu0 0.0
    %1131 = vmatprep.subr.mxu0 0.0
    %1132 = vmatpush1.msra.mxu0 0.0
    %1133 = vmatprep.subr.mxu0 0.0
    %1134 = vmatpush1.msra.mxu0 0.0
    %1135 = vmatprep.subr.mxu0 0.0
    %1136 = vmatpush1.msra.mxu0 0.0
    %1137 = vmatprep.subr.mxu0 0.0
    %1138 = vmatpush1.msra.mxu0 0.0
    %1139 = vmatprep.subr.mxu0 0.0
    %1140 = vmatpush1.msra.mxu0 0.0
    %1141 = vmatprep.subr.mxu0 0.0
    %1142 = vmatpush1.msra.mxu0 0.0
    %1143 = vmatprep.subr.mxu0 0.0
    %1144 = vmatpush1.msra.mxu0 0.0
    %1145 = vmatprep.subr.mxu0 0.0
    %1146 = vmatpush1.msra.mxu0 0.0
    %1147 = vmatprep.mubr.f32.mxu0 0.0
    %v1148 = vand.u32 %v653, 4294901760
    %1149 = vmatmul.mubr.f32.gmra.mrb[0].mxu0 %v1148
    %v1150 = vpop.f32.mrb[0].mxu0
    %v1151 = vadd.f32 %v1072, %v1150
    %v1152 = vpop.f32.mrb[0].mxu0
    %1153 = vmatprep.mubr.f32.mxu0 0.0
    %v1154 = vand.u32 %v656, 4294901760
    %1155 = vmatmul.mubr.f32.gmra.mrb[0].mxu0 %v1154
    %v1156 = vpop.f32.mrb[0].mxu0
    %v1157 = vadd.f32 %v1078, %v1156
    %v1158 = vpop.f32.mrb[0].mxu0
    %1159 = vdwg.mxu0
    %v1160 = vxor.u32 %v1151, 2147483648
    %v1161 = vxor.u32 %v1157, 2147483648
    %v1162 = vmul.f32 %v1160, 1.442695
    %v1163 = vpow.pop %v1162
    %v1164 = vmul.f32 %v1161, 1.442695
    %v1165 = vpow.pop %v1164
    %v1166 = vadd.f32 %v1163, 1.0
    %v1167 = vadd.f32 %v1165, 1.0
    %v1168 = vrcp.pop %v1166
    %v1169 = vmul.f32 1.0, %v1168
    %v1170 = vrcp.pop %v1167
    %v1171 = vmul.f32 1.0, %v1170
    %v1173 = vsel %vm32, %v18, 0
    %v1176 = vsel %vm32, %v19, 0
    %1178 = vmatprep.subr.mxu0 0.0
    %v1179 = vand.u32 %v1151, 4294901760
    %1180 = vmatpush1.msra.mxu0 %v1179
    %1181 = vmatprep.subr.mxu0 0.0
    %v1182 = vand.u32 %v1157, 4294901760
    %1183 = vmatpush1.msra.mxu0 %v1182
    %1184 = vmatprep.subr.mxu0 0.0
    %1185 = vmatpush1.msra.mxu0 0.0
    %1186 = vmatprep.subr.mxu0 0.0
    %1187 = vmatpush1.msra.mxu0 0.0
    %1188 = vmatprep.subr.mxu0 0.0
    %1189 = vmatpush1.msra.mxu0 0.0
    %1190 = vmatprep.subr.mxu0 0.0
    %1191 = vmatpush1.msra.mxu0 0.0
    %1192 = vmatprep.subr.mxu0 0.0
    %1193 = vmatpush1.msra.mxu0 0.0
    %1194 = vmatprep.subr.mxu0 0.0
    %1195 = vmatpush1.msra.mxu0 0.0
    %1196 = vmatprep.subr.mxu0 0.0
    %1197 = vmatpush1.msra.mxu0 0.0
    %1198 = vmatprep.subr.mxu0 0.0
    %1199 = vmatpush1.msra.mxu0 0.0
    %1200 = vmatprep.subr.mxu0 0.0
    %1201 = vmatpush1.msra.mxu0 0.0
    %1202 = vmatprep.subr.mxu0 0.0
    %1203 = vmatpush1.msra.mxu0 0.0
    %1204 = vmatprep.subr.mxu0 0.0
    %1205 = vmatpush1.msra.mxu0 0.0
    %1206 = vmatprep.subr.mxu0 0.0
    %1207 = vmatpush1.msra.mxu0 0.0
    %1208 = vmatprep.subr.mxu0 0.0
    %1209 = vmatpush1.msra.mxu0 0.0
    %1210 = vmatprep.subr.mxu0 0.0
    %1211 = vmatpush1.msra.mxu0 0.0
    %1212 = vmatprep.subr.mxu0 0.0
    %1213 = vmatpush1.msra.mxu0 0.0
    %1214 = vmatprep.subr.mxu0 0.0
    %1215 = vmatpush1.msra.mxu0 0.0
    %1216 = vmatprep.subr.mxu0 0.0
    %1217 = vmatpush1.msra.mxu0 0.0
    %1218 = vmatprep.subr.mxu0 0.0
    %1219 = vmatpush1.msra.mxu0 0.0
    %1220 = vmatprep.subr.mxu0 0.0
    %1221 = vmatpush1.msra.mxu0 0.0
    %1222 = vmatprep.subr.mxu0 0.0
    %1223 = vmatpush1.msra.mxu0 0.0
    %1224 = vmatprep.subr.mxu0 0.0
    %1225 = vmatpush1.msra.mxu0 0.0
    %1226 = vmatprep.subr.mxu0 0.0
    %1227 = vmatpush1.msra.mxu0 0.0
    %1228 = vmatprep.subr.mxu0 0.0
    %1229 = vmatpush1.msra.mxu0 0.0
    %1230 = vmatprep.subr.mxu0 0.0
    %1231 = vmatpush1.msra.mxu0 0.0
    %1232 = vmatprep.subr.mxu0 0.0
    %1233 = vmatpush1.msra.mxu0 0.0
    %1234 = vmatprep.subr.mxu0 0.0
    %1235 = vmatpush1.msra.mxu0 0.0
    %1236 = vmatprep.subr.mxu0 0.0
    %1237 = vmatpush1.msra.mxu0 0.0
    %1238 = vmatprep.subr.mxu0 0.0
    %1239 = vmatpush1.msra.mxu0 0.0
    %1240 = vmatprep.subr.mxu0 0.0
    %1241 = vmatpush1.msra.mxu0 0.0
    %1242 = vmatprep.subr.mxu0 0.0
    %1243 = vmatpush1.msra.mxu0 0.0
    %1244 = vmatprep.mubr.f32.mxu0 0.0
    %v1245 = vand.u32 %v1173, 4294901760
    %v1246 = vsub.f32 %v1173, %v1245
    %v1247 = vand.u32 %v1246, 4294901760
    %v1248 = vsub.f32 %v1246, %v1247
    %v1249 = vand.u32 %v1248, 4294901760
    %1250 = vmatmul.mubr.f32.gmra.mrb[0].mxu0 %v1249
    %v1251 = vpop.f32.mrb[0].mxu0
    %v1252 = vadd.f32 0.0, %v1251
    %v1253 = vpop.f32.mrb[0].mxu0
    %1254 = vmatprep.mubr.f32.mxu0 0.0
    %v1255 = vand.u32 %v1176, 4294901760
    %v1256 = vsub.f32 %v1176, %v1255
    %v1257 = vand.u32 %v1256, 4294901760
    %v1258 = vsub.f32 %v1256, %v1257
    %v1259 = vand.u32 %v1258, 4294901760
    %1260 = vmatmul.mubr.f32.gmra.mrb[0].mxu0 %v1259
    %v1261 = vpop.f32.mrb[0].mxu0
    %v1262 = vadd.f32 0.0, %v1261
    %v1263 = vpop.f32.mrb[0].mxu0
    %1264 = vdwg.mxu0
    %1265 = vmatprep.subr.mxu0 0.0
    %v1266 = vand.u32 %v1151, 4294901760
    %v1267 = vsub.f32 %v1151, %v1266
    %v1268 = vand.u32 %v1267, 4294901760
    %v1269 = vsub.f32 %v1267, %v1268
    %v1270 = vand.u32 %v1269, 4294901760
    %1271 = vmatpush1.msra.mxu0 %v1270
    %1272 = vmatprep.subr.mxu0 0.0
    %v1273 = vand.u32 %v1157, 4294901760
    %v1274 = vsub.f32 %v1157, %v1273
    %v1275 = vand.u32 %v1274, 4294901760
    %v1276 = vsub.f32 %v1274, %v1275
    %v1277 = vand.u32 %v1276, 4294901760
    %1278 = vmatpush1.msra.mxu0 %v1277
    %1279 = vmatprep.subr.mxu0 0.0
    %1280 = vmatpush1.msra.mxu0 0.0
    %1281 = vmatprep.subr.mxu0 0.0
    %1282 = vmatpush1.msra.mxu0 0.0
    %1283 = vmatprep.subr.mxu0 0.0
    %1284 = vmatpush1.msra.mxu0 0.0
    %1285 = vmatprep.subr.mxu0 0.0
    %1286 = vmatpush1.msra.mxu0 0.0
    %1287 = vmatprep.subr.mxu0 0.0
    %1288 = vmatpush1.msra.mxu0 0.0
    %1289 = vmatprep.subr.mxu0 0.0
    %1290 = vmatpush1.msra.mxu0 0.0
    %1291 = vmatprep.subr.mxu0 0.0
    %1292 = vmatpush1.msra.mxu0 0.0
    %1293 = vmatprep.subr.mxu0 0.0
    %1294 = vmatpush1.msra.mxu0 0.0
    %1295 = vmatprep.subr.mxu0 0.0
    %1296 = vmatpush1.msra.mxu0 0.0
    %1297 = vmatprep.subr.mxu0 0.0
    %1298 = vmatpush1.msra.mxu0 0.0
    %1299 = vmatprep.subr.mxu0 0.0
    %1300 = vmatpush1.msra.mxu0 0.0
    %1301 = vmatprep.subr.mxu0 0.0
    %1302 = vmatpush1.msra.mxu0 0.0
    %1303 = vmatprep.subr.mxu0 0.0
    %1304 = vmatpush1.msra.mxu0 0.0
    %1305 = vmatprep.subr.mxu0 0.0
    %1306 = vmatpush1.msra.mxu0 0.0
    %1307 = vmatprep.subr.mxu0 0.0
    %1308 = vmatpush1.msra.mxu0 0.0
    %1309 = vmatprep.subr.mxu0 0.0
    %1310 = vmatpush1.msra.mxu0 0.0
    %1311 = vmatprep.subr.mxu0 0.0
    %1312 = vmatpush1.msra.mxu0 0.0
    %1313 = vmatprep.subr.mxu0 0.0
    %1314 = vmatpush1.msra.mxu0 0.0
    %1315 = vmatprep.subr.mxu0 0.0
    %1316 = vmatpush1.msra.mxu0 0.0
    %1317 = vmatprep.subr.mxu0 0.0
    %1318 = vmatpush1.msra.mxu0 0.0
    %1319 = vmatprep.subr.mxu0 0.0
    %1320 = vmatpush1.msra.mxu0 0.0
    %1321 = vmatprep.subr.mxu0 0.0
    %1322 = vmatpush1.msra.mxu0 0.0
    %1323 = vmatprep.subr.mxu0 0.0
    %1324 = vmatpush1.msra.mxu0 0.0
    %1325 = vmatprep.subr.mxu0 0.0
    %1326 = vmatpush1.msra.mxu0 0.0
    %1327 = vmatprep.subr.mxu0 0.0
    %1328 = vmatpush1.msra.mxu0 0.0
    %1329 = vmatprep.subr.mxu0 0.0
    %1330 = vmatpush1.msra.mxu0 0.0
    %1331 = vmatprep.subr.mxu0 0.0
    %1332 = vmatpush1.msra.mxu0 0.0
    %1333 = vmatprep.subr.mxu0 0.0
    %1334 = vmatpush1.msra.mxu0 0.0
    %1335 = vmatprep.subr.mxu0 0.0
    %1336 = vmatpush1.msra.mxu0 0.0
    %1337 = vmatprep.subr.mxu0 0.0
    %1338 = vmatpush1.msra.mxu0 0.0
    %1339 = vmatprep.mubr.f32.mxu0 0.0
    %v1340 = vand.u32 %v1173, 4294901760
    %1341 = vmatmul.mubr.f32.gmra.mrb[0].mxu0 %v1340
    %v1342 = vpop.f32.mrb[0].mxu0
    %v1343 = vadd.f32 %v1252, %v1342
    %v1344 = vpop.f32.mrb[0].mxu0
    %1345 = vmatprep.mubr.f32.mxu0 0.0
    %v1346 = vand.u32 %v1176, 4294901760
    %1347 = vmatmul.mubr.f32.gmra.mrb[0].mxu0 %v1346
    %v1348 = vpop.f32.mrb[0].mxu0
    %v1349 = vadd.f32 %v1262, %v1348
    %v1350 = vpop.f32.mrb[0].mxu0
    %1351 = vdwg.mxu0
    %1352 = vmatprep.subr.mxu0 0.0
    %v1353 = vand.u32 %v1151, 4294901760
    %v1354 = vsub.f32 %v1151, %v1353
    %1355 = vmatpush1.msra.mxu0 %v1354
    %1356 = vmatprep.subr.mxu0 0.0
    %v1357 = vand.u32 %v1157, 4294901760
    %v1358 = vsub.f32 %v1157, %v1357
    %1359 = vmatpush1.msra.mxu0 %v1358
    %1360 = vmatprep.subr.mxu0 0.0
    %1361 = vmatpush1.msra.mxu0 0.0
    %1362 = vmatprep.subr.mxu0 0.0
    %1363 = vmatpush1.msra.mxu0 0.0
    %1364 = vmatprep.subr.mxu0 0.0
    %1365 = vmatpush1.msra.mxu0 0.0
    %1366 = vmatprep.subr.mxu0 0.0
    %1367 = vmatpush1.msra.mxu0 0.0
    %1368 = vmatprep.subr.mxu0 0.0
    %1369 = vmatpush1.msra.mxu0 0.0
    %1370 = vmatprep.subr.mxu0 0.0
    %1371 = vmatpush1.msra.mxu0 0.0
    %1372 = vmatprep.subr.mxu0 0.0
    %1373 = vmatpush1.msra.mxu0 0.0
    %1374 = vmatprep.subr.mxu0 0.0
    %1375 = vmatpush1.msra.mxu0 0.0
    %1376 = vmatprep.subr.mxu0 0.0
    %1377 = vmatpush1.msra.mxu0 0.0
    %1378 = vmatprep.subr.mxu0 0.0
    %1379 = vmatpush1.msra.mxu0 0.0
    %1380 = vmatprep.subr.mxu0 0.0
    %1381 = vmatpush1.msra.mxu0 0.0
    %1382 = vmatprep.subr.mxu0 0.0
    %1383 = vmatpush1.msra.mxu0 0.0
    %1384 = vmatprep.subr.mxu0 0.0
    %1385 = vmatpush1.msra.mxu0 0.0
    %1386 = vmatprep.subr.mxu0 0.0
    %1387 = vmatpush1.msra.mxu0 0.0
    %1388 = vmatprep.subr.mxu0 0.0
    %1389 = vmatpush1.msra.mxu0 0.0
    %1390 = vmatprep.subr.mxu0 0.0
    %1391 = vmatpush1.msra.mxu0 0.0
    %1392 = vmatprep.subr.mxu0 0.0
    %1393 = vmatpush1.msra.mxu0 0.0
    %1394 = vmatprep.subr.mxu0 0.0
    %1395 = vmatpush1.msra.mxu0 0.0
    %1396 = vmatprep.subr.mxu0 0.0
    %1397 = vmatpush1.msra.mxu0 0.0
    %1398 = vmatprep.subr.mxu0 0.0
    %1399 = vmatpush1.msra.mxu0 0.0
    %1400 = vmatprep.subr.mxu0 0.0
    %1401 = vmatpush1.msra.mxu0 0.0
    %1402 = vmatprep.subr.mxu0 0.0
    %1403 = vmatpush1.msra.mxu0 0.0
    %1404 = vmatprep.subr.mxu0 0.0
    %1405 = vmatpush1.msra.mxu0 0.0
    %1406 = vmatprep.subr.mxu0 0.0
    %1407 = vmatpush1.msra.mxu0 0.0
    %1408 = vmatprep.subr.mxu0 0.0
    %1409 = vmatpush1.msra.mxu0 0.0
    %1410 = vmatprep.subr.mxu0 0.0
    %1411 = vmatpush1.msra.mxu0 0.0
    %1412 = vmatprep.subr.mxu0 0.0
    %1413 = vmatpush1.msra.mxu0 0.0
    %1414 = vmatprep.subr.mxu0 0.0
    %1415 = vmatpush1.msra.mxu0 0.0
    %1416 = vmatprep.subr.mxu0 0.0
    %1417 = vmatpush1.msra.mxu0 0.0
    %1418 = vmatprep.subr.mxu0 0.0
    %1419 = vmatpush1.msra.mxu0 0.0
    %1420 = vmatprep.mubr.f32.mxu0 0.0
    %v1421 = vand.u32 %v1173, 4294901760
    %v1422 = vsub.f32 %v1173, %v1421
    %1423 = vmatmul.mubr.f32.gmra.mrb[0].mxu0 %v1422
    %v1424 = vpop.f32.mrb[0].mxu0
    %v1425 = vadd.f32 %v1343, %v1424
    %v1426 = vpop.f32.mrb[0].mxu0
    %1427 = vmatprep.mubr.f32.mxu0 0.0
    %v1428 = vand.u32 %v1176, 4294901760
    %v1429 = vsub.f32 %v1176, %v1428
    %1430 = vmatmul.mubr.f32.gmra.mrb[0].mxu0 %v1429
    %v1431 = vpop.f32.mrb[0].mxu0
    %v1432 = vadd.f32 %v1349, %v1431
    %v1433 = vpop.f32.mrb[0].mxu0
    %1434 = vdwg.mxu0
    %1435 = vmatprep.subr.mxu0 0.0
    %v1436 = vand.u32 %v1151, 4294901760
    %1437 = vmatpush1.msra.mxu0 %v1436
    %1438 = vmatprep.subr.mxu0 0.0
    %v1439 = vand.u32 %v1157, 4294901760
    %1440 = vmatpush1.msra.mxu0 %v1439
    %1441 = vmatprep.subr.mxu0 0.0
    %1442 = vmatpush1.msra.mxu0 0.0
    %1443 = vmatprep.subr.mxu0 0.0
    %1444 = vmatpush1.msra.mxu0 0.0
    %1445 = vmatprep.subr.mxu0 0.0
    %1446 = vmatpush1.msra.mxu0 0.0
    %1447 = vmatprep.subr.mxu0 0.0
    %1448 = vmatpush1.msra.mxu0 0.0
    %1449 = vmatprep.subr.mxu0 0.0
    %1450 = vmatpush1.msra.mxu0 0.0
    %1451 = vmatprep.subr.mxu0 0.0
    %1452 = vmatpush1.msra.mxu0 0.0
    %1453 = vmatprep.subr.mxu0 0.0
    %1454 = vmatpush1.msra.mxu0 0.0
    %1455 = vmatprep.subr.mxu0 0.0
    %1456 = vmatpush1.msra.mxu0 0.0
    %1457 = vmatprep.subr.mxu0 0.0
    %1458 = vmatpush1.msra.mxu0 0.0
    %1459 = vmatprep.subr.mxu0 0.0
    %1460 = vmatpush1.msra.mxu0 0.0
    %1461 = vmatprep.subr.mxu0 0.0
    %1462 = vmatpush1.msra.mxu0 0.0
    %1463 = vmatprep.subr.mxu0 0.0
    %1464 = vmatpush1.msra.mxu0 0.0
    %1465 = vmatprep.subr.mxu0 0.0
    %1466 = vmatpush1.msra.mxu0 0.0
    %1467 = vmatprep.subr.mxu0 0.0
    %1468 = vmatpush1.msra.mxu0 0.0
    %1469 = vmatprep.subr.mxu0 0.0
    %1470 = vmatpush1.msra.mxu0 0.0
    %1471 = vmatprep.subr.mxu0 0.0
    %1472 = vmatpush1.msra.mxu0 0.0
    %1473 = vmatprep.subr.mxu0 0.0
    %1474 = vmatpush1.msra.mxu0 0.0
    %1475 = vmatprep.subr.mxu0 0.0
    %1476 = vmatpush1.msra.mxu0 0.0
    %1477 = vmatprep.subr.mxu0 0.0
    %1478 = vmatpush1.msra.mxu0 0.0
    %1479 = vmatprep.subr.mxu0 0.0
    %1480 = vmatpush1.msra.mxu0 0.0
    %1481 = vmatprep.subr.mxu0 0.0
    %1482 = vmatpush1.msra.mxu0 0.0
    %1483 = vmatprep.subr.mxu0 0.0
    %1484 = vmatpush1.msra.mxu0 0.0
    %1485 = vmatprep.subr.mxu0 0.0
    %1486 = vmatpush1.msra.mxu0 0.0
    %1487 = vmatprep.subr.mxu0 0.0
    %1488 = vmatpush1.msra.mxu0 0.0
    %1489 = vmatprep.subr.mxu0 0.0
    %1490 = vmatpush1.msra.mxu0 0.0
    %1491 = vmatprep.subr.mxu0 0.0
    %1492 = vmatpush1.msra.mxu0 0.0
    %1493 = vmatprep.subr.mxu0 0.0
    %1494 = vmatpush1.msra.mxu0 0.0
    %1495 = vmatprep.subr.mxu0 0.0
    %1496 = vmatpush1.msra.mxu0 0.0
    %1497 = vmatprep.subr.mxu0 0.0
    %1498 = vmatpush1.msra.mxu0 0.0
    %1499 = vmatprep.subr.mxu0 0.0
    %1500 = vmatpush1.msra.mxu0 0.0
    %1501 = vmatprep.mubr.f32.mxu0 0.0
    %v1502 = vand.u32 %v1173, 4294901760
    %v1503 = vsub.f32 %v1173, %v1502
    %v1504 = vand.u32 %v1503, 4294901760
    %1505 = vmatmul.mubr.f32.gmra.mrb[0].mxu0 %v1504
    %v1506 = vpop.f32.mrb[0].mxu0
    %v1507 = vadd.f32 %v1425, %v1506
    %v1508 = vpop.f32.mrb[0].mxu0
    %1509 = vmatprep.mubr.f32.mxu0 0.0
    %v1510 = vand.u32 %v1176, 4294901760
    %v1511 = vsub.f32 %v1176, %v1510
    %v1512 = vand.u32 %v1511, 4294901760
    %1513 = vmatmul.mubr.f32.gmra.mrb[0].mxu0 %v1512
    %v1514 = vpop.f32.mrb[0].mxu0
    %v1515 = vadd.f32 %v1432, %v1514
    %v1516 = vpop.f32.mrb[0].mxu0
    %1517 = vdwg.mxu0
    %1518 = vmatprep.subr.mxu0 0.0
    %v1519 = vand.u32 %v1151, 4294901760
    %v1520 = vsub.f32 %v1151, %v1519
    %v1521 = vand.u32 %v1520, 4294901760
    %1522 = vmatpush1.msra.mxu0 %v1521
    %1523 = vmatprep.subr.mxu0 0.0
    %v1524 = vand.u32 %v1157, 4294901760
    %v1525 = vsub.f32 %v1157, %v1524
    %v1526 = vand.u32 %v1525, 4294901760
    %1527 = vmatpush1.msra.mxu0 %v1526
    %1528 = vmatprep.subr.mxu0 0.0
    %1529 = vmatpush1.msra.mxu0 0.0
    %1530 = vmatprep.subr.mxu0 0.0
    %1531 = vmatpush1.msra.mxu0 0.0
    %1532 = vmatprep.subr.mxu0 0.0
    %1533 = vmatpush1.msra.mxu0 0.0
    %1534 = vmatprep.subr.mxu0 0.0
    %1535 = vmatpush1.msra.mxu0 0.0
    %1536 = vmatprep.subr.mxu0 0.0
    %1537 = vmatpush1.msra.mxu0 0.0
    %1538 = vmatprep.subr.mxu0 0.0
    %1539 = vmatpush1.msra.mxu0 0.0
    %1540 = vmatprep.subr.mxu0 0.0
    %1541 = vmatpush1.msra.mxu0 0.0
    %1542 = vmatprep.subr.mxu0 0.0
    %1543 = vmatpush1.msra.mxu0 0.0
    %1544 = vmatprep.subr.mxu0 0.0
    %1545 = vmatpush1.msra.mxu0 0.0
    %1546 = vmatprep.subr.mxu0 0.0
    %1547 = vmatpush1.msra.mxu0 0.0
    %1548 = vmatprep.subr.mxu0 0.0
    %1549 = vmatpush1.msra.mxu0 0.0
    %1550 = vmatprep.subr.mxu0 0.0
    %1551 = vmatpush1.msra.mxu0 0.0
    %1552 = vmatprep.subr.mxu0 0.0
    %1553 = vmatpush1.msra.mxu0 0.0
    %1554 = vmatprep.subr.mxu0 0.0
    %1555 = vmatpush1.msra.mxu0 0.0
    %1556 = vmatprep.subr.mxu0 0.0
    %1557 = vmatpush1.msra.mxu0 0.0
    %1558 = vmatprep.subr.mxu0 0.0
    %1559 = vmatpush1.msra.mxu0 0.0
    %1560 = vmatprep.subr.mxu0 0.0
    %1561 = vmatpush1.msra.mxu0 0.0
    %1562 = vmatprep.subr.mxu0 0.0
    %1563 = vmatpush1.msra.mxu0 0.0
    %1564 = vmatprep.subr.mxu0 0.0
    %1565 = vmatpush1.msra.mxu0 0.0
    %1566 = vmatprep.subr.mxu0 0.0
    %1567 = vmatpush1.msra.mxu0 0.0
    %1568 = vmatprep.subr.mxu0 0.0
    %1569 = vmatpush1.msra.mxu0 0.0
    %1570 = vmatprep.subr.mxu0 0.0
    %1571 = vmatpush1.msra.mxu0 0.0
    %1572 = vmatprep.subr.mxu0 0.0
    %1573 = vmatpush1.msra.mxu0 0.0
    %1574 = vmatprep.subr.mxu0 0.0
    %1575 = vmatpush1.msra.mxu0 0.0
    %1576 = vmatprep.subr.mxu0 0.0
    %1577 = vmatpush1.msra.mxu0 0.0
    %1578 = vmatprep.subr.mxu0 0.0
    %1579 = vmatpush1.msra.mxu0 0.0
    %1580 = vmatprep.subr.mxu0 0.0
    %1581 = vmatpush1.msra.mxu0 0.0
    %1582 = vmatprep.subr.mxu0 0.0
    %1583 = vmatpush1.msra.mxu0 0.0
    %1584 = vmatprep.subr.mxu0 0.0
    %1585 = vmatpush1.msra.mxu0 0.0
    %1586 = vmatprep.subr.mxu0 0.0
    %1587 = vmatpush1.msra.mxu0 0.0
    %1588 = vmatprep.mubr.f32.mxu0 0.0
    %v1589 = vand.u32 %v1173, 4294901760
    %1590 = vmatmul.mubr.f32.gmra.mrb[0].mxu0 %v1589
    %v1591 = vpop.f32.mrb[0].mxu0
    %v1592 = vadd.f32 %v1507, %v1591
    %v1593 = vpop.f32.mrb[0].mxu0
    %1594 = vmatprep.mubr.f32.mxu0 0.0
    %v1595 = vand.u32 %v1176, 4294901760
    %1596 = vmatmul.mubr.f32.gmra.mrb[0].mxu0 %v1595
    %v1597 = vpop.f32.mrb[0].mxu0
    %v1598 = vadd.f32 %v1515, %v1597
    %v1599 = vpop.f32.mrb[0].mxu0
    %1600 = vdwg.mxu0
    %1601 = vmatprep.subr.mxu0 0.0
    %v1602 = vand.u32 %v1151, 4294901760
    %1603 = vmatpush1.msra.mxu0 %v1602
    %1604 = vmatprep.subr.mxu0 0.0
    %v1605 = vand.u32 %v1157, 4294901760
    %1606 = vmatpush1.msra.mxu0 %v1605
    %1607 = vmatprep.subr.mxu0 0.0
    %1608 = vmatpush1.msra.mxu0 0.0
    %1609 = vmatprep.subr.mxu0 0.0
    %1610 = vmatpush1.msra.mxu0 0.0
    %1611 = vmatprep.subr.mxu0 0.0
    %1612 = vmatpush1.msra.mxu0 0.0
    %1613 = vmatprep.subr.mxu0 0.0
    %1614 = vmatpush1.msra.mxu0 0.0
    %1615 = vmatprep.subr.mxu0 0.0
    %1616 = vmatpush1.msra.mxu0 0.0
    %1617 = vmatprep.subr.mxu0 0.0
    %1618 = vmatpush1.msra.mxu0 0.0
    %1619 = vmatprep.subr.mxu0 0.0
    %1620 = vmatpush1.msra.mxu0 0.0
    %1621 = vmatprep.subr.mxu0 0.0
    %1622 = vmatpush1.msra.mxu0 0.0
    %1623 = vmatprep.subr.mxu0 0.0
    %1624 = vmatpush1.msra.mxu0 0.0
    %1625 = vmatprep.subr.mxu0 0.0
    %1626 = vmatpush1.msra.mxu0 0.0
    %1627 = vmatprep.subr.mxu0 0.0
    %1628 = vmatpush1.msra.mxu0 0.0
    %1629 = vmatprep.subr.mxu0 0.0
    %1630 = vmatpush1.msra.mxu0 0.0
    %1631 = vmatprep.subr.mxu0 0.0
    %1632 = vmatpush1.msra.mxu0 0.0
    %1633 = vmatprep.subr.mxu0 0.0
    %1634 = vmatpush1.msra.mxu0 0.0
    %1635 = vmatprep.subr.mxu0 0.0
    %1636 = vmatpush1.msra.mxu0 0.0
    %1637 = vmatprep.subr.mxu0 0.0
    %1638 = vmatpush1.msra.mxu0 0.0
    %1639 = vmatprep.subr.mxu0 0.0
    %1640 = vmatpush1.msra.mxu0 0.0
    %1641 = vmatprep.subr.mxu0 0.0
    %1642 = vmatpush1.msra.mxu0 0.0
    %1643 = vmatprep.subr.mxu0 0.0
    %1644 = vmatpush1.msra.mxu0 0.0
    %1645 = vmatprep.subr.mxu0 0.0
    %1646 = vmatpush1.msra.mxu0 0.0
    %1647 = vmatprep.subr.mxu0 0.0
    %1648 = vmatpush1.msra.mxu0 0.0
    %1649 = vmatprep.subr.mxu0 0.0
    %1650 = vmatpush1.msra.mxu0 0.0
    %1651 = vmatprep.subr.mxu0 0.0
    %1652 = vmatpush1.msra.mxu0 0.0
    %1653 = vmatprep.subr.mxu0 0.0
    %1654 = vmatpush1.msra.mxu0 0.0
    %1655 = vmatprep.subr.mxu0 0.0
    %1656 = vmatpush1.msra.mxu0 0.0
    %1657 = vmatprep.subr.mxu0 0.0
    %1658 = vmatpush1.msra.mxu0 0.0
    %1659 = vmatprep.subr.mxu0 0.0
    %1660 = vmatpush1.msra.mxu0 0.0
    %1661 = vmatprep.subr.mxu0 0.0
    %1662 = vmatpush1.msra.mxu0 0.0
    %1663 = vmatprep.subr.mxu0 0.0
    %1664 = vmatpush1.msra.mxu0 0.0
    %1665 = vmatprep.subr.mxu0 0.0
    %1666 = vmatpush1.msra.mxu0 0.0
    %1667 = vmatprep.mubr.f32.mxu0 0.0
    %v1668 = vand.u32 %v1173, 4294901760
    %1669 = vmatmul.mubr.f32.gmra.mrb[0].mxu0 %v1668
    %v1670 = vpop.f32.mrb[0].mxu0
    %v1671 = vadd.f32 %v1592, %v1670
    %v1672 = vpop.f32.mrb[0].mxu0
    %1673 = vmatprep.mubr.f32.mxu0 0.0
    %v1674 = vand.u32 %v1176, 4294901760
    %1675 = vmatmul.mubr.f32.gmra.mrb[0].mxu0 %v1674
    %v1676 = vpop.f32.mrb[0].mxu0
    %v1677 = vadd.f32 %v1598, %v1676
    %v1678 = vpop.f32.mrb[0].mxu0
    %1679 = vdwg.mxu0
    %v1680 = vmul.f32 %v1671, %v1169
    %v1681 = vmul.f32 %v1677, %v1171
    %v1683 = vsel %vm32, %v20, 0
    %v1686 = vsel %vm32, %v21, 0
    %1688 = vmatprep.subr.mxu0 0.0
    %v1689 = vand.u32 %v1151, 4294901760
    %1690 = vmatpush1.msra.mxu0 %v1689
    %1691 = vmatprep.subr.mxu0 0.0
    %v1692 = vand.u32 %v1157, 4294901760
    %1693 = vmatpush1.msra.mxu0 %v1692
    %1694 = vmatprep.subr.mxu0 0.0
    %1695 = vmatpush1.msra.mxu0 0.0
    %1696 = vmatprep.subr.mxu0 0.0
    %1697 = vmatpush1.msra.mxu0 0.0
    %1698 = vmatprep.subr.mxu0 0.0
    %1699 = vmatpush1.msra.mxu0 0.0
    %1700 = vmatprep.subr.mxu0 0.0
    %1701 = vmatpush1.msra.mxu0 0.0
    %1702 = vmatprep.subr.mxu0 0.0
    %1703 = vmatpush1.msra.mxu0 0.0
    %1704 = vmatprep.subr.mxu0 0.0
    %1705 = vmatpush1.msra.mxu0 0.0
    %1706 = vmatprep.subr.mxu0 0.0
    %1707 = vmatpush1.msra.mxu0 0.0
    %1708 = vmatprep.subr.mxu0 0.0
    %1709 = vmatpush1.msra.mxu0 0.0
    %1710 = vmatprep.subr.mxu0 0.0
    %1711 = vmatpush1.msra.mxu0 0.0
    %1712 = vmatprep.subr.mxu0 0.0
    %1713 = vmatpush1.msra.mxu0 0.0
    %1714 = vmatprep.subr.mxu0 0.0
    %1715 = vmatpush1.msra.mxu0 0.0
    %1716 = vmatprep.subr.mxu0 0.0
    %1717 = vmatpush1.msra.mxu0 0.0
    %1718 = vmatprep.subr.mxu0 0.0
    %1719 = vmatpush1.msra.mxu0 0.0
    %1720 = vmatprep.subr.mxu0 0.0
    %1721 = vmatpush1.msra.mxu0 0.0
    %1722 = vmatprep.subr.mxu0 0.0
    %1723 = vmatpush1.msra.mxu0 0.0
    %1724 = vmatprep.subr.mxu0 0.0
    %1725 = vmatpush1.msra.mxu0 0.0
    %1726 = vmatprep.subr.mxu0 0.0
    %1727 = vmatpush1.msra.mxu0 0.0
    %1728 = vmatprep.subr.mxu0 0.0
    %1729 = vmatpush1.msra.mxu0 0.0
    %1730 = vmatprep.subr.mxu0 0.0
    %1731 = vmatpush1.msra.mxu0 0.0
    %1732 = vmatprep.subr.mxu0 0.0
    %1733 = vmatpush1.msra.mxu0 0.0
    %1734 = vmatprep.subr.mxu0 0.0
    %1735 = vmatpush1.msra.mxu0 0.0
    %1736 = vmatprep.subr.mxu0 0.0
    %1737 = vmatpush1.msra.mxu0 0.0
    %1738 = vmatprep.subr.mxu0 0.0
    %1739 = vmatpush1.msra.mxu0 0.0
    %1740 = vmatprep.subr.mxu0 0.0
    %1741 = vmatpush1.msra.mxu0 0.0
    %1742 = vmatprep.subr.mxu0 0.0
    %1743 = vmatpush1.msra.mxu0 0.0
    %1744 = vmatprep.subr.mxu0 0.0
    %1745 = vmatpush1.msra.mxu0 0.0
    %1746 = vmatprep.subr.mxu0 0.0
    %1747 = vmatpush1.msra.mxu0 0.0
    %1748 = vmatprep.subr.mxu0 0.0
    %1749 = vmatpush1.msra.mxu0 0.0
    %1750 = vmatprep.subr.mxu0 0.0
    %1751 = vmatpush1.msra.mxu0 0.0
    %1752 = vmatprep.subr.mxu0 0.0
    %1753 = vmatpush1.msra.mxu0 0.0
    %1754 = vmatprep.mubr.f32.mxu0 0.0
    %v1755 = vand.u32 %v1683, 4294901760
    %v1756 = vsub.f32 %v1683, %v1755
    %v1757 = vand.u32 %v1756, 4294901760
    %v1758 = vsub.f32 %v1756, %v1757
    %v1759 = vand.u32 %v1758, 4294901760
    %1760 = vmatmul.mubr.f32.gmra.mrb[0].mxu0 %v1759
    %v1761 = vpop.f32.mrb[0].mxu0
    %v1762 = vadd.f32 0.0, %v1761
    %v1763 = vpop.f32.mrb[0].mxu0
    %1764 = vmatprep.mubr.f32.mxu0 0.0
    %v1765 = vand.u32 %v1686, 4294901760
    %v1766 = vsub.f32 %v1686, %v1765
    %v1767 = vand.u32 %v1766, 4294901760
    %v1768 = vsub.f32 %v1766, %v1767
    %v1769 = vand.u32 %v1768, 4294901760
    %1770 = vmatmul.mubr.f32.gmra.mrb[0].mxu0 %v1769
    %v1771 = vpop.f32.mrb[0].mxu0
    %v1772 = vadd.f32 0.0, %v1771
    %v1773 = vpop.f32.mrb[0].mxu0
    %1774 = vdwg.mxu0
    %1775 = vmatprep.subr.mxu0 0.0
    %v1776 = vand.u32 %v1151, 4294901760
    %v1777 = vsub.f32 %v1151, %v1776
    %v1778 = vand.u32 %v1777, 4294901760
    %v1779 = vsub.f32 %v1777, %v1778
    %v1780 = vand.u32 %v1779, 4294901760
    %1781 = vmatpush1.msra.mxu0 %v1780
    %1782 = vmatprep.subr.mxu0 0.0
    %v1783 = vand.u32 %v1157, 4294901760
    %v1784 = vsub.f32 %v1157, %v1783
    %v1785 = vand.u32 %v1784, 4294901760
    %v1786 = vsub.f32 %v1784, %v1785
    %v1787 = vand.u32 %v1786, 4294901760
    %1788 = vmatpush1.msra.mxu0 %v1787
    %1789 = vmatprep.subr.mxu0 0.0
    %1790 = vmatpush1.msra.mxu0 0.0
    %1791 = vmatprep.subr.mxu0 0.0
    %1792 = vmatpush1.msra.mxu0 0.0
    %1793 = vmatprep.subr.mxu0 0.0
    %1794 = vmatpush1.msra.mxu0 0.0
    %1795 = vmatprep.subr.mxu0 0.0
    %1796 = vmatpush1.msra.mxu0 0.0
    %1797 = vmatprep.subr.mxu0 0.0
    %1798 = vmatpush1.msra.mxu0 0.0
    %1799 = vmatprep.subr.mxu0 0.0
    %1800 = vmatpush1.msra.mxu0 0.0
    %1801 = vmatprep.subr.mxu0 0.0
    %1802 = vmatpush1.msra.mxu0 0.0
    %1803 = vmatprep.subr.mxu0 0.0
    %1804 = vmatpush1.msra.mxu0 0.0
    %1805 = vmatprep.subr.mxu0 0.0
    %1806 = vmatpush1.msra.mxu0 0.0
    %1807 = vmatprep.subr.mxu0 0.0
    %1808 = vmatpush1.msra.mxu0 0.0
    %1809 = vmatprep.subr.mxu0 0.0
    %1810 = vmatpush1.msra.mxu0 0.0
    %1811 = vmatprep.subr.mxu0 0.0
    %1812 = vmatpush1.msra.mxu0 0.0
    %1813 = vmatprep.subr.mxu0 0.0
    %1814 = vmatpush1.msra.mxu0 0.0
    %1815 = vmatprep.subr.mxu0 0.0
    %1816 = vmatpush1.msra.mxu0 0.0
    %1817 = vmatprep.subr.mxu0 0.0
    %1818 = vmatpush1.msra.mxu0 0.0
    %1819 = vmatprep.subr.mxu0 0.0
    %1820 = vmatpush1.msra.mxu0 0.0
    %1821 = vmatprep.subr.mxu0 0.0
    %1822 = vmatpush1.msra.mxu0 0.0
    %1823 = vmatprep.subr.mxu0 0.0
    %1824 = vmatpush1.msra.mxu0 0.0
    %1825 = vmatprep.subr.mxu0 0.0
    %1826 = vmatpush1.msra.mxu0 0.0
    %1827 = vmatprep.subr.mxu0 0.0
    %1828 = vmatpush1.msra.mxu0 0.0
    %1829 = vmatprep.subr.mxu0 0.0
    %1830 = vmatpush1.msra.mxu0 0.0
    %1831 = vmatprep.subr.mxu0 0.0
    %1832 = vmatpush1.msra.mxu0 0.0
    %1833 = vmatprep.subr.mxu0 0.0
    %1834 = vmatpush1.msra.mxu0 0.0
    %1835 = vmatprep.subr.mxu0 0.0
    %1836 = vmatpush1.msra.mxu0 0.0
    %1837 = vmatprep.subr.mxu0 0.0
    %1838 = vmatpush1.msra.mxu0 0.0
    %1839 = vmatprep.subr.mxu0 0.0
    %1840 = vmatpush1.msra.mxu0 0.0
    %1841 = vmatprep.subr.mxu0 0.0
    %1842 = vmatpush1.msra.mxu0 0.0
    %1843 = vmatprep.subr.mxu0 0.0
    %1844 = vmatpush1.msra.mxu0 0.0
    %1845 = vmatprep.subr.mxu0 0.0
    %1846 = vmatpush1.msra.mxu0 0.0
    %1847 = vmatprep.subr.mxu0 0.0
    %1848 = vmatpush1.msra.mxu0 0.0
    %1849 = vmatprep.mubr.f32.mxu0 0.0
    %v1850 = vand.u32 %v1683, 4294901760
    %1851 = vmatmul.mubr.f32.gmra.mrb[0].mxu0 %v1850
    %v1852 = vpop.f32.mrb[0].mxu0
    %v1853 = vadd.f32 %v1762, %v1852
    %v1854 = vpop.f32.mrb[0].mxu0
    %1855 = vmatprep.mubr.f32.mxu0 0.0
    %v1856 = vand.u32 %v1686, 4294901760
    %1857 = vmatmul.mubr.f32.gmra.mrb[0].mxu0 %v1856
    %v1858 = vpop.f32.mrb[0].mxu0
    %v1859 = vadd.f32 %v1772, %v1858
    %v1860 = vpop.f32.mrb[0].mxu0
    %1861 = vdwg.mxu0
    %1862 = vmatprep.subr.mxu0 0.0
    %v1863 = vand.u32 %v1151, 4294901760
    %v1864 = vsub.f32 %v1151, %v1863
    %1865 = vmatpush1.msra.mxu0 %v1864
    %1866 = vmatprep.subr.mxu0 0.0
    %v1867 = vand.u32 %v1157, 4294901760
    %v1868 = vsub.f32 %v1157, %v1867
    %1869 = vmatpush1.msra.mxu0 %v1868
    %1870 = vmatprep.subr.mxu0 0.0
    %1871 = vmatpush1.msra.mxu0 0.0
    %1872 = vmatprep.subr.mxu0 0.0
    %1873 = vmatpush1.msra.mxu0 0.0
    %1874 = vmatprep.subr.mxu0 0.0
    %1875 = vmatpush1.msra.mxu0 0.0
    %1876 = vmatprep.subr.mxu0 0.0
    %1877 = vmatpush1.msra.mxu0 0.0
    %1878 = vmatprep.subr.mxu0 0.0
    %1879 = vmatpush1.msra.mxu0 0.0
    %1880 = vmatprep.subr.mxu0 0.0
    %1881 = vmatpush1.msra.mxu0 0.0
    %1882 = vmatprep.subr.mxu0 0.0
    %1883 = vmatpush1.msra.mxu0 0.0
    %1884 = vmatprep.subr.mxu0 0.0
    %1885 = vmatpush1.msra.mxu0 0.0
    %1886 = vmatprep.subr.mxu0 0.0
    %1887 = vmatpush1.msra.mxu0 0.0
    %1888 = vmatprep.subr.mxu0 0.0
    %1889 = vmatpush1.msra.mxu0 0.0
    %1890 = vmatprep.subr.mxu0 0.0
    %1891 = vmatpush1.msra.mxu0 0.0
    %1892 = vmatprep.subr.mxu0 0.0
    %1893 = vmatpush1.msra.mxu0 0.0
    %1894 = vmatprep.subr.mxu0 0.0
    %1895 = vmatpush1.msra.mxu0 0.0
    %1896 = vmatprep.subr.mxu0 0.0
    %1897 = vmatpush1.msra.mxu0 0.0
    %1898 = vmatprep.subr.mxu0 0.0
    %1899 = vmatpush1.msra.mxu0 0.0
    %1900 = vmatprep.subr.mxu0 0.0
    %1901 = vmatpush1.msra.mxu0 0.0
    %1902 = vmatprep.subr.mxu0 0.0
    %1903 = vmatpush1.msra.mxu0 0.0
    %1904 = vmatprep.subr.mxu0 0.0
    %1905 = vmatpush1.msra.mxu0 0.0
    %1906 = vmatprep.subr.mxu0 0.0
    %1907 = vmatpush1.msra.mxu0 0.0
    %1908 = vmatprep.subr.mxu0 0.0
    %1909 = vmatpush1.msra.mxu0 0.0
    %1910 = vmatprep.subr.mxu0 0.0
    %1911 = vmatpush1.msra.mxu0 0.0
    %1912 = vmatprep.subr.mxu0 0.0
    %1913 = vmatpush1.msra.mxu0 0.0
    %1914 = vmatprep.subr.mxu0 0.0
    %1915 = vmatpush1.msra.mxu0 0.0
    %1916 = vmatprep.subr.mxu0 0.0
    %1917 = vmatpush1.msra.mxu0 0.0
    %1918 = vmatprep.subr.mxu0 0.0
    %1919 = vmatpush1.msra.mxu0 0.0
    %1920 = vmatprep.subr.mxu0 0.0
    %1921 = vmatpush1.msra.mxu0 0.0
    %1922 = vmatprep.subr.mxu0 0.0
    %1923 = vmatpush1.msra.mxu0 0.0
    %1924 = vmatprep.subr.mxu0 0.0
    %1925 = vmatpush1.msra.mxu0 0.0
    %1926 = vmatprep.subr.mxu0 0.0
    %1927 = vmatpush1.msra.mxu0 0.0
    %1928 = vmatprep.subr.mxu0 0.0
    %1929 = vmatpush1.msra.mxu0 0.0
    %1930 = vmatprep.mubr.f32.mxu0 0.0
    %v1931 = vand.u32 %v1683, 4294901760
    %v1932 = vsub.f32 %v1683, %v1931
    %1933 = vmatmul.mubr.f32.gmra.mrb[0].mxu0 %v1932
    %v1934 = vpop.f32.mrb[0].mxu0
    %v1935 = vadd.f32 %v1853, %v1934
    %v1936 = vpop.f32.mrb[0].mxu0
    %1937 = vmatprep.mubr.f32.mxu0 0.0
    %v1938 = vand.u32 %v1686, 4294901760
    %v1939 = vsub.f32 %v1686, %v1938
    %1940 = vmatmul.mubr.f32.gmra.mrb[0].mxu0 %v1939
    %v1941 = vpop.f32.mrb[0].mxu0
    %v1942 = vadd.f32 %v1859, %v1941
    %v1943 = vpop.f32.mrb[0].mxu0
    %1944 = vdwg.mxu0
    %1945 = vmatprep.subr.mxu0 0.0
    %v1946 = vand.u32 %v1151, 4294901760
    %1947 = vmatpush1.msra.mxu0 %v1946
    %1948 = vmatprep.subr.mxu0 0.0
    %v1949 = vand.u32 %v1157, 4294901760
    %1950 = vmatpush1.msra.mxu0 %v1949
    %1951 = vmatprep.subr.mxu0 0.0
    %1952 = vmatpush1.msra.mxu0 0.0
    %1953 = vmatprep.subr.mxu0 0.0
    %1954 = vmatpush1.msra.mxu0 0.0
    %1955 = vmatprep.subr.mxu0 0.0
    %1956 = vmatpush1.msra.mxu0 0.0
    %1957 = vmatprep.subr.mxu0 0.0
    %1958 = vmatpush1.msra.mxu0 0.0
    %1959 = vmatprep.subr.mxu0 0.0
    %1960 = vmatpush1.msra.mxu0 0.0
    %1961 = vmatprep.subr.mxu0 0.0
    %1962 = vmatpush1.msra.mxu0 0.0
    %1963 = vmatprep.subr.mxu0 0.0
    %1964 = vmatpush1.msra.mxu0 0.0
    %1965 = vmatprep.subr.mxu0 0.0
    %1966 = vmatpush1.msra.mxu0 0.0
    %1967 = vmatprep.subr.mxu0 0.0
    %1968 = vmatpush1.msra.mxu0 0.0
    %1969 = vmatprep.subr.mxu0 0.0
    %1970 = vmatpush1.msra.mxu0 0.0
    %1971 = vmatprep.subr.mxu0 0.0
    %1972 = vmatpush1.msra.mxu0 0.0
    %1973 = vmatprep.subr.mxu0 0.0
    %1974 = vmatpush1.msra.mxu0 0.0
    %1975 = vmatprep.subr.mxu0 0.0
    %1976 = vmatpush1.msra.mxu0 0.0
    %1977 = vmatprep.subr.mxu0 0.0
    %1978 = vmatpush1.msra.mxu0 0.0
    %1979 = vmatprep.subr.mxu0 0.0
    %1980 = vmatpush1.msra.mxu0 0.0
    %1981 = vmatprep.subr.mxu0 0.0
    %1982 = vmatpush1.msra.mxu0 0.0
    %1983 = vmatprep.subr.mxu0 0.0
    %1984 = vmatpush1.msra.mxu0 0.0
    %1985 = vmatprep.subr.mxu0 0.0
    %1986 = vmatpush1.msra.mxu0 0.0
    %1987 = vmatprep.subr.mxu0 0.0
    %1988 = vmatpush1.msra.mxu0 0.0
    %1989 = vmatprep.subr.mxu0 0.0
    %1990 = vmatpush1.msra.mxu0 0.0
    %1991 = vmatprep.subr.mxu0 0.0
    %1992 = vmatpush1.msra.mxu0 0.0
    %1993 = vmatprep.subr.mxu0 0.0
    %1994 = vmatpush1.msra.mxu0 0.0
    %1995 = vmatprep.subr.mxu0 0.0
    %1996 = vmatpush1.msra.mxu0 0.0
    %1997 = vmatprep.subr.mxu0 0.0
    %1998 = vmatpush1.msra.mxu0 0.0
    %1999 = vmatprep.subr.mxu0 0.0
    %2000 = vmatpush1.msra.mxu0 0.0
    %2001 = vmatprep.subr.mxu0 0.0
    %2002 = vmatpush1.msra.mxu0 0.0
    %2003 = vmatprep.subr.mxu0 0.0
    %2004 = vmatpush1.msra.mxu0 0.0
    %2005 = vmatprep.subr.mxu0 0.0
    %2006 = vmatpush1.msra.mxu0 0.0
    %2007 = vmatprep.subr.mxu0 0.0
    %2008 = vmatpush1.msra.mxu0 0.0
    %2009 = vmatprep.subr.mxu0 0.0
    %2010 = vmatpush1.msra.mxu0 0.0
    %2011 = vmatprep.mubr.f32.mxu0 0.0
    %v2012 = vand.u32 %v1683, 4294901760
    %v2013 = vsub.f32 %v1683, %v2012
    %v2014 = vand.u32 %v2013, 4294901760
    %2015 = vmatmul.mubr.f32.gmra.mrb[0].mxu0 %v2014
    %v2016 = vpop.f32.mrb[0].mxu0
    %v2017 = vadd.f32 %v1935, %v2016
    %v2018 = vpop.f32.mrb[0].mxu0
    %2019 = vmatprep.mubr.f32.mxu0 0.0
    %v2020 = vand.u32 %v1686, 4294901760
    %v2021 = vsub.f32 %v1686, %v2020
    %v2022 = vand.u32 %v2021, 4294901760
    %2023 = vmatmul.mubr.f32.gmra.mrb[0].mxu0 %v2022
    %v2024 = vpop.f32.mrb[0].mxu0
    %v2025 = vadd.f32 %v1942, %v2024
    %v2026 = vpop.f32.mrb[0].mxu0
    %2027 = vdwg.mxu0
    %2028 = vmatprep.subr.mxu0 0.0
    %v2029 = vand.u32 %v1151, 4294901760
    %v2030 = vsub.f32 %v1151, %v2029
    %v2031 = vand.u32 %v2030, 4294901760
    %2032 = vmatpush1.msra.mxu0 %v2031
    %2033 = vmatprep.subr.mxu0 0.0
    %v2034 = vand.u32 %v1157, 4294901760
    %v2035 = vsub.f32 %v1157, %v2034
    %v2036 = vand.u32 %v2035, 4294901760
    %2037 = vmatpush1.msra.mxu0 %v2036
    %2038 = vmatprep.subr.mxu0 0.0
    %2039 = vmatpush1.msra.mxu0 0.0
    %2040 = vmatprep.subr.mxu0 0.0
    %2041 = vmatpush1.msra.mxu0 0.0
    %2042 = vmatprep.subr.mxu0 0.0
    %2043 = vmatpush1.msra.mxu0 0.0
    %2044 = vmatprep.subr.mxu0 0.0
    %2045 = vmatpush1.msra.mxu0 0.0
    %2046 = vmatprep.subr.mxu0 0.0
    %2047 = vmatpush1.msra.mxu0 0.0
    %2048 = vmatprep.subr.mxu0 0.0
    %2049 = vmatpush1.msra.mxu0 0.0
    %2050 = vmatprep.subr.mxu0 0.0
    %2051 = vmatpush1.msra.mxu0 0.0
    %2052 = vmatprep.subr.mxu0 0.0
    %2053 = vmatpush1.msra.mxu0 0.0
    %2054 = vmatprep.subr.mxu0 0.0
    %2055 = vmatpush1.msra.mxu0 0.0
    %2056 = vmatprep.subr.mxu0 0.0
    %2057 = vmatpush1.msra.mxu0 0.0
    %2058 = vmatprep.subr.mxu0 0.0
    %2059 = vmatpush1.msra.mxu0 0.0
    %2060 = vmatprep.subr.mxu0 0.0
    %2061 = vmatpush1.msra.mxu0 0.0
    %2062 = vmatprep.subr.mxu0 0.0
    %2063 = vmatpush1.msra.mxu0 0.0
    %2064 = vmatprep.subr.mxu0 0.0
    %2065 = vmatpush1.msra.mxu0 0.0
    %2066 = vmatprep.subr.mxu0 0.0
    %2067 = vmatpush1.msra.mxu0 0.0
    %2068 = vmatprep.subr.mxu0 0.0
    %2069 = vmatpush1.msra.mxu0 0.0
    %2070 = vmatprep.subr.mxu0 0.0
    %2071 = vmatpush1.msra.mxu0 0.0
    %2072 = vmatprep.subr.mxu0 0.0
    %2073 = vmatpush1.msra.mxu0 0.0
    %2074 = vmatprep.subr.mxu0 0.0
    %2075 = vmatpush1.msra.mxu0 0.0
    %2076 = vmatprep.subr.mxu0 0.0
    %2077 = vmatpush1.msra.mxu0 0.0
    %2078 = vmatprep.subr.mxu0 0.0
    %2079 = vmatpush1.msra.mxu0 0.0
    %2080 = vmatprep.subr.mxu0 0.0
    %2081 = vmatpush1.msra.mxu0 0.0
    %2082 = vmatprep.subr.mxu0 0.0
    %2083 = vmatpush1.msra.mxu0 0.0
    %2084 = vmatprep.subr.mxu0 0.0
    %2085 = vmatpush1.msra.mxu0 0.0
    %2086 = vmatprep.subr.mxu0 0.0
    %2087 = vmatpush1.msra.mxu0 0.0
    %2088 = vmatprep.subr.mxu0 0.0
    %2089 = vmatpush1.msra.mxu0 0.0
    %2090 = vmatprep.subr.mxu0 0.0
    %2091 = vmatpush1.msra.mxu0 0.0
    %2092 = vmatprep.subr.mxu0 0.0
    %2093 = vmatpush1.msra.mxu0 0.0
    %2094 = vmatprep.subr.mxu0 0.0
    %2095 = vmatpush1.msra.mxu0 0.0
    %2096 = vmatprep.subr.mxu0 0.0
    %2097 = vmatpush1.msra.mxu0 0.0
    %2098 = vmatprep.mubr.f32.mxu0 0.0
    %v2099 = vand.u32 %v1683, 4294901760
    %2100 = vmatmul.mubr.f32.gmra.mrb[0].mxu0 %v2099
    %v2101 = vpop.f32.mrb[0].mxu0
    %v2102 = vadd.f32 %v2017, %v2101
    %v2103 = vpop.f32.mrb[0].mxu0
    %2104 = vmatprep.mubr.f32.mxu0 0.0
    %v2105 = vand.u32 %v1686, 4294901760
    %2106 = vmatmul.mubr.f32.gmra.mrb[0].mxu0 %v2105
    %v2107 = vpop.f32.mrb[0].mxu0
    %v2108 = vadd.f32 %v2025, %v2107
    %v2109 = vpop.f32.mrb[0].mxu0
    %2110 = vdwg.mxu0
    %2111 = vmatprep.subr.mxu0 0.0
    %v2112 = vand.u32 %v1151, 4294901760
    %2113 = vmatpush1.msra.mxu0 %v2112
    %2114 = vmatprep.subr.mxu0 0.0
    %v2115 = vand.u32 %v1157, 4294901760
    %2116 = vmatpush1.msra.mxu0 %v2115
    %2117 = vmatprep.subr.mxu0 0.0
    %2118 = vmatpush1.msra.mxu0 0.0
    %2119 = vmatprep.subr.mxu0 0.0
    %2120 = vmatpush1.msra.mxu0 0.0
    %2121 = vmatprep.subr.mxu0 0.0
    %2122 = vmatpush1.msra.mxu0 0.0
    %2123 = vmatprep.subr.mxu0 0.0
    %2124 = vmatpush1.msra.mxu0 0.0
    %2125 = vmatprep.subr.mxu0 0.0
    %2126 = vmatpush1.msra.mxu0 0.0
    %2127 = vmatprep.subr.mxu0 0.0
    %2128 = vmatpush1.msra.mxu0 0.0
    %2129 = vmatprep.subr.mxu0 0.0
    %2130 = vmatpush1.msra.mxu0 0.0
    %2131 = vmatprep.subr.mxu0 0.0
    %2132 = vmatpush1.msra.mxu0 0.0
    %2133 = vmatprep.subr.mxu0 0.0
    %2134 = vmatpush1.msra.mxu0 0.0
    %2135 = vmatprep.subr.mxu0 0.0
    %2136 = vmatpush1.msra.mxu0 0.0
    %2137 = vmatprep.subr.mxu0 0.0
    %2138 = vmatpush1.msra.mxu0 0.0
    %2139 = vmatprep.subr.mxu0 0.0
    %2140 = vmatpush1.msra.mxu0 0.0
    %2141 = vmatprep.subr.mxu0 0.0
    %2142 = vmatpush1.msra.mxu0 0.0
    %2143 = vmatprep.subr.mxu0 0.0
    %2144 = vmatpush1.msra.mxu0 0.0
    %2145 = vmatprep.subr.mxu0 0.0
    %2146 = vmatpush1.msra.mxu0 0.0
    %2147 = vmatprep.subr.mxu0 0.0
    %2148 = vmatpush1.msra.mxu0 0.0
    %2149 = vmatprep.subr.mxu0 0.0
    %2150 = vmatpush1.msra.mxu0 0.0
    %2151 = vmatprep.subr.mxu0 0.0
    %2152 = vmatpush1.msra.mxu0 0.0
    %2153 = vmatprep.subr.mxu0 0.0
    %2154 = vmatpush1.msra.mxu0 0.0
    %2155 = vmatprep.subr.mxu0 0.0
    %2156 = vmatpush1.msra.mxu0 0.0
    %2157 = vmatprep.subr.mxu0 0.0
    %2158 = vmatpush1.msra.mxu0 0.0
    %2159 = vmatprep.subr.mxu0 0.0
    %2160 = vmatpush1.msra.mxu0 0.0
    %2161 = vmatprep.subr.mxu0 0.0
    %2162 = vmatpush1.msra.mxu0 0.0
    %2163 = vmatprep.subr.mxu0 0.0
    %2164 = vmatpush1.msra.mxu0 0.0
    %2165 = vmatprep.subr.mxu0 0.0
    %2166 = vmatpush1.msra.mxu0 0.0
    %2167 = vmatprep.subr.mxu0 0.0
    %2168 = vmatpush1.msra.mxu0 0.0
    %2169 = vmatprep.subr.mxu0 0.0
    %2170 = vmatpush1.msra.mxu0 0.0
    %2171 = vmatprep.subr.mxu0 0.0
    %2172 = vmatpush1.msra.mxu0 0.0
    %2173 = vmatprep.subr.mxu0 0.0
    %2174 = vmatpush1.msra.mxu0 0.0
    %2175 = vmatprep.subr.mxu0 0.0
    %2176 = vmatpush1.msra.mxu0 0.0
    %2177 = vmatprep.mubr.f32.mxu0 0.0
    %v2178 = vand.u32 %v1683, 4294901760
    %2179 = vmatmul.mubr.f32.gmra.mrb[0].mxu0 %v2178
    %v2180 = vpop.f32.mrb[0].mxu0
    %v2181 = vadd.f32 %v2102, %v2180
    %v2182 = vpop.f32.mrb[0].mxu0
    %2183 = vmatprep.mubr.f32.mxu0 0.0
    %v2184 = vand.u32 %v1686, 4294901760
    %2185 = vmatmul.mubr.f32.gmra.mrb[0].mxu0 %v2184
    %v2186 = vpop.f32.mrb[0].mxu0
    %v2187 = vadd.f32 %v2108, %v2186
    %v2188 = vpop.f32.mrb[0].mxu0
    %2189 = vdwg.mxu0
    %v2190 = vmul.f32 %v14, 1.442695
    %v2191 = vpow.pop %v2190
    %v2192 = vmul.f32 %v15, 1.442695
    %v2193 = vpow.pop %v2192
    %v2194 = vsub.f32 0.0, %v2191
    %v2195 = vsub.f32 0.0, %v2193
    %2197 = vset.pattern.permute.xlu0 0
    %2198 = vperm.xlu0 %2197, %v1680
    %v2199 = vpop.permute.xlu0 %2198
    %2202 = vset.pattern.permute.xlu0 0
    %2203 = vperm.xlu0 %2202, %v1681
    %v2204 = vpop.permute.xlu0 %2203
    %2207 = vset.pattern.permute.xlu0 0
    %2208 = vperm.xlu0 %2207, %v2181
    %v2209 = vpop.permute.xlu0 %2208
    %2212 = vset.pattern.permute.xlu0 0
    %2213 = vperm.xlu0 %2212, %v2187
    %v2214 = vpop.permute.xlu0 %2213
    %v2216 = vmul.f32 %v2209, %v2199
    %v2217 = vmul.f32 %v2214, %v2204
    %v2218 = vadd.f32 %v2216, %v2217
    %v2219 = vrot.slane %v2218, 4
    %v2220 = vadd.f32 %v2218, %v2219
    %v2221 = vrot.slane %v2220, 2
    %v2222 = vadd.f32 %v2220, %v2221
    %v2223 = vrot.slane %v2222, 1
    %v2224 = vadd.f32 %v2222, %v2223
    %2226 = vset.pattern.permute.xlu0 1
    %2227 = vperm.xlu0 %2226, %v1169
    %v2228 = vpop.permute.xlu0 %2227
    %2231 = vset.pattern.permute.xlu0 1
    %2232 = vperm.xlu0 %2231, %v1171
    %v2233 = vpop.permute.xlu0 %2232
    %v2235 = vmul.f32 %v2194, %v2228
    %v2236 = vmul.f32 %v2195, %v2233
    %v2237 = vmul.f32 %v2235, 1.442695
    %v2238 = vpow.pop %v2237
    %v2239 = vmul.f32 %v2236, 1.442695
    %v2240 = vpow.pop %v2239
    %2242 = vset.pattern.permute.xlu0 0
    %2243 = vperm.xlu0 %2242, %v2238
    %v2244 = vpop.permute.xlu0 %2243
    %2247 = vset.pattern.permute.xlu0 0
    %2248 = vperm.xlu0 %2247, %v2240
    %v2249 = vpop.permute.xlu0 %2248
    %s2251 = vtos %v1680
    %v2252 = vstv %s2251
    %v2254 = vmul.f32 %v2244, %v2252
    %v2255 = vmul.f32 %v2249, %v2252
    %2256 = vset.pattern.permute.xlu0 1
    %2257 = vperm.xlu0 %2256, %v2238
    %v2258 = vpop.permute.xlu0 %2257
    %2260 = vset.pattern.permute.xlu0 1
    %2261 = vperm.xlu0 %2260, %v2240
    %v2262 = vpop.permute.xlu0 %2261
    %v2264 = vrot.slane %v1680, 1
    %s2265 = vtos %v2264
    %v2266 = vstv %s2265
    %v2268 = vmul.f32 %v2258, %v2266
    %v2269 = vmul.f32 %v2262, %v2266
    %2270 = vset.pattern.permute.xlu0 2
    %2271 = vperm.xlu0 %2270, %v2238
    %v2272 = vpop.permute.xlu0 %2271
    %2274 = vset.pattern.permute.xlu0 2
    %2275 = vperm.xlu0 %2274, %v2240
    %v2276 = vpop.permute.xlu0 %2275
    %v2278 = vrot.slane %v1680, 2
    %s2279 = vtos %v2278
    %v2280 = vstv %s2279
    %v2282 = vmul.f32 %v2272, %v2280
    %v2283 = vmul.f32 %v2276, %v2280
    %2284 = vset.pattern.permute.xlu0 3
    %2285 = vperm.xlu0 %2284, %v2238
    %v2286 = vpop.permute.xlu0 %2285
    %2288 = vset.pattern.permute.xlu0 3
    %2289 = vperm.xlu0 %2288, %v2240
    %v2290 = vpop.permute.xlu0 %2289
    %v2292 = vrot.slane %v1680, 3
    %s2293 = vtos %v2292
    %v2294 = vstv %s2293
    %v2296 = vmul.f32 %v2286, %v2294
    %v2297 = vmul.f32 %v2290, %v2294
    %2298 = vset.pattern.permute.xlu0 4
    %2299 = vperm.xlu0 %2298, %v2238
    %v2300 = vpop.permute.xlu0 %2299
    %2302 = vset.pattern.permute.xlu0 4
    %2303 = vperm.xlu0 %2302, %v2240
    %v2304 = vpop.permute.xlu0 %2303
    %v2306 = vrot.slane %v1680, 4
    %s2307 = vtos %v2306
    %v2308 = vstv %s2307
    %v2310 = vmul.f32 %v2300, %v2308
    %v2311 = vmul.f32 %v2304, %v2308
    %2312 = vset.pattern.permute.xlu0 5
    %2313 = vperm.xlu0 %2312, %v2238
    %v2314 = vpop.permute.xlu0 %2313
    %2316 = vset.pattern.permute.xlu0 5
    %2317 = vperm.xlu0 %2316, %v2240
    %v2318 = vpop.permute.xlu0 %2317
    %v2320 = vrot.slane %v1680, 5
    %s2321 = vtos %v2320
    %v2322 = vstv %s2321
    %v2324 = vmul.f32 %v2314, %v2322
    %v2325 = vmul.f32 %v2318, %v2322
    %2326 = vset.pattern.permute.xlu0 6
    %2327 = vperm.xlu0 %2326, %v2238
    %v2328 = vpop.permute.xlu0 %2327
    %2330 = vset.pattern.permute.xlu0 6
    %2331 = vperm.xlu0 %2330, %v2240
    %v2332 = vpop.permute.xlu0 %2331
    %v2334 = vrot.slane %v1680, 6
    %s2335 = vtos %v2334
    %v2336 = vstv %s2335
    %v2338 = vmul.f32 %v2328, %v2336
    %v2339 = vmul.f32 %v2332, %v2336
    %2340 = vset.pattern.permute.xlu0 7
    %2341 = vperm.xlu0 %2340, %v2238
    %v2342 = vpop.permute.xlu0 %2341
    %2344 = vset.pattern.permute.xlu0 7
    %2345 = vperm.xlu0 %2344, %v2240
    %v2346 = vpop.permute.xlu0 %2345
    %v2348 = vrot.slane %v1680, 7
    %s2349 = vtos %v2348
    %v2350 = vstv %s2349
    %v2352 = vmul.f32 %v2342, %v2350
    %v2353 = vmul.f32 %v2346, %v2350
    %2354 = vset.pattern.permute.xlu0 8
    %2355 = vperm.xlu0 %2354, %v2238
    %v2356 = vpop.permute.xlu0 %2355
    %2358 = vset.pattern.permute.xlu0 8
    %2359 = vperm.xlu0 %2358, %v2240
    %v2360 = vpop.permute.xlu0 %2359
    %s2362 = vtos %v1681
    %v2363 = vstv %s2362
    %v2365 = vmul.f32 %v2356, %v2363
    %v2366 = vmul.f32 %v2360, %v2363
    %2367 = vset.pattern.permute.xlu0 9
    %2368 = vperm.xlu0 %2367, %v2238
    %v2369 = vpop.permute.xlu0 %2368
    %2371 = vset.pattern.permute.xlu0 9
    %2372 = vperm.xlu0 %2371, %v2240
    %v2373 = vpop.permute.xlu0 %2372
    %v2375 = vrot.slane %v1681, 1
    %s2376 = vtos %v2375
    %v2377 = vstv %s2376
    %v2379 = vmul.f32 %v2369, %v2377
    %v2380 = vmul.f32 %v2373, %v2377
    %2381 = vset.pattern.permute.xlu0 10
    %2382 = vperm.xlu0 %2381, %v2238
    %v2383 = vpop.permute.xlu0 %2382
    %2385 = vset.pattern.permute.xlu0 10
    %2386 = vperm.xlu0 %2385, %v2240
    %v2387 = vpop.permute.xlu0 %2386
    %v2389 = vrot.slane %v1681, 2
    %s2390 = vtos %v2389
    %v2391 = vstv %s2390
    %v2393 = vmul.f32 %v2383, %v2391
    %v2394 = vmul.f32 %v2387, %v2391
    %2395 = vset.pattern.permute.xlu0 11
    %2396 = vperm.xlu0 %2395, %v2238
    %v2397 = vpop.permute.xlu0 %2396
    %2399 = vset.pattern.permute.xlu0 11
    %2400 = vperm.xlu0 %2399, %v2240
    %v2401 = vpop.permute.xlu0 %2400
    %v2403 = vrot.slane %v1681, 3
    %s2404 = vtos %v2403
    %v2405 = vstv %s2404
    %v2407 = vmul.f32 %v2397, %v2405
    %v2408 = vmul.f32 %v2401, %v2405
    %2409 = vset.pattern.permute.xlu0 12
    %2410 = vperm.xlu0 %2409, %v2238
    %v2411 = vpop.permute.xlu0 %2410
    %2413 = vset.pattern.permute.xlu0 12
    %2414 = vperm.xlu0 %2413, %v2240
    %v2415 = vpop.permute.xlu0 %2414
    %v2417 = vrot.slane %v1681, 4
    %s2418 = vtos %v2417
    %v2419 = vstv %s2418
    %v2421 = vmul.f32 %v2411, %v2419
    %v2422 = vmul.f32 %v2415, %v2419
    %2423 = vset.pattern.permute.xlu0 13
    %2424 = vperm.xlu0 %2423, %v2238
    %v2425 = vpop.permute.xlu0 %2424
    %2427 = vset.pattern.permute.xlu0 13
    %2428 = vperm.xlu0 %2427, %v2240
    %v2429 = vpop.permute.xlu0 %2428
    %v2431 = vrot.slane %v1681, 5
    %s2432 = vtos %v2431
    %v2433 = vstv %s2432
    %v2435 = vmul.f32 %v2425, %v2433
    %v2436 = vmul.f32 %v2429, %v2433
    %2437 = vset.pattern.permute.xlu0 14
    %2438 = vperm.xlu0 %2437, %v2238
    %v2439 = vpop.permute.xlu0 %2438
    %2441 = vset.pattern.permute.xlu0 14
    %2442 = vperm.xlu0 %2441, %v2240
    %v2443 = vpop.permute.xlu0 %2442
    %v2445 = vrot.slane %v1681, 6
    %s2446 = vtos %v2445
    %v2447 = vstv %s2446
    %v2449 = vmul.f32 %v2439, %v2447
    %v2450 = vmul.f32 %v2443, %v2447
    %2451 = vset.pattern.permute.xlu0 15
    %2452 = vperm.xlu0 %2451, %v2238
    %v2453 = vpop.permute.xlu0 %2452
    %2455 = vset.pattern.permute.xlu0 15
    %2456 = vperm.xlu0 %2455, %v2240
    %v2457 = vpop.permute.xlu0 %2456
    %v2459 = vrot.slane %v1681, 7
    %s2460 = vtos %v2459
    %v2461 = vstv %s2460
    %v2463 = vmul.f32 %v2453, %v2461
    %v2464 = vmul.f32 %v2457, %v2461
    %v2465 = vadd.f32 %v2254, %v2268
    %v2466 = vadd.f32 %v2255, %v2269
    %v2467 = vadd.f32 %v2282, %v2296
    %v2468 = vadd.f32 %v2283, %v2297
    %v2469 = vadd.f32 %v2310, %v2324
    %v2470 = vadd.f32 %v2311, %v2325
    %v2471 = vadd.f32 %v2338, %v2352
    %v2472 = vadd.f32 %v2339, %v2353
    %v2473 = vadd.f32 %v2365, %v2379
    %v2474 = vadd.f32 %v2366, %v2380
    %v2475 = vadd.f32 %v2393, %v2407
    %v2476 = vadd.f32 %v2394, %v2408
    %v2477 = vadd.f32 %v2421, %v2435
    %v2478 = vadd.f32 %v2422, %v2436
    %v2479 = vadd.f32 %v2449, %v2463
    %v2480 = vadd.f32 %v2450, %v2464
    %v2481 = vadd.f32 %v2465, %v2467
    %v2482 = vadd.f32 %v2466, %v2468
    %v2483 = vadd.f32 %v2469, %v2471
    %v2484 = vadd.f32 %v2470, %v2472
    %v2485 = vadd.f32 %v2473, %v2475
    %v2486 = vadd.f32 %v2474, %v2476
    %v2487 = vadd.f32 %v2477, %v2479
    %v2488 = vadd.f32 %v2478, %v2480
    %v2489 = vadd.f32 %v2481, %v2483
    %v2490 = vadd.f32 %v2482, %v2484
    %v2491 = vadd.f32 %v2485, %v2487
    %v2492 = vadd.f32 %v2486, %v2488
    %v2493 = vadd.f32 %v2489, %v2491
    %v2494 = vadd.f32 %v2490, %v2492
    %2495 = vset.pattern.permute.xlu0 1
    %2496 = vperm.xlu0 %2495, %v1680
    %v2497 = vpop.permute.xlu0 %2496
    %2499 = vset.pattern.permute.xlu0 1
    %2500 = vperm.xlu0 %2499, %v1681
    %v2501 = vpop.permute.xlu0 %2500
    %v2503 = vadd.f32 %v2493, %v2497
    %v2504 = vadd.f32 %v2494, %v2501
    %2505 = vset.pattern.permute.xlu0 1
    %2506 = vperm.xlu0 %2505, %v2181
    %v2507 = vpop.permute.xlu0 %2506
    %2509 = vset.pattern.permute.xlu0 1
    %2510 = vperm.xlu0 %2509, %v2187
    %v2511 = vpop.permute.xlu0 %2510
    %v2513 = vmul.f32 %v2507, %v2503
    %v2514 = vmul.f32 %v2511, %v2504
    %v2515 = vadd.f32 %v2513, %v2514
    %v2516 = vrot.slane %v2515, 4
    %v2517 = vadd.f32 %v2515, %v2516
    %v2518 = vrot.slane %v2517, 2
    %v2519 = vadd.f32 %v2517, %v2518
    %v2520 = vrot.slane %v2519, 1
    %v2521 = vadd.f32 %v2519, %v2520
    %2522 = vset.pattern.permute.xlu0 2
    %2523 = vperm.xlu0 %2522, %v1169
    %v2524 = vpop.permute.xlu0 %2523
    %2526 = vset.pattern.permute.xlu0 2
    %2527 = vperm.xlu0 %2526, %v1171
    %v2528 = vpop.permute.xlu0 %2527
    %v2530 = vmul.f32 %v2194, %v2524
    %v2531 = vmul.f32 %v2195, %v2528
    %v2532 = vmul.f32 %v2530, 1.442695
    %v2533 = vpow.pop %v2532
    %v2534 = vmul.f32 %v2531, 1.442695
    %v2535 = vpow.pop %v2534
    %2537 = vset.pattern.permute.xlu0 0
    %2538 = vperm.xlu0 %2537, %v2533
    %v2539 = vpop.permute.xlu0 %2538
    %2542 = vset.pattern.permute.xlu0 0
    %2543 = vperm.xlu0 %2542, %v2535
    %v2544 = vpop.permute.xlu0 %2543
    %v2546 = vlaneseq
    %v2547 = vshrl.u32 %v2546, 7
    %v2548 = vsub.s32 0, %v2547
    %v2549 = vrot.slane %v2503, %v2548
    %v2550 = vmul.f32 %v2539, %v2549
    %v2551 = vmul.f32 %v2544, %v2549
    %2552 = vset.pattern.permute.xlu0 1
    %2553 = vperm.xlu0 %2552, %v2533
    %v2554 = vpop.permute.xlu0 %2553
    %2556 = vset.pattern.permute.xlu0 1
    %2557 = vperm.xlu0 %2556, %v2535
    %v2558 = vpop.permute.xlu0 %2557
    %v2560 = vlaneseq
    %v2561 = vshrl.u32 %v2560, 7
    %v2562 = vsub.s32 1, %v2561
    %v2563 = vrot.slane %v2503, %v2562
    %v2564 = vmul.f32 %v2554, %v2563
    %v2565 = vmul.f32 %v2558, %v2563
    %2566 = vset.pattern.permute.xlu0 2
    %2567 = vperm.xlu0 %2566, %v2533
    %v2568 = vpop.permute.xlu0 %2567
    %2570 = vset.pattern.permute.xlu0 2
    %2571 = vperm.xlu0 %2570, %v2535
    %v2572 = vpop.permute.xlu0 %2571
    %v2574 = vlaneseq
    %v2575 = vshrl.u32 %v2574, 7
    %v2576 = vsub.s32 2, %v2575
    %v2577 = vrot.slane %v2503, %v2576
    %v2578 = vmul.f32 %v2568, %v2577
    %v2579 = vmul.f32 %v2572, %v2577
    %2580 = vset.pattern.permute.xlu0 3
    %2581 = vperm.xlu0 %2580, %v2533
    %v2582 = vpop.permute.xlu0 %2581
    %2584 = vset.pattern.permute.xlu0 3
    %2585 = vperm.xlu0 %2584, %v2535
    %v2586 = vpop.permute.xlu0 %2585
    %v2588 = vlaneseq
    %v2589 = vshrl.u32 %v2588, 7
    %v2590 = vsub.s32 3, %v2589
    %v2591 = vrot.slane %v2503, %v2590
    %v2592 = vmul.f32 %v2582, %v2591
    %v2593 = vmul.f32 %v2586, %v2591
    %2594 = vset.pattern.permute.xlu0 4
    %2595 = vperm.xlu0 %2594, %v2533
    %v2596 = vpop.permute.xlu0 %2595
    %2598 = vset.pattern.permute.xlu0 4
    %2599 = vperm.xlu0 %2598, %v2535
    %v2600 = vpop.permute.xlu0 %2599
    %v2602 = vlaneseq
    %v2603 = vshrl.u32 %v2602, 7
    %v2604 = vsub.s32 4, %v2603
    %v2605 = vrot.slane %v2503, %v2604
    %v2606 = vmul.f32 %v2596, %v2605
    %v2607 = vmul.f32 %v2600, %v2605
    %2608 = vset.pattern.permute.xlu0 5
    %2609 = vperm.xlu0 %2608, %v2533
    %v2610 = vpop.permute.xlu0 %2609
    %2612 = vset.pattern.permute.xlu0 5
    %2613 = vperm.xlu0 %2612, %v2535
    %v2614 = vpop.permute.xlu0 %2613
    %v2616 = vlaneseq
    %v2617 = vshrl.u32 %v2616, 7
    %v2618 = vsub.s32 5, %v2617
    %v2619 = vrot.slane %v2503, %v2618
    %v2620 = vmul.f32 %v2610, %v2619
    %v2621 = vmul.f32 %v2614, %v2619
    %2622 = vset.pattern.permute.xlu0 6
    %2623 = vperm.xlu0 %2622, %v2533
    %v2624 = vpop.permute.xlu0 %2623
    %2626 = vset.pattern.permute.xlu0 6
    %2627 = vperm.xlu0 %2626, %v2535
    %v2628 = vpop.permute.xlu0 %2627
    %v2630 = vlaneseq
    %v2631 = vshrl.u32 %v2630, 7
    %v2632 = vsub.s32 6, %v2631
    %v2633 = vrot.slane %v2503, %v2632
    %v2634 = vmul.f32 %v2624, %v2633
    %v2635 = vmul.f32 %v2628, %v2633
    %2636 = vset.pattern.permute.xlu0 7
    %2637 = vperm.xlu0 %2636, %v2533
    %v2638 = vpop.permute.xlu0 %2637
    %2640 = vset.pattern.permute.xlu0 7
    %2641 = vperm.xlu0 %2640, %v2535
    %v2642 = vpop.permute.xlu0 %2641
    %v2644 = vlaneseq
    %v2645 = vshrl.u32 %v2644, 7
    %v2646 = vsub.s32 7, %v2645
    %v2647 = vrot.slane %v2503, %v2646
    %v2648 = vmul.f32 %v2638, %v2647
    %v2649 = vmul.f32 %v2642, %v2647
    %2650 = vset.pattern.permute.xlu0 8
    %2651 = vperm.xlu0 %2650, %v2533
    %v2652 = vpop.permute.xlu0 %2651
    %2654 = vset.pattern.permute.xlu0 8
    %2655 = vperm.xlu0 %2654, %v2535
    %v2656 = vpop.permute.xlu0 %2655
    %v2658 = vlaneseq
    %v2659 = vshrl.u32 %v2658, 7
    %v2660 = vsub.s32 0, %v2659
    %v2661 = vrot.slane %v2504, %v2660
    %v2662 = vmul.f32 %v2652, %v2661
    %v2663 = vmul.f32 %v2656, %v2661
    %2664 = vset.pattern.permute.xlu0 9
    %2665 = vperm.xlu0 %2664, %v2533
    %v2666 = vpop.permute.xlu0 %2665
    %2668 = vset.pattern.permute.xlu0 9
    %2669 = vperm.xlu0 %2668, %v2535
    %v2670 = vpop.permute.xlu0 %2669
    %v2672 = vlaneseq
    %v2673 = vshrl.u32 %v2672, 7
    %v2674 = vsub.s32 1, %v2673
    %v2675 = vrot.slane %v2504, %v2674
    %v2676 = vmul.f32 %v2666, %v2675
    %v2677 = vmul.f32 %v2670, %v2675
    %2678 = vset.pattern.permute.xlu0 10
    %2679 = vperm.xlu0 %2678, %v2533
    %v2680 = vpop.permute.xlu0 %2679
    %2682 = vset.pattern.permute.xlu0 10
    %2683 = vperm.xlu0 %2682, %v2535
    %v2684 = vpop.permute.xlu0 %2683
    %v2686 = vlaneseq
    %v2687 = vshrl.u32 %v2686, 7
    %v2688 = vsub.s32 2, %v2687
    %v2689 = vrot.slane %v2504, %v2688
    %v2690 = vmul.f32 %v2680, %v2689
    %v2691 = vmul.f32 %v2684, %v2689
    %2692 = vset.pattern.permute.xlu0 11
    %2693 = vperm.xlu0 %2692, %v2533
    %v2694 = vpop.permute.xlu0 %2693
    %2696 = vset.pattern.permute.xlu0 11
    %2697 = vperm.xlu0 %2696, %v2535
    %v2698 = vpop.permute.xlu0 %2697
    %v2700 = vlaneseq
    %v2701 = vshrl.u32 %v2700, 7
    %v2702 = vsub.s32 3, %v2701
    %v2703 = vrot.slane %v2504, %v2702
    %v2704 = vmul.f32 %v2694, %v2703
    %v2705 = vmul.f32 %v2698, %v2703
    %2706 = vset.pattern.permute.xlu0 12
    %2707 = vperm.xlu0 %2706, %v2533
    %v2708 = vpop.permute.xlu0 %2707
    %2710 = vset.pattern.permute.xlu0 12
    %2711 = vperm.xlu0 %2710, %v2535
    %v2712 = vpop.permute.xlu0 %2711
    %v2714 = vlaneseq
    %v2715 = vshrl.u32 %v2714, 7
    %v2716 = vsub.s32 4, %v2715
    %v2717 = vrot.slane %v2504, %v2716
    %v2718 = vmul.f32 %v2708, %v2717
    %v2719 = vmul.f32 %v2712, %v2717
    %2720 = vset.pattern.permute.xlu0 13
    %2721 = vperm.xlu0 %2720, %v2533
    %v2722 = vpop.permute.xlu0 %2721
    %2724 = vset.pattern.permute.xlu0 13
    %2725 = vperm.xlu0 %2724, %v2535
    %v2726 = vpop.permute.xlu0 %2725
    %v2728 = vlaneseq
    %v2729 = vshrl.u32 %v2728, 7
    %v2730 = vsub.s32 5, %v2729
    %v2731 = vrot.slane %v2504, %v2730
    %v2732 = vmul.f32 %v2722, %v2731
    %v2733 = vmul.f32 %v2726, %v2731
    %2734 = vset.pattern.permute.xlu0 14
    %2735 = vperm.xlu0 %2734, %v2533
    %v2736 = vpop.permute.xlu0 %2735
    %2738 = vset.pattern.permute.xlu0 14
    %2739 = vperm.xlu0 %2738, %v2535
    %v2740 = vpop.permute.xlu0 %2739
    %v2742 = vlaneseq
    %v2743 = vshrl.u32 %v2742, 7
    %v2744 = vsub.s32 6, %v2743
    %v2745 = vrot.slane %v2504, %v2744
    %v2746 = vmul.f32 %v2736, %v2745
    %v2747 = vmul.f32 %v2740, %v2745
    %2748 = vset.pattern.permute.xlu0 15
    %2749 = vperm.xlu0 %2748, %v2533
    %v2750 = vpop.permute.xlu0 %2749
    %2752 = vset.pattern.permute.xlu0 15
    %2753 = vperm.xlu0 %2752, %v2535
    %v2754 = vpop.permute.xlu0 %2753
    %v2756 = vlaneseq
    %v2757 = vshrl.u32 %v2756, 7
    %v2758 = vsub.s32 7, %v2757
    %v2759 = vrot.slane %v2504, %v2758
    %v2760 = vmul.f32 %v2750, %v2759
    %v2761 = vmul.f32 %v2754, %v2759
    %v2762 = vadd.f32 %v2550, %v2564
    %v2763 = vadd.f32 %v2551, %v2565
    %v2764 = vadd.f32 %v2578, %v2592
    %v2765 = vadd.f32 %v2579, %v2593
    %v2766 = vadd.f32 %v2606, %v2620
    %v2767 = vadd.f32 %v2607, %v2621
    %v2768 = vadd.f32 %v2634, %v2648
    %v2769 = vadd.f32 %v2635, %v2649
    %v2770 = vadd.f32 %v2662, %v2676
    %v2771 = vadd.f32 %v2663, %v2677
    %v2772 = vadd.f32 %v2690, %v2704
    %v2773 = vadd.f32 %v2691, %v2705
    %v2774 = vadd.f32 %v2718, %v2732
    %v2775 = vadd.f32 %v2719, %v2733
    %v2776 = vadd.f32 %v2746, %v2760
    %v2777 = vadd.f32 %v2747, %v2761
    %v2778 = vadd.f32 %v2762, %v2764
    %v2779 = vadd.f32 %v2763, %v2765
    %v2780 = vadd.f32 %v2766, %v2768
    %v2781 = vadd.f32 %v2767, %v2769
    %v2782 = vadd.f32 %v2770, %v2772
    %v2783 = vadd.f32 %v2771, %v2773
    %v2784 = vadd.f32 %v2774, %v2776
    %v2785 = vadd.f32 %v2775, %v2777
    %v2786 = vadd.f32 %v2778, %v2780
    %v2787 = vadd.f32 %v2779, %v2781
    %v2788 = vadd.f32 %v2782, %v2784
    %v2789 = vadd.f32 %v2783, %v2785
    %v2790 = vadd.f32 %v2786, %v2788
    %v2791 = vadd.f32 %v2787, %v2789
    %2792 = vset.pattern.permute.xlu0 2
    %2793 = vperm.xlu0 %2792, %v1680
    %v2794 = vpop.permute.xlu0 %2793
    %2796 = vset.pattern.permute.xlu0 2
    %2797 = vperm.xlu0 %2796, %v1681
    %v2798 = vpop.permute.xlu0 %2797
    %v2800 = vadd.f32 %v2790, %v2794
    %v2801 = vadd.f32 %v2791, %v2798
    %2802 = vset.pattern.permute.xlu0 2
    %2803 = vperm.xlu0 %2802, %v2181
    %v2804 = vpop.permute.xlu0 %2803
    %2806 = vset.pattern.permute.xlu0 2
    %2807 = vperm.xlu0 %2806, %v2187
    %v2808 = vpop.permute.xlu0 %2807
    %v2810 = vmul.f32 %v2804, %v2800
    %v2811 = vmul.f32 %v2808, %v2801
    %v2812 = vadd.f32 %v2810, %v2811
    %v2813 = vrot.slane %v2812, 4
    %v2814 = vadd.f32 %v2812, %v2813
    %v2815 = vrot.slane %v2814, 2
    %v2816 = vadd.f32 %v2814, %v2815
    %v2817 = vrot.slane %v2816, 1
    %v2818 = vadd.f32 %v2816, %v2817
    %2819 = vset.pattern.permute.xlu0 3
    %2820 = vperm.xlu0 %2819, %v1169
    %v2821 = vpop.permute.xlu0 %2820
    %2823 = vset.pattern.permute.xlu0 3
    %2824 = vperm.xlu0 %2823, %v1171
    %v2825 = vpop.permute.xlu0 %2824
    %v2827 = vmul.f32 %v2194, %v2821
    %v2828 = vmul.f32 %v2195, %v2825
    %v2829 = vmul.f32 %v2827, 1.442695
    %v2830 = vpow.pop %v2829
    %v2831 = vmul.f32 %v2828, 1.442695
    %v2832 = vpow.pop %v2831
    %2834 = vset.pattern.permute.xlu0 0
    %2835 = vperm.xlu0 %2834, %v2830
    %v2836 = vpop.permute.xlu0 %2835
    %2839 = vset.pattern.permute.xlu0 0
    %2840 = vperm.xlu0 %2839, %v2832
    %v2841 = vpop.permute.xlu0 %2840
    %v2843 = vlaneseq
    %v2844 = vshrl.u32 %v2843, 7
    %v2845 = vsub.s32 0, %v2844
    %v2846 = vrot.slane %v2800, %v2845
    %v2847 = vmul.f32 %v2836, %v2846
    %v2848 = vmul.f32 %v2841, %v2846
    %2849 = vset.pattern.permute.xlu0 1
    %2850 = vperm.xlu0 %2849, %v2830
    %v2851 = vpop.permute.xlu0 %2850
    %2853 = vset.pattern.permute.xlu0 1
    %2854 = vperm.xlu0 %2853, %v2832
    %v2855 = vpop.permute.xlu0 %2854
    %v2857 = vlaneseq
    %v2858 = vshrl.u32 %v2857, 7
    %v2859 = vsub.s32 1, %v2858
    %v2860 = vrot.slane %v2800, %v2859
    %v2861 = vmul.f32 %v2851, %v2860
    %v2862 = vmul.f32 %v2855, %v2860
    %2863 = vset.pattern.permute.xlu0 2
    %2864 = vperm.xlu0 %2863, %v2830
    %v2865 = vpop.permute.xlu0 %2864
    %2867 = vset.pattern.permute.xlu0 2
    %2868 = vperm.xlu0 %2867, %v2832
    %v2869 = vpop.permute.xlu0 %2868
    %v2871 = vlaneseq
    %v2872 = vshrl.u32 %v2871, 7
    %v2873 = vsub.s32 2, %v2872
    %v2874 = vrot.slane %v2800, %v2873
    %v2875 = vmul.f32 %v2865, %v2874
    %v2876 = vmul.f32 %v2869, %v2874
    %2877 = vset.pattern.permute.xlu0 3
    %2878 = vperm.xlu0 %2877, %v2830
    %v2879 = vpop.permute.xlu0 %2878
    %2881 = vset.pattern.permute.xlu0 3
    %2882 = vperm.xlu0 %2881, %v2832
    %v2883 = vpop.permute.xlu0 %2882
    %v2885 = vlaneseq
    %v2886 = vshrl.u32 %v2885, 7
    %v2887 = vsub.s32 3, %v2886
    %v2888 = vrot.slane %v2800, %v2887
    %v2889 = vmul.f32 %v2879, %v2888
    %v2890 = vmul.f32 %v2883, %v2888
    %2891 = vset.pattern.permute.xlu0 4
    %2892 = vperm.xlu0 %2891, %v2830
    %v2893 = vpop.permute.xlu0 %2892
    %2895 = vset.pattern.permute.xlu0 4
    %2896 = vperm.xlu0 %2895, %v2832
    %v2897 = vpop.permute.xlu0 %2896
    %v2899 = vlaneseq
    %v2900 = vshrl.u32 %v2899, 7
    %v2901 = vsub.s32 4, %v2900
    %v2902 = vrot.slane %v2800, %v2901
    %v2903 = vmul.f32 %v2893, %v2902
    %v2904 = vmul.f32 %v2897, %v2902
    %2905 = vset.pattern.permute.xlu0 5
    %2906 = vperm.xlu0 %2905, %v2830
    %v2907 = vpop.permute.xlu0 %2906
    %2909 = vset.pattern.permute.xlu0 5
    %2910 = vperm.xlu0 %2909, %v2832
    %v2911 = vpop.permute.xlu0 %2910
    %v2913 = vlaneseq
    %v2914 = vshrl.u32 %v2913, 7
    %v2915 = vsub.s32 5, %v2914
    %v2916 = vrot.slane %v2800, %v2915
    %v2917 = vmul.f32 %v2907, %v2916
    %v2918 = vmul.f32 %v2911, %v2916
    %2919 = vset.pattern.permute.xlu0 6
    %2920 = vperm.xlu0 %2919, %v2830
    %v2921 = vpop.permute.xlu0 %2920
    %2923 = vset.pattern.permute.xlu0 6
    %2924 = vperm.xlu0 %2923, %v2832
    %v2925 = vpop.permute.xlu0 %2924
    %v2927 = vlaneseq
    %v2928 = vshrl.u32 %v2927, 7
    %v2929 = vsub.s32 6, %v2928
    %v2930 = vrot.slane %v2800, %v2929
    %v2931 = vmul.f32 %v2921, %v2930
    %v2932 = vmul.f32 %v2925, %v2930
    %2933 = vset.pattern.permute.xlu0 7
    %2934 = vperm.xlu0 %2933, %v2830
    %v2935 = vpop.permute.xlu0 %2934
    %2937 = vset.pattern.permute.xlu0 7
    %2938 = vperm.xlu0 %2937, %v2832
    %v2939 = vpop.permute.xlu0 %2938
    %v2941 = vlaneseq
    %v2942 = vshrl.u32 %v2941, 7
    %v2943 = vsub.s32 7, %v2942
    %v2944 = vrot.slane %v2800, %v2943
    %v2945 = vmul.f32 %v2935, %v2944
    %v2946 = vmul.f32 %v2939, %v2944
    %2947 = vset.pattern.permute.xlu0 8
    %2948 = vperm.xlu0 %2947, %v2830
    %v2949 = vpop.permute.xlu0 %2948
    %2951 = vset.pattern.permute.xlu0 8
    %2952 = vperm.xlu0 %2951, %v2832
    %v2953 = vpop.permute.xlu0 %2952
    %v2955 = vlaneseq
    %v2956 = vshrl.u32 %v2955, 7
    %v2957 = vsub.s32 0, %v2956
    %v2958 = vrot.slane %v2801, %v2957
    %v2959 = vmul.f32 %v2949, %v2958
    %v2960 = vmul.f32 %v2953, %v2958
    %2961 = vset.pattern.permute.xlu0 9
    %2962 = vperm.xlu0 %2961, %v2830
    %v2963 = vpop.permute.xlu0 %2962
    %2965 = vset.pattern.permute.xlu0 9
    %2966 = vperm.xlu0 %2965, %v2832
    %v2967 = vpop.permute.xlu0 %2966
    %v2969 = vlaneseq
    %v2970 = vshrl.u32 %v2969, 7
    %v2971 = vsub.s32 1, %v2970
    %v2972 = vrot.slane %v2801, %v2971
    %v2973 = vmul.f32 %v2963, %v2972
    %v2974 = vmul.f32 %v2967, %v2972
    %2975 = vset.pattern.permute.xlu0 10
    %2976 = vperm.xlu0 %2975, %v2830
    %v2977 = vpop.permute.xlu0 %2976
    %2979 = vset.pattern.permute.xlu0 10
    %2980 = vperm.xlu0 %2979, %v2832
    %v2981 = vpop.permute.xlu0 %2980
    %v2983 = vlaneseq
    %v2984 = vshrl.u32 %v2983, 7
    %v2985 = vsub.s32 2, %v2984
    %v2986 = vrot.slane %v2801, %v2985
    %v2987 = vmul.f32 %v2977, %v2986
    %v2988 = vmul.f32 %v2981, %v2986
    %2989 = vset.pattern.permute.xlu0 11
    %2990 = vperm.xlu0 %2989, %v2830
    %v2991 = vpop.permute.xlu0 %2990
    %2993 = vset.pattern.permute.xlu0 11
    %2994 = vperm.xlu0 %2993, %v2832
    %v2995 = vpop.permute.xlu0 %2994
    %v2997 = vlaneseq
    %v2998 = vshrl.u32 %v2997, 7
    %v2999 = vsub.s32 3, %v2998
    %v3000 = vrot.slane %v2801, %v2999
    %v3001 = vmul.f32 %v2991, %v3000
    %v3002 = vmul.f32 %v2995, %v3000
    %3003 = vset.pattern.permute.xlu0 12
    %3004 = vperm.xlu0 %3003, %v2830
    %v3005 = vpop.permute.xlu0 %3004
    %3007 = vset.pattern.permute.xlu0 12
    %3008 = vperm.xlu0 %3007, %v2832
    %v3009 = vpop.permute.xlu0 %3008
    %v3011 = vlaneseq
    %v3012 = vshrl.u32 %v3011, 7
    %v3013 = vsub.s32 4, %v3012
    %v3014 = vrot.slane %v2801, %v3013
    %v3015 = vmul.f32 %v3005, %v3014
    %v3016 = vmul.f32 %v3009, %v3014
    %3017 = vset.pattern.permute.xlu0 13
    %3018 = vperm.xlu0 %3017, %v2830
    %v3019 = vpop.permute.xlu0 %3018
    %3021 = vset.pattern.permute.xlu0 13
    %3022 = vperm.xlu0 %3021, %v2832
    %v3023 = vpop.permute.xlu0 %3022
    %v3025 = vlaneseq
    %v3026 = vshrl.u32 %v3025, 7
    %v3027 = vsub.s32 5, %v3026
    %v3028 = vrot.slane %v2801, %v3027
    %v3029 = vmul.f32 %v3019, %v3028
    %v3030 = vmul.f32 %v3023, %v3028
    %3031 = vset.pattern.permute.xlu0 14
    %3032 = vperm.xlu0 %3031, %v2830
    %v3033 = vpop.permute.xlu0 %3032
    %3035 = vset.pattern.permute.xlu0 14
    %3036 = vperm.xlu0 %3035, %v2832
    %v3037 = vpop.permute.xlu0 %3036
    %v3039 = vlaneseq
    %v3040 = vshrl.u32 %v3039, 7
    %v3041 = vsub.s32 6, %v3040
    %v3042 = vrot.slane %v2801, %v3041
    %v3043 = vmul.f32 %v3033, %v3042
    %v3044 = vmul.f32 %v3037, %v3042
    %3045 = vset.pattern.permute.xlu0 15
    %3046 = vperm.xlu0 %3045, %v2830
    %v3047 = vpop.permute.xlu0 %3046
    %3049 = vset.pattern.permute.xlu0 15
    %3050 = vperm.xlu0 %3049, %v2832
    %v3051 = vpop.permute.xlu0 %3050
    %v3053 = vlaneseq
    %v3054 = vshrl.u32 %v3053, 7
    %v3055 = vsub.s32 7, %v3054
    %v3056 = vrot.slane %v2801, %v3055
    %v3057 = vmul.f32 %v3047, %v3056
    %v3058 = vmul.f32 %v3051, %v3056
    %v3059 = vadd.f32 %v2847, %v2861
    %v3060 = vadd.f32 %v2848, %v2862
    %v3061 = vadd.f32 %v2875, %v2889
    %v3062 = vadd.f32 %v2876, %v2890
    %v3063 = vadd.f32 %v2903, %v2917
    %v3064 = vadd.f32 %v2904, %v2918
    %v3065 = vadd.f32 %v2931, %v2945
    %v3066 = vadd.f32 %v2932, %v2946
    %v3067 = vadd.f32 %v2959, %v2973
    %v3068 = vadd.f32 %v2960, %v2974
    %v3069 = vadd.f32 %v2987, %v3001
    %v3070 = vadd.f32 %v2988, %v3002
    %v3071 = vadd.f32 %v3015, %v3029
    %v3072 = vadd.f32 %v3016, %v3030
    %v3073 = vadd.f32 %v3043, %v3057
    %v3074 = vadd.f32 %v3044, %v3058
    %v3075 = vadd.f32 %v3059, %v3061
    %v3076 = vadd.f32 %v3060, %v3062
    %v3077 = vadd.f32 %v3063, %v3065
    %v3078 = vadd.f32 %v3064, %v3066
    %v3079 = vadd.f32 %v3067, %v3069
    %v3080 = vadd.f32 %v3068, %v3070
    %v3081 = vadd.f32 %v3071, %v3073
    %v3082 = vadd.f32 %v3072, %v3074
    %v3083 = vadd.f32 %v3075, %v3077
    %v3084 = vadd.f32 %v3076, %v3078
    %v3085 = vadd.f32 %v3079, %v3081
    %v3086 = vadd.f32 %v3080, %v3082
    %v3087 = vadd.f32 %v3083, %v3085
    %v3088 = vadd.f32 %v3084, %v3086
    %3089 = vset.pattern.permute.xlu0 3
    %3090 = vperm.xlu0 %3089, %v1680
    %v3091 = vpop.permute.xlu0 %3090
    %3093 = vset.pattern.permute.xlu0 3
    %3094 = vperm.xlu0 %3093, %v1681
    %v3095 = vpop.permute.xlu0 %3094
    %v3097 = vadd.f32 %v3087, %v3091
    %v3098 = vadd.f32 %v3088, %v3095
    %3099 = vset.pattern.permute.xlu0 3
    %3100 = vperm.xlu0 %3099, %v2181
    %v3101 = vpop.permute.xlu0 %3100
    %3103 = vset.pattern.permute.xlu0 3
    %3104 = vperm.xlu0 %3103, %v2187
    %v3105 = vpop.permute.xlu0 %3104
    %v3107 = vmul.f32 %v3101, %v3097
    %v3108 = vmul.f32 %v3105, %v3098
    %v3109 = vadd.f32 %v3107, %v3108
    %v3110 = vrot.slane %v3109, 4
    %v3111 = vadd.f32 %v3109, %v3110
    %v3112 = vrot.slane %v3111, 2
    %v3113 = vadd.f32 %v3111, %v3112
    %v3114 = vrot.slane %v3113, 1
    %v3115 = vadd.f32 %v3113, %v3114
    %3116 = vset.pattern.permute.xlu0 4
    %3117 = vperm.xlu0 %3116, %v1169
    %v3118 = vpop.permute.xlu0 %3117
    %3120 = vset.pattern.permute.xlu0 4
    %3121 = vperm.xlu0 %3120, %v1171
    %v3122 = vpop.permute.xlu0 %3121
    %v3124 = vmul.f32 %v2194, %v3118
    %v3125 = vmul.f32 %v2195, %v3122
    %v3126 = vmul.f32 %v3124, 1.442695
    %v3127 = vpow.pop %v3126
    %v3128 = vmul.f32 %v3125, 1.442695
    %v3129 = vpow.pop %v3128
    %3131 = vset.pattern.permute.xlu0 0
    %3132 = vperm.xlu0 %3131, %v3127
    %v3133 = vpop.permute.xlu0 %3132
    %3136 = vset.pattern.permute.xlu0 0
    %3137 = vperm.xlu0 %3136, %v3129
    %v3138 = vpop.permute.xlu0 %3137
    %v3140 = vlaneseq
    %v3141 = vshrl.u32 %v3140, 7
    %v3142 = vsub.s32 0, %v3141
    %v3143 = vrot.slane %v3097, %v3142
    %v3144 = vmul.f32 %v3133, %v3143
    %v3145 = vmul.f32 %v3138, %v3143
    %3146 = vset.pattern.permute.xlu0 1
    %3147 = vperm.xlu0 %3146, %v3127
    %v3148 = vpop.permute.xlu0 %3147
    %3150 = vset.pattern.permute.xlu0 1
    %3151 = vperm.xlu0 %3150, %v3129
    %v3152 = vpop.permute.xlu0 %3151
    %v3154 = vlaneseq
    %v3155 = vshrl.u32 %v3154, 7
    %v3156 = vsub.s32 1, %v3155
    %v3157 = vrot.slane %v3097, %v3156
    %v3158 = vmul.f32 %v3148, %v3157
    %v3159 = vmul.f32 %v3152, %v3157
    %3160 = vset.pattern.permute.xlu0 2
    %3161 = vperm.xlu0 %3160, %v3127
    %v3162 = vpop.permute.xlu0 %3161
    %3164 = vset.pattern.permute.xlu0 2
    %3165 = vperm.xlu0 %3164, %v3129
    %v3166 = vpop.permute.xlu0 %3165
    %v3168 = vlaneseq
    %v3169 = vshrl.u32 %v3168, 7
    %v3170 = vsub.s32 2, %v3169
    %v3171 = vrot.slane %v3097, %v3170
    %v3172 = vmul.f32 %v3162, %v3171
    %v3173 = vmul.f32 %v3166, %v3171
    %3174 = vset.pattern.permute.xlu0 3
    %3175 = vperm.xlu0 %3174, %v3127
    %v3176 = vpop.permute.xlu0 %3175
    %3178 = vset.pattern.permute.xlu0 3
    %3179 = vperm.xlu0 %3178, %v3129
    %v3180 = vpop.permute.xlu0 %3179
    %v3182 = vlaneseq
    %v3183 = vshrl.u32 %v3182, 7
    %v3184 = vsub.s32 3, %v3183
    %v3185 = vrot.slane %v3097, %v3184
    %v3186 = vmul.f32 %v3176, %v3185
    %v3187 = vmul.f32 %v3180, %v3185
    %3188 = vset.pattern.permute.xlu0 4
    %3189 = vperm.xlu0 %3188, %v3127
    %v3190 = vpop.permute.xlu0 %3189
    %3192 = vset.pattern.permute.xlu0 4
    %3193 = vperm.xlu0 %3192, %v3129
    %v3194 = vpop.permute.xlu0 %3193
    %v3196 = vlaneseq
    %v3197 = vshrl.u32 %v3196, 7
    %v3198 = vsub.s32 4, %v3197
    %v3199 = vrot.slane %v3097, %v3198
    %v3200 = vmul.f32 %v3190, %v3199
    %v3201 = vmul.f32 %v3194, %v3199
    %3202 = vset.pattern.permute.xlu0 5
    %3203 = vperm.xlu0 %3202, %v3127
    %v3204 = vpop.permute.xlu0 %3203
    %3206 = vset.pattern.permute.xlu0 5
    %3207 = vperm.xlu0 %3206, %v3129
    %v3208 = vpop.permute.xlu0 %3207
    %v3210 = vlaneseq
    %v3211 = vshrl.u32 %v3210, 7
    %v3212 = vsub.s32 5, %v3211
    %v3213 = vrot.slane %v3097, %v3212
    %v3214 = vmul.f32 %v3204, %v3213
    %v3215 = vmul.f32 %v3208, %v3213
    %3216 = vset.pattern.permute.xlu0 6
    %3217 = vperm.xlu0 %3216, %v3127
    %v3218 = vpop.permute.xlu0 %3217
    %3220 = vset.pattern.permute.xlu0 6
    %3221 = vperm.xlu0 %3220, %v3129
    %v3222 = vpop.permute.xlu0 %3221
    %v3224 = vlaneseq
    %v3225 = vshrl.u32 %v3224, 7
    %v3226 = vsub.s32 6, %v3225
    %v3227 = vrot.slane %v3097, %v3226
    %v3228 = vmul.f32 %v3218, %v3227
    %v3229 = vmul.f32 %v3222, %v3227
    %3230 = vset.pattern.permute.xlu0 7
    %3231 = vperm.xlu0 %3230, %v3127
    %v3232 = vpop.permute.xlu0 %3231
    %3234 = vset.pattern.permute.xlu0 7
    %3235 = vperm.xlu0 %3234, %v3129
    %v3236 = vpop.permute.xlu0 %3235
    %v3238 = vlaneseq
    %v3239 = vshrl.u32 %v3238, 7
    %v3240 = vsub.s32 7, %v3239
    %v3241 = vrot.slane %v3097, %v3240
    %v3242 = vmul.f32 %v3232, %v3241
    %v3243 = vmul.f32 %v3236, %v3241
    %3244 = vset.pattern.permute.xlu0 8
    %3245 = vperm.xlu0 %3244, %v3127
    %v3246 = vpop.permute.xlu0 %3245
    %3248 = vset.pattern.permute.xlu0 8
    %3249 = vperm.xlu0 %3248, %v3129
    %v3250 = vpop.permute.xlu0 %3249
    %v3252 = vlaneseq
    %v3253 = vshrl.u32 %v3252, 7
    %v3254 = vsub.s32 0, %v3253
    %v3255 = vrot.slane %v3098, %v3254
    %v3256 = vmul.f32 %v3246, %v3255
    %v3257 = vmul.f32 %v3250, %v3255
    %3258 = vset.pattern.permute.xlu0 9
    %3259 = vperm.xlu0 %3258, %v3127
    %v3260 = vpop.permute.xlu0 %3259
    %3262 = vset.pattern.permute.xlu0 9
    %3263 = vperm.xlu0 %3262, %v3129
    %v3264 = vpop.permute.xlu0 %3263
    %v3266 = vlaneseq
    %v3267 = vshrl.u32 %v3266, 7
    %v3268 = vsub.s32 1, %v3267
    %v3269 = vrot.slane %v3098, %v3268
    %v3270 = vmul.f32 %v3260, %v3269
    %v3271 = vmul.f32 %v3264, %v3269
    %3272 = vset.pattern.permute.xlu0 10
    %3273 = vperm.xlu0 %3272, %v3127
    %v3274 = vpop.permute.xlu0 %3273
    %3276 = vset.pattern.permute.xlu0 10
    %3277 = vperm.xlu0 %3276, %v3129
    %v3278 = vpop.permute.xlu0 %3277
    %v3280 = vlaneseq
    %v3281 = vshrl.u32 %v3280, 7
    %v3282 = vsub.s32 2, %v3281
    %v3283 = vrot.slane %v3098, %v3282
    %v3284 = vmul.f32 %v3274, %v3283
    %v3285 = vmul.f32 %v3278, %v3283
    %3286 = vset.pattern.permute.xlu0 11
    %3287 = vperm.xlu0 %3286, %v3127
    %v3288 = vpop.permute.xlu0 %3287
    %3290 = vset.pattern.permute.xlu0 11
    %3291 = vperm.xlu0 %3290, %v3129
    %v3292 = vpop.permute.xlu0 %3291
    %v3294 = vlaneseq
    %v3295 = vshrl.u32 %v3294, 7
    %v3296 = vsub.s32 3, %v3295
    %v3297 = vrot.slane %v3098, %v3296
    %v3298 = vmul.f32 %v3288, %v3297
    %v3299 = vmul.f32 %v3292, %v3297
    %3300 = vset.pattern.permute.xlu0 12
    %3301 = vperm.xlu0 %3300, %v3127
    %v3302 = vpop.permute.xlu0 %3301
    %3304 = vset.pattern.permute.xlu0 12
    %3305 = vperm.xlu0 %3304, %v3129
    %v3306 = vpop.permute.xlu0 %3305
    %v3308 = vlaneseq
    %v3309 = vshrl.u32 %v3308, 7
    %v3310 = vsub.s32 4, %v3309
    %v3311 = vrot.slane %v3098, %v3310
    %v3312 = vmul.f32 %v3302, %v3311
    %v3313 = vmul.f32 %v3306, %v3311
    %3314 = vset.pattern.permute.xlu0 13
    %3315 = vperm.xlu0 %3314, %v3127
    %v3316 = vpop.permute.xlu0 %3315
    %3318 = vset.pattern.permute.xlu0 13
    %3319 = vperm.xlu0 %3318, %v3129
    %v3320 = vpop.permute.xlu0 %3319
    %v3322 = vlaneseq
    %v3323 = vshrl.u32 %v3322, 7
    %v3324 = vsub.s32 5, %v3323
    %v3325 = vrot.slane %v3098, %v3324
    %v3326 = vmul.f32 %v3316, %v3325
    %v3327 = vmul.f32 %v3320, %v3325
    %3328 = vset.pattern.permute.xlu0 14
    %3329 = vperm.xlu0 %3328, %v3127
    %v3330 = vpop.permute.xlu0 %3329
    %3332 = vset.pattern.permute.xlu0 14
    %3333 = vperm.xlu0 %3332, %v3129
    %v3334 = vpop.permute.xlu0 %3333
    %v3336 = vlaneseq
    %v3337 = vshrl.u32 %v3336, 7
    %v3338 = vsub.s32 6, %v3337
    %v3339 = vrot.slane %v3098, %v3338
    %v3340 = vmul.f32 %v3330, %v3339
    %v3341 = vmul.f32 %v3334, %v3339
    %3342 = vset.pattern.permute.xlu0 15
    %3343 = vperm.xlu0 %3342, %v3127
    %v3344 = vpop.permute.xlu0 %3343
    %3346 = vset.pattern.permute.xlu0 15
    %3347 = vperm.xlu0 %3346, %v3129
    %v3348 = vpop.permute.xlu0 %3347
    %v3350 = vlaneseq
    %v3351 = vshrl.u32 %v3350, 7
    %v3352 = vsub.s32 7, %v3351
    %v3353 = vrot.slane %v3098, %v3352
    %v3354 = vmul.f32 %v3344, %v3353
    %v3355 = vmul.f32 %v3348, %v3353
    %v3356 = vadd.f32 %v3144, %v3158
    %v3357 = vadd.f32 %v3145, %v3159
    %v3358 = vadd.f32 %v3172, %v3186
    %v3359 = vadd.f32 %v3173, %v3187
    %v3360 = vadd.f32 %v3200, %v3214
    %v3361 = vadd.f32 %v3201, %v3215
    %v3362 = vadd.f32 %v3228, %v3242
    %v3363 = vadd.f32 %v3229, %v3243
    %v3364 = vadd.f32 %v3256, %v3270
    %v3365 = vadd.f32 %v3257, %v3271
    %v3366 = vadd.f32 %v3284, %v3298
    %v3367 = vadd.f32 %v3285, %v3299
    %v3368 = vadd.f32 %v3312, %v3326
    %v3369 = vadd.f32 %v3313, %v3327
    %v3370 = vadd.f32 %v3340, %v3354
    %v3371 = vadd.f32 %v3341, %v3355
    %v3372 = vadd.f32 %v3356, %v3358
    %v3373 = vadd.f32 %v3357, %v3359
    %v3374 = vadd.f32 %v3360, %v3362
    %v3375 = vadd.f32 %v3361, %v3363
    %v3376 = vadd.f32 %v3364, %v3366
    %v3377 = vadd.f32 %v3365, %v3367
    %v3378 = vadd.f32 %v3368, %v3370
    %v3379 = vadd.f32 %v3369, %v3371
    %v3380 = vadd.f32 %v3372, %v3374
    %v3381 = vadd.f32 %v3373, %v3375
    %v3382 = vadd.f32 %v3376, %v3378
    %v3383 = vadd.f32 %v3377, %v3379
    %v3384 = vadd.f32 %v3380, %v3382
    %v3385 = vadd.f32 %v3381, %v3383
    %3386 = vset.pattern.permute.xlu0 4
    %3387 = vperm.xlu0 %3386, %v1680
    %v3388 = vpop.permute.xlu0 %3387
    %3390 = vset.pattern.permute.xlu0 4
    %3391 = vperm.xlu0 %3390, %v1681
    %v3392 = vpop.permute.xlu0 %3391
    %v3394 = vadd.f32 %v3384, %v3388
    %v3395 = vadd.f32 %v3385, %v3392
    %3396 = vset.pattern.permute.xlu0 4
    %3397 = vperm.xlu0 %3396, %v2181
    %v3398 = vpop.permute.xlu0 %3397
    %3400 = vset.pattern.permute.xlu0 4
    %3401 = vperm.xlu0 %3400, %v2187
    %v3402 = vpop.permute.xlu0 %3401
    %v3404 = vmul.f32 %v3398, %v3394
    %v3405 = vmul.f32 %v3402, %v3395
    %v3406 = vadd.f32 %v3404, %v3405
    %v3407 = vrot.slane %v3406, 4
    %v3408 = vadd.f32 %v3406, %v3407
    %v3409 = vrot.slane %v3408, 2
    %v3410 = vadd.f32 %v3408, %v3409
    %v3411 = vrot.slane %v3410, 1
    %v3412 = vadd.f32 %v3410, %v3411
    %3413 = vset.pattern.permute.xlu0 5
    %3414 = vperm.xlu0 %3413, %v1169
    %v3415 = vpop.permute.xlu0 %3414
    %3417 = vset.pattern.permute.xlu0 5
    %3418 = vperm.xlu0 %3417, %v1171
    %v3419 = vpop.permute.xlu0 %3418
    %v3421 = vmul.f32 %v2194, %v3415
    %v3422 = vmul.f32 %v2195, %v3419
    %v3423 = vmul.f32 %v3421, 1.442695
    %v3424 = vpow.pop %v3423
    %v3425 = vmul.f32 %v3422, 1.442695
    %v3426 = vpow.pop %v3425
    %3428 = vset.pattern.permute.xlu0 0
    %3429 = vperm.xlu0 %3428, %v3424
    %v3430 = vpop.permute.xlu0 %3429
    %3433 = vset.pattern.permute.xlu0 0
    %3434 = vperm.xlu0 %3433, %v3426
    %v3435 = vpop.permute.xlu0 %3434
    %v3437 = vlaneseq
    %v3438 = vshrl.u32 %v3437, 7
    %v3439 = vsub.s32 0, %v3438
    %v3440 = vrot.slane %v3394, %v3439
    %v3441 = vmul.f32 %v3430, %v3440
    %v3442 = vmul.f32 %v3435, %v3440
    %3443 = vset.pattern.permute.xlu0 1
    %3444 = vperm.xlu0 %3443, %v3424
    %v3445 = vpop.permute.xlu0 %3444
    %3447 = vset.pattern.permute.xlu0 1
    %3448 = vperm.xlu0 %3447, %v3426
    %v3449 = vpop.permute.xlu0 %3448
    %v3451 = vlaneseq
    %v3452 = vshrl.u32 %v3451, 7
    %v3453 = vsub.s32 1, %v3452
    %v3454 = vrot.slane %v3394, %v3453
    %v3455 = vmul.f32 %v3445, %v3454
    %v3456 = vmul.f32 %v3449, %v3454
    %3457 = vset.pattern.permute.xlu0 2
    %3458 = vperm.xlu0 %3457, %v3424
    %v3459 = vpop.permute.xlu0 %3458
    %3461 = vset.pattern.permute.xlu0 2
    %3462 = vperm.xlu0 %3461, %v3426
    %v3463 = vpop.permute.xlu0 %3462
    %v3465 = vlaneseq
    %v3466 = vshrl.u32 %v3465, 7
    %v3467 = vsub.s32 2, %v3466
    %v3468 = vrot.slane %v3394, %v3467
    %v3469 = vmul.f32 %v3459, %v3468
    %v3470 = vmul.f32 %v3463, %v3468
    %3471 = vset.pattern.permute.xlu0 3
    %3472 = vperm.xlu0 %3471, %v3424
    %v3473 = vpop.permute.xlu0 %3472
    %3475 = vset.pattern.permute.xlu0 3
    %3476 = vperm.xlu0 %3475, %v3426
    %v3477 = vpop.permute.xlu0 %3476
    %v3479 = vlaneseq
    %v3480 = vshrl.u32 %v3479, 7
    %v3481 = vsub.s32 3, %v3480
    %v3482 = vrot.slane %v3394, %v3481
    %v3483 = vmul.f32 %v3473, %v3482
    %v3484 = vmul.f32 %v3477, %v3482
    %3485 = vset.pattern.permute.xlu0 4
    %3486 = vperm.xlu0 %3485, %v3424
    %v3487 = vpop.permute.xlu0 %3486
    %3489 = vset.pattern.permute.xlu0 4
    %3490 = vperm.xlu0 %3489, %v3426
    %v3491 = vpop.permute.xlu0 %3490
    %v3493 = vlaneseq
    %v3494 = vshrl.u32 %v3493, 7
    %v3495 = vsub.s32 4, %v3494
    %v3496 = vrot.slane %v3394, %v3495
    %v3497 = vmul.f32 %v3487, %v3496
    %v3498 = vmul.f32 %v3491, %v3496
    %3499 = vset.pattern.permute.xlu0 5
    %3500 = vperm.xlu0 %3499, %v3424
    %v3501 = vpop.permute.xlu0 %3500
    %3503 = vset.pattern.permute.xlu0 5
    %3504 = vperm.xlu0 %3503, %v3426
    %v3505 = vpop.permute.xlu0 %3504
    %v3507 = vlaneseq
    %v3508 = vshrl.u32 %v3507, 7
    %v3509 = vsub.s32 5, %v3508
    %v3510 = vrot.slane %v3394, %v3509
    %v3511 = vmul.f32 %v3501, %v3510
    %v3512 = vmul.f32 %v3505, %v3510
    %3513 = vset.pattern.permute.xlu0 6
    %3514 = vperm.xlu0 %3513, %v3424
    %v3515 = vpop.permute.xlu0 %3514
    %3517 = vset.pattern.permute.xlu0 6
    %3518 = vperm.xlu0 %3517, %v3426
    %v3519 = vpop.permute.xlu0 %3518
    %v3521 = vlaneseq
    %v3522 = vshrl.u32 %v3521, 7
    %v3523 = vsub.s32 6, %v3522
    %v3524 = vrot.slane %v3394, %v3523
    %v3525 = vmul.f32 %v3515, %v3524
    %v3526 = vmul.f32 %v3519, %v3524
    %3527 = vset.pattern.permute.xlu0 7
    %3528 = vperm.xlu0 %3527, %v3424
    %v3529 = vpop.permute.xlu0 %3528
    %3531 = vset.pattern.permute.xlu0 7
    %3532 = vperm.xlu0 %3531, %v3426
    %v3533 = vpop.permute.xlu0 %3532
    %v3535 = vlaneseq
    %v3536 = vshrl.u32 %v3535, 7
    %v3537 = vsub.s32 7, %v3536
    %v3538 = vrot.slane %v3394, %v3537
    %v3539 = vmul.f32 %v3529, %v3538
    %v3540 = vmul.f32 %v3533, %v3538
    %3541 = vset.pattern.permute.xlu0 8
    %3542 = vperm.xlu0 %3541, %v3424
    %v3543 = vpop.permute.xlu0 %3542
    %3545 = vset.pattern.permute.xlu0 8
    %3546 = vperm.xlu0 %3545, %v3426
    %v3547 = vpop.permute.xlu0 %3546
    %v3549 = vlaneseq
    %v3550 = vshrl.u32 %v3549, 7
    %v3551 = vsub.s32 0, %v3550
    %v3552 = vrot.slane %v3395, %v3551
    %v3553 = vmul.f32 %v3543, %v3552
    %v3554 = vmul.f32 %v3547, %v3552
    %3555 = vset.pattern.permute.xlu0 9
    %3556 = vperm.xlu0 %3555, %v3424
    %v3557 = vpop.permute.xlu0 %3556
    %3559 = vset.pattern.permute.xlu0 9
    %3560 = vperm.xlu0 %3559, %v3426
    %v3561 = vpop.permute.xlu0 %3560
    %v3563 = vlaneseq
    %v3564 = vshrl.u32 %v3563, 7
    %v3565 = vsub.s32 1, %v3564
    %v3566 = vrot.slane %v3395, %v3565
    %v3567 = vmul.f32 %v3557, %v3566
    %v3568 = vmul.f32 %v3561, %v3566
    %3569 = vset.pattern.permute.xlu0 10
    %3570 = vperm.xlu0 %3569, %v3424
    %v3571 = vpop.permute.xlu0 %3570
    %3573 = vset.pattern.permute.xlu0 10
    %3574 = vperm.xlu0 %3573, %v3426
    %v3575 = vpop.permute.xlu0 %3574
    %v3577 = vlaneseq
    %v3578 = vshrl.u32 %v3577, 7
    %v3579 = vsub.s32 2, %v3578
    %v3580 = vrot.slane %v3395, %v3579
    %v3581 = vmul.f32 %v3571, %v3580
    %v3582 = vmul.f32 %v3575, %v3580
    %3583 = vset.pattern.permute.xlu0 11
    %3584 = vperm.xlu0 %3583, %v3424
    %v3585 = vpop.permute.xlu0 %3584
    %3587 = vset.pattern.permute.xlu0 11
    %3588 = vperm.xlu0 %3587, %v3426
    %v3589 = vpop.permute.xlu0 %3588
    %v3591 = vlaneseq
    %v3592 = vshrl.u32 %v3591, 7
    %v3593 = vsub.s32 3, %v3592
    %v3594 = vrot.slane %v3395, %v3593
    %v3595 = vmul.f32 %v3585, %v3594
    %v3596 = vmul.f32 %v3589, %v3594
    %3597 = vset.pattern.permute.xlu0 12
    %3598 = vperm.xlu0 %3597, %v3424
    %v3599 = vpop.permute.xlu0 %3598
    %3601 = vset.pattern.permute.xlu0 12
    %3602 = vperm.xlu0 %3601, %v3426
    %v3603 = vpop.permute.xlu0 %3602
    %v3605 = vlaneseq
    %v3606 = vshrl.u32 %v3605, 7
    %v3607 = vsub.s32 4, %v3606
    %v3608 = vrot.slane %v3395, %v3607
    %v3609 = vmul.f32 %v3599, %v3608
    %v3610 = vmul.f32 %v3603, %v3608
    %3611 = vset.pattern.permute.xlu0 13
    %3612 = vperm.xlu0 %3611, %v3424
    %v3613 = vpop.permute.xlu0 %3612
    %3615 = vset.pattern.permute.xlu0 13
    %3616 = vperm.xlu0 %3615, %v3426
    %v3617 = vpop.permute.xlu0 %3616
    %v3619 = vlaneseq
    %v3620 = vshrl.u32 %v3619, 7
    %v3621 = vsub.s32 5, %v3620
    %v3622 = vrot.slane %v3395, %v3621
    %v3623 = vmul.f32 %v3613, %v3622
    %v3624 = vmul.f32 %v3617, %v3622
    %3625 = vset.pattern.permute.xlu0 14
    %3626 = vperm.xlu0 %3625, %v3424
    %v3627 = vpop.permute.xlu0 %3626
    %3629 = vset.pattern.permute.xlu0 14
    %3630 = vperm.xlu0 %3629, %v3426
    %v3631 = vpop.permute.xlu0 %3630
    %v3633 = vlaneseq
    %v3634 = vshrl.u32 %v3633, 7
    %v3635 = vsub.s32 6, %v3634
    %v3636 = vrot.slane %v3395, %v3635
    %v3637 = vmul.f32 %v3627, %v3636
    %v3638 = vmul.f32 %v3631, %v3636
    %3639 = vset.pattern.permute.xlu0 15
    %3640 = vperm.xlu0 %3639, %v3424
    %v3641 = vpop.permute.xlu0 %3640
    %3643 = vset.pattern.permute.xlu0 15
    %3644 = vperm.xlu0 %3643, %v3426
    %v3645 = vpop.permute.xlu0 %3644
    %v3647 = vlaneseq
    %v3648 = vshrl.u32 %v3647, 7
    %v3649 = vsub.s32 7, %v3648
    %v3650 = vrot.slane %v3395, %v3649
    %v3651 = vmul.f32 %v3641, %v3650
    %v3652 = vmul.f32 %v3645, %v3650
    %v3653 = vadd.f32 %v3441, %v3455
    %v3654 = vadd.f32 %v3442, %v3456
    %v3655 = vadd.f32 %v3469, %v3483
    %v3656 = vadd.f32 %v3470, %v3484
    %v3657 = vadd.f32 %v3497, %v3511
    %v3658 = vadd.f32 %v3498, %v3512
    %v3659 = vadd.f32 %v3525, %v3539
    %v3660 = vadd.f32 %v3526, %v3540
    %v3661 = vadd.f32 %v3553, %v3567
    %v3662 = vadd.f32 %v3554, %v3568
    %v3663 = vadd.f32 %v3581, %v3595
    %v3664 = vadd.f32 %v3582, %v3596
    %v3665 = vadd.f32 %v3609, %v3623
    %v3666 = vadd.f32 %v3610, %v3624
    %v3667 = vadd.f32 %v3637, %v3651
    %v3668 = vadd.f32 %v3638, %v3652
    %v3669 = vadd.f32 %v3653, %v3655
    %v3670 = vadd.f32 %v3654, %v3656
    %v3671 = vadd.f32 %v3657, %v3659
    %v3672 = vadd.f32 %v3658, %v3660
    %v3673 = vadd.f32 %v3661, %v3663
    %v3674 = vadd.f32 %v3662, %v3664
    %v3675 = vadd.f32 %v3665, %v3667
    %v3676 = vadd.f32 %v3666, %v3668
    %v3677 = vadd.f32 %v3669, %v3671
    %v3678 = vadd.f32 %v3670, %v3672
    %v3679 = vadd.f32 %v3673, %v3675
    %v3680 = vadd.f32 %v3674, %v3676
    %v3681 = vadd.f32 %v3677, %v3679
    %v3682 = vadd.f32 %v3678, %v3680
    %3683 = vset.pattern.permute.xlu0 5
    %3684 = vperm.xlu0 %3683, %v1680
    %v3685 = vpop.permute.xlu0 %3684
    %3687 = vset.pattern.permute.xlu0 5
    %3688 = vperm.xlu0 %3687, %v1681
    %v3689 = vpop.permute.xlu0 %3688
    %v3691 = vadd.f32 %v3681, %v3685
    %v3692 = vadd.f32 %v3682, %v3689
    %3693 = vset.pattern.permute.xlu0 5
    %3694 = vperm.xlu0 %3693, %v2181
    %v3695 = vpop.permute.xlu0 %3694
    %3697 = vset.pattern.permute.xlu0 5
    %3698 = vperm.xlu0 %3697, %v2187
    %v3699 = vpop.permute.xlu0 %3698
    %v3701 = vmul.f32 %v3695, %v3691
    %v3702 = vmul.f32 %v3699, %v3692
    %v3703 = vadd.f32 %v3701, %v3702
    %v3704 = vrot.slane %v3703, 4
    %v3705 = vadd.f32 %v3703, %v3704
    %v3706 = vrot.slane %v3705, 2
    %v3707 = vadd.f32 %v3705, %v3706
    %v3708 = vrot.slane %v3707, 1
    %v3709 = vadd.f32 %v3707, %v3708
    %3710 = vset.pattern.permute.xlu0 6
    %3711 = vperm.xlu0 %3710, %v1169
    %v3712 = vpop.permute.xlu0 %3711
    %3714 = vset.pattern.permute.xlu0 6
    %3715 = vperm.xlu0 %3714, %v1171
    %v3716 = vpop.permute.xlu0 %3715
    %v3718 = vmul.f32 %v2194, %v3712
    %v3719 = vmul.f32 %v2195, %v3716
    %v3720 = vmul.f32 %v3718, 1.442695
    %v3721 = vpow.pop %v3720
    %v3722 = vmul.f32 %v3719, 1.442695
    %v3723 = vpow.pop %v3722
    %3725 = vset.pattern.permute.xlu0 0
    %3726 = vperm.xlu0 %3725, %v3721
    %v3727 = vpop.permute.xlu0 %3726
    %3730 = vset.pattern.permute.xlu0 0
    %3731 = vperm.xlu0 %3730, %v3723
    %v3732 = vpop.permute.xlu0 %3731
    %v3734 = vlaneseq
    %v3735 = vshrl.u32 %v3734, 7
    %v3736 = vsub.s32 0, %v3735
    %v3737 = vrot.slane %v3691, %v3736
    %v3738 = vmul.f32 %v3727, %v3737
    %v3739 = vmul.f32 %v3732, %v3737
    %3740 = vset.pattern.permute.xlu0 1
    %3741 = vperm.xlu0 %3740, %v3721
    %v3742 = vpop.permute.xlu0 %3741
    %3744 = vset.pattern.permute.xlu0 1
    %3745 = vperm.xlu0 %3744, %v3723
    %v3746 = vpop.permute.xlu0 %3745
    %v3748 = vlaneseq
    %v3749 = vshrl.u32 %v3748, 7
    %v3750 = vsub.s32 1, %v3749
    %v3751 = vrot.slane %v3691, %v3750
    %v3752 = vmul.f32 %v3742, %v3751
    %v3753 = vmul.f32 %v3746, %v3751
    %3754 = vset.pattern.permute.xlu0 2
    %3755 = vperm.xlu0 %3754, %v3721
    %v3756 = vpop.permute.xlu0 %3755
    %3758 = vset.pattern.permute.xlu0 2
    %3759 = vperm.xlu0 %3758, %v3723
    %v3760 = vpop.permute.xlu0 %3759
    %v3762 = vlaneseq
    %v3763 = vshrl.u32 %v3762, 7
    %v3764 = vsub.s32 2, %v3763
    %v3765 = vrot.slane %v3691, %v3764
    %v3766 = vmul.f32 %v3756, %v3765
    %v3767 = vmul.f32 %v3760, %v3765
    %3768 = vset.pattern.permute.xlu0 3
    %3769 = vperm.xlu0 %3768, %v3721
    %v3770 = vpop.permute.xlu0 %3769
    %3772 = vset.pattern.permute.xlu0 3
    %3773 = vperm.xlu0 %3772, %v3723
    %v3774 = vpop.permute.xlu0 %3773
    %v3776 = vlaneseq
    %v3777 = vshrl.u32 %v3776, 7
    %v3778 = vsub.s32 3, %v3777
    %v3779 = vrot.slane %v3691, %v3778
    %v3780 = vmul.f32 %v3770, %v3779
    %v3781 = vmul.f32 %v3774, %v3779
    %3782 = vset.pattern.permute.xlu0 4
    %3783 = vperm.xlu0 %3782, %v3721
    %v3784 = vpop.permute.xlu0 %3783
    %3786 = vset.pattern.permute.xlu0 4
    %3787 = vperm.xlu0 %3786, %v3723
    %v3788 = vpop.permute.xlu0 %3787
    %v3790 = vlaneseq
    %v3791 = vshrl.u32 %v3790, 7
    %v3792 = vsub.s32 4, %v3791
    %v3793 = vrot.slane %v3691, %v3792
    %v3794 = vmul.f32 %v3784, %v3793
    %v3795 = vmul.f32 %v3788, %v3793
    %3796 = vset.pattern.permute.xlu0 5
    %3797 = vperm.xlu0 %3796, %v3721
    %v3798 = vpop.permute.xlu0 %3797
    %3800 = vset.pattern.permute.xlu0 5
    %3801 = vperm.xlu0 %3800, %v3723
    %v3802 = vpop.permute.xlu0 %3801
    %v3804 = vlaneseq
    %v3805 = vshrl.u32 %v3804, 7
    %v3806 = vsub.s32 5, %v3805
    %v3807 = vrot.slane %v3691, %v3806
    %v3808 = vmul.f32 %v3798, %v3807
    %v3809 = vmul.f32 %v3802, %v3807
    %3810 = vset.pattern.permute.xlu0 6
    %3811 = vperm.xlu0 %3810, %v3721
    %v3812 = vpop.permute.xlu0 %3811
    %3814 = vset.pattern.permute.xlu0 6
    %3815 = vperm.xlu0 %3814, %v3723
    %v3816 = vpop.permute.xlu0 %3815
    %v3818 = vlaneseq
    %v3819 = vshrl.u32 %v3818, 7
    %v3820 = vsub.s32 6, %v3819
    %v3821 = vrot.slane %v3691, %v3820
    %v3822 = vmul.f32 %v3812, %v3821
    %v3823 = vmul.f32 %v3816, %v3821
    %3824 = vset.pattern.permute.xlu0 7
    %3825 = vperm.xlu0 %3824, %v3721
    %v3826 = vpop.permute.xlu0 %3825
    %3828 = vset.pattern.permute.xlu0 7
    %3829 = vperm.xlu0 %3828, %v3723
    %v3830 = vpop.permute.xlu0 %3829
    %v3832 = vlaneseq
    %v3833 = vshrl.u32 %v3832, 7
    %v3834 = vsub.s32 7, %v3833
    %v3835 = vrot.slane %v3691, %v3834
    %v3836 = vmul.f32 %v3826, %v3835
    %v3837 = vmul.f32 %v3830, %v3835
    %3838 = vset.pattern.permute.xlu0 8
    %3839 = vperm.xlu0 %3838, %v3721
    %v3840 = vpop.permute.xlu0 %3839
    %3842 = vset.pattern.permute.xlu0 8
    %3843 = vperm.xlu0 %3842, %v3723
    %v3844 = vpop.permute.xlu0 %3843
    %v3846 = vlaneseq
    %v3847 = vshrl.u32 %v3846, 7
    %v3848 = vsub.s32 0, %v3847
    %v3849 = vrot.slane %v3692, %v3848
    %v3850 = vmul.f32 %v3840, %v3849
    %v3851 = vmul.f32 %v3844, %v3849
    %3852 = vset.pattern.permute.xlu0 9
    %3853 = vperm.xlu0 %3852, %v3721
    %v3854 = vpop.permute.xlu0 %3853
    %3856 = vset.pattern.permute.xlu0 9
    %3857 = vperm.xlu0 %3856, %v3723
    %v3858 = vpop.permute.xlu0 %3857
    %v3860 = vlaneseq
    %v3861 = vshrl.u32 %v3860, 7
    %v3862 = vsub.s32 1, %v3861
    %v3863 = vrot.slane %v3692, %v3862
    %v3864 = vmul.f32 %v3854, %v3863
    %v3865 = vmul.f32 %v3858, %v3863
    %3866 = vset.pattern.permute.xlu0 10
    %3867 = vperm.xlu0 %3866, %v3721
    %v3868 = vpop.permute.xlu0 %3867
    %3870 = vset.pattern.permute.xlu0 10
    %3871 = vperm.xlu0 %3870, %v3723
    %v3872 = vpop.permute.xlu0 %3871
    %v3874 = vlaneseq
    %v3875 = vshrl.u32 %v3874, 7
    %v3876 = vsub.s32 2, %v3875
    %v3877 = vrot.slane %v3692, %v3876
    %v3878 = vmul.f32 %v3868, %v3877
    %v3879 = vmul.f32 %v3872, %v3877
    %3880 = vset.pattern.permute.xlu0 11
    %3881 = vperm.xlu0 %3880, %v3721
    %v3882 = vpop.permute.xlu0 %3881
    %3884 = vset.pattern.permute.xlu0 11
    %3885 = vperm.xlu0 %3884, %v3723
    %v3886 = vpop.permute.xlu0 %3885
    %v3888 = vlaneseq
    %v3889 = vshrl.u32 %v3888, 7
    %v3890 = vsub.s32 3, %v3889
    %v3891 = vrot.slane %v3692, %v3890
    %v3892 = vmul.f32 %v3882, %v3891
    %v3893 = vmul.f32 %v3886, %v3891
    %3894 = vset.pattern.permute.xlu0 12
    %3895 = vperm.xlu0 %3894, %v3721
    %v3896 = vpop.permute.xlu0 %3895
    %3898 = vset.pattern.permute.xlu0 12
    %3899 = vperm.xlu0 %3898, %v3723
    %v3900 = vpop.permute.xlu0 %3899
    %v3902 = vlaneseq
    %v3903 = vshrl.u32 %v3902, 7
    %v3904 = vsub.s32 4, %v3903
    %v3905 = vrot.slane %v3692, %v3904
    %v3906 = vmul.f32 %v3896, %v3905
    %v3907 = vmul.f32 %v3900, %v3905
    %3908 = vset.pattern.permute.xlu0 13
    %3909 = vperm.xlu0 %3908, %v3721
    %v3910 = vpop.permute.xlu0 %3909
    %3912 = vset.pattern.permute.xlu0 13
    %3913 = vperm.xlu0 %3912, %v3723
    %v3914 = vpop.permute.xlu0 %3913
    %v3916 = vlaneseq
    %v3917 = vshrl.u32 %v3916, 7
    %v3918 = vsub.s32 5, %v3917
    %v3919 = vrot.slane %v3692, %v3918
    %v3920 = vmul.f32 %v3910, %v3919
    %v3921 = vmul.f32 %v3914, %v3919
    %3922 = vset.pattern.permute.xlu0 14
    %3923 = vperm.xlu0 %3922, %v3721
    %v3924 = vpop.permute.xlu0 %3923
    %3926 = vset.pattern.permute.xlu0 14
    %3927 = vperm.xlu0 %3926, %v3723
    %v3928 = vpop.permute.xlu0 %3927
    %v3930 = vlaneseq
    %v3931 = vshrl.u32 %v3930, 7
    %v3932 = vsub.s32 6, %v3931
    %v3933 = vrot.slane %v3692, %v3932
    %v3934 = vmul.f32 %v3924, %v3933
    %v3935 = vmul.f32 %v3928, %v3933
    %3936 = vset.pattern.permute.xlu0 15
    %3937 = vperm.xlu0 %3936, %v3721
    %v3938 = vpop.permute.xlu0 %3937
    %3940 = vset.pattern.permute.xlu0 15
    %3941 = vperm.xlu0 %3940, %v3723
    %v3942 = vpop.permute.xlu0 %3941
    %v3944 = vlaneseq
    %v3945 = vshrl.u32 %v3944, 7
    %v3946 = vsub.s32 7, %v3945
    %v3947 = vrot.slane %v3692, %v3946
    %v3948 = vmul.f32 %v3938, %v3947
    %v3949 = vmul.f32 %v3942, %v3947
    %v3950 = vadd.f32 %v3738, %v3752
    %v3951 = vadd.f32 %v3739, %v3753
    %v3952 = vadd.f32 %v3766, %v3780
    %v3953 = vadd.f32 %v3767, %v3781
    %v3954 = vadd.f32 %v3794, %v3808
    %v3955 = vadd.f32 %v3795, %v3809
    %v3956 = vadd.f32 %v3822, %v3836
    %v3957 = vadd.f32 %v3823, %v3837
    %v3958 = vadd.f32 %v3850, %v3864
    %v3959 = vadd.f32 %v3851, %v3865
    %v3960 = vadd.f32 %v3878, %v3892
    %v3961 = vadd.f32 %v3879, %v3893
    %v3962 = vadd.f32 %v3906, %v3920
    %v3963 = vadd.f32 %v3907, %v3921
    %v3964 = vadd.f32 %v3934, %v3948
    %v3965 = vadd.f32 %v3935, %v3949
    %v3966 = vadd.f32 %v3950, %v3952
    %v3967 = vadd.f32 %v3951, %v3953
    %v3968 = vadd.f32 %v3954, %v3956
    %v3969 = vadd.f32 %v3955, %v3957
    %v3970 = vadd.f32 %v3958, %v3960
    %v3971 = vadd.f32 %v3959, %v3961
    %v3972 = vadd.f32 %v3962, %v3964
    %v3973 = vadd.f32 %v3963, %v3965
    %v3974 = vadd.f32 %v3966, %v3968
    %v3975 = vadd.f32 %v3967, %v3969
    %v3976 = vadd.f32 %v3970, %v3972
    %v3977 = vadd.f32 %v3971, %v3973
    %v3978 = vadd.f32 %v3974, %v3976
    %v3979 = vadd.f32 %v3975, %v3977
    %3980 = vset.pattern.permute.xlu0 6
    %3981 = vperm.xlu0 %3980, %v1680
    %v3982 = vpop.permute.xlu0 %3981
    %3984 = vset.pattern.permute.xlu0 6
    %3985 = vperm.xlu0 %3984, %v1681
    %v3986 = vpop.permute.xlu0 %3985
    %v3988 = vadd.f32 %v3978, %v3982
    %v3989 = vadd.f32 %v3979, %v3986
    %3990 = vset.pattern.permute.xlu0 6
    %3991 = vperm.xlu0 %3990, %v2181
    %v3992 = vpop.permute.xlu0 %3991
    %3994 = vset.pattern.permute.xlu0 6
    %3995 = vperm.xlu0 %3994, %v2187
    %v3996 = vpop.permute.xlu0 %3995
    %v3998 = vmul.f32 %v3992, %v3988
    %v3999 = vmul.f32 %v3996, %v3989
    %v4000 = vadd.f32 %v3998, %v3999
    %v4001 = vrot.slane %v4000, 4
    %v4002 = vadd.f32 %v4000, %v4001
    %v4003 = vrot.slane %v4002, 2
    %v4004 = vadd.f32 %v4002, %v4003
    %v4005 = vrot.slane %v4004, 1
    %v4006 = vadd.f32 %v4004, %v4005
    %4007 = vset.pattern.permute.xlu0 7
    %4008 = vperm.xlu0 %4007, %v1169
    %v4009 = vpop.permute.xlu0 %4008
    %4011 = vset.pattern.permute.xlu0 7
    %4012 = vperm.xlu0 %4011, %v1171
    %v4013 = vpop.permute.xlu0 %4012
    %v4015 = vmul.f32 %v2194, %v4009
    %v4016 = vmul.f32 %v2195, %v4013
    %v4017 = vmul.f32 %v4015, 1.442695
    %v4018 = vpow.pop %v4017
    %v4019 = vmul.f32 %v4016, 1.442695
    %v4020 = vpow.pop %v4019
    %4022 = vset.pattern.permute.xlu0 0
    %4023 = vperm.xlu0 %4022, %v4018
    %v4024 = vpop.permute.xlu0 %4023
    %4027 = vset.pattern.permute.xlu0 0
    %4028 = vperm.xlu0 %4027, %v4020
    %v4029 = vpop.permute.xlu0 %4028
    %v4031 = vlaneseq
    %v4032 = vshrl.u32 %v4031, 7
    %v4033 = vsub.s32 0, %v4032
    %v4034 = vrot.slane %v3988, %v4033
    %v4035 = vmul.f32 %v4024, %v4034
    %v4036 = vmul.f32 %v4029, %v4034
    %4037 = vset.pattern.permute.xlu0 1
    %4038 = vperm.xlu0 %4037, %v4018
    %v4039 = vpop.permute.xlu0 %4038
    %4041 = vset.pattern.permute.xlu0 1
    %4042 = vperm.xlu0 %4041, %v4020
    %v4043 = vpop.permute.xlu0 %4042
    %v4045 = vlaneseq
    %v4046 = vshrl.u32 %v4045, 7
    %v4047 = vsub.s32 1, %v4046
    %v4048 = vrot.slane %v3988, %v4047
    %v4049 = vmul.f32 %v4039, %v4048
    %v4050 = vmul.f32 %v4043, %v4048
    %4051 = vset.pattern.permute.xlu0 2
    %4052 = vperm.xlu0 %4051, %v4018
    %v4053 = vpop.permute.xlu0 %4052
    %4055 = vset.pattern.permute.xlu0 2
    %4056 = vperm.xlu0 %4055, %v4020
    %v4057 = vpop.permute.xlu0 %4056
    %v4059 = vlaneseq
    %v4060 = vshrl.u32 %v4059, 7
    %v4061 = vsub.s32 2, %v4060
    %v4062 = vrot.slane %v3988, %v4061
    %v4063 = vmul.f32 %v4053, %v4062
    %v4064 = vmul.f32 %v4057, %v4062
    %4065 = vset.pattern.permute.xlu0 3
    %4066 = vperm.xlu0 %4065, %v4018
    %v4067 = vpop.permute.xlu0 %4066
    %4069 = vset.pattern.permute.xlu0 3
    %4070 = vperm.xlu0 %4069, %v4020
    %v4071 = vpop.permute.xlu0 %4070
    %v4073 = vlaneseq
    %v4074 = vshrl.u32 %v4073, 7
    %v4075 = vsub.s32 3, %v4074
    %v4076 = vrot.slane %v3988, %v4075
    %v4077 = vmul.f32 %v4067, %v4076
    %v4078 = vmul.f32 %v4071, %v4076
    %4079 = vset.pattern.permute.xlu0 4
    %4080 = vperm.xlu0 %4079, %v4018
    %v4081 = vpop.permute.xlu0 %4080
    %4083 = vset.pattern.permute.xlu0 4
    %4084 = vperm.xlu0 %4083, %v4020
    %v4085 = vpop.permute.xlu0 %4084
    %v4087 = vlaneseq
    %v4088 = vshrl.u32 %v4087, 7
    %v4089 = vsub.s32 4, %v4088
    %v4090 = vrot.slane %v3988, %v4089
    %v4091 = vmul.f32 %v4081, %v4090
    %v4092 = vmul.f32 %v4085, %v4090
    %4093 = vset.pattern.permute.xlu0 5
    %4094 = vperm.xlu0 %4093, %v4018
    %v4095 = vpop.permute.xlu0 %4094
    %4097 = vset.pattern.permute.xlu0 5
    %4098 = vperm.xlu0 %4097, %v4020
    %v4099 = vpop.permute.xlu0 %4098
    %v4101 = vlaneseq
    %v4102 = vshrl.u32 %v4101, 7
    %v4103 = vsub.s32 5, %v4102
    %v4104 = vrot.slane %v3988, %v4103
    %v4105 = vmul.f32 %v4095, %v4104
    %v4106 = vmul.f32 %v4099, %v4104
    %4107 = vset.pattern.permute.xlu0 6
    %4108 = vperm.xlu0 %4107, %v4018
    %v4109 = vpop.permute.xlu0 %4108
    %4111 = vset.pattern.permute.xlu0 6
    %4112 = vperm.xlu0 %4111, %v4020
    %v4113 = vpop.permute.xlu0 %4112
    %v4115 = vlaneseq
    %v4116 = vshrl.u32 %v4115, 7
    %v4117 = vsub.s32 6, %v4116
    %v4118 = vrot.slane %v3988, %v4117
    %v4119 = vmul.f32 %v4109, %v4118
    %v4120 = vmul.f32 %v4113, %v4118
    %4121 = vset.pattern.permute.xlu0 7
    %4122 = vperm.xlu0 %4121, %v4018
    %v4123 = vpop.permute.xlu0 %4122
    %4125 = vset.pattern.permute.xlu0 7
    %4126 = vperm.xlu0 %4125, %v4020
    %v4127 = vpop.permute.xlu0 %4126
    %v4129 = vlaneseq
    %v4130 = vshrl.u32 %v4129, 7
    %v4131 = vsub.s32 7, %v4130
    %v4132 = vrot.slane %v3988, %v4131
    %v4133 = vmul.f32 %v4123, %v4132
    %v4134 = vmul.f32 %v4127, %v4132
    %4135 = vset.pattern.permute.xlu0 8
    %4136 = vperm.xlu0 %4135, %v4018
    %v4137 = vpop.permute.xlu0 %4136
    %4139 = vset.pattern.permute.xlu0 8
    %4140 = vperm.xlu0 %4139, %v4020
    %v4141 = vpop.permute.xlu0 %4140
    %v4143 = vlaneseq
    %v4144 = vshrl.u32 %v4143, 7
    %v4145 = vsub.s32 0, %v4144
    %v4146 = vrot.slane %v3989, %v4145
    %v4147 = vmul.f32 %v4137, %v4146
    %v4148 = vmul.f32 %v4141, %v4146
    %4149 = vset.pattern.permute.xlu0 9
    %4150 = vperm.xlu0 %4149, %v4018
    %v4151 = vpop.permute.xlu0 %4150
    %4153 = vset.pattern.permute.xlu0 9
    %4154 = vperm.xlu0 %4153, %v4020
    %v4155 = vpop.permute.xlu0 %4154
    %v4157 = vlaneseq
    %v4158 = vshrl.u32 %v4157, 7
    %v4159 = vsub.s32 1, %v4158
    %v4160 = vrot.slane %v3989, %v4159
    %v4161 = vmul.f32 %v4151, %v4160
    %v4162 = vmul.f32 %v4155, %v4160
    %4163 = vset.pattern.permute.xlu0 10
    %4164 = vperm.xlu0 %4163, %v4018
    %v4165 = vpop.permute.xlu0 %4164
    %4167 = vset.pattern.permute.xlu0 10
    %4168 = vperm.xlu0 %4167, %v4020
    %v4169 = vpop.permute.xlu0 %4168
    %v4171 = vlaneseq
    %v4172 = vshrl.u32 %v4171, 7
    %v4173 = vsub.s32 2, %v4172
    %v4174 = vrot.slane %v3989, %v4173
    %v4175 = vmul.f32 %v4165, %v4174
    %v4176 = vmul.f32 %v4169, %v4174
    %4177 = vset.pattern.permute.xlu0 11
    %4178 = vperm.xlu0 %4177, %v4018
    %v4179 = vpop.permute.xlu0 %4178
    %4181 = vset.pattern.permute.xlu0 11
    %4182 = vperm.xlu0 %4181, %v4020
    %v4183 = vpop.permute.xlu0 %4182
    %v4185 = vlaneseq
    %v4186 = vshrl.u32 %v4185, 7
    %v4187 = vsub.s32 3, %v4186
    %v4188 = vrot.slane %v3989, %v4187
    %v4189 = vmul.f32 %v4179, %v4188
    %v4190 = vmul.f32 %v4183, %v4188
    %4191 = vset.pattern.permute.xlu0 12
    %4192 = vperm.xlu0 %4191, %v4018
    %v4193 = vpop.permute.xlu0 %4192
    %4195 = vset.pattern.permute.xlu0 12
    %4196 = vperm.xlu0 %4195, %v4020
    %v4197 = vpop.permute.xlu0 %4196
    %v4199 = vlaneseq
    %v4200 = vshrl.u32 %v4199, 7
    %v4201 = vsub.s32 4, %v4200
    %v4202 = vrot.slane %v3989, %v4201
    %v4203 = vmul.f32 %v4193, %v4202
    %v4204 = vmul.f32 %v4197, %v4202
    %4205 = vset.pattern.permute.xlu0 13
    %4206 = vperm.xlu0 %4205, %v4018
    %v4207 = vpop.permute.xlu0 %4206
    %4209 = vset.pattern.permute.xlu0 13
    %4210 = vperm.xlu0 %4209, %v4020
    %v4211 = vpop.permute.xlu0 %4210
    %v4213 = vlaneseq
    %v4214 = vshrl.u32 %v4213, 7
    %v4215 = vsub.s32 5, %v4214
    %v4216 = vrot.slane %v3989, %v4215
    %v4217 = vmul.f32 %v4207, %v4216
    %v4218 = vmul.f32 %v4211, %v4216
    %4219 = vset.pattern.permute.xlu0 14
    %4220 = vperm.xlu0 %4219, %v4018
    %v4221 = vpop.permute.xlu0 %4220
    %4223 = vset.pattern.permute.xlu0 14
    %4224 = vperm.xlu0 %4223, %v4020
    %v4225 = vpop.permute.xlu0 %4224
    %v4227 = vlaneseq
    %v4228 = vshrl.u32 %v4227, 7
    %v4229 = vsub.s32 6, %v4228
    %v4230 = vrot.slane %v3989, %v4229
    %v4231 = vmul.f32 %v4221, %v4230
    %v4232 = vmul.f32 %v4225, %v4230
    %4233 = vset.pattern.permute.xlu0 15
    %4234 = vperm.xlu0 %4233, %v4018
    %v4235 = vpop.permute.xlu0 %4234
    %4237 = vset.pattern.permute.xlu0 15
    %4238 = vperm.xlu0 %4237, %v4020
    %v4239 = vpop.permute.xlu0 %4238
    %v4241 = vlaneseq
    %v4242 = vshrl.u32 %v4241, 7
    %v4243 = vsub.s32 7, %v4242
    %v4244 = vrot.slane %v3989, %v4243
    %v4245 = vmul.f32 %v4235, %v4244
    %v4246 = vmul.f32 %v4239, %v4244
    %v4247 = vadd.f32 %v4035, %v4049
    %v4248 = vadd.f32 %v4036, %v4050
    %v4249 = vadd.f32 %v4063, %v4077
    %v4250 = vadd.f32 %v4064, %v4078
    %v4251 = vadd.f32 %v4091, %v4105
    %v4252 = vadd.f32 %v4092, %v4106
    %v4253 = vadd.f32 %v4119, %v4133
    %v4254 = vadd.f32 %v4120, %v4134
    %v4255 = vadd.f32 %v4147, %v4161
    %v4256 = vadd.f32 %v4148, %v4162
    %v4257 = vadd.f32 %v4175, %v4189
    %v4258 = vadd.f32 %v4176, %v4190
    %v4259 = vadd.f32 %v4203, %v4217
    %v4260 = vadd.f32 %v4204, %v4218
    %v4261 = vadd.f32 %v4231, %v4245
    %v4262 = vadd.f32 %v4232, %v4246
    %v4263 = vadd.f32 %v4247, %v4249
    %v4264 = vadd.f32 %v4248, %v4250
    %v4265 = vadd.f32 %v4251, %v4253
    %v4266 = vadd.f32 %v4252, %v4254
    %v4267 = vadd.f32 %v4255, %v4257
    %v4268 = vadd.f32 %v4256, %v4258
    %v4269 = vadd.f32 %v4259, %v4261
    %v4270 = vadd.f32 %v4260, %v4262
    %v4271 = vadd.f32 %v4263, %v4265
    %v4272 = vadd.f32 %v4264, %v4266
    %v4273 = vadd.f32 %v4267, %v4269
    %v4274 = vadd.f32 %v4268, %v4270
    %v4275 = vadd.f32 %v4271, %v4273
    %v4276 = vadd.f32 %v4272, %v4274
    %4277 = vset.pattern.permute.xlu0 7
    %4278 = vperm.xlu0 %4277, %v1680
    %v4279 = vpop.permute.xlu0 %4278
    %4281 = vset.pattern.permute.xlu0 7
    %4282 = vperm.xlu0 %4281, %v1681
    %v4283 = vpop.permute.xlu0 %4282
    %v4285 = vadd.f32 %v4275, %v4279
    %v4286 = vadd.f32 %v4276, %v4283
    %4287 = vset.pattern.permute.xlu0 7
    %4288 = vperm.xlu0 %4287, %v2181
    %v4289 = vpop.permute.xlu0 %4288
    %4291 = vset.pattern.permute.xlu0 7
    %4292 = vperm.xlu0 %4291, %v2187
    %v4293 = vpop.permute.xlu0 %4292
    %v4295 = vmul.f32 %v4289, %v4285
    %v4296 = vmul.f32 %v4293, %v4286
    %v4297 = vadd.f32 %v4295, %v4296
    %v4298 = vrot.slane %v4297, 4
    %v4299 = vadd.f32 %v4297, %v4298
    %v4300 = vrot.slane %v4299, 2
    %v4301 = vadd.f32 %v4299, %v4300
    %v4302 = vrot.slane %v4301, 1
    %v4303 = vadd.f32 %v4301, %v4302
    %4304 = vset.pattern.permute.xlu0 8
    %4305 = vperm.xlu0 %4304, %v1169
    %v4306 = vpop.permute.xlu0 %4305
    %4308 = vset.pattern.permute.xlu0 8
    %4309 = vperm.xlu0 %4308, %v1171
    %v4310 = vpop.permute.xlu0 %4309
    %v4312 = vmul.f32 %v2194, %v4306
    %v4313 = vmul.f32 %v2195, %v4310
    %v4314 = vmul.f32 %v4312, 1.442695
    %v4315 = vpow.pop %v4314
    %v4316 = vmul.f32 %v4313, 1.442695
    %v4317 = vpow.pop %v4316
    %4319 = vset.pattern.permute.xlu0 0
    %4320 = vperm.xlu0 %4319, %v4315
    %v4321 = vpop.permute.xlu0 %4320
    %4324 = vset.pattern.permute.xlu0 0
    %4325 = vperm.xlu0 %4324, %v4317
    %v4326 = vpop.permute.xlu0 %4325
    %v4328 = vlaneseq
    %v4329 = vshrl.u32 %v4328, 7
    %v4330 = vsub.s32 0, %v4329
    %v4331 = vrot.slane %v4285, %v4330
    %v4332 = vmul.f32 %v4321, %v4331
    %v4333 = vmul.f32 %v4326, %v4331
    %4334 = vset.pattern.permute.xlu0 1
    %4335 = vperm.xlu0 %4334, %v4315
    %v4336 = vpop.permute.xlu0 %4335
    %4338 = vset.pattern.permute.xlu0 1
    %4339 = vperm.xlu0 %4338, %v4317
    %v4340 = vpop.permute.xlu0 %4339
    %v4342 = vlaneseq
    %v4343 = vshrl.u32 %v4342, 7
    %v4344 = vsub.s32 1, %v4343
    %v4345 = vrot.slane %v4285, %v4344
    %v4346 = vmul.f32 %v4336, %v4345
    %v4347 = vmul.f32 %v4340, %v4345
    %4348 = vset.pattern.permute.xlu0 2
    %4349 = vperm.xlu0 %4348, %v4315
    %v4350 = vpop.permute.xlu0 %4349
    %4352 = vset.pattern.permute.xlu0 2
    %4353 = vperm.xlu0 %4352, %v4317
    %v4354 = vpop.permute.xlu0 %4353
    %v4356 = vlaneseq
    %v4357 = vshrl.u32 %v4356, 7
    %v4358 = vsub.s32 2, %v4357
    %v4359 = vrot.slane %v4285, %v4358
    %v4360 = vmul.f32 %v4350, %v4359
    %v4361 = vmul.f32 %v4354, %v4359
    %4362 = vset.pattern.permute.xlu0 3
    %4363 = vperm.xlu0 %4362, %v4315
    %v4364 = vpop.permute.xlu0 %4363
    %4366 = vset.pattern.permute.xlu0 3
    %4367 = vperm.xlu0 %4366, %v4317
    %v4368 = vpop.permute.xlu0 %4367
    %v4370 = vlaneseq
    %v4371 = vshrl.u32 %v4370, 7
    %v4372 = vsub.s32 3, %v4371
    %v4373 = vrot.slane %v4285, %v4372
    %v4374 = vmul.f32 %v4364, %v4373
    %v4375 = vmul.f32 %v4368, %v4373
    %4376 = vset.pattern.permute.xlu0 4
    %4377 = vperm.xlu0 %4376, %v4315
    %v4378 = vpop.permute.xlu0 %4377
    %4380 = vset.pattern.permute.xlu0 4
    %4381 = vperm.xlu0 %4380, %v4317
    %v4382 = vpop.permute.xlu0 %4381
    %v4384 = vlaneseq
    %v4385 = vshrl.u32 %v4384, 7
    %v4386 = vsub.s32 4, %v4385
    %v4387 = vrot.slane %v4285, %v4386
    %v4388 = vmul.f32 %v4378, %v4387
    %v4389 = vmul.f32 %v4382, %v4387
    %4390 = vset.pattern.permute.xlu0 5
    %4391 = vperm.xlu0 %4390, %v4315
    %v4392 = vpop.permute.xlu0 %4391
    %4394 = vset.pattern.permute.xlu0 5
    %4395 = vperm.xlu0 %4394, %v4317
    %v4396 = vpop.permute.xlu0 %4395
    %v4398 = vlaneseq
    %v4399 = vshrl.u32 %v4398, 7
    %v4400 = vsub.s32 5, %v4399
    %v4401 = vrot.slane %v4285, %v4400
    %v4402 = vmul.f32 %v4392, %v4401
    %v4403 = vmul.f32 %v4396, %v4401
    %4404 = vset.pattern.permute.xlu0 6
    %4405 = vperm.xlu0 %4404, %v4315
    %v4406 = vpop.permute.xlu0 %4405
    %4408 = vset.pattern.permute.xlu0 6
    %4409 = vperm.xlu0 %4408, %v4317
    %v4410 = vpop.permute.xlu0 %4409
    %v4412 = vlaneseq
    %v4413 = vshrl.u32 %v4412, 7
    %v4414 = vsub.s32 6, %v4413
    %v4415 = vrot.slane %v4285, %v4414
    %v4416 = vmul.f32 %v4406, %v4415
    %v4417 = vmul.f32 %v4410, %v4415
    %4418 = vset.pattern.permute.xlu0 7
    %4419 = vperm.xlu0 %4418, %v4315
    %v4420 = vpop.permute.xlu0 %4419
    %4422 = vset.pattern.permute.xlu0 7
    %4423 = vperm.xlu0 %4422, %v4317
    %v4424 = vpop.permute.xlu0 %4423
    %v4426 = vlaneseq
    %v4427 = vshrl.u32 %v4426, 7
    %v4428 = vsub.s32 7, %v4427
    %v4429 = vrot.slane %v4285, %v4428
    %v4430 = vmul.f32 %v4420, %v4429
    %v4431 = vmul.f32 %v4424, %v4429
    %4432 = vset.pattern.permute.xlu0 8
    %4433 = vperm.xlu0 %4432, %v4315
    %v4434 = vpop.permute.xlu0 %4433
    %4436 = vset.pattern.permute.xlu0 8
    %4437 = vperm.xlu0 %4436, %v4317
    %v4438 = vpop.permute.xlu0 %4437
    %v4440 = vlaneseq
    %v4441 = vshrl.u32 %v4440, 7
    %v4442 = vsub.s32 0, %v4441
    %v4443 = vrot.slane %v4286, %v4442
    %v4444 = vmul.f32 %v4434, %v4443
    %v4445 = vmul.f32 %v4438, %v4443
    %4446 = vset.pattern.permute.xlu0 9
    %4447 = vperm.xlu0 %4446, %v4315
    %v4448 = vpop.permute.xlu0 %4447
    %4450 = vset.pattern.permute.xlu0 9
    %4451 = vperm.xlu0 %4450, %v4317
    %v4452 = vpop.permute.xlu0 %4451
    %v4454 = vlaneseq
    %v4455 = vshrl.u32 %v4454, 7
    %v4456 = vsub.s32 1, %v4455
    %v4457 = vrot.slane %v4286, %v4456
    %v4458 = vmul.f32 %v4448, %v4457
    %v4459 = vmul.f32 %v4452, %v4457
    %4460 = vset.pattern.permute.xlu0 10
    %4461 = vperm.xlu0 %4460, %v4315
    %v4462 = vpop.permute.xlu0 %4461
    %4464 = vset.pattern.permute.xlu0 10
    %4465 = vperm.xlu0 %4464, %v4317
    %v4466 = vpop.permute.xlu0 %4465
    %v4468 = vlaneseq
    %v4469 = vshrl.u32 %v4468, 7
    %v4470 = vsub.s32 2, %v4469
    %v4471 = vrot.slane %v4286, %v4470
    %v4472 = vmul.f32 %v4462, %v4471
    %v4473 = vmul.f32 %v4466, %v4471
    %4474 = vset.pattern.permute.xlu0 11
    %4475 = vperm.xlu0 %4474, %v4315
    %v4476 = vpop.permute.xlu0 %4475
    %4478 = vset.pattern.permute.xlu0 11
    %4479 = vperm.xlu0 %4478, %v4317
    %v4480 = vpop.permute.xlu0 %4479
    %v4482 = vlaneseq
    %v4483 = vshrl.u32 %v4482, 7
    %v4484 = vsub.s32 3, %v4483
    %v4485 = vrot.slane %v4286, %v4484
    %v4486 = vmul.f32 %v4476, %v4485
    %v4487 = vmul.f32 %v4480, %v4485
    %4488 = vset.pattern.permute.xlu0 12
    %4489 = vperm.xlu0 %4488, %v4315
    %v4490 = vpop.permute.xlu0 %4489
    %4492 = vset.pattern.permute.xlu0 12
    %4493 = vperm.xlu0 %4492, %v4317
    %v4494 = vpop.permute.xlu0 %4493
    %v4496 = vlaneseq
    %v4497 = vshrl.u32 %v4496, 7
    %v4498 = vsub.s32 4, %v4497
    %v4499 = vrot.slane %v4286, %v4498
    %v4500 = vmul.f32 %v4490, %v4499
    %v4501 = vmul.f32 %v4494, %v4499
    %4502 = vset.pattern.permute.xlu0 13
    %4503 = vperm.xlu0 %4502, %v4315
    %v4504 = vpop.permute.xlu0 %4503
    %4506 = vset.pattern.permute.xlu0 13
    %4507 = vperm.xlu0 %4506, %v4317
    %v4508 = vpop.permute.xlu0 %4507
    %v4510 = vlaneseq
    %v4511 = vshrl.u32 %v4510, 7
    %v4512 = vsub.s32 5, %v4511
    %v4513 = vrot.slane %v4286, %v4512
    %v4514 = vmul.f32 %v4504, %v4513
    %v4515 = vmul.f32 %v4508, %v4513
    %4516 = vset.pattern.permute.xlu0 14
    %4517 = vperm.xlu0 %4516, %v4315
    %v4518 = vpop.permute.xlu0 %4517
    %4520 = vset.pattern.permute.xlu0 14
    %4521 = vperm.xlu0 %4520, %v4317
    %v4522 = vpop.permute.xlu0 %4521
    %v4524 = vlaneseq
    %v4525 = vshrl.u32 %v4524, 7
    %v4526 = vsub.s32 6, %v4525
    %v4527 = vrot.slane %v4286, %v4526
    %v4528 = vmul.f32 %v4518, %v4527
    %v4529 = vmul.f32 %v4522, %v4527
    %4530 = vset.pattern.permute.xlu0 15
    %4531 = vperm.xlu0 %4530, %v4315
    %v4532 = vpop.permute.xlu0 %4531
    %4534 = vset.pattern.permute.xlu0 15
    %4535 = vperm.xlu0 %4534, %v4317
    %v4536 = vpop.permute.xlu0 %4535
    %v4538 = vlaneseq
    %v4539 = vshrl.u32 %v4538, 7
    %v4540 = vsub.s32 7, %v4539
    %v4541 = vrot.slane %v4286, %v4540
    %v4542 = vmul.f32 %v4532, %v4541
    %v4543 = vmul.f32 %v4536, %v4541
    %v4544 = vadd.f32 %v4332, %v4346
    %v4545 = vadd.f32 %v4333, %v4347
    %v4546 = vadd.f32 %v4360, %v4374
    %v4547 = vadd.f32 %v4361, %v4375
    %v4548 = vadd.f32 %v4388, %v4402
    %v4549 = vadd.f32 %v4389, %v4403
    %v4550 = vadd.f32 %v4416, %v4430
    %v4551 = vadd.f32 %v4417, %v4431
    %v4552 = vadd.f32 %v4444, %v4458
    %v4553 = vadd.f32 %v4445, %v4459
    %v4554 = vadd.f32 %v4472, %v4486
    %v4555 = vadd.f32 %v4473, %v4487
    %v4556 = vadd.f32 %v4500, %v4514
    %v4557 = vadd.f32 %v4501, %v4515
    %v4558 = vadd.f32 %v4528, %v4542
    %v4559 = vadd.f32 %v4529, %v4543
    %v4560 = vadd.f32 %v4544, %v4546
    %v4561 = vadd.f32 %v4545, %v4547
    %v4562 = vadd.f32 %v4548, %v4550
    %v4563 = vadd.f32 %v4549, %v4551
    %v4564 = vadd.f32 %v4552, %v4554
    %v4565 = vadd.f32 %v4553, %v4555
    %v4566 = vadd.f32 %v4556, %v4558
    %v4567 = vadd.f32 %v4557, %v4559
    %v4568 = vadd.f32 %v4560, %v4562
    %v4569 = vadd.f32 %v4561, %v4563
    %v4570 = vadd.f32 %v4564, %v4566
    %v4571 = vadd.f32 %v4565, %v4567
    %v4572 = vadd.f32 %v4568, %v4570
    %v4573 = vadd.f32 %v4569, %v4571
    %4574 = vset.pattern.permute.xlu0 8
    %4575 = vperm.xlu0 %4574, %v1680
    %v4576 = vpop.permute.xlu0 %4575
    %4578 = vset.pattern.permute.xlu0 8
    %4579 = vperm.xlu0 %4578, %v1681
    %v4580 = vpop.permute.xlu0 %4579
    %v4582 = vadd.f32 %v4572, %v4576
    %v4583 = vadd.f32 %v4573, %v4580
    %4584 = vset.pattern.permute.xlu0 8
    %4585 = vperm.xlu0 %4584, %v2181
    %v4586 = vpop.permute.xlu0 %4585
    %4588 = vset.pattern.permute.xlu0 8
    %4589 = vperm.xlu0 %4588, %v2187
    %v4590 = vpop.permute.xlu0 %4589
    %v4592 = vmul.f32 %v4586, %v4582
    %v4593 = vmul.f32 %v4590, %v4583
    %v4594 = vadd.f32 %v4592, %v4593
    %v4595 = vrot.slane %v4594, 4
    %v4596 = vadd.f32 %v4594, %v4595
    %v4597 = vrot.slane %v4596, 2
    %v4598 = vadd.f32 %v4596, %v4597
    %v4599 = vrot.slane %v4598, 1
    %v4600 = vadd.f32 %v4598, %v4599
    %4601 = vset.pattern.permute.xlu0 9
    %4602 = vperm.xlu0 %4601, %v1169
    %v4603 = vpop.permute.xlu0 %4602
    %4605 = vset.pattern.permute.xlu0 9
    %4606 = vperm.xlu0 %4605, %v1171
    %v4607 = vpop.permute.xlu0 %4606
    %v4609 = vmul.f32 %v2194, %v4603
    %v4610 = vmul.f32 %v2195, %v4607
    %v4611 = vmul.f32 %v4609, 1.442695
    %v4612 = vpow.pop %v4611
    %v4613 = vmul.f32 %v4610, 1.442695
    %v4614 = vpow.pop %v4613
    %4616 = vset.pattern.permute.xlu0 0
    %4617 = vperm.xlu0 %4616, %v4612
    %v4618 = vpop.permute.xlu0 %4617
    %4621 = vset.pattern.permute.xlu0 0
    %4622 = vperm.xlu0 %4621, %v4614
    %v4623 = vpop.permute.xlu0 %4622
    %v4625 = vlaneseq
    %v4626 = vshrl.u32 %v4625, 7
    %v4627 = vsub.s32 0, %v4626
    %v4628 = vrot.slane %v4582, %v4627
    %v4629 = vmul.f32 %v4618, %v4628
    %v4630 = vmul.f32 %v4623, %v4628
    %4631 = vset.pattern.permute.xlu0 1
    %4632 = vperm.xlu0 %4631, %v4612
    %v4633 = vpop.permute.xlu0 %4632
    %4635 = vset.pattern.permute.xlu0 1
    %4636 = vperm.xlu0 %4635, %v4614
    %v4637 = vpop.permute.xlu0 %4636
    %v4639 = vlaneseq
    %v4640 = vshrl.u32 %v4639, 7
    %v4641 = vsub.s32 1, %v4640
    %v4642 = vrot.slane %v4582, %v4641
    %v4643 = vmul.f32 %v4633, %v4642
    %v4644 = vmul.f32 %v4637, %v4642
    %4645 = vset.pattern.permute.xlu0 2
    %4646 = vperm.xlu0 %4645, %v4612
    %v4647 = vpop.permute.xlu0 %4646
    %4649 = vset.pattern.permute.xlu0 2
    %4650 = vperm.xlu0 %4649, %v4614
    %v4651 = vpop.permute.xlu0 %4650
    %v4653 = vlaneseq
    %v4654 = vshrl.u32 %v4653, 7
    %v4655 = vsub.s32 2, %v4654
    %v4656 = vrot.slane %v4582, %v4655
    %v4657 = vmul.f32 %v4647, %v4656
    %v4658 = vmul.f32 %v4651, %v4656
    %4659 = vset.pattern.permute.xlu0 3
    %4660 = vperm.xlu0 %4659, %v4612
    %v4661 = vpop.permute.xlu0 %4660
    %4663 = vset.pattern.permute.xlu0 3
    %4664 = vperm.xlu0 %4663, %v4614
    %v4665 = vpop.permute.xlu0 %4664
    %v4667 = vlaneseq
    %v4668 = vshrl.u32 %v4667, 7
    %v4669 = vsub.s32 3, %v4668
    %v4670 = vrot.slane %v4582, %v4669
    %v4671 = vmul.f32 %v4661, %v4670
    %v4672 = vmul.f32 %v4665, %v4670
    %4673 = vset.pattern.permute.xlu0 4
    %4674 = vperm.xlu0 %4673, %v4612
    %v4675 = vpop.permute.xlu0 %4674
    %4677 = vset.pattern.permute.xlu0 4
    %4678 = vperm.xlu0 %4677, %v4614
    %v4679 = vpop.permute.xlu0 %4678
    %v4681 = vlaneseq
    %v4682 = vshrl.u32 %v4681, 7
    %v4683 = vsub.s32 4, %v4682
    %v4684 = vrot.slane %v4582, %v4683
    %v4685 = vmul.f32 %v4675, %v4684
    %v4686 = vmul.f32 %v4679, %v4684
    %4687 = vset.pattern.permute.xlu0 5
    %4688 = vperm.xlu0 %4687, %v4612
    %v4689 = vpop.permute.xlu0 %4688
    %4691 = vset.pattern.permute.xlu0 5
    %4692 = vperm.xlu0 %4691, %v4614
    %v4693 = vpop.permute.xlu0 %4692
    %v4695 = vlaneseq
    %v4696 = vshrl.u32 %v4695, 7
    %v4697 = vsub.s32 5, %v4696
    %v4698 = vrot.slane %v4582, %v4697
    %v4699 = vmul.f32 %v4689, %v4698
    %v4700 = vmul.f32 %v4693, %v4698
    %4701 = vset.pattern.permute.xlu0 6
    %4702 = vperm.xlu0 %4701, %v4612
    %v4703 = vpop.permute.xlu0 %4702
    %4705 = vset.pattern.permute.xlu0 6
    %4706 = vperm.xlu0 %4705, %v4614
    %v4707 = vpop.permute.xlu0 %4706
    %v4709 = vlaneseq
    %v4710 = vshrl.u32 %v4709, 7
    %v4711 = vsub.s32 6, %v4710
    %v4712 = vrot.slane %v4582, %v4711
    %v4713 = vmul.f32 %v4703, %v4712
    %v4714 = vmul.f32 %v4707, %v4712
    %4715 = vset.pattern.permute.xlu0 7
    %4716 = vperm.xlu0 %4715, %v4612
    %v4717 = vpop.permute.xlu0 %4716
    %4719 = vset.pattern.permute.xlu0 7
    %4720 = vperm.xlu0 %4719, %v4614
    %v4721 = vpop.permute.xlu0 %4720
    %v4723 = vlaneseq
    %v4724 = vshrl.u32 %v4723, 7
    %v4725 = vsub.s32 7, %v4724
    %v4726 = vrot.slane %v4582, %v4725
    %v4727 = vmul.f32 %v4717, %v4726
    %v4728 = vmul.f32 %v4721, %v4726
    %4729 = vset.pattern.permute.xlu0 8
    %4730 = vperm.xlu0 %4729, %v4612
    %v4731 = vpop.permute.xlu0 %4730
    %4733 = vset.pattern.permute.xlu0 8
    %4734 = vperm.xlu0 %4733, %v4614
    %v4735 = vpop.permute.xlu0 %4734
    %v4737 = vlaneseq
    %v4738 = vshrl.u32 %v4737, 7
    %v4739 = vsub.s32 0, %v4738
    %v4740 = vrot.slane %v4583, %v4739
    %v4741 = vmul.f32 %v4731, %v4740
    %v4742 = vmul.f32 %v4735, %v4740
    %4743 = vset.pattern.permute.xlu0 9
    %4744 = vperm.xlu0 %4743, %v4612
    %v4745 = vpop.permute.xlu0 %4744
    %4747 = vset.pattern.permute.xlu0 9
    %4748 = vperm.xlu0 %4747, %v4614
    %v4749 = vpop.permute.xlu0 %4748
    %v4751 = vlaneseq
    %v4752 = vshrl.u32 %v4751, 7
    %v4753 = vsub.s32 1, %v4752
    %v4754 = vrot.slane %v4583, %v4753
    %v4755 = vmul.f32 %v4745, %v4754
    %v4756 = vmul.f32 %v4749, %v4754
    %4757 = vset.pattern.permute.xlu0 10
    %4758 = vperm.xlu0 %4757, %v4612
    %v4759 = vpop.permute.xlu0 %4758
    %4761 = vset.pattern.permute.xlu0 10
    %4762 = vperm.xlu0 %4761, %v4614
    %v4763 = vpop.permute.xlu0 %4762
    %v4765 = vlaneseq
    %v4766 = vshrl.u32 %v4765, 7
    %v4767 = vsub.s32 2, %v4766
    %v4768 = vrot.slane %v4583, %v4767
    %v4769 = vmul.f32 %v4759, %v4768
    %v4770 = vmul.f32 %v4763, %v4768
    %4771 = vset.pattern.permute.xlu0 11
    %4772 = vperm.xlu0 %4771, %v4612
    %v4773 = vpop.permute.xlu0 %4772
    %4775 = vset.pattern.permute.xlu0 11
    %4776 = vperm.xlu0 %4775, %v4614
    %v4777 = vpop.permute.xlu0 %4776
    %v4779 = vlaneseq
    %v4780 = vshrl.u32 %v4779, 7
    %v4781 = vsub.s32 3, %v4780
    %v4782 = vrot.slane %v4583, %v4781
    %v4783 = vmul.f32 %v4773, %v4782
    %v4784 = vmul.f32 %v4777, %v4782
    %4785 = vset.pattern.permute.xlu0 12
    %4786 = vperm.xlu0 %4785, %v4612
    %v4787 = vpop.permute.xlu0 %4786
    %4789 = vset.pattern.permute.xlu0 12
    %4790 = vperm.xlu0 %4789, %v4614
    %v4791 = vpop.permute.xlu0 %4790
    %v4793 = vlaneseq
    %v4794 = vshrl.u32 %v4793, 7
    %v4795 = vsub.s32 4, %v4794
    %v4796 = vrot.slane %v4583, %v4795
    %v4797 = vmul.f32 %v4787, %v4796
    %v4798 = vmul.f32 %v4791, %v4796
    %4799 = vset.pattern.permute.xlu0 13
    %4800 = vperm.xlu0 %4799, %v4612
    %v4801 = vpop.permute.xlu0 %4800
    %4803 = vset.pattern.permute.xlu0 13
    %4804 = vperm.xlu0 %4803, %v4614
    %v4805 = vpop.permute.xlu0 %4804
    %v4807 = vlaneseq
    %v4808 = vshrl.u32 %v4807, 7
    %v4809 = vsub.s32 5, %v4808
    %v4810 = vrot.slane %v4583, %v4809
    %v4811 = vmul.f32 %v4801, %v4810
    %v4812 = vmul.f32 %v4805, %v4810
    %4813 = vset.pattern.permute.xlu0 14
    %4814 = vperm.xlu0 %4813, %v4612
    %v4815 = vpop.permute.xlu0 %4814
    %4817 = vset.pattern.permute.xlu0 14
    %4818 = vperm.xlu0 %4817, %v4614
    %v4819 = vpop.permute.xlu0 %4818
    %v4821 = vlaneseq
    %v4822 = vshrl.u32 %v4821, 7
    %v4823 = vsub.s32 6, %v4822
    %v4824 = vrot.slane %v4583, %v4823
    %v4825 = vmul.f32 %v4815, %v4824
    %v4826 = vmul.f32 %v4819, %v4824
    %4827 = vset.pattern.permute.xlu0 15
    %4828 = vperm.xlu0 %4827, %v4612
    %v4829 = vpop.permute.xlu0 %4828
    %4831 = vset.pattern.permute.xlu0 15
    %4832 = vperm.xlu0 %4831, %v4614
    %v4833 = vpop.permute.xlu0 %4832
    %v4835 = vlaneseq
    %v4836 = vshrl.u32 %v4835, 7
    %v4837 = vsub.s32 7, %v4836
    %v4838 = vrot.slane %v4583, %v4837
    %v4839 = vmul.f32 %v4829, %v4838
    %v4840 = vmul.f32 %v4833, %v4838
    %v4841 = vadd.f32 %v4629, %v4643
    %v4842 = vadd.f32 %v4630, %v4644
    %v4843 = vadd.f32 %v4657, %v4671
    %v4844 = vadd.f32 %v4658, %v4672
    %v4845 = vadd.f32 %v4685, %v4699
    %v4846 = vadd.f32 %v4686, %v4700
    %v4847 = vadd.f32 %v4713, %v4727
    %v4848 = vadd.f32 %v4714, %v4728
    %v4849 = vadd.f32 %v4741, %v4755
    %v4850 = vadd.f32 %v4742, %v4756
    %v4851 = vadd.f32 %v4769, %v4783
    %v4852 = vadd.f32 %v4770, %v4784
    %v4853 = vadd.f32 %v4797, %v4811
    %v4854 = vadd.f32 %v4798, %v4812
    %v4855 = vadd.f32 %v4825, %v4839
    %v4856 = vadd.f32 %v4826, %v4840
    %v4857 = vadd.f32 %v4841, %v4843
    %v4858 = vadd.f32 %v4842, %v4844
    %v4859 = vadd.f32 %v4845, %v4847
    %v4860 = vadd.f32 %v4846, %v4848
    %v4861 = vadd.f32 %v4849, %v4851
    %v4862 = vadd.f32 %v4850, %v4852
    %v4863 = vadd.f32 %v4853, %v4855
    %v4864 = vadd.f32 %v4854, %v4856
    %v4865 = vadd.f32 %v4857, %v4859
    %v4866 = vadd.f32 %v4858, %v4860
    %v4867 = vadd.f32 %v4861, %v4863
    %v4868 = vadd.f32 %v4862, %v4864
    %v4869 = vadd.f32 %v4865, %v4867
    %v4870 = vadd.f32 %v4866, %v4868
    %4871 = vset.pattern.permute.xlu0 9
    %4872 = vperm.xlu0 %4871, %v1680
    %v4873 = vpop.permute.xlu0 %4872
    %4875 = vset.pattern.permute.xlu0 9
    %4876 = vperm.xlu0 %4875, %v1681
    %v4877 = vpop.permute.xlu0 %4876
    %v4879 = vadd.f32 %v4869, %v4873
    %v4880 = vadd.f32 %v4870, %v4877
    %4881 = vset.pattern.permute.xlu0 9
    %4882 = vperm.xlu0 %4881, %v2181
    %v4883 = vpop.permute.xlu0 %4882
    %4885 = vset.pattern.permute.xlu0 9
    %4886 = vperm.xlu0 %4885, %v2187
    %v4887 = vpop.permute.xlu0 %4886
    %v4889 = vmul.f32 %v4883, %v4879
    %v4890 = vmul.f32 %v4887, %v4880
    %v4891 = vadd.f32 %v4889, %v4890
    %v4892 = vrot.slane %v4891, 4
    %v4893 = vadd.f32 %v4891, %v4892
    %v4894 = vrot.slane %v4893, 2
    %v4895 = vadd.f32 %v4893, %v4894
    %v4896 = vrot.slane %v4895, 1
    %v4897 = vadd.f32 %v4895, %v4896
    %4898 = vset.pattern.permute.xlu0 10
    %4899 = vperm.xlu0 %4898, %v1169
    %v4900 = vpop.permute.xlu0 %4899
    %4902 = vset.pattern.permute.xlu0 10
    %4903 = vperm.xlu0 %4902, %v1171
    %v4904 = vpop.permute.xlu0 %4903
    %v4906 = vmul.f32 %v2194, %v4900
    %v4907 = vmul.f32 %v2195, %v4904
    %v4908 = vmul.f32 %v4906, 1.442695
    %v4909 = vpow.pop %v4908
    %v4910 = vmul.f32 %v4907, 1.442695
    %v4911 = vpow.pop %v4910
    %4913 = vset.pattern.permute.xlu0 0
    %4914 = vperm.xlu0 %4913, %v4909
    %v4915 = vpop.permute.xlu0 %4914
    %4918 = vset.pattern.permute.xlu0 0
    %4919 = vperm.xlu0 %4918, %v4911
    %v4920 = vpop.permute.xlu0 %4919
    %v4922 = vlaneseq
    %v4923 = vshrl.u32 %v4922, 7
    %v4924 = vsub.s32 0, %v4923
    %v4925 = vrot.slane %v4879, %v4924
    %v4926 = vmul.f32 %v4915, %v4925
    %v4927 = vmul.f32 %v4920, %v4925
    %4928 = vset.pattern.permute.xlu0 1
    %4929 = vperm.xlu0 %4928, %v4909
    %v4930 = vpop.permute.xlu0 %4929
    %4932 = vset.pattern.permute.xlu0 1
    %4933 = vperm.xlu0 %4932, %v4911
    %v4934 = vpop.permute.xlu0 %4933
    %v4936 = vlaneseq
    %v4937 = vshrl.u32 %v4936, 7
    %v4938 = vsub.s32 1, %v4937
    %v4939 = vrot.slane %v4879, %v4938
    %v4940 = vmul.f32 %v4930, %v4939
    %v4941 = vmul.f32 %v4934, %v4939
    %4942 = vset.pattern.permute.xlu0 2
    %4943 = vperm.xlu0 %4942, %v4909
    %v4944 = vpop.permute.xlu0 %4943
    %4946 = vset.pattern.permute.xlu0 2
    %4947 = vperm.xlu0 %4946, %v4911
    %v4948 = vpop.permute.xlu0 %4947
    %v4950 = vlaneseq
    %v4951 = vshrl.u32 %v4950, 7
    %v4952 = vsub.s32 2, %v4951
    %v4953 = vrot.slane %v4879, %v4952
    %v4954 = vmul.f32 %v4944, %v4953
    %v4955 = vmul.f32 %v4948, %v4953
    %4956 = vset.pattern.permute.xlu0 3
    %4957 = vperm.xlu0 %4956, %v4909
    %v4958 = vpop.permute.xlu0 %4957
    %4960 = vset.pattern.permute.xlu0 3
    %4961 = vperm.xlu0 %4960, %v4911
    %v4962 = vpop.permute.xlu0 %4961
    %v4964 = vlaneseq
    %v4965 = vshrl.u32 %v4964, 7
    %v4966 = vsub.s32 3, %v4965
    %v4967 = vrot.slane %v4879, %v4966
    %v4968 = vmul.f32 %v4958, %v4967
    %v4969 = vmul.f32 %v4962, %v4967
    %4970 = vset.pattern.permute.xlu0 4
    %4971 = vperm.xlu0 %4970, %v4909
    %v4972 = vpop.permute.xlu0 %4971
    %4974 = vset.pattern.permute.xlu0 4
    %4975 = vperm.xlu0 %4974, %v4911
    %v4976 = vpop.permute.xlu0 %4975
    %v4978 = vlaneseq
    %v4979 = vshrl.u32 %v4978, 7
    %v4980 = vsub.s32 4, %v4979
    %v4981 = vrot.slane %v4879, %v4980
    %v4982 = vmul.f32 %v4972, %v4981
    %v4983 = vmul.f32 %v4976, %v4981
    %4984 = vset.pattern.permute.xlu0 5
    %4985 = vperm.xlu0 %4984, %v4909
    %v4986 = vpop.permute.xlu0 %4985
    %4988 = vset.pattern.permute.xlu0 5
    %4989 = vperm.xlu0 %4988, %v4911
    %v4990 = vpop.permute.xlu0 %4989
    %v4992 = vlaneseq
    %v4993 = vshrl.u32 %v4992, 7
    %v4994 = vsub.s32 5, %v4993
    %v4995 = vrot.slane %v4879, %v4994
    %v4996 = vmul.f32 %v4986, %v4995
    %v4997 = vmul.f32 %v4990, %v4995
    %4998 = vset.pattern.permute.xlu0 6
    %4999 = vperm.xlu0 %4998, %v4909
    %v5000 = vpop.permute.xlu0 %4999
    %5002 = vset.pattern.permute.xlu0 6
    %5003 = vperm.xlu0 %5002, %v4911
    %v5004 = vpop.permute.xlu0 %5003
    %v5006 = vlaneseq
    %v5007 = vshrl.u32 %v5006, 7
    %v5008 = vsub.s32 6, %v5007
    %v5009 = vrot.slane %v4879, %v5008
    %v5010 = vmul.f32 %v5000, %v5009
    %v5011 = vmul.f32 %v5004, %v5009
    %5012 = vset.pattern.permute.xlu0 7
    %5013 = vperm.xlu0 %5012, %v4909
    %v5014 = vpop.permute.xlu0 %5013
    %5016 = vset.pattern.permute.xlu0 7
    %5017 = vperm.xlu0 %5016, %v4911
    %v5018 = vpop.permute.xlu0 %5017
    %v5020 = vlaneseq
    %v5021 = vshrl.u32 %v5020, 7
    %v5022 = vsub.s32 7, %v5021
    %v5023 = vrot.slane %v4879, %v5022
    %v5024 = vmul.f32 %v5014, %v5023
    %v5025 = vmul.f32 %v5018, %v5023
    %5026 = vset.pattern.permute.xlu0 8
    %5027 = vperm.xlu0 %5026, %v4909
    %v5028 = vpop.permute.xlu0 %5027
    %5030 = vset.pattern.permute.xlu0 8
    %5031 = vperm.xlu0 %5030, %v4911
    %v5032 = vpop.permute.xlu0 %5031
    %v5034 = vlaneseq
    %v5035 = vshrl.u32 %v5034, 7
    %v5036 = vsub.s32 0, %v5035
    %v5037 = vrot.slane %v4880, %v5036
    %v5038 = vmul.f32 %v5028, %v5037
    %v5039 = vmul.f32 %v5032, %v5037
    %5040 = vset.pattern.permute.xlu0 9
    %5041 = vperm.xlu0 %5040, %v4909
    %v5042 = vpop.permute.xlu0 %5041
    %5044 = vset.pattern.permute.xlu0 9
    %5045 = vperm.xlu0 %5044, %v4911
    %v5046 = vpop.permute.xlu0 %5045
    %v5048 = vlaneseq
    %v5049 = vshrl.u32 %v5048, 7
    %v5050 = vsub.s32 1, %v5049
    %v5051 = vrot.slane %v4880, %v5050
    %v5052 = vmul.f32 %v5042, %v5051
    %v5053 = vmul.f32 %v5046, %v5051
    %5054 = vset.pattern.permute.xlu0 10
    %5055 = vperm.xlu0 %5054, %v4909
    %v5056 = vpop.permute.xlu0 %5055
    %5058 = vset.pattern.permute.xlu0 10
    %5059 = vperm.xlu0 %5058, %v4911
    %v5060 = vpop.permute.xlu0 %5059
    %v5062 = vlaneseq
    %v5063 = vshrl.u32 %v5062, 7
    %v5064 = vsub.s32 2, %v5063
    %v5065 = vrot.slane %v4880, %v5064
    %v5066 = vmul.f32 %v5056, %v5065
    %v5067 = vmul.f32 %v5060, %v5065
    %5068 = vset.pattern.permute.xlu0 11
    %5069 = vperm.xlu0 %5068, %v4909
    %v5070 = vpop.permute.xlu0 %5069
    %5072 = vset.pattern.permute.xlu0 11
    %5073 = vperm.xlu0 %5072, %v4911
    %v5074 = vpop.permute.xlu0 %5073
    %v5076 = vlaneseq
    %v5077 = vshrl.u32 %v5076, 7
    %v5078 = vsub.s32 3, %v5077
    %v5079 = vrot.slane %v4880, %v5078
    %v5080 = vmul.f32 %v5070, %v5079
    %v5081 = vmul.f32 %v5074, %v5079
    %5082 = vset.pattern.permute.xlu0 12
    %5083 = vperm.xlu0 %5082, %v4909
    %v5084 = vpop.permute.xlu0 %5083
    %5086 = vset.pattern.permute.xlu0 12
    %5087 = vperm.xlu0 %5086, %v4911
    %v5088 = vpop.permute.xlu0 %5087
    %v5090 = vlaneseq
    %v5091 = vshrl.u32 %v5090, 7
    %v5092 = vsub.s32 4, %v5091
    %v5093 = vrot.slane %v4880, %v5092
    %v5094 = vmul.f32 %v5084, %v5093
    %v5095 = vmul.f32 %v5088, %v5093
    %5096 = vset.pattern.permute.xlu0 13
    %5097 = vperm.xlu0 %5096, %v4909
    %v5098 = vpop.permute.xlu0 %5097
    %5100 = vset.pattern.permute.xlu0 13
    %5101 = vperm.xlu0 %5100, %v4911
    %v5102 = vpop.permute.xlu0 %5101
    %v5104 = vlaneseq
    %v5105 = vshrl.u32 %v5104, 7
    %v5106 = vsub.s32 5, %v5105
    %v5107 = vrot.slane %v4880, %v5106
    %v5108 = vmul.f32 %v5098, %v5107
    %v5109 = vmul.f32 %v5102, %v5107
    %5110 = vset.pattern.permute.xlu0 14
    %5111 = vperm.xlu0 %5110, %v4909
    %v5112 = vpop.permute.xlu0 %5111
    %5114 = vset.pattern.permute.xlu0 14
    %5115 = vperm.xlu0 %5114, %v4911
    %v5116 = vpop.permute.xlu0 %5115
    %v5118 = vlaneseq
    %v5119 = vshrl.u32 %v5118, 7
    %v5120 = vsub.s32 6, %v5119
    %v5121 = vrot.slane %v4880, %v5120
    %v5122 = vmul.f32 %v5112, %v5121
    %v5123 = vmul.f32 %v5116, %v5121
    %5124 = vset.pattern.permute.xlu0 15
    %5125 = vperm.xlu0 %5124, %v4909
    %v5126 = vpop.permute.xlu0 %5125
    %5128 = vset.pattern.permute.xlu0 15
    %5129 = vperm.xlu0 %5128, %v4911
    %v5130 = vpop.permute.xlu0 %5129
    %v5132 = vlaneseq
    %v5133 = vshrl.u32 %v5132, 7
    %v5134 = vsub.s32 7, %v5133
    %v5135 = vrot.slane %v4880, %v5134
    %v5136 = vmul.f32 %v5126, %v5135
    %v5137 = vmul.f32 %v5130, %v5135
    %v5138 = vadd.f32 %v4926, %v4940
    %v5139 = vadd.f32 %v4927, %v4941
    %v5140 = vadd.f32 %v4954, %v4968
    %v5141 = vadd.f32 %v4955, %v4969
    %v5142 = vadd.f32 %v4982, %v4996
    %v5143 = vadd.f32 %v4983, %v4997
    %v5144 = vadd.f32 %v5010, %v5024
    %v5145 = vadd.f32 %v5011, %v5025
    %v5146 = vadd.f32 %v5038, %v5052
    %v5147 = vadd.f32 %v5039, %v5053
    %v5148 = vadd.f32 %v5066, %v5080
    %v5149 = vadd.f32 %v5067, %v5081
    %v5150 = vadd.f32 %v5094, %v5108
    %v5151 = vadd.f32 %v5095, %v5109
    %v5152 = vadd.f32 %v5122, %v5136
    %v5153 = vadd.f32 %v5123, %v5137
    %v5154 = vadd.f32 %v5138, %v5140
    %v5155 = vadd.f32 %v5139, %v5141
    %v5156 = vadd.f32 %v5142, %v5144
    %v5157 = vadd.f32 %v5143, %v5145
    %v5158 = vadd.f32 %v5146, %v5148
    %v5159 = vadd.f32 %v5147, %v5149
    %v5160 = vadd.f32 %v5150, %v5152
    %v5161 = vadd.f32 %v5151, %v5153
    %v5162 = vadd.f32 %v5154, %v5156
    %v5163 = vadd.f32 %v5155, %v5157
    %v5164 = vadd.f32 %v5158, %v5160
    %v5165 = vadd.f32 %v5159, %v5161
    %v5166 = vadd.f32 %v5162, %v5164
    %v5167 = vadd.f32 %v5163, %v5165
    %5168 = vset.pattern.permute.xlu0 10
    %5169 = vperm.xlu0 %5168, %v1680
    %v5170 = vpop.permute.xlu0 %5169
    %5172 = vset.pattern.permute.xlu0 10
    %5173 = vperm.xlu0 %5172, %v1681
    %v5174 = vpop.permute.xlu0 %5173
    %v5176 = vadd.f32 %v5166, %v5170
    %v5177 = vadd.f32 %v5167, %v5174
    %5178 = vset.pattern.permute.xlu0 10
    %5179 = vperm.xlu0 %5178, %v2181
    %v5180 = vpop.permute.xlu0 %5179
    %5182 = vset.pattern.permute.xlu0 10
    %5183 = vperm.xlu0 %5182, %v2187
    %v5184 = vpop.permute.xlu0 %5183
    %v5186 = vmul.f32 %v5180, %v5176
    %v5187 = vmul.f32 %v5184, %v5177
    %v5188 = vadd.f32 %v5186, %v5187
    %v5189 = vrot.slane %v5188, 4
    %v5190 = vadd.f32 %v5188, %v5189
    %v5191 = vrot.slane %v5190, 2
    %v5192 = vadd.f32 %v5190, %v5191
    %v5193 = vrot.slane %v5192, 1
    %v5194 = vadd.f32 %v5192, %v5193
    %5195 = vset.pattern.permute.xlu0 11
    %5196 = vperm.xlu0 %5195, %v1169
    %v5197 = vpop.permute.xlu0 %5196
    %5199 = vset.pattern.permute.xlu0 11
    %5200 = vperm.xlu0 %5199, %v1171
    %v5201 = vpop.permute.xlu0 %5200
    %v5203 = vmul.f32 %v2194, %v5197
    %v5204 = vmul.f32 %v2195, %v5201
    %v5205 = vmul.f32 %v5203, 1.442695
    %v5206 = vpow.pop %v5205
    %v5207 = vmul.f32 %v5204, 1.442695
    %v5208 = vpow.pop %v5207
    %5210 = vset.pattern.permute.xlu0 0
    %5211 = vperm.xlu0 %5210, %v5206
    %v5212 = vpop.permute.xlu0 %5211
    %5215 = vset.pattern.permute.xlu0 0
    %5216 = vperm.xlu0 %5215, %v5208
    %v5217 = vpop.permute.xlu0 %5216
    %v5219 = vlaneseq
    %v5220 = vshrl.u32 %v5219, 7
    %v5221 = vsub.s32 0, %v5220
    %v5222 = vrot.slane %v5176, %v5221
    %v5223 = vmul.f32 %v5212, %v5222
    %v5224 = vmul.f32 %v5217, %v5222
    %5225 = vset.pattern.permute.xlu0 1
    %5226 = vperm.xlu0 %5225, %v5206
    %v5227 = vpop.permute.xlu0 %5226
    %5229 = vset.pattern.permute.xlu0 1
    %5230 = vperm.xlu0 %5229, %v5208
    %v5231 = vpop.permute.xlu0 %5230
    %v5233 = vlaneseq
    %v5234 = vshrl.u32 %v5233, 7
    %v5235 = vsub.s32 1, %v5234
    %v5236 = vrot.slane %v5176, %v5235
    %v5237 = vmul.f32 %v5227, %v5236
    %v5238 = vmul.f32 %v5231, %v5236
    %5239 = vset.pattern.permute.xlu0 2
    %5240 = vperm.xlu0 %5239, %v5206
    %v5241 = vpop.permute.xlu0 %5240
    %5243 = vset.pattern.permute.xlu0 2
    %5244 = vperm.xlu0 %5243, %v5208
    %v5245 = vpop.permute.xlu0 %5244
    %v5247 = vlaneseq
    %v5248 = vshrl.u32 %v5247, 7
    %v5249 = vsub.s32 2, %v5248
    %v5250 = vrot.slane %v5176, %v5249
    %v5251 = vmul.f32 %v5241, %v5250
    %v5252 = vmul.f32 %v5245, %v5250
    %5253 = vset.pattern.permute.xlu0 3
    %5254 = vperm.xlu0 %5253, %v5206
    %v5255 = vpop.permute.xlu0 %5254
    %5257 = vset.pattern.permute.xlu0 3
    %5258 = vperm.xlu0 %5257, %v5208
    %v5259 = vpop.permute.xlu0 %5258
    %v5261 = vlaneseq
    %v5262 = vshrl.u32 %v5261, 7
    %v5263 = vsub.s32 3, %v5262
    %v5264 = vrot.slane %v5176, %v5263
    %v5265 = vmul.f32 %v5255, %v5264
    %v5266 = vmul.f32 %v5259, %v5264
    %5267 = vset.pattern.permute.xlu0 4
    %5268 = vperm.xlu0 %5267, %v5206
    %v5269 = vpop.permute.xlu0 %5268
    %5271 = vset.pattern.permute.xlu0 4
    %5272 = vperm.xlu0 %5271, %v5208
    %v5273 = vpop.permute.xlu0 %5272
    %v5275 = vlaneseq
    %v5276 = vshrl.u32 %v5275, 7
    %v5277 = vsub.s32 4, %v5276
    %v5278 = vrot.slane %v5176, %v5277
    %v5279 = vmul.f32 %v5269, %v5278
    %v5280 = vmul.f32 %v5273, %v5278
    %5281 = vset.pattern.permute.xlu0 5
    %5282 = vperm.xlu0 %5281, %v5206
    %v5283 = vpop.permute.xlu0 %5282
    %5285 = vset.pattern.permute.xlu0 5
    %5286 = vperm.xlu0 %5285, %v5208
    %v5287 = vpop.permute.xlu0 %5286
    %v5289 = vlaneseq
    %v5290 = vshrl.u32 %v5289, 7
    %v5291 = vsub.s32 5, %v5290
    %v5292 = vrot.slane %v5176, %v5291
    %v5293 = vmul.f32 %v5283, %v5292
    %v5294 = vmul.f32 %v5287, %v5292
    %5295 = vset.pattern.permute.xlu0 6
    %5296 = vperm.xlu0 %5295, %v5206
    %v5297 = vpop.permute.xlu0 %5296
    %5299 = vset.pattern.permute.xlu0 6
    %5300 = vperm.xlu0 %5299, %v5208
    %v5301 = vpop.permute.xlu0 %5300
    %v5303 = vlaneseq
    %v5304 = vshrl.u32 %v5303, 7
    %v5305 = vsub.s32 6, %v5304
    %v5306 = vrot.slane %v5176, %v5305
    %v5307 = vmul.f32 %v5297, %v5306
    %v5308 = vmul.f32 %v5301, %v5306
    %5309 = vset.pattern.permute.xlu0 7
    %5310 = vperm.xlu0 %5309, %v5206
    %v5311 = vpop.permute.xlu0 %5310
    %5313 = vset.pattern.permute.xlu0 7
    %5314 = vperm.xlu0 %5313, %v5208
    %v5315 = vpop.permute.xlu0 %5314
    %v5317 = vlaneseq
    %v5318 = vshrl.u32 %v5317, 7
    %v5319 = vsub.s32 7, %v5318
    %v5320 = vrot.slane %v5176, %v5319
    %v5321 = vmul.f32 %v5311, %v5320
    %v5322 = vmul.f32 %v5315, %v5320
    %5323 = vset.pattern.permute.xlu0 8
    %5324 = vperm.xlu0 %5323, %v5206
    %v5325 = vpop.permute.xlu0 %5324
    %5327 = vset.pattern.permute.xlu0 8
    %5328 = vperm.xlu0 %5327, %v5208
    %v5329 = vpop.permute.xlu0 %5328
    %v5331 = vlaneseq
    %v5332 = vshrl.u32 %v5331, 7
    %v5333 = vsub.s32 0, %v5332
    %v5334 = vrot.slane %v5177, %v5333
    %v5335 = vmul.f32 %v5325, %v5334
    %v5336 = vmul.f32 %v5329, %v5334
    %5337 = vset.pattern.permute.xlu0 9
    %5338 = vperm.xlu0 %5337, %v5206
    %v5339 = vpop.permute.xlu0 %5338
    %5341 = vset.pattern.permute.xlu0 9
    %5342 = vperm.xlu0 %5341, %v5208
    %v5343 = vpop.permute.xlu0 %5342
    %v5345 = vlaneseq
    %v5346 = vshrl.u32 %v5345, 7
    %v5347 = vsub.s32 1, %v5346
    %v5348 = vrot.slane %v5177, %v5347
    %v5349 = vmul.f32 %v5339, %v5348
    %v5350 = vmul.f32 %v5343, %v5348
    %5351 = vset.pattern.permute.xlu0 10
    %5352 = vperm.xlu0 %5351, %v5206
    %v5353 = vpop.permute.xlu0 %5352
    %5355 = vset.pattern.permute.xlu0 10
    %5356 = vperm.xlu0 %5355, %v5208
    %v5357 = vpop.permute.xlu0 %5356
    %v5359 = vlaneseq
    %v5360 = vshrl.u32 %v5359, 7
    %v5361 = vsub.s32 2, %v5360
    %v5362 = vrot.slane %v5177, %v5361
    %v5363 = vmul.f32 %v5353, %v5362
    %v5364 = vmul.f32 %v5357, %v5362
    %5365 = vset.pattern.permute.xlu0 11
    %5366 = vperm.xlu0 %5365, %v5206
    %v5367 = vpop.permute.xlu0 %5366
    %5369 = vset.pattern.permute.xlu0 11
    %5370 = vperm.xlu0 %5369, %v5208
    %v5371 = vpop.permute.xlu0 %5370
    %v5373 = vlaneseq
    %v5374 = vshrl.u32 %v5373, 7
    %v5375 = vsub.s32 3, %v5374
    %v5376 = vrot.slane %v5177, %v5375
    %v5377 = vmul.f32 %v5367, %v5376
    %v5378 = vmul.f32 %v5371, %v5376
    %5379 = vset.pattern.permute.xlu0 12
    %5380 = vperm.xlu0 %5379, %v5206
    %v5381 = vpop.permute.xlu0 %5380
    %5383 = vset.pattern.permute.xlu0 12
    %5384 = vperm.xlu0 %5383, %v5208
    %v5385 = vpop.permute.xlu0 %5384
    %v5387 = vlaneseq
    %v5388 = vshrl.u32 %v5387, 7
    %v5389 = vsub.s32 4, %v5388
    %v5390 = vrot.slane %v5177, %v5389
    %v5391 = vmul.f32 %v5381, %v5390
    %v5392 = vmul.f32 %v5385, %v5390
    %5393 = vset.pattern.permute.xlu0 13
    %5394 = vperm.xlu0 %5393, %v5206
    %v5395 = vpop.permute.xlu0 %5394
    %5397 = vset.pattern.permute.xlu0 13
    %5398 = vperm.xlu0 %5397, %v5208
    %v5399 = vpop.permute.xlu0 %5398
    %v5401 = vlaneseq
    %v5402 = vshrl.u32 %v5401, 7
    %v5403 = vsub.s32 5, %v5402
    %v5404 = vrot.slane %v5177, %v5403
    %v5405 = vmul.f32 %v5395, %v5404
    %v5406 = vmul.f32 %v5399, %v5404
    %5407 = vset.pattern.permute.xlu0 14
    %5408 = vperm.xlu0 %5407, %v5206
    %v5409 = vpop.permute.xlu0 %5408
    %5411 = vset.pattern.permute.xlu0 14
    %5412 = vperm.xlu0 %5411, %v5208
    %v5413 = vpop.permute.xlu0 %5412
    %v5415 = vlaneseq
    %v5416 = vshrl.u32 %v5415, 7
    %v5417 = vsub.s32 6, %v5416
    %v5418 = vrot.slane %v5177, %v5417
    %v5419 = vmul.f32 %v5409, %v5418
    %v5420 = vmul.f32 %v5413, %v5418
    %5421 = vset.pattern.permute.xlu0 15
    %5422 = vperm.xlu0 %5421, %v5206
    %v5423 = vpop.permute.xlu0 %5422
    %5425 = vset.pattern.permute.xlu0 15
    %5426 = vperm.xlu0 %5425, %v5208
    %v5427 = vpop.permute.xlu0 %5426
    %v5429 = vlaneseq
    %v5430 = vshrl.u32 %v5429, 7
    %v5431 = vsub.s32 7, %v5430
    %v5432 = vrot.slane %v5177, %v5431
    %v5433 = vmul.f32 %v5423, %v5432
    %v5434 = vmul.f32 %v5427, %v5432
    %v5435 = vadd.f32 %v5223, %v5237
    %v5436 = vadd.f32 %v5224, %v5238
    %v5437 = vadd.f32 %v5251, %v5265
    %v5438 = vadd.f32 %v5252, %v5266
    %v5439 = vadd.f32 %v5279, %v5293
    %v5440 = vadd.f32 %v5280, %v5294
    %v5441 = vadd.f32 %v5307, %v5321
    %v5442 = vadd.f32 %v5308, %v5322
    %v5443 = vadd.f32 %v5335, %v5349
    %v5444 = vadd.f32 %v5336, %v5350
    %v5445 = vadd.f32 %v5363, %v5377
    %v5446 = vadd.f32 %v5364, %v5378
    %v5447 = vadd.f32 %v5391, %v5405
    %v5448 = vadd.f32 %v5392, %v5406
    %v5449 = vadd.f32 %v5419, %v5433
    %v5450 = vadd.f32 %v5420, %v5434
    %v5451 = vadd.f32 %v5435, %v5437
    %v5452 = vadd.f32 %v5436, %v5438
    %v5453 = vadd.f32 %v5439, %v5441
    %v5454 = vadd.f32 %v5440, %v5442
    %v5455 = vadd.f32 %v5443, %v5445
    %v5456 = vadd.f32 %v5444, %v5446
    %v5457 = vadd.f32 %v5447, %v5449
    %v5458 = vadd.f32 %v5448, %v5450
    %v5459 = vadd.f32 %v5451, %v5453
    %v5460 = vadd.f32 %v5452, %v5454
    %v5461 = vadd.f32 %v5455, %v5457
    %v5462 = vadd.f32 %v5456, %v5458
    %v5463 = vadd.f32 %v5459, %v5461
    %v5464 = vadd.f32 %v5460, %v5462
    %5465 = vset.pattern.permute.xlu0 11
    %5466 = vperm.xlu0 %5465, %v1680
    %v5467 = vpop.permute.xlu0 %5466
    %5469 = vset.pattern.permute.xlu0 11
    %5470 = vperm.xlu0 %5469, %v1681
    %v5471 = vpop.permute.xlu0 %5470
    %v5473 = vadd.f32 %v5463, %v5467
    %v5474 = vadd.f32 %v5464, %v5471
    %5475 = vset.pattern.permute.xlu0 11
    %5476 = vperm.xlu0 %5475, %v2181
    %v5477 = vpop.permute.xlu0 %5476
    %5479 = vset.pattern.permute.xlu0 11
    %5480 = vperm.xlu0 %5479, %v2187
    %v5481 = vpop.permute.xlu0 %5480
    %v5483 = vmul.f32 %v5477, %v5473
    %v5484 = vmul.f32 %v5481, %v5474
    %v5485 = vadd.f32 %v5483, %v5484
    %v5486 = vrot.slane %v5485, 4
    %v5487 = vadd.f32 %v5485, %v5486
    %v5488 = vrot.slane %v5487, 2
    %v5489 = vadd.f32 %v5487, %v5488
    %v5490 = vrot.slane %v5489, 1
    %v5491 = vadd.f32 %v5489, %v5490
    %5492 = vset.pattern.permute.xlu0 12
    %5493 = vperm.xlu0 %5492, %v1169
    %v5494 = vpop.permute.xlu0 %5493
    %5496 = vset.pattern.permute.xlu0 12
    %5497 = vperm.xlu0 %5496, %v1171
    %v5498 = vpop.permute.xlu0 %5497
    %v5500 = vmul.f32 %v2194, %v5494
    %v5501 = vmul.f32 %v2195, %v5498
    %v5502 = vmul.f32 %v5500, 1.442695
    %v5503 = vpow.pop %v5502
    %v5504 = vmul.f32 %v5501, 1.442695
    %v5505 = vpow.pop %v5504
    %5507 = vset.pattern.permute.xlu0 0
    %5508 = vperm.xlu0 %5507, %v5503
    %v5509 = vpop.permute.xlu0 %5508
    %5512 = vset.pattern.permute.xlu0 0
    %5513 = vperm.xlu0 %5512, %v5505
    %v5514 = vpop.permute.xlu0 %5513
    %v5516 = vlaneseq
    %v5517 = vshrl.u32 %v5516, 7
    %v5518 = vsub.s32 0, %v5517
    %v5519 = vrot.slane %v5473, %v5518
    %v5520 = vmul.f32 %v5509, %v5519
    %v5521 = vmul.f32 %v5514, %v5519
    %5522 = vset.pattern.permute.xlu0 1
    %5523 = vperm.xlu0 %5522, %v5503
    %v5524 = vpop.permute.xlu0 %5523
    %5526 = vset.pattern.permute.xlu0 1
    %5527 = vperm.xlu0 %5526, %v5505
    %v5528 = vpop.permute.xlu0 %5527
    %v5530 = vlaneseq
    %v5531 = vshrl.u32 %v5530, 7
    %v5532 = vsub.s32 1, %v5531
    %v5533 = vrot.slane %v5473, %v5532
    %v5534 = vmul.f32 %v5524, %v5533
    %v5535 = vmul.f32 %v5528, %v5533
    %5536 = vset.pattern.permute.xlu0 2
    %5537 = vperm.xlu0 %5536, %v5503
    %v5538 = vpop.permute.xlu0 %5537
    %5540 = vset.pattern.permute.xlu0 2
    %5541 = vperm.xlu0 %5540, %v5505
    %v5542 = vpop.permute.xlu0 %5541
    %v5544 = vlaneseq
    %v5545 = vshrl.u32 %v5544, 7
    %v5546 = vsub.s32 2, %v5545
    %v5547 = vrot.slane %v5473, %v5546
    %v5548 = vmul.f32 %v5538, %v5547
    %v5549 = vmul.f32 %v5542, %v5547
    %5550 = vset.pattern.permute.xlu0 3
    %5551 = vperm.xlu0 %5550, %v5503
    %v5552 = vpop.permute.xlu0 %5551
    %5554 = vset.pattern.permute.xlu0 3
    %5555 = vperm.xlu0 %5554, %v5505
    %v5556 = vpop.permute.xlu0 %5555
    %v5558 = vlaneseq
    %v5559 = vshrl.u32 %v5558, 7
    %v5560 = vsub.s32 3, %v5559
    %v5561 = vrot.slane %v5473, %v5560
    %v5562 = vmul.f32 %v5552, %v5561
    %v5563 = vmul.f32 %v5556, %v5561
    %5564 = vset.pattern.permute.xlu0 4
    %5565 = vperm.xlu0 %5564, %v5503
    %v5566 = vpop.permute.xlu0 %5565
    %5568 = vset.pattern.permute.xlu0 4
    %5569 = vperm.xlu0 %5568, %v5505
    %v5570 = vpop.permute.xlu0 %5569
    %v5572 = vlaneseq
    %v5573 = vshrl.u32 %v5572, 7
    %v5574 = vsub.s32 4, %v5573
    %v5575 = vrot.slane %v5473, %v5574
    %v5576 = vmul.f32 %v5566, %v5575
    %v5577 = vmul.f32 %v5570, %v5575
    %5578 = vset.pattern.permute.xlu0 5
    %5579 = vperm.xlu0 %5578, %v5503
    %v5580 = vpop.permute.xlu0 %5579
    %5582 = vset.pattern.permute.xlu0 5
    %5583 = vperm.xlu0 %5582, %v5505
    %v5584 = vpop.permute.xlu0 %5583
    %v5586 = vlaneseq
    %v5587 = vshrl.u32 %v5586, 7
    %v5588 = vsub.s32 5, %v5587
    %v5589 = vrot.slane %v5473, %v5588
    %v5590 = vmul.f32 %v5580, %v5589
    %v5591 = vmul.f32 %v5584, %v5589
    %5592 = vset.pattern.permute.xlu0 6
    %5593 = vperm.xlu0 %5592, %v5503
    %v5594 = vpop.permute.xlu0 %5593
    %5596 = vset.pattern.permute.xlu0 6
    %5597 = vperm.xlu0 %5596, %v5505
    %v5598 = vpop.permute.xlu0 %5597
    %v5600 = vlaneseq
    %v5601 = vshrl.u32 %v5600, 7
    %v5602 = vsub.s32 6, %v5601
    %v5603 = vrot.slane %v5473, %v5602
    %v5604 = vmul.f32 %v5594, %v5603
    %v5605 = vmul.f32 %v5598, %v5603
    %5606 = vset.pattern.permute.xlu0 7
    %5607 = vperm.xlu0 %5606, %v5503
    %v5608 = vpop.permute.xlu0 %5607
    %5610 = vset.pattern.permute.xlu0 7
    %5611 = vperm.xlu0 %5610, %v5505
    %v5612 = vpop.permute.xlu0 %5611
    %v5614 = vlaneseq
    %v5615 = vshrl.u32 %v5614, 7
    %v5616 = vsub.s32 7, %v5615
    %v5617 = vrot.slane %v5473, %v5616
    %v5618 = vmul.f32 %v5608, %v5617
    %v5619 = vmul.f32 %v5612, %v5617
    %5620 = vset.pattern.permute.xlu0 8
    %5621 = vperm.xlu0 %5620, %v5503
    %v5622 = vpop.permute.xlu0 %5621
    %5624 = vset.pattern.permute.xlu0 8
    %5625 = vperm.xlu0 %5624, %v5505
    %v5626 = vpop.permute.xlu0 %5625
    %v5628 = vlaneseq
    %v5629 = vshrl.u32 %v5628, 7
    %v5630 = vsub.s32 0, %v5629
    %v5631 = vrot.slane %v5474, %v5630
    %v5632 = vmul.f32 %v5622, %v5631
    %v5633 = vmul.f32 %v5626, %v5631
    %5634 = vset.pattern.permute.xlu0 9
    %5635 = vperm.xlu0 %5634, %v5503
    %v5636 = vpop.permute.xlu0 %5635
    %5638 = vset.pattern.permute.xlu0 9
    %5639 = vperm.xlu0 %5638, %v5505
    %v5640 = vpop.permute.xlu0 %5639
    %v5642 = vlaneseq
    %v5643 = vshrl.u32 %v5642, 7
    %v5644 = vsub.s32 1, %v5643
    %v5645 = vrot.slane %v5474, %v5644
    %v5646 = vmul.f32 %v5636, %v5645
    %v5647 = vmul.f32 %v5640, %v5645
    %5648 = vset.pattern.permute.xlu0 10
    %5649 = vperm.xlu0 %5648, %v5503
    %v5650 = vpop.permute.xlu0 %5649
    %5652 = vset.pattern.permute.xlu0 10
    %5653 = vperm.xlu0 %5652, %v5505
    %v5654 = vpop.permute.xlu0 %5653
    %v5656 = vlaneseq
    %v5657 = vshrl.u32 %v5656, 7
    %v5658 = vsub.s32 2, %v5657
    %v5659 = vrot.slane %v5474, %v5658
    %v5660 = vmul.f32 %v5650, %v5659
    %v5661 = vmul.f32 %v5654, %v5659
    %5662 = vset.pattern.permute.xlu0 11
    %5663 = vperm.xlu0 %5662, %v5503
    %v5664 = vpop.permute.xlu0 %5663
    %5666 = vset.pattern.permute.xlu0 11
    %5667 = vperm.xlu0 %5666, %v5505
    %v5668 = vpop.permute.xlu0 %5667
    %v5670 = vlaneseq
    %v5671 = vshrl.u32 %v5670, 7
    %v5672 = vsub.s32 3, %v5671
    %v5673 = vrot.slane %v5474, %v5672
    %v5674 = vmul.f32 %v5664, %v5673
    %v5675 = vmul.f32 %v5668, %v5673
    %5676 = vset.pattern.permute.xlu0 12
    %5677 = vperm.xlu0 %5676, %v5503
    %v5678 = vpop.permute.xlu0 %5677
    %5680 = vset.pattern.permute.xlu0 12
    %5681 = vperm.xlu0 %5680, %v5505
    %v5682 = vpop.permute.xlu0 %5681
    %v5684 = vlaneseq
    %v5685 = vshrl.u32 %v5684, 7
    %v5686 = vsub.s32 4, %v5685
    %v5687 = vrot.slane %v5474, %v5686
    %v5688 = vmul.f32 %v5678, %v5687
    %v5689 = vmul.f32 %v5682, %v5687
    %5690 = vset.pattern.permute.xlu0 13
    %5691 = vperm.xlu0 %5690, %v5503
    %v5692 = vpop.permute.xlu0 %5691
    %5694 = vset.pattern.permute.xlu0 13
    %5695 = vperm.xlu0 %5694, %v5505
    %v5696 = vpop.permute.xlu0 %5695
    %v5698 = vlaneseq
    %v5699 = vshrl.u32 %v5698, 7
    %v5700 = vsub.s32 5, %v5699
    %v5701 = vrot.slane %v5474, %v5700
    %v5702 = vmul.f32 %v5692, %v5701
    %v5703 = vmul.f32 %v5696, %v5701
    %5704 = vset.pattern.permute.xlu0 14
    %5705 = vperm.xlu0 %5704, %v5503
    %v5706 = vpop.permute.xlu0 %5705
    %5708 = vset.pattern.permute.xlu0 14
    %5709 = vperm.xlu0 %5708, %v5505
    %v5710 = vpop.permute.xlu0 %5709
    %v5712 = vlaneseq
    %v5713 = vshrl.u32 %v5712, 7
    %v5714 = vsub.s32 6, %v5713
    %v5715 = vrot.slane %v5474, %v5714
    %v5716 = vmul.f32 %v5706, %v5715
    %v5717 = vmul.f32 %v5710, %v5715
    %5718 = vset.pattern.permute.xlu0 15
    %5719 = vperm.xlu0 %5718, %v5503
    %v5720 = vpop.permute.xlu0 %5719
    %5722 = vset.pattern.permute.xlu0 15
    %5723 = vperm.xlu0 %5722, %v5505
    %v5724 = vpop.permute.xlu0 %5723
    %v5726 = vlaneseq
    %v5727 = vshrl.u32 %v5726, 7
    %v5728 = vsub.s32 7, %v5727
    %v5729 = vrot.slane %v5474, %v5728
    %v5730 = vmul.f32 %v5720, %v5729
    %v5731 = vmul.f32 %v5724, %v5729
    %v5732 = vadd.f32 %v5520, %v5534
    %v5733 = vadd.f32 %v5521, %v5535
    %v5734 = vadd.f32 %v5548, %v5562
    %v5735 = vadd.f32 %v5549, %v5563
    %v5736 = vadd.f32 %v5576, %v5590
    %v5737 = vadd.f32 %v5577, %v5591
    %v5738 = vadd.f32 %v5604, %v5618
    %v5739 = vadd.f32 %v5605, %v5619
    %v5740 = vadd.f32 %v5632, %v5646
    %v5741 = vadd.f32 %v5633, %v5647
    %v5742 = vadd.f32 %v5660, %v5674
    %v5743 = vadd.f32 %v5661, %v5675
    %v5744 = vadd.f32 %v5688, %v5702
    %v5745 = vadd.f32 %v5689, %v5703
    %v5746 = vadd.f32 %v5716, %v5730
    %v5747 = vadd.f32 %v5717, %v5731
    %v5748 = vadd.f32 %v5732, %v5734
    %v5749 = vadd.f32 %v5733, %v5735
    %v5750 = vadd.f32 %v5736, %v5738
    %v5751 = vadd.f32 %v5737, %v5739
    %v5752 = vadd.f32 %v5740, %v5742
    %v5753 = vadd.f32 %v5741, %v5743
    %v5754 = vadd.f32 %v5744, %v5746
    %v5755 = vadd.f32 %v5745, %v5747
    %v5756 = vadd.f32 %v5748, %v5750
    %v5757 = vadd.f32 %v5749, %v5751
    %v5758 = vadd.f32 %v5752, %v5754
    %v5759 = vadd.f32 %v5753, %v5755
    %v5760 = vadd.f32 %v5756, %v5758
    %v5761 = vadd.f32 %v5757, %v5759
    %5762 = vset.pattern.permute.xlu0 12
    %5763 = vperm.xlu0 %5762, %v1680
    %v5764 = vpop.permute.xlu0 %5763
    %5766 = vset.pattern.permute.xlu0 12
    %5767 = vperm.xlu0 %5766, %v1681
    %v5768 = vpop.permute.xlu0 %5767
    %v5770 = vadd.f32 %v5760, %v5764
    %v5771 = vadd.f32 %v5761, %v5768
    %5772 = vset.pattern.permute.xlu0 12
    %5773 = vperm.xlu0 %5772, %v2181
    %v5774 = vpop.permute.xlu0 %5773
    %5776 = vset.pattern.permute.xlu0 12
    %5777 = vperm.xlu0 %5776, %v2187
    %v5778 = vpop.permute.xlu0 %5777
    %v5780 = vmul.f32 %v5774, %v5770
    %v5781 = vmul.f32 %v5778, %v5771
    %v5782 = vadd.f32 %v5780, %v5781
    %v5783 = vrot.slane %v5782, 4
    %v5784 = vadd.f32 %v5782, %v5783
    %v5785 = vrot.slane %v5784, 2
    %v5786 = vadd.f32 %v5784, %v5785
    %v5787 = vrot.slane %v5786, 1
    %v5788 = vadd.f32 %v5786, %v5787
    %5789 = vset.pattern.permute.xlu0 13
    %5790 = vperm.xlu0 %5789, %v1169
    %v5791 = vpop.permute.xlu0 %5790
    %5793 = vset.pattern.permute.xlu0 13
    %5794 = vperm.xlu0 %5793, %v1171
    %v5795 = vpop.permute.xlu0 %5794
    %v5797 = vmul.f32 %v2194, %v5791
    %v5798 = vmul.f32 %v2195, %v5795
    %v5799 = vmul.f32 %v5797, 1.442695
    %v5800 = vpow.pop %v5799
    %v5801 = vmul.f32 %v5798, 1.442695
    %v5802 = vpow.pop %v5801
    %5804 = vset.pattern.permute.xlu0 0
    %5805 = vperm.xlu0 %5804, %v5800
    %v5806 = vpop.permute.xlu0 %5805
    %5809 = vset.pattern.permute.xlu0 0
    %5810 = vperm.xlu0 %5809, %v5802
    %v5811 = vpop.permute.xlu0 %5810
    %v5813 = vlaneseq
    %v5814 = vshrl.u32 %v5813, 7
    %v5815 = vsub.s32 0, %v5814
    %v5816 = vrot.slane %v5770, %v5815
    %v5817 = vmul.f32 %v5806, %v5816
    %v5818 = vmul.f32 %v5811, %v5816
    %5819 = vset.pattern.permute.xlu0 1
    %5820 = vperm.xlu0 %5819, %v5800
    %v5821 = vpop.permute.xlu0 %5820
    %5823 = vset.pattern.permute.xlu0 1
    %5824 = vperm.xlu0 %5823, %v5802
    %v5825 = vpop.permute.xlu0 %5824
    %v5827 = vlaneseq
    %v5828 = vshrl.u32 %v5827, 7
    %v5829 = vsub.s32 1, %v5828
    %v5830 = vrot.slane %v5770, %v5829
    %v5831 = vmul.f32 %v5821, %v5830
    %v5832 = vmul.f32 %v5825, %v5830
    %5833 = vset.pattern.permute.xlu0 2
    %5834 = vperm.xlu0 %5833, %v5800
    %v5835 = vpop.permute.xlu0 %5834
    %5837 = vset.pattern.permute.xlu0 2
    %5838 = vperm.xlu0 %5837, %v5802
    %v5839 = vpop.permute.xlu0 %5838
    %v5841 = vlaneseq
    %v5842 = vshrl.u32 %v5841, 7
    %v5843 = vsub.s32 2, %v5842
    %v5844 = vrot.slane %v5770, %v5843
    %v5845 = vmul.f32 %v5835, %v5844
    %v5846 = vmul.f32 %v5839, %v5844
    %5847 = vset.pattern.permute.xlu0 3
    %5848 = vperm.xlu0 %5847, %v5800
    %v5849 = vpop.permute.xlu0 %5848
    %5851 = vset.pattern.permute.xlu0 3
    %5852 = vperm.xlu0 %5851, %v5802
    %v5853 = vpop.permute.xlu0 %5852
    %v5855 = vlaneseq
    %v5856 = vshrl.u32 %v5855, 7
    %v5857 = vsub.s32 3, %v5856
    %v5858 = vrot.slane %v5770, %v5857
    %v5859 = vmul.f32 %v5849, %v5858
    %v5860 = vmul.f32 %v5853, %v5858
    %5861 = vset.pattern.permute.xlu0 4
    %5862 = vperm.xlu0 %5861, %v5800
    %v5863 = vpop.permute.xlu0 %5862
    %5865 = vset.pattern.permute.xlu0 4
    %5866 = vperm.xlu0 %5865, %v5802
    %v5867 = vpop.permute.xlu0 %5866
    %v5869 = vlaneseq
    %v5870 = vshrl.u32 %v5869, 7
    %v5871 = vsub.s32 4, %v5870
    %v5872 = vrot.slane %v5770, %v5871
    %v5873 = vmul.f32 %v5863, %v5872
    %v5874 = vmul.f32 %v5867, %v5872
    %5875 = vset.pattern.permute.xlu0 5
    %5876 = vperm.xlu0 %5875, %v5800
    %v5877 = vpop.permute.xlu0 %5876
    %5879 = vset.pattern.permute.xlu0 5
    %5880 = vperm.xlu0 %5879, %v5802
    %v5881 = vpop.permute.xlu0 %5880
    %v5883 = vlaneseq
    %v5884 = vshrl.u32 %v5883, 7
    %v5885 = vsub.s32 5, %v5884
    %v5886 = vrot.slane %v5770, %v5885
    %v5887 = vmul.f32 %v5877, %v5886
    %v5888 = vmul.f32 %v5881, %v5886
    %5889 = vset.pattern.permute.xlu0 6
    %5890 = vperm.xlu0 %5889, %v5800
    %v5891 = vpop.permute.xlu0 %5890
    %5893 = vset.pattern.permute.xlu0 6
    %5894 = vperm.xlu0 %5893, %v5802
    %v5895 = vpop.permute.xlu0 %5894
    %v5897 = vlaneseq
    %v5898 = vshrl.u32 %v5897, 7
    %v5899 = vsub.s32 6, %v5898
    %v5900 = vrot.slane %v5770, %v5899
    %v5901 = vmul.f32 %v5891, %v5900
    %v5902 = vmul.f32 %v5895, %v5900
    %5903 = vset.pattern.permute.xlu0 7
    %5904 = vperm.xlu0 %5903, %v5800
    %v5905 = vpop.permute.xlu0 %5904
    %5907 = vset.pattern.permute.xlu0 7
    %5908 = vperm.xlu0 %5907, %v5802
    %v5909 = vpop.permute.xlu0 %5908
    %v5911 = vlaneseq
    %v5912 = vshrl.u32 %v5911, 7
    %v5913 = vsub.s32 7, %v5912
    %v5914 = vrot.slane %v5770, %v5913
    %v5915 = vmul.f32 %v5905, %v5914
    %v5916 = vmul.f32 %v5909, %v5914
    %5917 = vset.pattern.permute.xlu0 8
    %5918 = vperm.xlu0 %5917, %v5800
    %v5919 = vpop.permute.xlu0 %5918
    %5921 = vset.pattern.permute.xlu0 8
    %5922 = vperm.xlu0 %5921, %v5802
    %v5923 = vpop.permute.xlu0 %5922
    %v5925 = vlaneseq
    %v5926 = vshrl.u32 %v5925, 7
    %v5927 = vsub.s32 0, %v5926
    %v5928 = vrot.slane %v5771, %v5927
    %v5929 = vmul.f32 %v5919, %v5928
    %v5930 = vmul.f32 %v5923, %v5928
    %5931 = vset.pattern.permute.xlu0 9
    %5932 = vperm.xlu0 %5931, %v5800
    %v5933 = vpop.permute.xlu0 %5932
    %5935 = vset.pattern.permute.xlu0 9
    %5936 = vperm.xlu0 %5935, %v5802
    %v5937 = vpop.permute.xlu0 %5936
    %v5939 = vlaneseq
    %v5940 = vshrl.u32 %v5939, 7
    %v5941 = vsub.s32 1, %v5940
    %v5942 = vrot.slane %v5771, %v5941
    %v5943 = vmul.f32 %v5933, %v5942
    %v5944 = vmul.f32 %v5937, %v5942
    %5945 = vset.pattern.permute.xlu0 10
    %5946 = vperm.xlu0 %5945, %v5800
    %v5947 = vpop.permute.xlu0 %5946
    %5949 = vset.pattern.permute.xlu0 10
    %5950 = vperm.xlu0 %5949, %v5802
    %v5951 = vpop.permute.xlu0 %5950
    %v5953 = vlaneseq
    %v5954 = vshrl.u32 %v5953, 7
    %v5955 = vsub.s32 2, %v5954
    %v5956 = vrot.slane %v5771, %v5955
    %v5957 = vmul.f32 %v5947, %v5956
    %v5958 = vmul.f32 %v5951, %v5956
    %5959 = vset.pattern.permute.xlu0 11
    %5960 = vperm.xlu0 %5959, %v5800
    %v5961 = vpop.permute.xlu0 %5960
    %5963 = vset.pattern.permute.xlu0 11
    %5964 = vperm.xlu0 %5963, %v5802
    %v5965 = vpop.permute.xlu0 %5964
    %v5967 = vlaneseq
    %v5968 = vshrl.u32 %v5967, 7
    %v5969 = vsub.s32 3, %v5968
    %v5970 = vrot.slane %v5771, %v5969
    %v5971 = vmul.f32 %v5961, %v5970
    %v5972 = vmul.f32 %v5965, %v5970
    %5973 = vset.pattern.permute.xlu0 12
    %5974 = vperm.xlu0 %5973, %v5800
    %v5975 = vpop.permute.xlu0 %5974
    %5977 = vset.pattern.permute.xlu0 12
    %5978 = vperm.xlu0 %5977, %v5802
    %v5979 = vpop.permute.xlu0 %5978
    %v5981 = vlaneseq
    %v5982 = vshrl.u32 %v5981, 7
    %v5983 = vsub.s32 4, %v5982
    %v5984 = vrot.slane %v5771, %v5983
    %v5985 = vmul.f32 %v5975, %v5984
    %v5986 = vmul.f32 %v5979, %v5984
    %5987 = vset.pattern.permute.xlu0 13
    %5988 = vperm.xlu0 %5987, %v5800
    %v5989 = vpop.permute.xlu0 %5988
    %5991 = vset.pattern.permute.xlu0 13
    %5992 = vperm.xlu0 %5991, %v5802
    %v5993 = vpop.permute.xlu0 %5992
    %v5995 = vlaneseq
    %v5996 = vshrl.u32 %v5995, 7
    %v5997 = vsub.s32 5, %v5996
    %v5998 = vrot.slane %v5771, %v5997
    %v5999 = vmul.f32 %v5989, %v5998
    %v6000 = vmul.f32 %v5993, %v5998
    %6001 = vset.pattern.permute.xlu0 14
    %6002 = vperm.xlu0 %6001, %v5800
    %v6003 = vpop.permute.xlu0 %6002
    %6005 = vset.pattern.permute.xlu0 14
    %6006 = vperm.xlu0 %6005, %v5802
    %v6007 = vpop.permute.xlu0 %6006
    %v6009 = vlaneseq
    %v6010 = vshrl.u32 %v6009, 7
    %v6011 = vsub.s32 6, %v6010
    %v6012 = vrot.slane %v5771, %v6011
    %v6013 = vmul.f32 %v6003, %v6012
    %v6014 = vmul.f32 %v6007, %v6012
    %6015 = vset.pattern.permute.xlu0 15
    %6016 = vperm.xlu0 %6015, %v5800
    %v6017 = vpop.permute.xlu0 %6016
    %6019 = vset.pattern.permute.xlu0 15
    %6020 = vperm.xlu0 %6019, %v5802
    %v6021 = vpop.permute.xlu0 %6020
    %v6023 = vlaneseq
    %v6024 = vshrl.u32 %v6023, 7
    %v6025 = vsub.s32 7, %v6024
    %v6026 = vrot.slane %v5771, %v6025
    %v6027 = vmul.f32 %v6017, %v6026
    %v6028 = vmul.f32 %v6021, %v6026
    %v6029 = vadd.f32 %v5817, %v5831
    %v6030 = vadd.f32 %v5818, %v5832
    %v6031 = vadd.f32 %v5845, %v5859
    %v6032 = vadd.f32 %v5846, %v5860
    %v6033 = vadd.f32 %v5873, %v5887
    %v6034 = vadd.f32 %v5874, %v5888
    %v6035 = vadd.f32 %v5901, %v5915
    %v6036 = vadd.f32 %v5902, %v5916
    %v6037 = vadd.f32 %v5929, %v5943
    %v6038 = vadd.f32 %v5930, %v5944
    %v6039 = vadd.f32 %v5957, %v5971
    %v6040 = vadd.f32 %v5958, %v5972
    %v6041 = vadd.f32 %v5985, %v5999
    %v6042 = vadd.f32 %v5986, %v6000
    %v6043 = vadd.f32 %v6013, %v6027
    %v6044 = vadd.f32 %v6014, %v6028
    %v6045 = vadd.f32 %v6029, %v6031
    %v6046 = vadd.f32 %v6030, %v6032
    %v6047 = vadd.f32 %v6033, %v6035
    %v6048 = vadd.f32 %v6034, %v6036
    %v6049 = vadd.f32 %v6037, %v6039
    %v6050 = vadd.f32 %v6038, %v6040
    %v6051 = vadd.f32 %v6041, %v6043
    %v6052 = vadd.f32 %v6042, %v6044
    %v6053 = vadd.f32 %v6045, %v6047
    %v6054 = vadd.f32 %v6046, %v6048
    %v6055 = vadd.f32 %v6049, %v6051
    %v6056 = vadd.f32 %v6050, %v6052
    %v6057 = vadd.f32 %v6053, %v6055
    %v6058 = vadd.f32 %v6054, %v6056
    %6059 = vset.pattern.permute.xlu0 13
    %6060 = vperm.xlu0 %6059, %v1680
    %v6061 = vpop.permute.xlu0 %6060
    %6063 = vset.pattern.permute.xlu0 13
    %6064 = vperm.xlu0 %6063, %v1681
    %v6065 = vpop.permute.xlu0 %6064
    %v6067 = vadd.f32 %v6057, %v6061
    %v6068 = vadd.f32 %v6058, %v6065
    %6069 = vset.pattern.permute.xlu0 13
    %6070 = vperm.xlu0 %6069, %v2181
    %v6071 = vpop.permute.xlu0 %6070
    %6073 = vset.pattern.permute.xlu0 13
    %6074 = vperm.xlu0 %6073, %v2187
    %v6075 = vpop.permute.xlu0 %6074
    %v6077 = vmul.f32 %v6071, %v6067
    %v6078 = vmul.f32 %v6075, %v6068
    %v6079 = vadd.f32 %v6077, %v6078
    %v6080 = vrot.slane %v6079, 4
    %v6081 = vadd.f32 %v6079, %v6080
    %v6082 = vrot.slane %v6081, 2
    %v6083 = vadd.f32 %v6081, %v6082
    %v6084 = vrot.slane %v6083, 1
    %v6085 = vadd.f32 %v6083, %v6084
    %6086 = vset.pattern.permute.xlu0 14
    %6087 = vperm.xlu0 %6086, %v1169
    %v6088 = vpop.permute.xlu0 %6087
    %6090 = vset.pattern.permute.xlu0 14
    %6091 = vperm.xlu0 %6090, %v1171
    %v6092 = vpop.permute.xlu0 %6091
    %v6094 = vmul.f32 %v2194, %v6088
    %v6095 = vmul.f32 %v2195, %v6092
    %v6096 = vmul.f32 %v6094, 1.442695
    %v6097 = vpow.pop %v6096
    %v6098 = vmul.f32 %v6095, 1.442695
    %v6099 = vpow.pop %v6098
    %6101 = vset.pattern.permute.xlu0 0
    %6102 = vperm.xlu0 %6101, %v6097
    %v6103 = vpop.permute.xlu0 %6102
    %6106 = vset.pattern.permute.xlu0 0
    %6107 = vperm.xlu0 %6106, %v6099
    %v6108 = vpop.permute.xlu0 %6107
    %v6110 = vlaneseq
    %v6111 = vshrl.u32 %v6110, 7
    %v6112 = vsub.s32 0, %v6111
    %v6113 = vrot.slane %v6067, %v6112
    %v6114 = vmul.f32 %v6103, %v6113
    %v6115 = vmul.f32 %v6108, %v6113
    %6116 = vset.pattern.permute.xlu0 1
    %6117 = vperm.xlu0 %6116, %v6097
    %v6118 = vpop.permute.xlu0 %6117
    %6120 = vset.pattern.permute.xlu0 1
    %6121 = vperm.xlu0 %6120, %v6099
    %v6122 = vpop.permute.xlu0 %6121
    %v6124 = vlaneseq
    %v6125 = vshrl.u32 %v6124, 7
    %v6126 = vsub.s32 1, %v6125
    %v6127 = vrot.slane %v6067, %v6126
    %v6128 = vmul.f32 %v6118, %v6127
    %v6129 = vmul.f32 %v6122, %v6127
    %6130 = vset.pattern.permute.xlu0 2
    %6131 = vperm.xlu0 %6130, %v6097
    %v6132 = vpop.permute.xlu0 %6131
    %6134 = vset.pattern.permute.xlu0 2
    %6135 = vperm.xlu0 %6134, %v6099
    %v6136 = vpop.permute.xlu0 %6135
    %v6138 = vlaneseq
    %v6139 = vshrl.u32 %v6138, 7
    %v6140 = vsub.s32 2, %v6139
    %v6141 = vrot.slane %v6067, %v6140
    %v6142 = vmul.f32 %v6132, %v6141
    %v6143 = vmul.f32 %v6136, %v6141
    %6144 = vset.pattern.permute.xlu0 3
    %6145 = vperm.xlu0 %6144, %v6097
    %v6146 = vpop.permute.xlu0 %6145
    %6148 = vset.pattern.permute.xlu0 3
    %6149 = vperm.xlu0 %6148, %v6099
    %v6150 = vpop.permute.xlu0 %6149
    %v6152 = vlaneseq
    %v6153 = vshrl.u32 %v6152, 7
    %v6154 = vsub.s32 3, %v6153
    %v6155 = vrot.slane %v6067, %v6154
    %v6156 = vmul.f32 %v6146, %v6155
    %v6157 = vmul.f32 %v6150, %v6155
    %6158 = vset.pattern.permute.xlu0 4
    %6159 = vperm.xlu0 %6158, %v6097
    %v6160 = vpop.permute.xlu0 %6159
    %6162 = vset.pattern.permute.xlu0 4
    %6163 = vperm.xlu0 %6162, %v6099
    %v6164 = vpop.permute.xlu0 %6163
    %v6166 = vlaneseq
    %v6167 = vshrl.u32 %v6166, 7
    %v6168 = vsub.s32 4, %v6167
    %v6169 = vrot.slane %v6067, %v6168
    %v6170 = vmul.f32 %v6160, %v6169
    %v6171 = vmul.f32 %v6164, %v6169
    %6172 = vset.pattern.permute.xlu0 5
    %6173 = vperm.xlu0 %6172, %v6097
    %v6174 = vpop.permute.xlu0 %6173
    %6176 = vset.pattern.permute.xlu0 5
    %6177 = vperm.xlu0 %6176, %v6099
    %v6178 = vpop.permute.xlu0 %6177
    %v6180 = vlaneseq
    %v6181 = vshrl.u32 %v6180, 7
    %v6182 = vsub.s32 5, %v6181
    %v6183 = vrot.slane %v6067, %v6182
    %v6184 = vmul.f32 %v6174, %v6183
    %v6185 = vmul.f32 %v6178, %v6183
    %6186 = vset.pattern.permute.xlu0 6
    %6187 = vperm.xlu0 %6186, %v6097
    %v6188 = vpop.permute.xlu0 %6187
    %6190 = vset.pattern.permute.xlu0 6
    %6191 = vperm.xlu0 %6190, %v6099
    %v6192 = vpop.permute.xlu0 %6191
    %v6194 = vlaneseq
    %v6195 = vshrl.u32 %v6194, 7
    %v6196 = vsub.s32 6, %v6195
    %v6197 = vrot.slane %v6067, %v6196
    %v6198 = vmul.f32 %v6188, %v6197
    %v6199 = vmul.f32 %v6192, %v6197
    %6200 = vset.pattern.permute.xlu0 7
    %6201 = vperm.xlu0 %6200, %v6097
    %v6202 = vpop.permute.xlu0 %6201
    %6204 = vset.pattern.permute.xlu0 7
    %6205 = vperm.xlu0 %6204, %v6099
    %v6206 = vpop.permute.xlu0 %6205
    %v6208 = vlaneseq
    %v6209 = vshrl.u32 %v6208, 7
    %v6210 = vsub.s32 7, %v6209
    %v6211 = vrot.slane %v6067, %v6210
    %v6212 = vmul.f32 %v6202, %v6211
    %v6213 = vmul.f32 %v6206, %v6211
    %6214 = vset.pattern.permute.xlu0 8
    %6215 = vperm.xlu0 %6214, %v6097
    %v6216 = vpop.permute.xlu0 %6215
    %6218 = vset.pattern.permute.xlu0 8
    %6219 = vperm.xlu0 %6218, %v6099
    %v6220 = vpop.permute.xlu0 %6219
    %v6222 = vlaneseq
    %v6223 = vshrl.u32 %v6222, 7
    %v6224 = vsub.s32 0, %v6223
    %v6225 = vrot.slane %v6068, %v6224
    %v6226 = vmul.f32 %v6216, %v6225
    %v6227 = vmul.f32 %v6220, %v6225
    %6228 = vset.pattern.permute.xlu0 9
    %6229 = vperm.xlu0 %6228, %v6097
    %v6230 = vpop.permute.xlu0 %6229
    %6232 = vset.pattern.permute.xlu0 9
    %6233 = vperm.xlu0 %6232, %v6099
    %v6234 = vpop.permute.xlu0 %6233
    %v6236 = vlaneseq
    %v6237 = vshrl.u32 %v6236, 7
    %v6238 = vsub.s32 1, %v6237
    %v6239 = vrot.slane %v6068, %v6238
    %v6240 = vmul.f32 %v6230, %v6239
    %v6241 = vmul.f32 %v6234, %v6239
    %6242 = vset.pattern.permute.xlu0 10
    %6243 = vperm.xlu0 %6242, %v6097
    %v6244 = vpop.permute.xlu0 %6243
    %6246 = vset.pattern.permute.xlu0 10
    %6247 = vperm.xlu0 %6246, %v6099
    %v6248 = vpop.permute.xlu0 %6247
    %v6250 = vlaneseq
    %v6251 = vshrl.u32 %v6250, 7
    %v6252 = vsub.s32 2, %v6251
    %v6253 = vrot.slane %v6068, %v6252
    %v6254 = vmul.f32 %v6244, %v6253
    %v6255 = vmul.f32 %v6248, %v6253
    %6256 = vset.pattern.permute.xlu0 11
    %6257 = vperm.xlu0 %6256, %v6097
    %v6258 = vpop.permute.xlu0 %6257
    %6260 = vset.pattern.permute.xlu0 11
    %6261 = vperm.xlu0 %6260, %v6099
    %v6262 = vpop.permute.xlu0 %6261
    %v6264 = vlaneseq
    %v6265 = vshrl.u32 %v6264, 7
    %v6266 = vsub.s32 3, %v6265
    %v6267 = vrot.slane %v6068, %v6266
    %v6268 = vmul.f32 %v6258, %v6267
    %v6269 = vmul.f32 %v6262, %v6267
    %6270 = vset.pattern.permute.xlu0 12
    %6271 = vperm.xlu0 %6270, %v6097
    %v6272 = vpop.permute.xlu0 %6271
    %6274 = vset.pattern.permute.xlu0 12
    %6275 = vperm.xlu0 %6274, %v6099
    %v6276 = vpop.permute.xlu0 %6275
    %v6278 = vlaneseq
    %v6279 = vshrl.u32 %v6278, 7
    %v6280 = vsub.s32 4, %v6279
    %v6281 = vrot.slane %v6068, %v6280
    %v6282 = vmul.f32 %v6272, %v6281
    %v6283 = vmul.f32 %v6276, %v6281
    %6284 = vset.pattern.permute.xlu0 13
    %6285 = vperm.xlu0 %6284, %v6097
    %v6286 = vpop.permute.xlu0 %6285
    %6288 = vset.pattern.permute.xlu0 13
    %6289 = vperm.xlu0 %6288, %v6099
    %v6290 = vpop.permute.xlu0 %6289
    %v6292 = vlaneseq
    %v6293 = vshrl.u32 %v6292, 7
    %v6294 = vsub.s32 5, %v6293
    %v6295 = vrot.slane %v6068, %v6294
    %v6296 = vmul.f32 %v6286, %v6295
    %v6297 = vmul.f32 %v6290, %v6295
    %6298 = vset.pattern.permute.xlu0 14
    %6299 = vperm.xlu0 %6298, %v6097
    %v6300 = vpop.permute.xlu0 %6299
    %6302 = vset.pattern.permute.xlu0 14
    %6303 = vperm.xlu0 %6302, %v6099
    %v6304 = vpop.permute.xlu0 %6303
    %v6306 = vlaneseq
    %v6307 = vshrl.u32 %v6306, 7
    %v6308 = vsub.s32 6, %v6307
    %v6309 = vrot.slane %v6068, %v6308
    %v6310 = vmul.f32 %v6300, %v6309
    %v6311 = vmul.f32 %v6304, %v6309
    %6312 = vset.pattern.permute.xlu0 15
    %6313 = vperm.xlu0 %6312, %v6097
    %v6314 = vpop.permute.xlu0 %6313
    %6316 = vset.pattern.permute.xlu0 15
    %6317 = vperm.xlu0 %6316, %v6099
    %v6318 = vpop.permute.xlu0 %6317
    %v6320 = vlaneseq
    %v6321 = vshrl.u32 %v6320, 7
    %v6322 = vsub.s32 7, %v6321
    %v6323 = vrot.slane %v6068, %v6322
    %v6324 = vmul.f32 %v6314, %v6323
    %v6325 = vmul.f32 %v6318, %v6323
    %v6326 = vadd.f32 %v6114, %v6128
    %v6327 = vadd.f32 %v6115, %v6129
    %v6328 = vadd.f32 %v6142, %v6156
    %v6329 = vadd.f32 %v6143, %v6157
    %v6330 = vadd.f32 %v6170, %v6184
    %v6331 = vadd.f32 %v6171, %v6185
    %v6332 = vadd.f32 %v6198, %v6212
    %v6333 = vadd.f32 %v6199, %v6213
    %v6334 = vadd.f32 %v6226, %v6240
    %v6335 = vadd.f32 %v6227, %v6241
    %v6336 = vadd.f32 %v6254, %v6268
    %v6337 = vadd.f32 %v6255, %v6269
    %v6338 = vadd.f32 %v6282, %v6296
    %v6339 = vadd.f32 %v6283, %v6297
    %v6340 = vadd.f32 %v6310, %v6324
    %v6341 = vadd.f32 %v6311, %v6325
    %v6342 = vadd.f32 %v6326, %v6328
    %v6343 = vadd.f32 %v6327, %v6329
    %v6344 = vadd.f32 %v6330, %v6332
    %v6345 = vadd.f32 %v6331, %v6333
    %v6346 = vadd.f32 %v6334, %v6336
    %v6347 = vadd.f32 %v6335, %v6337
    %v6348 = vadd.f32 %v6338, %v6340
    %v6349 = vadd.f32 %v6339, %v6341
    %v6350 = vadd.f32 %v6342, %v6344
    %v6351 = vadd.f32 %v6343, %v6345
    %v6352 = vadd.f32 %v6346, %v6348
    %v6353 = vadd.f32 %v6347, %v6349
    %v6354 = vadd.f32 %v6350, %v6352
    %v6355 = vadd.f32 %v6351, %v6353
    %6356 = vset.pattern.permute.xlu0 14
    %6357 = vperm.xlu0 %6356, %v1680
    %v6358 = vpop.permute.xlu0 %6357
    %6360 = vset.pattern.permute.xlu0 14
    %6361 = vperm.xlu0 %6360, %v1681
    %v6362 = vpop.permute.xlu0 %6361
    %v6364 = vadd.f32 %v6354, %v6358
    %v6365 = vadd.f32 %v6355, %v6362
    %6366 = vset.pattern.permute.xlu0 14
    %6367 = vperm.xlu0 %6366, %v2181
    %v6368 = vpop.permute.xlu0 %6367
    %6370 = vset.pattern.permute.xlu0 14
    %6371 = vperm.xlu0 %6370, %v2187
    %v6372 = vpop.permute.xlu0 %6371
    %v6374 = vmul.f32 %v6368, %v6364
    %v6375 = vmul.f32 %v6372, %v6365
    %v6376 = vadd.f32 %v6374, %v6375
    %v6377 = vrot.slane %v6376, 4
    %v6378 = vadd.f32 %v6376, %v6377
    %v6379 = vrot.slane %v6378, 2
    %v6380 = vadd.f32 %v6378, %v6379
    %v6381 = vrot.slane %v6380, 1
    %v6382 = vadd.f32 %v6380, %v6381
    %6383 = vset.pattern.permute.xlu0 15
    %6384 = vperm.xlu0 %6383, %v1169
    %v6385 = vpop.permute.xlu0 %6384
    %6387 = vset.pattern.permute.xlu0 15
    %6388 = vperm.xlu0 %6387, %v1171
    %v6389 = vpop.permute.xlu0 %6388
    %v6391 = vmul.f32 %v2194, %v6385
    %v6392 = vmul.f32 %v2195, %v6389
    %v6393 = vmul.f32 %v6391, 1.442695
    %v6394 = vpow.pop %v6393
    %v6395 = vmul.f32 %v6392, 1.442695
    %v6396 = vpow.pop %v6395
    %6398 = vset.pattern.permute.xlu0 0
    %6399 = vperm.xlu0 %6398, %v6394
    %v6400 = vpop.permute.xlu0 %6399
    %6403 = vset.pattern.permute.xlu0 0
    %6404 = vperm.xlu0 %6403, %v6396
    %v6405 = vpop.permute.xlu0 %6404
    %v6407 = vlaneseq
    %v6408 = vshrl.u32 %v6407, 7
    %v6409 = vsub.s32 0, %v6408
    %v6410 = vrot.slane %v6364, %v6409
    %v6411 = vmul.f32 %v6400, %v6410
    %v6412 = vmul.f32 %v6405, %v6410
    %6413 = vset.pattern.permute.xlu0 1
    %6414 = vperm.xlu0 %6413, %v6394
    %v6415 = vpop.permute.xlu0 %6414
    %6417 = vset.pattern.permute.xlu0 1
    %6418 = vperm.xlu0 %6417, %v6396
    %v6419 = vpop.permute.xlu0 %6418
    %v6421 = vlaneseq
    %v6422 = vshrl.u32 %v6421, 7
    %v6423 = vsub.s32 1, %v6422
    %v6424 = vrot.slane %v6364, %v6423
    %v6425 = vmul.f32 %v6415, %v6424
    %v6426 = vmul.f32 %v6419, %v6424
    %6427 = vset.pattern.permute.xlu0 2
    %6428 = vperm.xlu0 %6427, %v6394
    %v6429 = vpop.permute.xlu0 %6428
    %6431 = vset.pattern.permute.xlu0 2
    %6432 = vperm.xlu0 %6431, %v6396
    %v6433 = vpop.permute.xlu0 %6432
    %v6435 = vlaneseq
    %v6436 = vshrl.u32 %v6435, 7
    %v6437 = vsub.s32 2, %v6436
    %v6438 = vrot.slane %v6364, %v6437
    %v6439 = vmul.f32 %v6429, %v6438
    %v6440 = vmul.f32 %v6433, %v6438
    %6441 = vset.pattern.permute.xlu0 3
    %6442 = vperm.xlu0 %6441, %v6394
    %v6443 = vpop.permute.xlu0 %6442
    %6445 = vset.pattern.permute.xlu0 3
    %6446 = vperm.xlu0 %6445, %v6396
    %v6447 = vpop.permute.xlu0 %6446
    %v6449 = vlaneseq
    %v6450 = vshrl.u32 %v6449, 7
    %v6451 = vsub.s32 3, %v6450
    %v6452 = vrot.slane %v6364, %v6451
    %v6453 = vmul.f32 %v6443, %v6452
    %v6454 = vmul.f32 %v6447, %v6452
    %6455 = vset.pattern.permute.xlu0 4
    %6456 = vperm.xlu0 %6455, %v6394
    %v6457 = vpop.permute.xlu0 %6456
    %6459 = vset.pattern.permute.xlu0 4
    %6460 = vperm.xlu0 %6459, %v6396
    %v6461 = vpop.permute.xlu0 %6460
    %v6463 = vlaneseq
    %v6464 = vshrl.u32 %v6463, 7
    %v6465 = vsub.s32 4, %v6464
    %v6466 = vrot.slane %v6364, %v6465
    %v6467 = vmul.f32 %v6457, %v6466
    %v6468 = vmul.f32 %v6461, %v6466
    %6469 = vset.pattern.permute.xlu0 5
    %6470 = vperm.xlu0 %6469, %v6394
    %v6471 = vpop.permute.xlu0 %6470
    %6473 = vset.pattern.permute.xlu0 5
    %6474 = vperm.xlu0 %6473, %v6396
    %v6475 = vpop.permute.xlu0 %6474
    %v6477 = vlaneseq
    %v6478 = vshrl.u32 %v6477, 7
    %v6479 = vsub.s32 5, %v6478
    %v6480 = vrot.slane %v6364, %v6479
    %v6481 = vmul.f32 %v6471, %v6480
    %v6482 = vmul.f32 %v6475, %v6480
    %6483 = vset.pattern.permute.xlu0 6
    %6484 = vperm.xlu0 %6483, %v6394
    %v6485 = vpop.permute.xlu0 %6484
    %6487 = vset.pattern.permute.xlu0 6
    %6488 = vperm.xlu0 %6487, %v6396
    %v6489 = vpop.permute.xlu0 %6488
    %v6491 = vlaneseq
    %v6492 = vshrl.u32 %v6491, 7
    %v6493 = vsub.s32 6, %v6492
    %v6494 = vrot.slane %v6364, %v6493
    %v6495 = vmul.f32 %v6485, %v6494
    %v6496 = vmul.f32 %v6489, %v6494
    %6497 = vset.pattern.permute.xlu0 7
    %6498 = vperm.xlu0 %6497, %v6394
    %v6499 = vpop.permute.xlu0 %6498
    %6501 = vset.pattern.permute.xlu0 7
    %6502 = vperm.xlu0 %6501, %v6396
    %v6503 = vpop.permute.xlu0 %6502
    %v6505 = vlaneseq
    %v6506 = vshrl.u32 %v6505, 7
    %v6507 = vsub.s32 7, %v6506
    %v6508 = vrot.slane %v6364, %v6507
    %v6509 = vmul.f32 %v6499, %v6508
    %v6510 = vmul.f32 %v6503, %v6508
    %6511 = vset.pattern.permute.xlu0 8
    %6512 = vperm.xlu0 %6511, %v6394
    %v6513 = vpop.permute.xlu0 %6512
    %6515 = vset.pattern.permute.xlu0 8
    %6516 = vperm.xlu0 %6515, %v6396
    %v6517 = vpop.permute.xlu0 %6516
    %v6519 = vlaneseq
    %v6520 = vshrl.u32 %v6519, 7
    %v6521 = vsub.s32 0, %v6520
    %v6522 = vrot.slane %v6365, %v6521
    %v6523 = vmul.f32 %v6513, %v6522
    %v6524 = vmul.f32 %v6517, %v6522
    %6525 = vset.pattern.permute.xlu0 9
    %6526 = vperm.xlu0 %6525, %v6394
    %v6527 = vpop.permute.xlu0 %6526
    %6529 = vset.pattern.permute.xlu0 9
    %6530 = vperm.xlu0 %6529, %v6396
    %v6531 = vpop.permute.xlu0 %6530
    %v6533 = vlaneseq
    %v6534 = vshrl.u32 %v6533, 7
    %v6535 = vsub.s32 1, %v6534
    %v6536 = vrot.slane %v6365, %v6535
    %v6537 = vmul.f32 %v6527, %v6536
    %v6538 = vmul.f32 %v6531, %v6536
    %6539 = vset.pattern.permute.xlu0 10
    %6540 = vperm.xlu0 %6539, %v6394
    %v6541 = vpop.permute.xlu0 %6540
    %6543 = vset.pattern.permute.xlu0 10
    %6544 = vperm.xlu0 %6543, %v6396
    %v6545 = vpop.permute.xlu0 %6544
    %v6547 = vlaneseq
    %v6548 = vshrl.u32 %v6547, 7
    %v6549 = vsub.s32 2, %v6548
    %v6550 = vrot.slane %v6365, %v6549
    %v6551 = vmul.f32 %v6541, %v6550
    %v6552 = vmul.f32 %v6545, %v6550
    %6553 = vset.pattern.permute.xlu0 11
    %6554 = vperm.xlu0 %6553, %v6394
    %v6555 = vpop.permute.xlu0 %6554
    %6557 = vset.pattern.permute.xlu0 11
    %6558 = vperm.xlu0 %6557, %v6396
    %v6559 = vpop.permute.xlu0 %6558
    %v6561 = vlaneseq
    %v6562 = vshrl.u32 %v6561, 7
    %v6563 = vsub.s32 3, %v6562
    %v6564 = vrot.slane %v6365, %v6563
    %v6565 = vmul.f32 %v6555, %v6564
    %v6566 = vmul.f32 %v6559, %v6564
    %6567 = vset.pattern.permute.xlu0 12
    %6568 = vperm.xlu0 %6567, %v6394
    %v6569 = vpop.permute.xlu0 %6568
    %6571 = vset.pattern.permute.xlu0 12
    %6572 = vperm.xlu0 %6571, %v6396
    %v6573 = vpop.permute.xlu0 %6572
    %v6575 = vlaneseq
    %v6576 = vshrl.u32 %v6575, 7
    %v6577 = vsub.s32 4, %v6576
    %v6578 = vrot.slane %v6365, %v6577
    %v6579 = vmul.f32 %v6569, %v6578
    %v6580 = vmul.f32 %v6573, %v6578
    %6581 = vset.pattern.permute.xlu0 13
    %6582 = vperm.xlu0 %6581, %v6394
    %v6583 = vpop.permute.xlu0 %6582
    %6585 = vset.pattern.permute.xlu0 13
    %6586 = vperm.xlu0 %6585, %v6396
    %v6587 = vpop.permute.xlu0 %6586
    %v6589 = vlaneseq
    %v6590 = vshrl.u32 %v6589, 7
    %v6591 = vsub.s32 5, %v6590
    %v6592 = vrot.slane %v6365, %v6591
    %v6593 = vmul.f32 %v6583, %v6592
    %v6594 = vmul.f32 %v6587, %v6592
    %6595 = vset.pattern.permute.xlu0 14
    %6596 = vperm.xlu0 %6595, %v6394
    %v6597 = vpop.permute.xlu0 %6596
    %6599 = vset.pattern.permute.xlu0 14
    %6600 = vperm.xlu0 %6599, %v6396
    %v6601 = vpop.permute.xlu0 %6600
    %v6603 = vlaneseq
    %v6604 = vshrl.u32 %v6603, 7
    %v6605 = vsub.s32 6, %v6604
    %v6606 = vrot.slane %v6365, %v6605
    %v6607 = vmul.f32 %v6597, %v6606
    %v6608 = vmul.f32 %v6601, %v6606
    %6609 = vset.pattern.permute.xlu0 15
    %6610 = vperm.xlu0 %6609, %v6394
    %v6611 = vpop.permute.xlu0 %6610
    %6613 = vset.pattern.permute.xlu0 15
    %6614 = vperm.xlu0 %6613, %v6396
    %v6615 = vpop.permute.xlu0 %6614
    %v6617 = vlaneseq
    %v6618 = vshrl.u32 %v6617, 7
    %v6619 = vsub.s32 7, %v6618
    %v6620 = vrot.slane %v6365, %v6619
    %v6621 = vmul.f32 %v6611, %v6620
    %v6622 = vmul.f32 %v6615, %v6620
    %v6623 = vadd.f32 %v6411, %v6425
    %v6624 = vadd.f32 %v6412, %v6426
    %v6625 = vadd.f32 %v6439, %v6453
    %v6626 = vadd.f32 %v6440, %v6454
    %v6627 = vadd.f32 %v6467, %v6481
    %v6628 = vadd.f32 %v6468, %v6482
    %v6629 = vadd.f32 %v6495, %v6509
    %v6630 = vadd.f32 %v6496, %v6510
    %v6631 = vadd.f32 %v6523, %v6537
    %v6632 = vadd.f32 %v6524, %v6538
    %v6633 = vadd.f32 %v6551, %v6565
    %v6634 = vadd.f32 %v6552, %v6566
    %v6635 = vadd.f32 %v6579, %v6593
    %v6636 = vadd.f32 %v6580, %v6594
    %v6637 = vadd.f32 %v6607, %v6621
    %v6638 = vadd.f32 %v6608, %v6622
    %v6639 = vadd.f32 %v6623, %v6625
    %v6640 = vadd.f32 %v6624, %v6626
    %v6641 = vadd.f32 %v6627, %v6629
    %v6642 = vadd.f32 %v6628, %v6630
    %v6643 = vadd.f32 %v6631, %v6633
    %v6644 = vadd.f32 %v6632, %v6634
    %v6645 = vadd.f32 %v6635, %v6637
    %v6646 = vadd.f32 %v6636, %v6638
    %v6647 = vadd.f32 %v6639, %v6641
    %v6648 = vadd.f32 %v6640, %v6642
    %v6649 = vadd.f32 %v6643, %v6645
    %v6650 = vadd.f32 %v6644, %v6646
    %v6651 = vadd.f32 %v6647, %v6649
    %v6652 = vadd.f32 %v6648, %v6650
    %6653 = vset.pattern.permute.xlu0 15
    %6654 = vperm.xlu0 %6653, %v1680
    %v6655 = vpop.permute.xlu0 %6654
    %6657 = vset.pattern.permute.xlu0 15
    %6658 = vperm.xlu0 %6657, %v1681
    %v6659 = vpop.permute.xlu0 %6658
    %v6661 = vadd.f32 %v6651, %v6655
    %v6662 = vadd.f32 %v6652, %v6659
    %6663 = vset.pattern.permute.xlu0 15
    %6664 = vperm.xlu0 %6663, %v2181
    %v6665 = vpop.permute.xlu0 %6664
    %6667 = vset.pattern.permute.xlu0 15
    %6668 = vperm.xlu0 %6667, %v2187
    %v6669 = vpop.permute.xlu0 %6668
    %v6671 = vmul.f32 %v6665, %v6661
    %v6672 = vmul.f32 %v6669, %v6662
    %v6673 = vadd.f32 %v6671, %v6672
    %v6674 = vrot.slane %v6673, 4
    %v6675 = vadd.f32 %v6673, %v6674
    %v6676 = vrot.slane %v6675, 2
    %v6677 = vadd.f32 %v6675, %v6676
    %v6678 = vrot.slane %v6677, 1
    %v6679 = vadd.f32 %v6677, %v6678
    %vm6680 = vcmask 1040384
    %v6681 = vsel %vm6680, %v2224, %v2521
    %vm6682 = vcmask 1041408
    %v6683 = vsel %vm6682, %v6681, %v2818
    %vm6684 = vcmask 1042432
    %v6685 = vsel %vm6684, %v6683, %v3115
    %vm6686 = vcmask 1043456
    %v6687 = vsel %vm6686, %v6685, %v3412
    %vm6688 = vcmask 1044480
    %v6689 = vsel %vm6688, %v6687, %v3709
    %vm6690 = vcmask 1045504
    %v6691 = vsel %vm6690, %v6689, %v4006
    %vm6692 = vcmask 1046528
    %v6693 = vsel %vm6692, %v6691, %v4303
    %v6694 = vsel %vm6680, %v4600, %v4897
    %v6695 = vsel %vm6682, %v6694, %v5194
    %v6696 = vsel %vm6684, %v6695, %v5491
    %v6697 = vsel %vm6686, %v6696, %v5788
    %v6698 = vsel %vm6688, %v6697, %v6085
    %v6699 = vsel %vm6690, %v6698, %v6382
    %v6700 = vsel %vm6692, %v6699, %v6679
    %v6702 = vsel %vm32, %v24, 0
    %v6705 = vsel %vm32, %v25, 0
    %6707 = vmatprep.subr.mxu0 0.0
    %v6708 = vand.u32 %v1151, 4294901760
    %6709 = vmatpush1.msra.mxu0 %v6708
    %6710 = vmatprep.subr.mxu0 0.0
    %v6711 = vand.u32 %v1157, 4294901760
    %6712 = vmatpush1.msra.mxu0 %v6711
    %6713 = vmatprep.subr.mxu0 0.0
    %6714 = vmatpush1.msra.mxu0 0.0
    %6715 = vmatprep.subr.mxu0 0.0
    %6716 = vmatpush1.msra.mxu0 0.0
    %6717 = vmatprep.subr.mxu0 0.0
    %6718 = vmatpush1.msra.mxu0 0.0
    %6719 = vmatprep.subr.mxu0 0.0
    %6720 = vmatpush1.msra.mxu0 0.0
    %6721 = vmatprep.subr.mxu0 0.0
    %6722 = vmatpush1.msra.mxu0 0.0
    %6723 = vmatprep.subr.mxu0 0.0
    %6724 = vmatpush1.msra.mxu0 0.0
    %6725 = vmatprep.subr.mxu0 0.0
    %6726 = vmatpush1.msra.mxu0 0.0
    %6727 = vmatprep.subr.mxu0 0.0
    %6728 = vmatpush1.msra.mxu0 0.0
    %6729 = vmatprep.subr.mxu0 0.0
    %6730 = vmatpush1.msra.mxu0 0.0
    %6731 = vmatprep.subr.mxu0 0.0
    %6732 = vmatpush1.msra.mxu0 0.0
    %6733 = vmatprep.subr.mxu0 0.0
    %6734 = vmatpush1.msra.mxu0 0.0
    %6735 = vmatprep.subr.mxu0 0.0
    %6736 = vmatpush1.msra.mxu0 0.0
    %6737 = vmatprep.subr.mxu0 0.0
    %6738 = vmatpush1.msra.mxu0 0.0
    %6739 = vmatprep.subr.mxu0 0.0
    %6740 = vmatpush1.msra.mxu0 0.0
    %6741 = vmatprep.subr.mxu0 0.0
    %6742 = vmatpush1.msra.mxu0 0.0
    %6743 = vmatprep.subr.mxu0 0.0
    %6744 = vmatpush1.msra.mxu0 0.0
    %6745 = vmatprep.subr.mxu0 0.0
    %6746 = vmatpush1.msra.mxu0 0.0
    %6747 = vmatprep.subr.mxu0 0.0
    %6748 = vmatpush1.msra.mxu0 0.0
    %6749 = vmatprep.subr.mxu0 0.0
    %6750 = vmatpush1.msra.mxu0 0.0
    %6751 = vmatprep.subr.mxu0 0.0
    %6752 = vmatpush1.msra.mxu0 0.0
    %6753 = vmatprep.subr.mxu0 0.0
    %6754 = vmatpush1.msra.mxu0 0.0
    %6755 = vmatprep.subr.mxu0 0.0
    %6756 = vmatpush1.msra.mxu0 0.0
    %6757 = vmatprep.subr.mxu0 0.0
    %6758 = vmatpush1.msra.mxu0 0.0
    %6759 = vmatprep.subr.mxu0 0.0
    %6760 = vmatpush1.msra.mxu0 0.0
    %6761 = vmatprep.subr.mxu0 0.0
    %6762 = vmatpush1.msra.mxu0 0.0
    %6763 = vmatprep.subr.mxu0 0.0
    %6764 = vmatpush1.msra.mxu0 0.0
    %6765 = vmatprep.subr.mxu0 0.0
    %6766 = vmatpush1.msra.mxu0 0.0
    %6767 = vmatprep.subr.mxu0 0.0
    %6768 = vmatpush1.msra.mxu0 0.0
    %6769 = vmatprep.subr.mxu0 0.0
    %6770 = vmatpush1.msra.mxu0 0.0
    %6771 = vmatprep.subr.mxu0 0.0
    %6772 = vmatpush1.msra.mxu0 0.0
    %6773 = vmatprep.mubr.f32.mxu0 0.0
    %v6774 = vand.u32 %v6702, 4294901760
    %v6775 = vsub.f32 %v6702, %v6774
    %v6776 = vand.u32 %v6775, 4294901760
    %v6777 = vsub.f32 %v6775, %v6776
    %v6778 = vand.u32 %v6777, 4294901760
    %6779 = vmatmul.mubr.f32.gmra.mrb[0].mxu0 %v6778
    %v6780 = vpop.f32.mrb[0].mxu0
    %v6781 = vadd.f32 0.0, %v6780
    %v6782 = vpop.f32.mrb[0].mxu0
    %6783 = vmatprep.mubr.f32.mxu0 0.0
    %v6784 = vand.u32 %v6705, 4294901760
    %v6785 = vsub.f32 %v6705, %v6784
    %v6786 = vand.u32 %v6785, 4294901760
    %v6787 = vsub.f32 %v6785, %v6786
    %v6788 = vand.u32 %v6787, 4294901760
    %6789 = vmatmul.mubr.f32.gmra.mrb[0].mxu0 %v6788
    %v6790 = vpop.f32.mrb[0].mxu0
    %v6791 = vadd.f32 0.0, %v6790
    %v6792 = vpop.f32.mrb[0].mxu0
    %6793 = vdwg.mxu0
    %6794 = vmatprep.subr.mxu0 0.0
    %v6795 = vand.u32 %v1151, 4294901760
    %v6796 = vsub.f32 %v1151, %v6795
    %v6797 = vand.u32 %v6796, 4294901760
    %v6798 = vsub.f32 %v6796, %v6797
    %v6799 = vand.u32 %v6798, 4294901760
    %6800 = vmatpush1.msra.mxu0 %v6799
    %6801 = vmatprep.subr.mxu0 0.0
    %v6802 = vand.u32 %v1157, 4294901760
    %v6803 = vsub.f32 %v1157, %v6802
    %v6804 = vand.u32 %v6803, 4294901760
    %v6805 = vsub.f32 %v6803, %v6804
    %v6806 = vand.u32 %v6805, 4294901760
    %6807 = vmatpush1.msra.mxu0 %v6806
    %6808 = vmatprep.subr.mxu0 0.0
    %6809 = vmatpush1.msra.mxu0 0.0
    %6810 = vmatprep.subr.mxu0 0.0
    %6811 = vmatpush1.msra.mxu0 0.0
    %6812 = vmatprep.subr.mxu0 0.0
    %6813 = vmatpush1.msra.mxu0 0.0
    %6814 = vmatprep.subr.mxu0 0.0
    %6815 = vmatpush1.msra.mxu0 0.0
    %6816 = vmatprep.subr.mxu0 0.0
    %6817 = vmatpush1.msra.mxu0 0.0
    %6818 = vmatprep.subr.mxu0 0.0
    %6819 = vmatpush1.msra.mxu0 0.0
    %6820 = vmatprep.subr.mxu0 0.0
    %6821 = vmatpush1.msra.mxu0 0.0
    %6822 = vmatprep.subr.mxu0 0.0
    %6823 = vmatpush1.msra.mxu0 0.0
    %6824 = vmatprep.subr.mxu0 0.0
    %6825 = vmatpush1.msra.mxu0 0.0
    %6826 = vmatprep.subr.mxu0 0.0
    %6827 = vmatpush1.msra.mxu0 0.0
    %6828 = vmatprep.subr.mxu0 0.0
    %6829 = vmatpush1.msra.mxu0 0.0
    %6830 = vmatprep.subr.mxu0 0.0
    %6831 = vmatpush1.msra.mxu0 0.0
    %6832 = vmatprep.subr.mxu0 0.0
    %6833 = vmatpush1.msra.mxu0 0.0
    %6834 = vmatprep.subr.mxu0 0.0
    %6835 = vmatpush1.msra.mxu0 0.0
    %6836 = vmatprep.subr.mxu0 0.0
    %6837 = vmatpush1.msra.mxu0 0.0
    %6838 = vmatprep.subr.mxu0 0.0
    %6839 = vmatpush1.msra.mxu0 0.0
    %6840 = vmatprep.subr.mxu0 0.0
    %6841 = vmatpush1.msra.mxu0 0.0
    %6842 = vmatprep.subr.mxu0 0.0
    %6843 = vmatpush1.msra.mxu0 0.0
    %6844 = vmatprep.subr.mxu0 0.0
    %6845 = vmatpush1.msra.mxu0 0.0
    %6846 = vmatprep.subr.mxu0 0.0
    %6847 = vmatpush1.msra.mxu0 0.0
    %6848 = vmatprep.subr.mxu0 0.0
    %6849 = vmatpush1.msra.mxu0 0.0
    %6850 = vmatprep.subr.mxu0 0.0
    %6851 = vmatpush1.msra.mxu0 0.0
    %6852 = vmatprep.subr.mxu0 0.0
    %6853 = vmatpush1.msra.mxu0 0.0
    %6854 = vmatprep.subr.mxu0 0.0
    %6855 = vmatpush1.msra.mxu0 0.0
    %6856 = vmatprep.subr.mxu0 0.0
    %6857 = vmatpush1.msra.mxu0 0.0
    %6858 = vmatprep.subr.mxu0 0.0
    %6859 = vmatpush1.msra.mxu0 0.0
    %6860 = vmatprep.subr.mxu0 0.0
    %6861 = vmatpush1.msra.mxu0 0.0
    %6862 = vmatprep.subr.mxu0 0.0
    %6863 = vmatpush1.msra.mxu0 0.0
    %6864 = vmatprep.subr.mxu0 0.0
    %6865 = vmatpush1.msra.mxu0 0.0
    %6866 = vmatprep.subr.mxu0 0.0
    %6867 = vmatpush1.msra.mxu0 0.0
    %6868 = vmatprep.mubr.f32.mxu0 0.0
    %v6869 = vand.u32 %v6702, 4294901760
    %6870 = vmatmul.mubr.f32.gmra.mrb[0].mxu0 %v6869
    %v6871 = vpop.f32.mrb[0].mxu0
    %v6872 = vadd.f32 %v6781, %v6871
    %v6873 = vpop.f32.mrb[0].mxu0
    %6874 = vmatprep.mubr.f32.mxu0 0.0
    %v6875 = vand.u32 %v6705, 4294901760
    %6876 = vmatmul.mubr.f32.gmra.mrb[0].mxu0 %v6875
    %v6877 = vpop.f32.mrb[0].mxu0
    %v6878 = vadd.f32 %v6791, %v6877
    %v6879 = vpop.f32.mrb[0].mxu0
    %6880 = vdwg.mxu0
    %6881 = vmatprep.subr.mxu0 0.0
    %v6882 = vand.u32 %v1151, 4294901760
    %v6883 = vsub.f32 %v1151, %v6882
    %6884 = vmatpush1.msra.mxu0 %v6883
    %6885 = vmatprep.subr.mxu0 0.0
    %v6886 = vand.u32 %v1157, 4294901760
    %v6887 = vsub.f32 %v1157, %v6886
    %6888 = vmatpush1.msra.mxu0 %v6887
    %6889 = vmatprep.subr.mxu0 0.0
    %6890 = vmatpush1.msra.mxu0 0.0
    %6891 = vmatprep.subr.mxu0 0.0
    %6892 = vmatpush1.msra.mxu0 0.0
    %6893 = vmatprep.subr.mxu0 0.0
    %6894 = vmatpush1.msra.mxu0 0.0
    %6895 = vmatprep.subr.mxu0 0.0
    %6896 = vmatpush1.msra.mxu0 0.0
    %6897 = vmatprep.subr.mxu0 0.0
    %6898 = vmatpush1.msra.mxu0 0.0
    %6899 = vmatprep.subr.mxu0 0.0
    %6900 = vmatpush1.msra.mxu0 0.0
    %6901 = vmatprep.subr.mxu0 0.0
    %6902 = vmatpush1.msra.mxu0 0.0
    %6903 = vmatprep.subr.mxu0 0.0
    %6904 = vmatpush1.msra.mxu0 0.0
    %6905 = vmatprep.subr.mxu0 0.0
    %6906 = vmatpush1.msra.mxu0 0.0
    %6907 = vmatprep.subr.mxu0 0.0
    %6908 = vmatpush1.msra.mxu0 0.0
    %6909 = vmatprep.subr.mxu0 0.0
    %6910 = vmatpush1.msra.mxu0 0.0
    %6911 = vmatprep.subr.mxu0 0.0
    %6912 = vmatpush1.msra.mxu0 0.0
    %6913 = vmatprep.subr.mxu0 0.0
    %6914 = vmatpush1.msra.mxu0 0.0
    %6915 = vmatprep.subr.mxu0 0.0
    %6916 = vmatpush1.msra.mxu0 0.0
    %6917 = vmatprep.subr.mxu0 0.0
    %6918 = vmatpush1.msra.mxu0 0.0
    %6919 = vmatprep.subr.mxu0 0.0
    %6920 = vmatpush1.msra.mxu0 0.0
    %6921 = vmatprep.subr.mxu0 0.0
    %6922 = vmatpush1.msra.mxu0 0.0
    %6923 = vmatprep.subr.mxu0 0.0
    %6924 = vmatpush1.msra.mxu0 0.0
    %6925 = vmatprep.subr.mxu0 0.0
    %6926 = vmatpush1.msra.mxu0 0.0
    %6927 = vmatprep.subr.mxu0 0.0
    %6928 = vmatpush1.msra.mxu0 0.0
    %6929 = vmatprep.subr.mxu0 0.0
    %6930 = vmatpush1.msra.mxu0 0.0
    %6931 = vmatprep.subr.mxu0 0.0
    %6932 = vmatpush1.msra.mxu0 0.0
    %6933 = vmatprep.subr.mxu0 0.0
    %6934 = vmatpush1.msra.mxu0 0.0
    %6935 = vmatprep.subr.mxu0 0.0
    %6936 = vmatpush1.msra.mxu0 0.0
    %6937 = vmatprep.subr.mxu0 0.0
    %6938 = vmatpush1.msra.mxu0 0.0
    %6939 = vmatprep.subr.mxu0 0.0
    %6940 = vmatpush1.msra.mxu0 0.0
    %6941 = vmatprep.subr.mxu0 0.0
    %6942 = vmatpush1.msra.mxu0 0.0
    %6943 = vmatprep.subr.mxu0 0.0
    %6944 = vmatpush1.msra.mxu0 0.0
    %6945 = vmatprep.subr.mxu0 0.0
    %6946 = vmatpush1.msra.mxu0 0.0
    %6947 = vmatprep.subr.mxu0 0.0
    %6948 = vmatpush1.msra.mxu0 0.0
    %6949 = vmatprep.mubr.f32.mxu0 0.0
    %v6950 = vand.u32 %v6702, 4294901760
    %v6951 = vsub.f32 %v6702, %v6950
    %6952 = vmatmul.mubr.f32.gmra.mrb[0].mxu0 %v6951
    %v6953 = vpop.f32.mrb[0].mxu0
    %v6954 = vadd.f32 %v6872, %v6953
    %v6955 = vpop.f32.mrb[0].mxu0
    %6956 = vmatprep.mubr.f32.mxu0 0.0
    %v6957 = vand.u32 %v6705, 4294901760
    %v6958 = vsub.f32 %v6705, %v6957
    %6959 = vmatmul.mubr.f32.gmra.mrb[0].mxu0 %v6958
    %v6960 = vpop.f32.mrb[0].mxu0
    %v6961 = vadd.f32 %v6878, %v6960
    %v6962 = vpop.f32.mrb[0].mxu0
    %6963 = vdwg.mxu0
    %6964 = vmatprep.subr.mxu0 0.0
    %v6965 = vand.u32 %v1151, 4294901760
    %6966 = vmatpush1.msra.mxu0 %v6965
    %6967 = vmatprep.subr.mxu0 0.0
    %v6968 = vand.u32 %v1157, 4294901760
    %6969 = vmatpush1.msra.mxu0 %v6968
    %6970 = vmatprep.subr.mxu0 0.0
    %6971 = vmatpush1.msra.mxu0 0.0
    %6972 = vmatprep.subr.mxu0 0.0
    %6973 = vmatpush1.msra.mxu0 0.0
    %6974 = vmatprep.subr.mxu0 0.0
    %6975 = vmatpush1.msra.mxu0 0.0
    %6976 = vmatprep.subr.mxu0 0.0
    %6977 = vmatpush1.msra.mxu0 0.0
    %6978 = vmatprep.subr.mxu0 0.0
    %6979 = vmatpush1.msra.mxu0 0.0
    %6980 = vmatprep.subr.mxu0 0.0
    %6981 = vmatpush1.msra.mxu0 0.0
    %6982 = vmatprep.subr.mxu0 0.0
    %6983 = vmatpush1.msra.mxu0 0.0
    %6984 = vmatprep.subr.mxu0 0.0
    %6985 = vmatpush1.msra.mxu0 0.0
    %6986 = vmatprep.subr.mxu0 0.0
    %6987 = vmatpush1.msra.mxu0 0.0
    %6988 = vmatprep.subr.mxu0 0.0
    %6989 = vmatpush1.msra.mxu0 0.0
    %6990 = vmatprep.subr.mxu0 0.0
    %6991 = vmatpush1.msra.mxu0 0.0
    %6992 = vmatprep.subr.mxu0 0.0
    %6993 = vmatpush1.msra.mxu0 0.0
    %6994 = vmatprep.subr.mxu0 0.0
    %6995 = vmatpush1.msra.mxu0 0.0
    %6996 = vmatprep.subr.mxu0 0.0
    %6997 = vmatpush1.msra.mxu0 0.0
    %6998 = vmatprep.subr.mxu0 0.0
    %6999 = vmatpush1.msra.mxu0 0.0
    %7000 = vmatprep.subr.mxu0 0.0
    %7001 = vmatpush1.msra.mxu0 0.0
    %7002 = vmatprep.subr.mxu0 0.0
    %7003 = vmatpush1.msra.mxu0 0.0
    %7004 = vmatprep.subr.mxu0 0.0
    %7005 = vmatpush1.msra.mxu0 0.0
    %7006 = vmatprep.subr.mxu0 0.0
    %7007 = vmatpush1.msra.mxu0 0.0
    %7008 = vmatprep.subr.mxu0 0.0
    %7009 = vmatpush1.msra.mxu0 0.0
    %7010 = vmatprep.subr.mxu0 0.0
    %7011 = vmatpush1.msra.mxu0 0.0
    %7012 = vmatprep.subr.mxu0 0.0
    %7013 = vmatpush1.msra.mxu0 0.0
    %7014 = vmatprep.subr.mxu0 0.0
    %7015 = vmatpush1.msra.mxu0 0.0
    %7016 = vmatprep.subr.mxu0 0.0
    %7017 = vmatpush1.msra.mxu0 0.0
    %7018 = vmatprep.subr.mxu0 0.0
    %7019 = vmatpush1.msra.mxu0 0.0
    %7020 = vmatprep.subr.mxu0 0.0
    %7021 = vmatpush1.msra.mxu0 0.0
    %7022 = vmatprep.subr.mxu0 0.0
    %7023 = vmatpush1.msra.mxu0 0.0
    %7024 = vmatprep.subr.mxu0 0.0
    %7025 = vmatpush1.msra.mxu0 0.0
    %7026 = vmatprep.subr.mxu0 0.0
    %7027 = vmatpush1.msra.mxu0 0.0
    %7028 = vmatprep.subr.mxu0 0.0
    %7029 = vmatpush1.msra.mxu0 0.0
    %7030 = vmatprep.mubr.f32.mxu0 0.0
    %v7031 = vand.u32 %v6702, 4294901760
    %v7032 = vsub.f32 %v6702, %v7031
    %v7033 = vand.u32 %v7032, 4294901760
    %7034 = vmatmul.mubr.f32.gmra.mrb[0].mxu0 %v7033
    %v7035 = vpop.f32.mrb[0].mxu0
    %v7036 = vadd.f32 %v6954, %v7035
    %v7037 = vpop.f32.mrb[0].mxu0
    %7038 = vmatprep.mubr.f32.mxu0 0.0
    %v7039 = vand.u32 %v6705, 4294901760
    %v7040 = vsub.f32 %v6705, %v7039
    %v7041 = vand.u32 %v7040, 4294901760
    %7042 = vmatmul.mubr.f32.gmra.mrb[0].mxu0 %v7041
    %v7043 = vpop.f32.mrb[0].mxu0
    %v7044 = vadd.f32 %v6961, %v7043
    %v7045 = vpop.f32.mrb[0].mxu0
    %7046 = vdwg.mxu0
    %7047 = vmatprep.subr.mxu0 0.0
    %v7048 = vand.u32 %v1151, 4294901760
    %v7049 = vsub.f32 %v1151, %v7048
    %v7050 = vand.u32 %v7049, 4294901760
    %7051 = vmatpush1.msra.mxu0 %v7050
    %7052 = vmatprep.subr.mxu0 0.0
    %v7053 = vand.u32 %v1157, 4294901760
    %v7054 = vsub.f32 %v1157, %v7053
    %v7055 = vand.u32 %v7054, 4294901760
    %7056 = vmatpush1.msra.mxu0 %v7055
    %7057 = vmatprep.subr.mxu0 0.0
    %7058 = vmatpush1.msra.mxu0 0.0
    %7059 = vmatprep.subr.mxu0 0.0
    %7060 = vmatpush1.msra.mxu0 0.0
    %7061 = vmatprep.subr.mxu0 0.0
    %7062 = vmatpush1.msra.mxu0 0.0
    %7063 = vmatprep.subr.mxu0 0.0
    %7064 = vmatpush1.msra.mxu0 0.0
    %7065 = vmatprep.subr.mxu0 0.0
    %7066 = vmatpush1.msra.mxu0 0.0
    %7067 = vmatprep.subr.mxu0 0.0
    %7068 = vmatpush1.msra.mxu0 0.0
    %7069 = vmatprep.subr.mxu0 0.0
    %7070 = vmatpush1.msra.mxu0 0.0
    %7071 = vmatprep.subr.mxu0 0.0
    %7072 = vmatpush1.msra.mxu0 0.0
    %7073 = vmatprep.subr.mxu0 0.0
    %7074 = vmatpush1.msra.mxu0 0.0
    %7075 = vmatprep.subr.mxu0 0.0
    %7076 = vmatpush1.msra.mxu0 0.0
    %7077 = vmatprep.subr.mxu0 0.0
    %7078 = vmatpush1.msra.mxu0 0.0
    %7079 = vmatprep.subr.mxu0 0.0
    %7080 = vmatpush1.msra.mxu0 0.0
    %7081 = vmatprep.subr.mxu0 0.0
    %7082 = vmatpush1.msra.mxu0 0.0
    %7083 = vmatprep.subr.mxu0 0.0
    %7084 = vmatpush1.msra.mxu0 0.0
    %7085 = vmatprep.subr.mxu0 0.0
    %7086 = vmatpush1.msra.mxu0 0.0
    %7087 = vmatprep.subr.mxu0 0.0
    %7088 = vmatpush1.msra.mxu0 0.0
    %7089 = vmatprep.subr.mxu0 0.0
    %7090 = vmatpush1.msra.mxu0 0.0
    %7091 = vmatprep.subr.mxu0 0.0
    %7092 = vmatpush1.msra.mxu0 0.0
    %7093 = vmatprep.subr.mxu0 0.0
    %7094 = vmatpush1.msra.mxu0 0.0
    %7095 = vmatprep.subr.mxu0 0.0
    %7096 = vmatpush1.msra.mxu0 0.0
    %7097 = vmatprep.subr.mxu0 0.0
    %7098 = vmatpush1.msra.mxu0 0.0
    %7099 = vmatprep.subr.mxu0 0.0
    %7100 = vmatpush1.msra.mxu0 0.0
    %7101 = vmatprep.subr.mxu0 0.0
    %7102 = vmatpush1.msra.mxu0 0.0
    %7103 = vmatprep.subr.mxu0 0.0
    %7104 = vmatpush1.msra.mxu0 0.0
    %7105 = vmatprep.subr.mxu0 0.0
    %7106 = vmatpush1.msra.mxu0 0.0
    %7107 = vmatprep.subr.mxu0 0.0
    %7108 = vmatpush1.msra.mxu0 0.0
    %7109 = vmatprep.subr.mxu0 0.0
    %7110 = vmatpush1.msra.mxu0 0.0
    %7111 = vmatprep.subr.mxu0 0.0
    %7112 = vmatpush1.msra.mxu0 0.0
    %7113 = vmatprep.subr.mxu0 0.0
    %7114 = vmatpush1.msra.mxu0 0.0
    %7115 = vmatprep.subr.mxu0 0.0
    %7116 = vmatpush1.msra.mxu0 0.0
    %7117 = vmatprep.mubr.f32.mxu0 0.0
    %v7118 = vand.u32 %v6702, 4294901760
    %7119 = vmatmul.mubr.f32.gmra.mrb[0].mxu0 %v7118
    %v7120 = vpop.f32.mrb[0].mxu0
    %v7121 = vadd.f32 %v7036, %v7120
    %v7122 = vpop.f32.mrb[0].mxu0
    %7123 = vmatprep.mubr.f32.mxu0 0.0
    %v7124 = vand.u32 %v6705, 4294901760
    %7125 = vmatmul.mubr.f32.gmra.mrb[0].mxu0 %v7124
    %v7126 = vpop.f32.mrb[0].mxu0
    %v7127 = vadd.f32 %v7044, %v7126
    %v7128 = vpop.f32.mrb[0].mxu0
    %7129 = vdwg.mxu0
    %7130 = vmatprep.subr.mxu0 0.0
    %v7131 = vand.u32 %v1151, 4294901760
    %7132 = vmatpush1.msra.mxu0 %v7131
    %7133 = vmatprep.subr.mxu0 0.0
    %v7134 = vand.u32 %v1157, 4294901760
    %7135 = vmatpush1.msra.mxu0 %v7134
    %7136 = vmatprep.subr.mxu0 0.0
    %7137 = vmatpush1.msra.mxu0 0.0
    %7138 = vmatprep.subr.mxu0 0.0
    %7139 = vmatpush1.msra.mxu0 0.0
    %7140 = vmatprep.subr.mxu0 0.0
    %7141 = vmatpush1.msra.mxu0 0.0
    %7142 = vmatprep.subr.mxu0 0.0
    %7143 = vmatpush1.msra.mxu0 0.0
    %7144 = vmatprep.subr.mxu0 0.0
    %7145 = vmatpush1.msra.mxu0 0.0
    %7146 = vmatprep.subr.mxu0 0.0
    %7147 = vmatpush1.msra.mxu0 0.0
    %7148 = vmatprep.subr.mxu0 0.0
    %7149 = vmatpush1.msra.mxu0 0.0
    %7150 = vmatprep.subr.mxu0 0.0
    %7151 = vmatpush1.msra.mxu0 0.0
    %7152 = vmatprep.subr.mxu0 0.0
    %7153 = vmatpush1.msra.mxu0 0.0
    %7154 = vmatprep.subr.mxu0 0.0
    %7155 = vmatpush1.msra.mxu0 0.0
    %7156 = vmatprep.subr.mxu0 0.0
    %7157 = vmatpush1.msra.mxu0 0.0
    %7158 = vmatprep.subr.mxu0 0.0
    %7159 = vmatpush1.msra.mxu0 0.0
    %7160 = vmatprep.subr.mxu0 0.0
    %7161 = vmatpush1.msra.mxu0 0.0
    %7162 = vmatprep.subr.mxu0 0.0
    %7163 = vmatpush1.msra.mxu0 0.0
    %7164 = vmatprep.subr.mxu0 0.0
    %7165 = vmatpush1.msra.mxu0 0.0
    %7166 = vmatprep.subr.mxu0 0.0
    %7167 = vmatpush1.msra.mxu0 0.0
    %7168 = vmatprep.subr.mxu0 0.0
    %7169 = vmatpush1.msra.mxu0 0.0
    %7170 = vmatprep.subr.mxu0 0.0
    %7171 = vmatpush1.msra.mxu0 0.0
    %7172 = vmatprep.subr.mxu0 0.0
    %7173 = vmatpush1.msra.mxu0 0.0
    %7174 = vmatprep.subr.mxu0 0.0
    %7175 = vmatpush1.msra.mxu0 0.0
    %7176 = vmatprep.subr.mxu0 0.0
    %7177 = vmatpush1.msra.mxu0 0.0
    %7178 = vmatprep.subr.mxu0 0.0
    %7179 = vmatpush1.msra.mxu0 0.0
    %7180 = vmatprep.subr.mxu0 0.0
    %7181 = vmatpush1.msra.mxu0 0.0
    %7182 = vmatprep.subr.mxu0 0.0
    %7183 = vmatpush1.msra.mxu0 0.0
    %7184 = vmatprep.subr.mxu0 0.0
    %7185 = vmatpush1.msra.mxu0 0.0
    %7186 = vmatprep.subr.mxu0 0.0
    %7187 = vmatpush1.msra.mxu0 0.0
    %7188 = vmatprep.subr.mxu0 0.0
    %7189 = vmatpush1.msra.mxu0 0.0
    %7190 = vmatprep.subr.mxu0 0.0
    %7191 = vmatpush1.msra.mxu0 0.0
    %7192 = vmatprep.subr.mxu0 0.0
    %7193 = vmatpush1.msra.mxu0 0.0
    %7194 = vmatprep.subr.mxu0 0.0
    %7195 = vmatpush1.msra.mxu0 0.0
    %7196 = vmatprep.mubr.f32.mxu0 0.0
    %v7197 = vand.u32 %v6702, 4294901760
    %7198 = vmatmul.mubr.f32.gmra.mrb[0].mxu0 %v7197
    %v7199 = vpop.f32.mrb[0].mxu0
    %v7200 = vadd.f32 %v7121, %v7199
    %v7201 = vpop.f32.mrb[0].mxu0
    %7202 = vmatprep.mubr.f32.mxu0 0.0
    %v7203 = vand.u32 %v6705, 4294901760
    %7204 = vmatmul.mubr.f32.gmra.mrb[0].mxu0 %v7203
    %v7205 = vpop.f32.mrb[0].mxu0
    %v7206 = vadd.f32 %v7127, %v7205
    %v7207 = vpop.f32.mrb[0].mxu0
    %7208 = vdwg.mxu0
    %v7210 = vsel %vm32, %v22, 0
    %v7213 = vsel %vm32, %v23, 0
    %v7216 = vsel %vm32, %v6693, 0
    %v7219 = vsel %vm32, %v6700, 0
    %7221 = vmatprep.subr.mxu0 0.0
    %v7222 = vand.u32 %v7216, 4294901760
    %7223 = vmatpush1.xpose.msra.mxu0 %v7222
    %7224 = vmatprep.subr.mxu0 0.0
    %v7225 = vand.u32 %v7219, 4294901760
    %7226 = vmatpush1.xpose.msra.mxu0 %v7225
    %7227 = vmatprep.subr.mxu0 0.0
    %7228 = vmatpush1.xpose.msra.mxu0 0.0
    %7229 = vmatprep.subr.mxu0 0.0
    %7230 = vmatpush1.xpose.msra.mxu0 0.0
    %7231 = vmatprep.subr.mxu0 0.0
    %7232 = vmatpush1.xpose.msra.mxu0 0.0
    %7233 = vmatprep.subr.mxu0 0.0
    %7234 = vmatpush1.xpose.msra.mxu0 0.0
    %7235 = vmatprep.subr.mxu0 0.0
    %7236 = vmatpush1.xpose.msra.mxu0 0.0
    %7237 = vmatprep.subr.mxu0 0.0
    %7238 = vmatpush1.xpose.msra.mxu0 0.0
    %7239 = vmatprep.subr.mxu0 0.0
    %7240 = vmatpush1.xpose.msra.mxu0 0.0
    %7241 = vmatprep.subr.mxu0 0.0
    %7242 = vmatpush1.xpose.msra.mxu0 0.0
    %7243 = vmatprep.subr.mxu0 0.0
    %7244 = vmatpush1.xpose.msra.mxu0 0.0
    %7245 = vmatprep.subr.mxu0 0.0
    %7246 = vmatpush1.xpose.msra.mxu0 0.0
    %7247 = vmatprep.subr.mxu0 0.0
    %7248 = vmatpush1.xpose.msra.mxu0 0.0
    %7249 = vmatprep.subr.mxu0 0.0
    %7250 = vmatpush1.xpose.msra.mxu0 0.0
    %7251 = vmatprep.subr.mxu0 0.0
    %7252 = vmatpush1.xpose.msra.mxu0 0.0
    %7253 = vmatprep.subr.mxu0 0.0
    %7254 = vmatpush1.xpose.msra.mxu0 0.0
    %7255 = vmatprep.subr.mxu0 0.0
    %7256 = vmatpush1.xpose.msra.mxu0 0.0
    %7257 = vmatprep.subr.mxu0 0.0
    %7258 = vmatpush1.xpose.msra.mxu0 0.0
    %7259 = vmatprep.subr.mxu0 0.0
    %7260 = vmatpush1.xpose.msra.mxu0 0.0
    %7261 = vmatprep.subr.mxu0 0.0
    %7262 = vmatpush1.xpose.msra.mxu0 0.0
    %7263 = vmatprep.subr.mxu0 0.0
    %7264 = vmatpush1.xpose.msra.mxu0 0.0
    %7265 = vmatprep.subr.mxu0 0.0
    %7266 = vmatpush1.xpose.msra.mxu0 0.0
    %7267 = vmatprep.subr.mxu0 0.0
    %7268 = vmatpush1.xpose.msra.mxu0 0.0
    %7269 = vmatprep.subr.mxu0 0.0
    %7270 = vmatpush1.xpose.msra.mxu0 0.0
    %7271 = vmatprep.subr.mxu0 0.0
    %7272 = vmatpush1.xpose.msra.mxu0 0.0
    %7273 = vmatprep.subr.mxu0 0.0
    %7274 = vmatpush1.xpose.msra.mxu0 0.0
    %7275 = vmatprep.subr.mxu0 0.0
    %7276 = vmatpush1.xpose.msra.mxu0 0.0
    %7277 = vmatprep.subr.mxu0 0.0
    %7278 = vmatpush1.xpose.msra.mxu0 0.0
    %7279 = vmatprep.subr.mxu0 0.0
    %7280 = vmatpush1.xpose.msra.mxu0 0.0
    %7281 = vmatprep.subr.mxu0 0.0
    %7282 = vmatpush1.xpose.msra.mxu0 0.0
    %7283 = vmatprep.subr.mxu0 0.0
    %7284 = vmatpush1.xpose.msra.mxu0 0.0
    %7285 = vmatprep.subr.mxu0 0.0
    %7286 = vmatpush1.xpose.msra.mxu0 0.0
    %7287 = vmatprep.mubr.f32.mxu0 0.0
    %v7288 = vand.u32 %v7210, 4294901760
    %v7289 = vsub.f32 %v7210, %v7288
    %v7290 = vand.u32 %v7289, 4294901760
    %v7291 = vsub.f32 %v7289, %v7290
    %v7292 = vand.u32 %v7291, 4294901760
    %7293 = vmatmul.mubr.f32.gmra.mrb[0].mxu0 %v7292
    %v7294 = vpop.f32.mrb[0].mxu0
    %v7295 = vadd.f32 %v7200, %v7294
    %v7296 = vpop.f32.mrb[0].mxu0
    %7297 = vmatprep.mubr.f32.mxu0 0.0
    %v7298 = vand.u32 %v7213, 4294901760
    %v7299 = vsub.f32 %v7213, %v7298
    %v7300 = vand.u32 %v7299, 4294901760
    %v7301 = vsub.f32 %v7299, %v7300
    %v7302 = vand.u32 %v7301, 4294901760
    %7303 = vmatmul.mubr.f32.gmra.mrb[0].mxu0 %v7302
    %v7304 = vpop.f32.mrb[0].mxu0
    %v7305 = vadd.f32 %v7206, %v7304
    %v7306 = vpop.f32.mrb[0].mxu0
    %7307 = vdwg.mxu0
    %7308 = vmatprep.subr.mxu0 0.0
    %v7309 = vand.u32 %v7216, 4294901760
    %v7310 = vsub.f32 %v7216, %v7309
    %v7311 = vand.u32 %v7310, 4294901760
    %v7312 = vsub.f32 %v7310, %v7311
    %v7313 = vand.u32 %v7312, 4294901760
    %7314 = vmatpush1.xpose.msra.mxu0 %v7313
    %7315 = vmatprep.subr.mxu0 0.0
    %v7316 = vand.u32 %v7219, 4294901760
    %v7317 = vsub.f32 %v7219, %v7316
    %v7318 = vand.u32 %v7317, 4294901760
    %v7319 = vsub.f32 %v7317, %v7318
    %v7320 = vand.u32 %v7319, 4294901760
    %7321 = vmatpush1.xpose.msra.mxu0 %v7320
    %7322 = vmatprep.subr.mxu0 0.0
    %7323 = vmatpush1.xpose.msra.mxu0 0.0
    %7324 = vmatprep.subr.mxu0 0.0
    %7325 = vmatpush1.xpose.msra.mxu0 0.0
    %7326 = vmatprep.subr.mxu0 0.0
    %7327 = vmatpush1.xpose.msra.mxu0 0.0
    %7328 = vmatprep.subr.mxu0 0.0
    %7329 = vmatpush1.xpose.msra.mxu0 0.0
    %7330 = vmatprep.subr.mxu0 0.0
    %7331 = vmatpush1.xpose.msra.mxu0 0.0
    %7332 = vmatprep.subr.mxu0 0.0
    %7333 = vmatpush1.xpose.msra.mxu0 0.0
    %7334 = vmatprep.subr.mxu0 0.0
    %7335 = vmatpush1.xpose.msra.mxu0 0.0
    %7336 = vmatprep.subr.mxu0 0.0
    %7337 = vmatpush1.xpose.msra.mxu0 0.0
    %7338 = vmatprep.subr.mxu0 0.0
    %7339 = vmatpush1.xpose.msra.mxu0 0.0
    %7340 = vmatprep.subr.mxu0 0.0
    %7341 = vmatpush1.xpose.msra.mxu0 0.0
    %7342 = vmatprep.subr.mxu0 0.0
    %7343 = vmatpush1.xpose.msra.mxu0 0.0
    %7344 = vmatprep.subr.mxu0 0.0
    %7345 = vmatpush1.xpose.msra.mxu0 0.0
    %7346 = vmatprep.subr.mxu0 0.0
    %7347 = vmatpush1.xpose.msra.mxu0 0.0
    %7348 = vmatprep.subr.mxu0 0.0
    %7349 = vmatpush1.xpose.msra.mxu0 0.0
    %7350 = vmatprep.subr.mxu0 0.0
    %7351 = vmatpush1.xpose.msra.mxu0 0.0
    %7352 = vmatprep.subr.mxu0 0.0
    %7353 = vmatpush1.xpose.msra.mxu0 0.0
    %7354 = vmatprep.subr.mxu0 0.0
    %7355 = vmatpush1.xpose.msra.mxu0 0.0
    %7356 = vmatprep.subr.mxu0 0.0
    %7357 = vmatpush1.xpose.msra.mxu0 0.0
    %7358 = vmatprep.subr.mxu0 0.0
    %7359 = vmatpush1.xpose.msra.mxu0 0.0
    %7360 = vmatprep.subr.mxu0 0.0
    %7361 = vmatpush1.xpose.msra.mxu0 0.0
    %7362 = vmatprep.subr.mxu0 0.0
    %7363 = vmatpush1.xpose.msra.mxu0 0.0
    %7364 = vmatprep.subr.mxu0 0.0
    %7365 = vmatpush1.xpose.msra.mxu0 0.0
    %7366 = vmatprep.subr.mxu0 0.0
    %7367 = vmatpush1.xpose.msra.mxu0 0.0
    %7368 = vmatprep.subr.mxu0 0.0
    %7369 = vmatpush1.xpose.msra.mxu0 0.0
    %7370 = vmatprep.subr.mxu0 0.0
    %7371 = vmatpush1.xpose.msra.mxu0 0.0
    %7372 = vmatprep.subr.mxu0 0.0
    %7373 = vmatpush1.xpose.msra.mxu0 0.0
    %7374 = vmatprep.subr.mxu0 0.0
    %7375 = vmatpush1.xpose.msra.mxu0 0.0
    %7376 = vmatprep.subr.mxu0 0.0
    %7377 = vmatpush1.xpose.msra.mxu0 0.0
    %7378 = vmatprep.subr.mxu0 0.0
    %7379 = vmatpush1.xpose.msra.mxu0 0.0
    %7380 = vmatprep.subr.mxu0 0.0
    %7381 = vmatpush1.xpose.msra.mxu0 0.0
    %7382 = vmatprep.mubr.f32.mxu0 0.0
    %v7383 = vand.u32 %v7210, 4294901760
    %7384 = vmatmul.mubr.f32.gmra.mrb[0].mxu0 %v7383
    %v7385 = vpop.f32.mrb[0].mxu0
    %v7386 = vadd.f32 %v7295, %v7385
    %v7387 = vpop.f32.mrb[0].mxu0
    %7388 = vmatprep.mubr.f32.mxu0 0.0
    %v7389 = vand.u32 %v7213, 4294901760
    %7390 = vmatmul.mubr.f32.gmra.mrb[0].mxu0 %v7389
    %v7391 = vpop.f32.mrb[0].mxu0
    %v7392 = vadd.f32 %v7305, %v7391
    %v7393 = vpop.f32.mrb[0].mxu0
    %7394 = vdwg.mxu0
    %7395 = vmatprep.subr.mxu0 0.0
    %v7396 = vand.u32 %v7216, 4294901760
    %v7397 = vsub.f32 %v7216, %v7396
    %7398 = vmatpush1.xpose.msra.mxu0 %v7397
    %7399 = vmatprep.subr.mxu0 0.0
    %v7400 = vand.u32 %v7219, 4294901760
    %v7401 = vsub.f32 %v7219, %v7400
    %7402 = vmatpush1.xpose.msra.mxu0 %v7401
    %7403 = vmatprep.subr.mxu0 0.0
    %7404 = vmatpush1.xpose.msra.mxu0 0.0
    %7405 = vmatprep.subr.mxu0 0.0
    %7406 = vmatpush1.xpose.msra.mxu0 0.0
    %7407 = vmatprep.subr.mxu0 0.0
    %7408 = vmatpush1.xpose.msra.mxu0 0.0
    %7409 = vmatprep.subr.mxu0 0.0
    %7410 = vmatpush1.xpose.msra.mxu0 0.0
    %7411 = vmatprep.subr.mxu0 0.0
    %7412 = vmatpush1.xpose.msra.mxu0 0.0
    %7413 = vmatprep.subr.mxu0 0.0
    %7414 = vmatpush1.xpose.msra.mxu0 0.0
    %7415 = vmatprep.subr.mxu0 0.0
    %7416 = vmatpush1.xpose.msra.mxu0 0.0
    %7417 = vmatprep.subr.mxu0 0.0
    %7418 = vmatpush1.xpose.msra.mxu0 0.0
    %7419 = vmatprep.subr.mxu0 0.0
    %7420 = vmatpush1.xpose.msra.mxu0 0.0
    %7421 = vmatprep.subr.mxu0 0.0
    %7422 = vmatpush1.xpose.msra.mxu0 0.0
    %7423 = vmatprep.subr.mxu0 0.0
    %7424 = vmatpush1.xpose.msra.mxu0 0.0
    %7425 = vmatprep.subr.mxu0 0.0
    %7426 = vmatpush1.xpose.msra.mxu0 0.0
    %7427 = vmatprep.subr.mxu0 0.0
    %7428 = vmatpush1.xpose.msra.mxu0 0.0
    %7429 = vmatprep.subr.mxu0 0.0
    %7430 = vmatpush1.xpose.msra.mxu0 0.0
    %7431 = vmatprep.subr.mxu0 0.0
    %7432 = vmatpush1.xpose.msra.mxu0 0.0
    %7433 = vmatprep.subr.mxu0 0.0
    %7434 = vmatpush1.xpose.msra.mxu0 0.0
    %7435 = vmatprep.subr.mxu0 0.0
    %7436 = vmatpush1.xpose.msra.mxu0 0.0
    %7437 = vmatprep.subr.mxu0 0.0
    %7438 = vmatpush1.xpose.msra.mxu0 0.0
    %7439 = vmatprep.subr.mxu0 0.0
    %7440 = vmatpush1.xpose.msra.mxu0 0.0
    %7441 = vmatprep.subr.mxu0 0.0
    %7442 = vmatpush1.xpose.msra.mxu0 0.0
    %7443 = vmatprep.subr.mxu0 0.0
    %7444 = vmatpush1.xpose.msra.mxu0 0.0
    %7445 = vmatprep.subr.mxu0 0.0
    %7446 = vmatpush1.xpose.msra.mxu0 0.0
    %7447 = vmatprep.subr.mxu0 0.0
    %7448 = vmatpush1.xpose.msra.mxu0 0.0
    %7449 = vmatprep.subr.mxu0 0.0
    %7450 = vmatpush1.xpose.msra.mxu0 0.0
    %7451 = vmatprep.subr.mxu0 0.0
    %7452 = vmatpush1.xpose.msra.mxu0 0.0
    %7453 = vmatprep.subr.mxu0 0.0
    %7454 = vmatpush1.xpose.msra.mxu0 0.0
    %7455 = vmatprep.subr.mxu0 0.0
    %7456 = vmatpush1.xpose.msra.mxu0 0.0
    %7457 = vmatprep.subr.mxu0 0.0
    %7458 = vmatpush1.xpose.msra.mxu0 0.0
    %7459 = vmatprep.subr.mxu0 0.0
    %7460 = vmatpush1.xpose.msra.mxu0 0.0
    %7461 = vmatprep.subr.mxu0 0.0
    %7462 = vmatpush1.xpose.msra.mxu0 0.0
    %7463 = vmatprep.mubr.f32.mxu0 0.0
    %v7464 = vand.u32 %v7210, 4294901760
    %v7465 = vsub.f32 %v7210, %v7464
    %7466 = vmatmul.mubr.f32.gmra.mrb[0].mxu0 %v7465
    %v7467 = vpop.f32.mrb[0].mxu0
    %v7468 = vadd.f32 %v7386, %v7467
    %v7469 = vpop.f32.mrb[0].mxu0
    %7470 = vmatprep.mubr.f32.mxu0 0.0
    %v7471 = vand.u32 %v7213, 4294901760
    %v7472 = vsub.f32 %v7213, %v7471
    %7473 = vmatmul.mubr.f32.gmra.mrb[0].mxu0 %v7472
    %v7474 = vpop.f32.mrb[0].mxu0
    %v7475 = vadd.f32 %v7392, %v7474
    %v7476 = vpop.f32.mrb[0].mxu0
    %7477 = vdwg.mxu0
    %7478 = vmatprep.subr.mxu0 0.0
    %v7479 = vand.u32 %v7216, 4294901760
    %7480 = vmatpush1.xpose.msra.mxu0 %v7479
    %7481 = vmatprep.subr.mxu0 0.0
    %v7482 = vand.u32 %v7219, 4294901760
    %7483 = vmatpush1.xpose.msra.mxu0 %v7482
    %7484 = vmatprep.subr.mxu0 0.0
    %7485 = vmatpush1.xpose.msra.mxu0 0.0
    %7486 = vmatprep.subr.mxu0 0.0
    %7487 = vmatpush1.xpose.msra.mxu0 0.0
    %7488 = vmatprep.subr.mxu0 0.0
    %7489 = vmatpush1.xpose.msra.mxu0 0.0
    %7490 = vmatprep.subr.mxu0 0.0
    %7491 = vmatpush1.xpose.msra.mxu0 0.0
    %7492 = vmatprep.subr.mxu0 0.0
    %7493 = vmatpush1.xpose.msra.mxu0 0.0
    %7494 = vmatprep.subr.mxu0 0.0
    %7495 = vmatpush1.xpose.msra.mxu0 0.0
    %7496 = vmatprep.subr.mxu0 0.0
    %7497 = vmatpush1.xpose.msra.mxu0 0.0
    %7498 = vmatprep.subr.mxu0 0.0
    %7499 = vmatpush1.xpose.msra.mxu0 0.0
    %7500 = vmatprep.subr.mxu0 0.0
    %7501 = vmatpush1.xpose.msra.mxu0 0.0
    %7502 = vmatprep.subr.mxu0 0.0
    %7503 = vmatpush1.xpose.msra.mxu0 0.0
    %7504 = vmatprep.subr.mxu0 0.0
    %7505 = vmatpush1.xpose.msra.mxu0 0.0
    %7506 = vmatprep.subr.mxu0 0.0
    %7507 = vmatpush1.xpose.msra.mxu0 0.0
    %7508 = vmatprep.subr.mxu0 0.0
    %7509 = vmatpush1.xpose.msra.mxu0 0.0
    %7510 = vmatprep.subr.mxu0 0.0
    %7511 = vmatpush1.xpose.msra.mxu0 0.0
    %7512 = vmatprep.subr.mxu0 0.0
    %7513 = vmatpush1.xpose.msra.mxu0 0.0
    %7514 = vmatprep.subr.mxu0 0.0
    %7515 = vmatpush1.xpose.msra.mxu0 0.0
    %7516 = vmatprep.subr.mxu0 0.0
    %7517 = vmatpush1.xpose.msra.mxu0 0.0
    %7518 = vmatprep.subr.mxu0 0.0
    %7519 = vmatpush1.xpose.msra.mxu0 0.0
    %7520 = vmatprep.subr.mxu0 0.0
    %7521 = vmatpush1.xpose.msra.mxu0 0.0
    %7522 = vmatprep.subr.mxu0 0.0
    %7523 = vmatpush1.xpose.msra.mxu0 0.0
    %7524 = vmatprep.subr.mxu0 0.0
    %7525 = vmatpush1.xpose.msra.mxu0 0.0
    %7526 = vmatprep.subr.mxu0 0.0
    %7527 = vmatpush1.xpose.msra.mxu0 0.0
    %7528 = vmatprep.subr.mxu0 0.0
    %7529 = vmatpush1.xpose.msra.mxu0 0.0
    %7530 = vmatprep.subr.mxu0 0.0
    %7531 = vmatpush1.xpose.msra.mxu0 0.0
    %7532 = vmatprep.subr.mxu0 0.0
    %7533 = vmatpush1.xpose.msra.mxu0 0.0
    %7534 = vmatprep.subr.mxu0 0.0
    %7535 = vmatpush1.xpose.msra.mxu0 0.0
    %7536 = vmatprep.subr.mxu0 0.0
    %7537 = vmatpush1.xpose.msra.mxu0 0.0
    %7538 = vmatprep.subr.mxu0 0.0
    %7539 = vmatpush1.xpose.msra.mxu0 0.0
    %7540 = vmatprep.subr.mxu0 0.0
    %7541 = vmatpush1.xpose.msra.mxu0 0.0
    %7542 = vmatprep.subr.mxu0 0.0
    %7543 = vmatpush1.xpose.msra.mxu0 0.0
    %7544 = vmatprep.mubr.f32.mxu0 0.0
    %v7545 = vand.u32 %v7210, 4294901760
    %v7546 = vsub.f32 %v7210, %v7545
    %v7547 = vand.u32 %v7546, 4294901760
    %7548 = vmatmul.mubr.f32.gmra.mrb[0].mxu0 %v7547
    %v7549 = vpop.f32.mrb[0].mxu0
    %v7550 = vadd.f32 %v7468, %v7549
    %v7551 = vpop.f32.mrb[0].mxu0
    %7552 = vmatprep.mubr.f32.mxu0 0.0
    %v7553 = vand.u32 %v7213, 4294901760
    %v7554 = vsub.f32 %v7213, %v7553
    %v7555 = vand.u32 %v7554, 4294901760
    %7556 = vmatmul.mubr.f32.gmra.mrb[0].mxu0 %v7555
    %v7557 = vpop.f32.mrb[0].mxu0
    %v7558 = vadd.f32 %v7475, %v7557
    %v7559 = vpop.f32.mrb[0].mxu0
    %7560 = vdwg.mxu0
    %7561 = vmatprep.subr.mxu0 0.0
    %v7562 = vand.u32 %v7216, 4294901760
    %v7563 = vsub.f32 %v7216, %v7562
    %v7564 = vand.u32 %v7563, 4294901760
    %7565 = vmatpush1.xpose.msra.mxu0 %v7564
    %7566 = vmatprep.subr.mxu0 0.0
    %v7567 = vand.u32 %v7219, 4294901760
    %v7568 = vsub.f32 %v7219, %v7567
    %v7569 = vand.u32 %v7568, 4294901760
    %7570 = vmatpush1.xpose.msra.mxu0 %v7569
    %7571 = vmatprep.subr.mxu0 0.0
    %7572 = vmatpush1.xpose.msra.mxu0 0.0
    %7573 = vmatprep.subr.mxu0 0.0
    %7574 = vmatpush1.xpose.msra.mxu0 0.0
    %7575 = vmatprep.subr.mxu0 0.0
    %7576 = vmatpush1.xpose.msra.mxu0 0.0
    %7577 = vmatprep.subr.mxu0 0.0
    %7578 = vmatpush1.xpose.msra.mxu0 0.0
    %7579 = vmatprep.subr.mxu0 0.0
    %7580 = vmatpush1.xpose.msra.mxu0 0.0
    %7581 = vmatprep.subr.mxu0 0.0
    %7582 = vmatpush1.xpose.msra.mxu0 0.0
    %7583 = vmatprep.subr.mxu0 0.0
    %7584 = vmatpush1.xpose.msra.mxu0 0.0
    %7585 = vmatprep.subr.mxu0 0.0
    %7586 = vmatpush1.xpose.msra.mxu0 0.0
    %7587 = vmatprep.subr.mxu0 0.0
    %7588 = vmatpush1.xpose.msra.mxu0 0.0
    %7589 = vmatprep.subr.mxu0 0.0
    %7590 = vmatpush1.xpose.msra.mxu0 0.0
    %7591 = vmatprep.subr.mxu0 0.0
    %7592 = vmatpush1.xpose.msra.mxu0 0.0
    %7593 = vmatprep.subr.mxu0 0.0
    %7594 = vmatpush1.xpose.msra.mxu0 0.0
    %7595 = vmatprep.subr.mxu0 0.0
    %7596 = vmatpush1.xpose.msra.mxu0 0.0
    %7597 = vmatprep.subr.mxu0 0.0
    %7598 = vmatpush1.xpose.msra.mxu0 0.0
    %7599 = vmatprep.subr.mxu0 0.0
    %7600 = vmatpush1.xpose.msra.mxu0 0.0
    %7601 = vmatprep.subr.mxu0 0.0
    %7602 = vmatpush1.xpose.msra.mxu0 0.0
    %7603 = vmatprep.subr.mxu0 0.0
    %7604 = vmatpush1.xpose.msra.mxu0 0.0
    %7605 = vmatprep.subr.mxu0 0.0
    %7606 = vmatpush1.xpose.msra.mxu0 0.0
    %7607 = vmatprep.subr.mxu0 0.0
    %7608 = vmatpush1.xpose.msra.mxu0 0.0
    %7609 = vmatprep.subr.mxu0 0.0
    %7610 = vmatpush1.xpose.msra.mxu0 0.0
    %7611 = vmatprep.subr.mxu0 0.0
    %7612 = vmatpush1.xpose.msra.mxu0 0.0
    %7613 = vmatprep.subr.mxu0 0.0
    %7614 = vmatpush1.xpose.msra.mxu0 0.0
    %7615 = vmatprep.subr.mxu0 0.0
    %7616 = vmatpush1.xpose.msra.mxu0 0.0
    %7617 = vmatprep.subr.mxu0 0.0
    %7618 = vmatpush1.xpose.msra.mxu0 0.0
    %7619 = vmatprep.subr.mxu0 0.0
    %7620 = vmatpush1.xpose.msra.mxu0 0.0
    %7621 = vmatprep.subr.mxu0 0.0
    %7622 = vmatpush1.xpose.msra.mxu0 0.0
    %7623 = vmatprep.subr.mxu0 0.0
    %7624 = vmatpush1.xpose.msra.mxu0 0.0
    %7625 = vmatprep.subr.mxu0 0.0
    %7626 = vmatpush1.xpose.msra.mxu0 0.0
    %7627 = vmatprep.subr.mxu0 0.0
    %7628 = vmatpush1.xpose.msra.mxu0 0.0
    %7629 = vmatprep.subr.mxu0 0.0
    %7630 = vmatpush1.xpose.msra.mxu0 0.0
    %7631 = vmatprep.mubr.f32.mxu0 0.0
    %v7632 = vand.u32 %v7210, 4294901760
    %7633 = vmatmul.mubr.f32.gmra.mrb[0].mxu0 %v7632
    %v7634 = vpop.f32.mrb[0].mxu0
    %v7635 = vadd.f32 %v7550, %v7634
    %v7636 = vpop.f32.mrb[0].mxu0
    %7637 = vmatprep.mubr.f32.mxu0 0.0
    %v7638 = vand.u32 %v7213, 4294901760
    %7639 = vmatmul.mubr.f32.gmra.mrb[0].mxu0 %v7638
    %v7640 = vpop.f32.mrb[0].mxu0
    %v7641 = vadd.f32 %v7558, %v7640
    %v7642 = vpop.f32.mrb[0].mxu0
    %7643 = vdwg.mxu0
    %7644 = vmatprep.subr.mxu0 0.0
    %v7645 = vand.u32 %v7216, 4294901760
    %7646 = vmatpush1.xpose.msra.mxu0 %v7645
    %7647 = vmatprep.subr.mxu0 0.0
    %v7648 = vand.u32 %v7219, 4294901760
    %7649 = vmatpush1.xpose.msra.mxu0 %v7648
    %7650 = vmatprep.subr.mxu0 0.0
    %7651 = vmatpush1.xpose.msra.mxu0 0.0
    %7652 = vmatprep.subr.mxu0 0.0
    %7653 = vmatpush1.xpose.msra.mxu0 0.0
    %7654 = vmatprep.subr.mxu0 0.0
    %7655 = vmatpush1.xpose.msra.mxu0 0.0
    %7656 = vmatprep.subr.mxu0 0.0
    %7657 = vmatpush1.xpose.msra.mxu0 0.0
    %7658 = vmatprep.subr.mxu0 0.0
    %7659 = vmatpush1.xpose.msra.mxu0 0.0
    %7660 = vmatprep.subr.mxu0 0.0
    %7661 = vmatpush1.xpose.msra.mxu0 0.0
    %7662 = vmatprep.subr.mxu0 0.0
    %7663 = vmatpush1.xpose.msra.mxu0 0.0
    %7664 = vmatprep.subr.mxu0 0.0
    %7665 = vmatpush1.xpose.msra.mxu0 0.0
    %7666 = vmatprep.subr.mxu0 0.0
    %7667 = vmatpush1.xpose.msra.mxu0 0.0
    %7668 = vmatprep.subr.mxu0 0.0
    %7669 = vmatpush1.xpose.msra.mxu0 0.0
    %7670 = vmatprep.subr.mxu0 0.0
    %7671 = vmatpush1.xpose.msra.mxu0 0.0
    %7672 = vmatprep.subr.mxu0 0.0
    %7673 = vmatpush1.xpose.msra.mxu0 0.0
    %7674 = vmatprep.subr.mxu0 0.0
    %7675 = vmatpush1.xpose.msra.mxu0 0.0
    %7676 = vmatprep.subr.mxu0 0.0
    %7677 = vmatpush1.xpose.msra.mxu0 0.0
    %7678 = vmatprep.subr.mxu0 0.0
    %7679 = vmatpush1.xpose.msra.mxu0 0.0
    %7680 = vmatprep.subr.mxu0 0.0
    %7681 = vmatpush1.xpose.msra.mxu0 0.0
    %7682 = vmatprep.subr.mxu0 0.0
    %7683 = vmatpush1.xpose.msra.mxu0 0.0
    %7684 = vmatprep.subr.mxu0 0.0
    %7685 = vmatpush1.xpose.msra.mxu0 0.0
    %7686 = vmatprep.subr.mxu0 0.0
    %7687 = vmatpush1.xpose.msra.mxu0 0.0
    %7688 = vmatprep.subr.mxu0 0.0
    %7689 = vmatpush1.xpose.msra.mxu0 0.0
    %7690 = vmatprep.subr.mxu0 0.0
    %7691 = vmatpush1.xpose.msra.mxu0 0.0
    %7692 = vmatprep.subr.mxu0 0.0
    %7693 = vmatpush1.xpose.msra.mxu0 0.0
    %7694 = vmatprep.subr.mxu0 0.0
    %7695 = vmatpush1.xpose.msra.mxu0 0.0
    %7696 = vmatprep.subr.mxu0 0.0
    %7697 = vmatpush1.xpose.msra.mxu0 0.0
    %7698 = vmatprep.subr.mxu0 0.0
    %7699 = vmatpush1.xpose.msra.mxu0 0.0
    %7700 = vmatprep.subr.mxu0 0.0
    %7701 = vmatpush1.xpose.msra.mxu0 0.0
    %7702 = vmatprep.subr.mxu0 0.0
    %7703 = vmatpush1.xpose.msra.mxu0 0.0
    %7704 = vmatprep.subr.mxu0 0.0
    %7705 = vmatpush1.xpose.msra.mxu0 0.0
    %7706 = vmatprep.subr.mxu0 0.0
    %7707 = vmatpush1.xpose.msra.mxu0 0.0
    %7708 = vmatprep.subr.mxu0 0.0
    %7709 = vmatpush1.xpose.msra.mxu0 0.0
    %7710 = vmatprep.mubr.f32.mxu0 0.0
    %v7711 = vand.u32 %v7210, 4294901760
    %7712 = vmatmul.mubr.f32.gmra.mrb[0].mxu0 %v7711
    %v7713 = vpop.f32.mrb[0].mxu0
    %v7714 = vadd.f32 %v7635, %v7713
    %v7715 = vpop.f32.mrb[0].mxu0
    %7716 = vmatprep.mubr.f32.mxu0 0.0
    %v7717 = vand.u32 %v7213, 4294901760
    %7718 = vmatmul.mubr.f32.gmra.mrb[0].mxu0 %v7717
    %v7719 = vpop.f32.mrb[0].mxu0
    %v7720 = vadd.f32 %v7641, %v7719
    %v7721 = vpop.f32.mrb[0].mxu0
    %7722 = vdwg.mxu0
    %7723 = vset.pattern.permute.xlu0 1
    %7724 = vperm.xlu0 %7723, %v28
    %v7725 = vpop.permute.xlu0 %7724
    %7727 = vset.pattern.permute.xlu0 1
    %7728 = vperm.xlu0 %7727, %v29
    %v7729 = vpop.permute.xlu0 %7728
    %v7731 = vadd.f32 %v7714, %v7725
    %v7732 = vadd.f32 %v7720, %v7729
    %v7733 = vadd.f32 %v7731, %v538
    %v7734 = vadd.f32 %v7732, %v544
    %v7735 = vsel %vm32, %v7733, 0.0
    %v7736 = vsel %vm32, %v7734, 0.0
    %v7737 = vadd.f32 %v7735, %v7736
    %v7738 = vrot.slane %v7737, 4
    %v7739 = vadd.f32 %v7737, %v7738
    %v7740 = vrot.slane %v7739, 2
    %v7741 = vadd.f32 %v7739, %v7740
    %v7742 = vrot.slane %v7741, 1
    %v7743 = vadd.f32 %v7741, %v7742
    %v7744 = vrcp.pop 16.0
    %v7745 = vmul.f32 %v7743, %v7744
    %v7746 = vsub.f32 %v7733, %v7745
    %v7747 = vsub.f32 %v7734, %v7745
    %v7748 = vmul.f32 %v7746, %v7746
    %v7749 = vmul.f32 %v7747, %v7747
    %v7750 = vsel %vm32, %v7748, 0.0
    %v7751 = vsel %vm32, %v7749, 0.0
    %v7752 = vadd.f32 %v7750, %v7751
    %v7753 = vrot.slane %v7752, 4
    %v7754 = vadd.f32 %v7752, %v7753
    %v7755 = vrot.slane %v7754, 2
    %v7756 = vadd.f32 %v7754, %v7755
    %v7757 = vrot.slane %v7756, 1
    %v7758 = vadd.f32 %v7756, %v7757
    %v7759 = vmul.f32 %v7758, %v7744
    %v7760 = vadd.f32 %v7759, 1e-05
    %v7761 = vrsqrt.pop %v7760
    %v7762 = vmul.f32 %v7760, %v7761
    %vm7763 = vcmp.eq.f32.partialorder %v7760, inf
    %v7764 = vsel %vm7763, %v7760, %v7762
    %vm7765 = vcmp.eq.f32.partialorder %v7760, 0.0
    %v7766 = vand.u32 %v7760, 2147483648
    %v7767 = vsel %vm7765, %v7766, %v7764
    %v7768 = vrcp.pop %v7767
    %v7769 = vmul.f32 %v7746, %v7768
    %v7770 = vmul.f32 %v7747, %v7768
    %7771 = vset.pattern.permute.xlu0 2
    %7772 = vperm.xlu0 %7771, %v28
    %v7773 = vpop.permute.xlu0 %7772
    %7775 = vset.pattern.permute.xlu0 2
    %7776 = vperm.xlu0 %7775, %v29
    %v7777 = vpop.permute.xlu0 %7776
    %v7779 = vmul.f32 %v7769, %v7773
    %v7780 = vmul.f32 %v7770, %v7777
    %7781 = vset.pattern.permute.xlu0 3
    %7782 = vperm.xlu0 %7781, %v28
    %v7783 = vpop.permute.xlu0 %7782
    %7785 = vset.pattern.permute.xlu0 3
    %7786 = vperm.xlu0 %7785, %v29
    %v7787 = vpop.permute.xlu0 %7786
    %v7789 = vadd.f32 %v7779, %v7783
    %v7790 = vadd.f32 %v7780, %v7787
    %7791 = vst.msk [vmem:[#allocation2] sm:$0xff] %vm32, %v7789
    %7792 = vst.msk [vmem:[#allocation2 + $0x8] sm:$0xff] %vm32, %v7790
    // Predicated region
    $region10: #{ssm_block_forward.1} parent=1 // pred_check
      _
    $region11: #{ssm_block_forward.1} parent=1 // pred_check_branch
      %7794 = sbr.rel (0) target = $region13
    $region12: #{ssm_block_forward.1} parent=1 // pred_region
      %s7796 = ssub.s32 256, 256
      %7797 = vsyncadd [#allocation3], %s7796
      %s7798 = sshll.u32 [#allocation2], 4
      %s7799 = int_to_ptr.vmem [resolvable:$true] %s7798
      %7804 = dma.vmem_to_hbm [thread:$0]  %s7799, 256, %s2, [#allocation3], 128, 128, 8
    $region13: #{ssm_block_forward.1} parent=1 // pred_fallthru
      _
    // Predicated region
    $region14: #{ssm_block_forward.1} parent=1 // pred_check
      _
    $region15: #{ssm_block_forward.1} parent=1 // pred_check_branch
      %7806 = sbr.rel (0) target = $region17
    $region16: #{ssm_block_forward.1} parent=1 // pred_region
      %7807 = dma.done [#allocation3], 256
    $region17: #{ssm_block_forward.1} parent=1 // pred_fallthru
      _
    %7808 = vsyncpa [#allocation3], 1

</llo_original>
